<compile_context>
chip_gen: v7x
topology: tpu7x:2x2x1
jax: 0.10.0
libtpu: 0.0.40
codegen_flags: <defaults>
</compile_context>

<pallas_src>
import functools
import math

import jax
import jax.numpy as jnp
import numpy as np
from jax.experimental import pallas as pl
from jax.experimental.pallas import tpu as pltpu

LANE = 128


def _round_up(x, m):
    return (x + m - 1) // m * m


def _make_qpr_kernel(tb, k_pad, d_in, d_out_pad, rb):
    """Kernel: one fused bf16 matmul + lane-aligned broadcast-multiply-sum."""
    n_rb = tb // rb

    def kernel(x_ref, w_ref, b_ref, o_ref):
        # x_ref: (tb, k_pad)              f32   [x | 1 | 0pad]
        # w_ref: (k_pad, d_in*d_out_pad)  bf16  fused cross/linear/square weight
        # b_ref: (1, d_out_pad)           f32   b_lin + b_cross + b_sq (padded)
        # o_ref: (tb, d_out_pad)          bf16
        x = x_ref[...]                                      # keep VPU work in f32
        # Single MXU call: every per-i "partial" column block in one pass.
        y = jnp.dot(x.astype(jnp.bfloat16), w_ref[...],
                    preferred_element_type=jnp.float32)     # (tb, d_in*d_out_pad) f32
        bias_b = jnp.broadcast_to(b_ref[...], (rb, d_out_pad))   # hoisted once

        # Row-blocked epilogue keeps the live accumulator small (rb x 128) and
        # every slice of y below is a (8,128)-aligned vreg view (no relayout).
        for r in range(n_rb):
            r0 = r * rb
            xr = x[r0:r0 + rb, :]                           # (rb, k_pad) f32
            acc = bias_b
            for i in range(d_in):
                acc = acc + xr[:, i:i + 1] * y[r0:r0 + rb,
                                               i * d_out_pad:(i + 1) * d_out_pad]
            o_ref[r0:r0 + rb, :] = acc.astype(o_ref.dtype)

    return kernel


@functools.partial(jax.jit, static_argnames=("d_in", "d_out", "tb"))
def qpr_forward(x, w_big, bias, *, d_in, d_out, tb=None):
    B = x.shape[0]
    k_pad = w_big.shape[0]
    d_out_pad = bias.shape[1]
    assert w_big.shape[1] == d_in * d_out_pad

    if tb is None:
        tb = min(512, _round_up(B, 16))    # grid=(1,) at small B; parallel steps at large B
    B_pad = _round_up(B, tb)
    rb = 64 if (tb % 64 == 0) else tb      # row block for the epilogue (multiple of 16)

    # Augmented, zero-padded input: [x | 1 | 0...]; pad rows contribute nothing.
    xp = jnp.zeros((B_pad, k_pad), jnp.float32)
    xp = xp.at[:B, :d_in].set(x.astype(jnp.float32))
    xp = xp.at[:B, d_in].set(1.0)

    kernel = _make_qpr_kernel(tb, k_pad, d_in, d_out_pad, rb)
    n_bt = B_pad // tb

    flops = 2 * B_pad * k_pad * d_in * d_out_pad + 3 * B_pad * d_in * d_out_pad
    bytes_accessed = (B_pad * k_pad * 4 + k_pad * d_in * d_out_pad * 2
                      + d_out_pad * 4 + B_pad * d_out_pad * 2)

    # Per-step VMEM need (double-buffered in/out + the y intermediate).
    need = (2 * tb * k_pad * 4
            + 2 * k_pad * d_in * d_out_pad * 2
            + 2 * d_out_pad * 4
            + 2 * tb * d_out_pad * 2
            + tb * d_in * d_out_pad * 4)
    try:
        cap = int(pltpu.get_tpu_info().vmem_capacity_bytes)
    except Exception:
        cap = 64 * 1024 * 1024             # conservative (v7x per-TC capacity)
    vmem_limit = int(min(cap - 2 * 1024 * 1024, max(32 * 1024 * 1024, 2 * need)))

    out = pl.pallas_call(
        kernel,
        out_shape=jax.ShapeDtypeStruct((B_pad, d_out_pad), jnp.bfloat16),
        grid=(n_bt,),
        in_specs=[
            pl.BlockSpec((tb, k_pad), lambda i: (i, 0)),
            pl.BlockSpec((k_pad, d_in * d_out_pad), lambda i: (0, 0)),
            pl.BlockSpec((1, d_out_pad), lambda i: (0, 0)),
        ],
        out_specs=pl.BlockSpec((tb, d_out_pad), lambda i: (i, 0)),
        compiler_params=pltpu.CompilerParams(
            dimension_semantics=("parallel",),
            vmem_limit_bytes=vmem_limit,
        ),
        cost_estimate=pl.CostEstimate(
            flops=int(flops), transcendentals=0, bytes_accessed=int(bytes_accessed)),
    )(xp, w_big, bias)

    # Slice away batch/out padding inside jit (no padded data shipped to host).
    return out[:B, :d_out]


def make_params(key, d_in, d_out):
    """Deterministic synthetic parameters matching the torch module's shapes."""
    num_cross = d_in * (d_in - 1) // 2      # sampling=1 -> sampling_len = d_in
    ks = jax.random.split(key, 6)

    def lin(k, fan_in, shape):
        b = 1.0 / math.sqrt(fan_in)
        return jax.random.uniform(k, shape, jnp.float32, -b, b)

    W_lin = lin(ks[0], d_in, (d_out, d_in))
    b_lin = lin(ks[1], d_in, (d_out,))
    W_cross = lin(ks[2], num_cross, (d_out, num_cross))
    b_cross = lin(ks[3], num_cross, (d_out,))
    W_sq = lin(ks[4], d_in, (d_out, d_in))
    b_sq = lin(ks[5], d_in, (d_out,))
    return W_lin, b_lin, W_cross, b_cross, W_sq, b_sq


def preprocess_weights(W_lin, b_lin, W_cross, b_cross, W_sq, b_sq, *, d_in):
    """Build the fused (K_pad, d_in*d_out_pad) bf16 weight and the fused bias."""
    d_out = W_lin.shape[0]
    d_out_pad = _round_up(d_out, LANE)
    k_pad = _round_up(d_in + 1, 32)          # [x | 1 | zero padding]
    ones_row = d_in

    Wb = np.zeros((k_pad, d_in * d_out_pad), np.float32)

    # Cross term: W_cross columns are ordered like torch triu(k=1) boolean-mask
    # indexing, i.e. row-major (i,j) pairs == np.triu_indices(d_in, k=1).
    ii, jj = np.triu_indices(d_in, k=1)
    Wc_T = np.asarray(W_cross).T             # (num_cross, d_out)
    for p in range(len(ii)):
        i, j = int(ii[p]), int(jj[p])
        Wb[j, i * d_out_pad:i * d_out_pad + d_out] = Wc_T[p]

    # Linear + square (linear(2x)) folded onto the ones-row of each chunk i.
    comb = np.asarray(W_lin).T + 2.0 * np.asarray(W_sq).T   # (d_in, d_out)
    for i in range(d_in):
        Wb[ones_row, i * d_out_pad:i * d_out_pad + d_out] = comb[i]

    bias = np.zeros((1, d_out_pad), np.float32)
    bias[0, :d_out] = np.asarray(b_lin) + np.asarray(b_cross) + np.asarray(b_sq)

    return (jnp.asarray(Wb, jnp.bfloat16),
            jnp.asarray(bias, jnp.float32),
            k_pad, d_out_pad)


def reference_forward(x, W_lin, b_lin, W_cross, b_cross, W_sq, b_sq):
    """Pure-JAX f32 mirror of the PyTorch forward, for validation."""
    d_in = x.shape[1]
    lin = x @ W_lin.T + b_lin
    outer = jnp.einsum('bl,bs->bls', x, x)
    ii, jj = np.triu_indices(d_in, k=1)
    cross_item = outer[:, ii, jj]                      # (B, num_cross) row-major
    cross = cross_item @ W_cross.T + b_cross
    square = (2.0 * x) @ W_sq.T + b_sq
    return lin + cross + square


if __name__ == "__main__":
    B, d_in, d_out = 512, 16, 32

    key = jax.random.PRNGKey(0)
    kx, kp = jax.random.split(key)
    x = jax.random.normal(kx, (B, d_in), jnp.float32)

    params = make_params(kp, d_in, d_out)
    w_big, bias, k_pad, d_out_pad = preprocess_weights(*params, d_in=d_in)

    out = qpr_forward(x, w_big, bias, d_in=d_in, d_out=d_out)
    out = jax.block_until_ready(out)

    ref = np.asarray(reference_forward(x, *params))
    # bf16 weights / bf16 matmul LHS / bf16 output -> loosened tolerance.
    np.testing.assert_allclose(np.asarray(out).astype(np.float32), ref,
                               rtol=2e-2, atol=5e-2)

    print("KERNEL_OK")
</pallas_src>

<mosaic_0001>
module attributes {stable_mosaic.version = 11 : i64} {
  func.func @kernel(%arg0: i32, %arg1: memref<512x32xf32, #tpu.memory_space<vmem>>, %arg2: memref<32x2048xbf16, #tpu.memory_space<vmem>>, %arg3: memref<1x128xf32, #tpu.memory_space<vmem>>, %arg4: memref<512x128xbf16, #tpu.memory_space<vmem>>) attributes {dimension_semantics = [#tpu.dimension_semantics<parallel>], iteration_bounds = array<i64: 1>, scalar_prefetch = 0 : i64, scratch_operands = 0 : i64, tpu.core_type = #tpu.core_type<tc>, window_params = [{transform_indices = @transform_0, window_bounds = array<i64: 512, 32>}, {pipeline_mode = #tpu.pipeline_mode<synchronous>, transform_indices = @transform_1, window_bounds = array<i64: 32, 2048>}, {pipeline_mode = #tpu.pipeline_mode<synchronous>, transform_indices = @transform_2, window_bounds = array<i64: 1, 128>}, {transform_indices = @transform_3, window_bounds = array<i64: 512, 128>}]} {
    %c0 = arith.constant 0 : index
    %c0_0 = arith.constant 0 : index
    %0 = vector.load %arg1[%c0, %c0_0] : memref<512x32xf32, #tpu.memory_space<vmem>>, vector<512x32xf32>
    %1 = arith.truncf %0 : vector<512x32xf32> to vector<512x32xbf16>
    %c0_1 = arith.constant 0 : index
    %c0_2 = arith.constant 0 : index
    %2 = vector.load %arg2[%c0_1, %c0_2] : memref<32x2048xbf16, #tpu.memory_space<vmem>>, vector<32x2048xbf16>
    %cst = arith.constant dense<0.000000e+00> : vector<512x2048xf32>
    %3 = tpu.matmul %1, %2, %cst {dimension_numbers = #tpu.dot_dimension_numbers<[1], [0], [0], [1], [0, 0, 1, 1], [], []>} : vector<512x32xbf16>, vector<32x2048xbf16>, vector<512x2048xf32> -> vector<512x2048xf32>
    %c0_3 = arith.constant 0 : index
    %c0_4 = arith.constant 0 : index
    %4 = vector.load %arg3[%c0_3, %c0_4] : memref<1x128xf32, #tpu.memory_space<vmem>>, vector<1x128xf32>
    %5 = vector.shape_cast %4 : vector<1x128xf32> to vector<1x128xf32>
    %6 = vector.broadcast %5 : vector<1x128xf32> to vector<64x128xf32>
    %7 = vector.extract_strided_slice %0 {offsets = [0, 0], sizes = [64, 32], strides = [1, 1]} : vector<512x32xf32> to vector<64x32xf32>
    %8 = vector.extract_strided_slice %7 {offsets = [0, 0], sizes = [64, 1], strides = [1, 1]} : vector<64x32xf32> to vector<64x1xf32>
    %9 = vector.extract_strided_slice %3 {offsets = [0, 0], sizes = [64, 128], strides = [1, 1]} : vector<512x2048xf32> to vector<64x128xf32>
    %10 = vector.broadcast %8 : vector<64x1xf32> to vector<64x128xf32>
    %11 = arith.mulf %10, %9 : vector<64x128xf32>
    %12 = arith.addf %6, %11 : vector<64x128xf32>
    %13 = vector.extract_strided_slice %7 {offsets = [0, 1], sizes = [64, 1], strides = [1, 1]} : vector<64x32xf32> to vector<64x1xf32>
    %14 = vector.extract_strided_slice %3 {offsets = [0, 128], sizes = [64, 128], strides = [1, 1]} : vector<512x2048xf32> to vector<64x128xf32>
    %15 = vector.broadcast %13 : vector<64x1xf32> to vector<64x128xf32>
    %16 = arith.mulf %15, %14 : vector<64x128xf32>
    %17 = arith.addf %12, %16 : vector<64x128xf32>
    %18 = vector.extract_strided_slice %7 {offsets = [0, 2], sizes = [64, 1], strides = [1, 1]} : vector<64x32xf32> to vector<64x1xf32>
    %19 = vector.extract_strided_slice %3 {offsets = [0, 256], sizes = [64, 128], strides = [1, 1]} : vector<512x2048xf32> to vector<64x128xf32>
    %20 = vector.broadcast %18 : vector<64x1xf32> to vector<64x128xf32>
    %21 = arith.mulf %20, %19 : vector<64x128xf32>
    %22 = arith.addf %17, %21 : vector<64x128xf32>
    %23 = vector.extract_strided_slice %7 {offsets = [0, 3], sizes = [64, 1], strides = [1, 1]} : vector<64x32xf32> to vector<64x1xf32>
    %24 = vector.extract_strided_slice %3 {offsets = [0, 384], sizes = [64, 128], strides = [1, 1]} : vector<512x2048xf32> to vector<64x128xf32>
    %25 = vector.broadcast %23 : vector<64x1xf32> to vector<64x128xf32>
    %26 = arith.mulf %25, %24 : vector<64x128xf32>
    %27 = arith.addf %22, %26 : vector<64x128xf32>
    %28 = vector.extract_strided_slice %7 {offsets = [0, 4], sizes = [64, 1], strides = [1, 1]} : vector<64x32xf32> to vector<64x1xf32>
    %29 = vector.extract_strided_slice %3 {offsets = [0, 512], sizes = [64, 128], strides = [1, 1]} : vector<512x2048xf32> to vector<64x128xf32>
    %30 = vector.broadcast %28 : vector<64x1xf32> to vector<64x128xf32>
    %31 = arith.mulf %30, %29 : vector<64x128xf32>
    %32 = arith.addf %27, %31 : vector<64x128xf32>
    %33 = vector.extract_strided_slice %7 {offsets = [0, 5], sizes = [64, 1], strides = [1, 1]} : vector<64x32xf32> to vector<64x1xf32>
    %34 = vector.extract_strided_slice %3 {offsets = [0, 640], sizes = [64, 128], strides = [1, 1]} : vector<512x2048xf32> to vector<64x128xf32>
    %35 = vector.broadcast %33 : vector<64x1xf32> to vector<64x128xf32>
    %36 = arith.mulf %35, %34 : vector<64x128xf32>
    %37 = arith.addf %32, %36 : vector<64x128xf32>
    %38 = vector.extract_strided_slice %7 {offsets = [0, 6], sizes = [64, 1], strides = [1, 1]} : vector<64x32xf32> to vector<64x1xf32>
    %39 = vector.extract_strided_slice %3 {offsets = [0, 768], sizes = [64, 128], strides = [1, 1]} : vector<512x2048xf32> to vector<64x128xf32>
    %40 = vector.broadcast %38 : vector<64x1xf32> to vector<64x128xf32>
    %41 = arith.mulf %40, %39 : vector<64x128xf32>
    %42 = arith.addf %37, %41 : vector<64x128xf32>
    %43 = vector.extract_strided_slice %7 {offsets = [0, 7], sizes = [64, 1], strides = [1, 1]} : vector<64x32xf32> to vector<64x1xf32>
    %44 = vector.extract_strided_slice %3 {offsets = [0, 896], sizes = [64, 128], strides = [1, 1]} : vector<512x2048xf32> to vector<64x128xf32>
    %45 = vector.broadcast %43 : vector<64x1xf32> to vector<64x128xf32>
    %46 = arith.mulf %45, %44 : vector<64x128xf32>
    %47 = arith.addf %42, %46 : vector<64x128xf32>
    %48 = vector.extract_strided_slice %7 {offsets = [0, 8], sizes = [64, 1], strides = [1, 1]} : vector<64x32xf32> to vector<64x1xf32>
    %49 = vector.extract_strided_slice %3 {offsets = [0, 1024], sizes = [64, 128], strides = [1, 1]} : vector<512x2048xf32> to vector<64x128xf32>
    %50 = vector.broadcast %48 : vector<64x1xf32> to vector<64x128xf32>
    %51 = arith.mulf %50, %49 : vector<64x128xf32>
    %52 = arith.addf %47, %51 : vector<64x128xf32>
    %53 = vector.extract_strided_slice %7 {offsets = [0, 9], sizes = [64, 1], strides = [1, 1]} : vector<64x32xf32> to vector<64x1xf32>
    %54 = vector.extract_strided_slice %3 {offsets = [0, 1152], sizes = [64, 128], strides = [1, 1]} : vector<512x2048xf32> to vector<64x128xf32>
    %55 = vector.broadcast %53 : vector<64x1xf32> to vector<64x128xf32>
    %56 = arith.mulf %55, %54 : vector<64x128xf32>
    %57 = arith.addf %52, %56 : vector<64x128xf32>
    %58 = vector.extract_strided_slice %7 {offsets = [0, 10], sizes = [64, 1], strides = [1, 1]} : vector<64x32xf32> to vector<64x1xf32>
    %59 = vector.extract_strided_slice %3 {offsets = [0, 1280], sizes = [64, 128], strides = [1, 1]} : vector<512x2048xf32> to vector<64x128xf32>
    %60 = vector.broadcast %58 : vector<64x1xf32> to vector<64x128xf32>
    %61 = arith.mulf %60, %59 : vector<64x128xf32>
    %62 = arith.addf %57, %61 : vector<64x128xf32>
    %63 = vector.extract_strided_slice %7 {offsets = [0, 11], sizes = [64, 1], strides = [1, 1]} : vector<64x32xf32> to vector<64x1xf32>
    %64 = vector.extract_strided_slice %3 {offsets = [0, 1408], sizes = [64, 128], strides = [1, 1]} : vector<512x2048xf32> to vector<64x128xf32>
    %65 = vector.broadcast %63 : vector<64x1xf32> to vector<64x128xf32>
    %66 = arith.mulf %65, %64 : vector<64x128xf32>
    %67 = arith.addf %62, %66 : vector<64x128xf32>
    %68 = vector.extract_strided_slice %7 {offsets = [0, 12], sizes = [64, 1], strides = [1, 1]} : vector<64x32xf32> to vector<64x1xf32>
    %69 = vector.extract_strided_slice %3 {offsets = [0, 1536], sizes = [64, 128], strides = [1, 1]} : vector<512x2048xf32> to vector<64x128xf32>
    %70 = vector.broadcast %68 : vector<64x1xf32> to vector<64x128xf32>
    %71 = arith.mulf %70, %69 : vector<64x128xf32>
    %72 = arith.addf %67, %71 : vector<64x128xf32>
    %73 = vector.extract_strided_slice %7 {offsets = [0, 13], sizes = [64, 1], strides = [1, 1]} : vector<64x32xf32> to vector<64x1xf32>
    %74 = vector.extract_strided_slice %3 {offsets = [0, 1664], sizes = [64, 128], strides = [1, 1]} : vector<512x2048xf32> to vector<64x128xf32>
    %75 = vector.broadcast %73 : vector<64x1xf32> to vector<64x128xf32>
    %76 = arith.mulf %75, %74 : vector<64x128xf32>
    %77 = arith.addf %72, %76 : vector<64x128xf32>
    %78 = vector.extract_strided_slice %7 {offsets = [0, 14], sizes = [64, 1], strides = [1, 1]} : vector<64x32xf32> to vector<64x1xf32>
    %79 = vector.extract_strided_slice %3 {offsets = [0, 1792], sizes = [64, 128], strides = [1, 1]} : vector<512x2048xf32> to vector<64x128xf32>
    %80 = vector.broadcast %78 : vector<64x1xf32> to vector<64x128xf32>
    %81 = arith.mulf %80, %79 : vector<64x128xf32>
    %82 = arith.addf %77, %81 : vector<64x128xf32>
    %83 = vector.extract_strided_slice %7 {offsets = [0, 15], sizes = [64, 1], strides = [1, 1]} : vector<64x32xf32> to vector<64x1xf32>
    %84 = vector.extract_strided_slice %3 {offsets = [0, 1920], sizes = [64, 128], strides = [1, 1]} : vector<512x2048xf32> to vector<64x128xf32>
    %85 = vector.broadcast %83 : vector<64x1xf32> to vector<64x128xf32>
    %86 = arith.mulf %85, %84 : vector<64x128xf32>
    %87 = arith.addf %82, %86 : vector<64x128xf32>
    %88 = arith.truncf %87 : vector<64x128xf32> to vector<64x128xbf16>
    %c0_5 = arith.constant 0 : index
    %c0_6 = arith.constant 0 : index
    %89 = vector.load %arg4[%c0_5, %c0_6] : memref<512x128xbf16, #tpu.memory_space<vmem>>, vector<64x128xbf16>
    tpu.vector_store %arg4[%c0_5, %c0_6], %88 {strides = array<i32>} : memref<512x128xbf16, #tpu.memory_space<vmem>>, vector<64x128xbf16>,
    %90 = vector.extract_strided_slice %0 {offsets = [64, 0], sizes = [64, 32], strides = [1, 1]} : vector<512x32xf32> to vector<64x32xf32>
    %91 = vector.extract_strided_slice %90 {offsets = [0, 0], sizes = [64, 1], strides = [1, 1]} : vector<64x32xf32> to vector<64x1xf32>
    %92 = vector.extract_strided_slice %3 {offsets = [64, 0], sizes = [64, 128], strides = [1, 1]} : vector<512x2048xf32> to vector<64x128xf32>
    %93 = vector.broadcast %91 : vector<64x1xf32> to vector<64x128xf32>
    %94 = arith.mulf %93, %92 : vector<64x128xf32>
    %95 = arith.addf %6, %94 : vector<64x128xf32>
    %96 = vector.extract_strided_slice %90 {offsets = [0, 1], sizes = [64, 1], strides = [1, 1]} : vector<64x32xf32> to vector<64x1xf32>
    %97 = vector.extract_strided_slice %3 {offsets = [64, 128], sizes = [64, 128], strides = [1, 1]} : vector<512x2048xf32> to vector<64x128xf32>
    %98 = vector.broadcast %96 : vector<64x1xf32> to vector<64x128xf32>
    %99 = arith.mulf %98, %97 : vector<64x128xf32>
    %100 = arith.addf %95, %99 : vector<64x128xf32>
    %101 = vector.extract_strided_slice %90 {offsets = [0, 2], sizes = [64, 1], strides = [1, 1]} : vector<64x32xf32> to vector<64x1xf32>
    %102 = vector.extract_strided_slice %3 {offsets = [64, 256], sizes = [64, 128], strides = [1, 1]} : vector<512x2048xf32> to vector<64x128xf32>
    %103 = vector.broadcast %101 : vector<64x1xf32> to vector<64x128xf32>
    %104 = arith.mulf %103, %102 : vector<64x128xf32>
    %105 = arith.addf %100, %104 : vector<64x128xf32>
    %106 = vector.extract_strided_slice %90 {offsets = [0, 3], sizes = [64, 1], strides = [1, 1]} : vector<64x32xf32> to vector<64x1xf32>
    %107 = vector.extract_strided_slice %3 {offsets = [64, 384], sizes = [64, 128], strides = [1, 1]} : vector<512x2048xf32> to vector<64x128xf32>
    %108 = vector.broadcast %106 : vector<64x1xf32> to vector<64x128xf32>
    %109 = arith.mulf %108, %107 : vector<64x128xf32>
    %110 = arith.addf %105, %109 : vector<64x128xf32>
    %111 = vector.extract_strided_slice %90 {offsets = [0, 4], sizes = [64, 1], strides = [1, 1]} : vector<64x32xf32> to vector<64x1xf32>
    %112 = vector.extract_strided_slice %3 {offsets = [64, 512], sizes = [64, 128], strides = [1, 1]} : vector<512x2048xf32> to vector<64x128xf32>
    %113 = vector.broadcast %111 : vector<64x1xf32> to vector<64x128xf32>
    %114 = arith.mulf %113, %112 : vector<64x128xf32>
    %115 = arith.addf %110, %114 : vector<64x128xf32>
    %116 = vector.extract_strided_slice %90 {offsets = [0, 5], sizes = [64, 1], strides = [1, 1]} : vector<64x32xf32> to vector<64x1xf32>
    %117 = vector.extract_strided_slice %3 {offsets = [64, 640], sizes = [64, 128], strides = [1, 1]} : vector<512x2048xf32> to vector<64x128xf32>
    %118 = vector.broadcast %116 : vector<64x1xf32> to vector<64x128xf32>
    %119 = arith.mulf %118, %117 : vector<64x128xf32>
    %120 = arith.addf %115, %119 : vector<64x128xf32>
    %121 = vector.extract_strided_slice %90 {offsets = [0, 6], sizes = [64, 1], strides = [1, 1]} : vector<64x32xf32> to vector<64x1xf32>
    %122 = vector.extract_strided_slice %3 {offsets = [64, 768], sizes = [64, 128], strides = [1, 1]} : vector<512x2048xf32> to vector<64x128xf32>
    %123 = vector.broadcast %121 : vector<64x1xf32> to vector<64x128xf32>
    %124 = arith.mulf %123, %122 : vector<64x128xf32>
    %125 = arith.addf %120, %124 : vector<64x128xf32>
    %126 = vector.extract_strided_slice %90 {offsets = [0, 7], sizes = [64, 1], strides = [1, 1]} : vector<64x32xf32> to vector<64x1xf32>
    %127 = vector.extract_strided_slice %3 {offsets = [64, 896], sizes = [64, 128], strides = [1, 1]} : vector<512x2048xf32> to vector<64x128xf32>
    %128 = vector.broadcast %126 : vector<64x1xf32> to vector<64x128xf32>
    %129 = arith.mulf %128, %127 : vector<64x128xf32>
    %130 = arith.addf %125, %129 : vector<64x128xf32>
    %131 = vector.extract_strided_slice %90 {offsets = [0, 8], sizes = [64, 1], strides = [1, 1]} : vector<64x32xf32> to vector<64x1xf32>
    %132 = vector.extract_strided_slice %3 {offsets = [64, 1024], sizes = [64, 128], strides = [1, 1]} : vector<512x2048xf32> to vector<64x128xf32>
    %133 = vector.broadcast %131 : vector<64x1xf32> to vector<64x128xf32>
    %134 = arith.mulf %133, %132 : vector<64x128xf32>
    %135 = arith.addf %130, %134 : vector<64x128xf32>
    %136 = vector.extract_strided_slice %90 {offsets = [0, 9], sizes = [64, 1], strides = [1, 1]} : vector<64x32xf32> to vector<64x1xf32>
    %137 = vector.extract_strided_slice %3 {offsets = [64, 1152], sizes = [64, 128], strides = [1, 1]} : vector<512x2048xf32> to vector<64x128xf32>
    %138 = vector.broadcast %136 : vector<64x1xf32> to vector<64x128xf32>
    %139 = arith.mulf %138, %137 : vector<64x128xf32>
    %140 = arith.addf %135, %139 : vector<64x128xf32>
    %141 = vector.extract_strided_slice %90 {offsets = [0, 10], sizes = [64, 1], strides = [1, 1]} : vector<64x32xf32> to vector<64x1xf32>
    %142 = vector.extract_strided_slice %3 {offsets = [64, 1280], sizes = [64, 128], strides = [1, 1]} : vector<512x2048xf32> to vector<64x128xf32>
    %143 = vector.broadcast %141 : vector<64x1xf32> to vector<64x128xf32>
    %144 = arith.mulf %143, %142 : vector<64x128xf32>
    %145 = arith.addf %140, %144 : vector<64x128xf32>
    %146 = vector.extract_strided_slice %90 {offsets = [0, 11], sizes = [64, 1], strides = [1, 1]} : vector<64x32xf32> to vector<64x1xf32>
    %147 = vector.extract_strided_slice %3 {offsets = [64, 1408], sizes = [64, 128], strides = [1, 1]} : vector<512x2048xf32> to vector<64x128xf32>
    %148 = vector.broadcast %146 : vector<64x1xf32> to vector<64x128xf32>
    %149 = arith.mulf %148, %147 : vector<64x128xf32>
    %150 = arith.addf %145, %149 : vector<64x128xf32>
    %151 = vector.extract_strided_slice %90 {offsets = [0, 12], sizes = [64, 1], strides = [1, 1]} : vector<64x32xf32> to vector<64x1xf32>
    %152 = vector.extract_strided_slice %3 {offsets = [64, 1536], sizes = [64, 128], strides = [1, 1]} : vector<512x2048xf32> to vector<64x128xf32>
    %153 = vector.broadcast %151 : vector<64x1xf32> to vector<64x128xf32>
    %154 = arith.mulf %153, %152 : vector<64x128xf32>
    %155 = arith.addf %150, %154 : vector<64x128xf32>
    %156 = vector.extract_strided_slice %90 {offsets = [0, 13], sizes = [64, 1], strides = [1, 1]} : vector<64x32xf32> to vector<64x1xf32>
    %157 = vector.extract_strided_slice %3 {offsets = [64, 1664], sizes = [64, 128], strides = [1, 1]} : vector<512x2048xf32> to vector<64x128xf32>
    %158 = vector.broadcast %156 : vector<64x1xf32> to vector<64x128xf32>
    %159 = arith.mulf %158, %157 : vector<64x128xf32>
    %160 = arith.addf %155, %159 : vector<64x128xf32>
    %161 = vector.extract_strided_slice %90 {offsets = [0, 14], sizes = [64, 1], strides = [1, 1]} : vector<64x32xf32> to vector<64x1xf32>
    %162 = vector.extract_strided_slice %3 {offsets = [64, 1792], sizes = [64, 128], strides = [1, 1]} : vector<512x2048xf32> to vector<64x128xf32>
    %163 = vector.broadcast %161 : vector<64x1xf32> to vector<64x128xf32>
    %164 = arith.mulf %163, %162 : vector<64x128xf32>
    %165 = arith.addf %160, %164 : vector<64x128xf32>
    %166 = vector.extract_strided_slice %90 {offsets = [0, 15], sizes = [64, 1], strides = [1, 1]} : vector<64x32xf32> to vector<64x1xf32>
    %167 = vector.extract_strided_slice %3 {offsets = [64, 1920], sizes = [64, 128], strides = [1, 1]} : vector<512x2048xf32> to vector<64x128xf32>
    %168 = vector.broadcast %166 : vector<64x1xf32> to vector<64x128xf32>
    %169 = arith.mulf %168, %167 : vector<64x128xf32>
    %170 = arith.addf %165, %169 : vector<64x128xf32>
    %171 = arith.truncf %170 : vector<64x128xf32> to vector<64x128xbf16>
    %c64 = arith.constant 64 : index
    %c0_7 = arith.constant 0 : index
    %172 = vector.load %arg4[%c64, %c0_7] : memref<512x128xbf16, #tpu.memory_space<vmem>>, vector<64x128xbf16>
    tpu.vector_store %arg4[%c64, %c0_7], %171 {strides = array<i32>} : memref<512x128xbf16, #tpu.memory_space<vmem>>, vector<64x128xbf16>,
    %173 = vector.extract_strided_slice %0 {offsets = [128, 0], sizes = [64, 32], strides = [1, 1]} : vector<512x32xf32> to vector<64x32xf32>
    %174 = vector.extract_strided_slice %173 {offsets = [0, 0], sizes = [64, 1], strides = [1, 1]} : vector<64x32xf32> to vector<64x1xf32>
    %175 = vector.extract_strided_slice %3 {offsets = [128, 0], sizes = [64, 128], strides = [1, 1]} : vector<512x2048xf32> to vector<64x128xf32>
    %176 = vector.broadcast %174 : vector<64x1xf32> to vector<64x128xf32>
    %177 = arith.mulf %176, %175 : vector<64x128xf32>
    %178 = arith.addf %6, %177 : vector<64x128xf32>
    %179 = vector.extract_strided_slice %173 {offsets = [0, 1], sizes = [64, 1], strides = [1, 1]} : vector<64x32xf32> to vector<64x1xf32>
    %180 = vector.extract_strided_slice %3 {offsets = [128, 128], sizes = [64, 128], strides = [1, 1]} : vector<512x2048xf32> to vector<64x128xf32>
    %181 = vector.broadcast %179 : vector<64x1xf32> to vector<64x128xf32>
    %182 = arith.mulf %181, %180 : vector<64x128xf32>
    %183 = arith.addf %178, %182 : vector<64x128xf32>
    %184 = vector.extract_strided_slice %173 {offsets = [0, 2], sizes = [64, 1], strides = [1, 1]} : vector<64x32xf32> to vector<64x1xf32>
    %185 = vector.extract_strided_slice %3 {offsets = [128, 256], sizes = [64, 128], strides = [1, 1]} : vector<512x2048xf32> to vector<64x128xf32>
    %186 = vector.broadcast %184 : vector<64x1xf32> to vector<64x128xf32>
    %187 = arith.mulf %186, %185 : vector<64x128xf32>
    %188 = arith.addf %183, %187 : vector<64x128xf32>
    %189 = vector.extract_strided_slice %173 {offsets = [0, 3], sizes = [64, 1], strides = [1, 1]} : vector<64x32xf32> to vector<64x1xf32>
    %190 = vector.extract_strided_slice %3 {offsets = [128, 384], sizes = [64, 128], strides = [1, 1]} : vector<512x2048xf32> to vector<64x128xf32>
    %191 = vector.broadcast %189 : vector<64x1xf32> to vector<64x128xf32>
    %192 = arith.mulf %191, %190 : vector<64x128xf32>
    %193 = arith.addf %188, %192 : vector<64x128xf32>
    %194 = vector.extract_strided_slice %173 {offsets = [0, 4], sizes = [64, 1], strides = [1, 1]} : vector<64x32xf32> to vector<64x1xf32>
    %195 = vector.extract_strided_slice %3 {offsets = [128, 512], sizes = [64, 128], strides = [1, 1]} : vector<512x2048xf32> to vector<64x128xf32>
    %196 = vector.broadcast %194 : vector<64x1xf32> to vector<64x128xf32>
    %197 = arith.mulf %196, %195 : vector<64x128xf32>
    %198 = arith.addf %193, %197 : vector<64x128xf32>
    %199 = vector.extract_strided_slice %173 {offsets = [0, 5], sizes = [64, 1], strides = [1, 1]} : vector<64x32xf32> to vector<64x1xf32>
    %200 = vector.extract_strided_slice %3 {offsets = [128, 640], sizes = [64, 128], strides = [1, 1]} : vector<512x2048xf32> to vector<64x128xf32>
    %201 = vector.broadcast %199 : vector<64x1xf32> to vector<64x128xf32>
    %202 = arith.mulf %201, %200 : vector<64x128xf32>
    %203 = arith.addf %198, %202 : vector<64x128xf32>
    %204 = vector.extract_strided_slice %173 {offsets = [0, 6], sizes = [64, 1], strides = [1, 1]} : vector<64x32xf32> to vector<64x1xf32>
    %205 = vector.extract_strided_slice %3 {offsets = [128, 768], sizes = [64, 128], strides = [1, 1]} : vector<512x2048xf32> to vector<64x128xf32>
    %206 = vector.broadcast %204 : vector<64x1xf32> to vector<64x128xf32>
    %207 = arith.mulf %206, %205 : vector<64x128xf32>
    %208 = arith.addf %203, %207 : vector<64x128xf32>
    %209 = vector.extract_strided_slice %173 {offsets = [0, 7], sizes = [64, 1], strides = [1, 1]} : vector<64x32xf32> to vector<64x1xf32>
    %210 = vector.extract_strided_slice %3 {offsets = [128, 896], sizes = [64, 128], strides = [1, 1]} : vector<512x2048xf32> to vector<64x128xf32>
    %211 = vector.broadcast %209 : vector<64x1xf32> to vector<64x128xf32>
    %212 = arith.mulf %211, %210 : vector<64x128xf32>
    %213 = arith.addf %208, %212 : vector<64x128xf32>
    %214 = vector.extract_strided_slice %173 {offsets = [0, 8], sizes = [64, 1], strides = [1, 1]} : vector<64x32xf32> to vector<64x1xf32>
    %215 = vector.extract_strided_slice %3 {offsets = [128, 1024], sizes = [64, 128], strides = [1, 1]} : vector<512x2048xf32> to vector<64x128xf32>
    %216 = vector.broadcast %214 : vector<64x1xf32> to vector<64x128xf32>
    %217 = arith.mulf %216, %215 : vector<64x128xf32>
    %218 = arith.addf %213, %217 : vector<64x128xf32>
    %219 = vector.extract_strided_slice %173 {offsets = [0, 9], sizes = [64, 1], strides = [1, 1]} : vector<64x32xf32> to vector<64x1xf32>
    %220 = vector.extract_strided_slice %3 {offsets = [128, 1152], sizes = [64, 128], strides = [1, 1]} : vector<512x2048xf32> to vector<64x128xf32>
    %221 = vector.broadcast %219 : vector<64x1xf32> to vector<64x128xf32>
    %222 = arith.mulf %221, %220 : vector<64x128xf32>
    %223 = arith.addf %218, %222 : vector<64x128xf32>
    %224 = vector.extract_strided_slice %173 {offsets = [0, 10], sizes = [64, 1], strides = [1, 1]} : vector<64x32xf32> to vector<64x1xf32>
    %225 = vector.extract_strided_slice %3 {offsets = [128, 1280], sizes = [64, 128], strides = [1, 1]} : vector<512x2048xf32> to vector<64x128xf32>
    %226 = vector.broadcast %224 : vector<64x1xf32> to vector<64x128xf32>
    %227 = arith.mulf %226, %225 : vector<64x128xf32>
    %228 = arith.addf %223, %227 : vector<64x128xf32>
    %229 = vector.extract_strided_slice %173 {offsets = [0, 11], sizes = [64, 1], strides = [1, 1]} : vector<64x32xf32> to vector<64x1xf32>
    %230 = vector.extract_strided_slice %3 {offsets = [128, 1408], sizes = [64, 128], strides = [1, 1]} : vector<512x2048xf32> to vector<64x128xf32>
    %231 = vector.broadcast %229 : vector<64x1xf32> to vector<64x128xf32>
    %232 = arith.mulf %231, %230 : vector<64x128xf32>
    %233 = arith.addf %228, %232 : vector<64x128xf32>
    %234 = vector.extract_strided_slice %173 {offsets = [0, 12], sizes = [64, 1], strides = [1, 1]} : vector<64x32xf32> to vector<64x1xf32>
    %235 = vector.extract_strided_slice %3 {offsets = [128, 1536], sizes = [64, 128], strides = [1, 1]} : vector<512x2048xf32> to vector<64x128xf32>
    %236 = vector.broadcast %234 : vector<64x1xf32> to vector<64x128xf32>
    %237 = arith.mulf %236, %235 : vector<64x128xf32>
    %238 = arith.addf %233, %237 : vector<64x128xf32>
    %239 = vector.extract_strided_slice %173 {offsets = [0, 13], sizes = [64, 1], strides = [1, 1]} : vector<64x32xf32> to vector<64x1xf32>
    %240 = vector.extract_strided_slice %3 {offsets = [128, 1664], sizes = [64, 128], strides = [1, 1]} : vector<512x2048xf32> to vector<64x128xf32>
    %241 = vector.broadcast %239 : vector<64x1xf32> to vector<64x128xf32>
    %242 = arith.mulf %241, %240 : vector<64x128xf32>
    %243 = arith.addf %238, %242 : vector<64x128xf32>
    %244 = vector.extract_strided_slice %173 {offsets = [0, 14], sizes = [64, 1], strides = [1, 1]} : vector<64x32xf32> to vector<64x1xf32>
    %245 = vector.extract_strided_slice %3 {offsets = [128, 1792], sizes = [64, 128], strides = [1, 1]} : vector<512x2048xf32> to vector<64x128xf32>
    %246 = vector.broadcast %244 : vector<64x1xf32> to vector<64x128xf32>
    %247 = arith.mulf %246, %245 : vector<64x128xf32>
    %248 = arith.addf %243, %247 : vector<64x128xf32>
    %249 = vector.extract_strided_slice %173 {offsets = [0, 15], sizes = [64, 1], strides = [1, 1]} : vector<64x32xf32> to vector<64x1xf32>
    %250 = vector.extract_strided_slice %3 {offsets = [128, 1920], sizes = [64, 128], strides = [1, 1]} : vector<512x2048xf32> to vector<64x128xf32>
    %251 = vector.broadcast %249 : vector<64x1xf32> to vector<64x128xf32>
    %252 = arith.mulf %251, %250 : vector<64x128xf32>
    %253 = arith.addf %248, %252 : vector<64x128xf32>
    %254 = arith.truncf %253 : vector<64x128xf32> to vector<64x128xbf16>
    %c128 = arith.constant 128 : index
    %c0_8 = arith.constant 0 : index
    %255 = vector.load %arg4[%c128, %c0_8] : memref<512x128xbf16, #tpu.memory_space<vmem>>, vector<64x128xbf16>
    tpu.vector_store %arg4[%c128, %c0_8], %254 {strides = array<i32>} : memref<512x128xbf16, #tpu.memory_space<vmem>>, vector<64x128xbf16>,
    %256 = vector.extract_strided_slice %0 {offsets = [192, 0], sizes = [64, 32], strides = [1, 1]} : vector<512x32xf32> to vector<64x32xf32>
    %257 = vector.extract_strided_slice %256 {offsets = [0, 0], sizes = [64, 1], strides = [1, 1]} : vector<64x32xf32> to vector<64x1xf32>
    %258 = vector.extract_strided_slice %3 {offsets = [192, 0], sizes = [64, 128], strides = [1, 1]} : vector<512x2048xf32> to vector<64x128xf32>
    %259 = vector.broadcast %257 : vector<64x1xf32> to vector<64x128xf32>
    %260 = arith.mulf %259, %258 : vector<64x128xf32>
    %261 = arith.addf %6, %260 : vector<64x128xf32>
    %262 = vector.extract_strided_slice %256 {offsets = [0, 1], sizes = [64, 1], strides = [1, 1]} : vector<64x32xf32> to vector<64x1xf32>
    %263 = vector.extract_strided_slice %3 {offsets = [192, 128], sizes = [64, 128], strides = [1, 1]} : vector<512x2048xf32> to vector<64x128xf32>
    %264 = vector.broadcast %262 : vector<64x1xf32> to vector<64x128xf32>
    %265 = arith.mulf %264, %263 : vector<64x128xf32>
    %266 = arith.addf %261, %265 : vector<64x128xf32>
    %267 = vector.extract_strided_slice %256 {offsets = [0, 2], sizes = [64, 1], strides = [1, 1]} : vector<64x32xf32> to vector<64x1xf32>
    %268 = vector.extract_strided_slice %3 {offsets = [192, 256], sizes = [64, 128], strides = [1, 1]} : vector<512x2048xf32> to vector<64x128xf32>
    %269 = vector.broadcast %267 : vector<64x1xf32> to vector<64x128xf32>
    %270 = arith.mulf %269, %268 : vector<64x128xf32>
    %271 = arith.addf %266, %270 : vector<64x128xf32>
    %272 = vector.extract_strided_slice %256 {offsets = [0, 3], sizes = [64, 1], strides = [1, 1]} : vector<64x32xf32> to vector<64x1xf32>
    %273 = vector.extract_strided_slice %3 {offsets = [192, 384], sizes = [64, 128], strides = [1, 1]} : vector<512x2048xf32> to vector<64x128xf32>
    %274 = vector.broadcast %272 : vector<64x1xf32> to vector<64x128xf32>
    %275 = arith.mulf %274, %273 : vector<64x128xf32>
    %276 = arith.addf %271, %275 : vector<64x128xf32>
    %277 = vector.extract_strided_slice %256 {offsets = [0, 4], sizes = [64, 1], strides = [1, 1]} : vector<64x32xf32> to vector<64x1xf32>
    %278 = vector.extract_strided_slice %3 {offsets = [192, 512], sizes = [64, 128], strides = [1, 1]} : vector<512x2048xf32> to vector<64x128xf32>
    %279 = vector.broadcast %277 : vector<64x1xf32> to vector<64x128xf32>
    %280 = arith.mulf %279, %278 : vector<64x128xf32>
    %281 = arith.addf %276, %280 : vector<64x128xf32>
    %282 = vector.extract_strided_slice %256 {offsets = [0, 5], sizes = [64, 1], strides = [1, 1]} : vector<64x32xf32> to vector<64x1xf32>
    %283 = vector.extract_strided_slice %3 {offsets = [192, 640], sizes = [64, 128], strides = [1, 1]} : vector<512x2048xf32> to vector<64x128xf32>
    %284 = vector.broadcast %282 : vector<64x1xf32> to vector<64x128xf32>
    %285 = arith.mulf %284, %283 : vector<64x128xf32>
    %286 = arith.addf %281, %285 : vector<64x128xf32>
    %287 = vector.extract_strided_slice %256 {offsets = [0, 6], sizes = [64, 1], strides = [1, 1]} : vector<64x32xf32> to vector<64x1xf32>
    %288 = vector.extract_strided_slice %3 {offsets = [192, 768], sizes = [64, 128], strides = [1, 1]} : vector<512x2048xf32> to vector<64x128xf32>
    %289 = vector.broadcast %287 : vector<64x1xf32> to vector<64x128xf32>
    %290 = arith.mulf %289, %288 : vector<64x128xf32>
    %291 = arith.addf %286, %290 : vector<64x128xf32>
    %292 = vector.extract_strided_slice %256 {offsets = [0, 7], sizes = [64, 1], strides = [1, 1]} : vector<64x32xf32> to vector<64x1xf32>
    %293 = vector.extract_strided_slice %3 {offsets = [192, 896], sizes = [64, 128], strides = [1, 1]} : vector<512x2048xf32> to vector<64x128xf32>
    %294 = vector.broadcast %292 : vector<64x1xf32> to vector<64x128xf32>
    %295 = arith.mulf %294, %293 : vector<64x128xf32>
    %296 = arith.addf %291, %295 : vector<64x128xf32>
    %297 = vector.extract_strided_slice %256 {offsets = [0, 8], sizes = [64, 1], strides = [1, 1]} : vector<64x32xf32> to vector<64x1xf32>
    %298 = vector.extract_strided_slice %3 {offsets = [192, 1024], sizes = [64, 128], strides = [1, 1]} : vector<512x2048xf32> to vector<64x128xf32>
    %299 = vector.broadcast %297 : vector<64x1xf32> to vector<64x128xf32>
    %300 = arith.mulf %299, %298 : vector<64x128xf32>
    %301 = arith.addf %296, %300 : vector<64x128xf32>
    %302 = vector.extract_strided_slice %256 {offsets = [0, 9], sizes = [64, 1], strides = [1, 1]} : vector<64x32xf32> to vector<64x1xf32>
    %303 = vector.extract_strided_slice %3 {offsets = [192, 1152], sizes = [64, 128], strides = [1, 1]} : vector<512x2048xf32> to vector<64x128xf32>
    %304 = vector.broadcast %302 : vector<64x1xf32> to vector<64x128xf32>
    %305 = arith.mulf %304, %303 : vector<64x128xf32>
    %306 = arith.addf %301, %305 : vector<64x128xf32>
    %307 = vector.extract_strided_slice %256 {offsets = [0, 10], sizes = [64, 1], strides = [1, 1]} : vector<64x32xf32> to vector<64x1xf32>
    %308 = vector.extract_strided_slice %3 {offsets = [192, 1280], sizes = [64, 128], strides = [1, 1]} : vector<512x2048xf32> to vector<64x128xf32>
    %309 = vector.broadcast %307 : vector<64x1xf32> to vector<64x128xf32>
    %310 = arith.mulf %309, %308 : vector<64x128xf32>
    %311 = arith.addf %306, %310 : vector<64x128xf32>
    %312 = vector.extract_strided_slice %256 {offsets = [0, 11], sizes = [64, 1], strides = [1, 1]} : vector<64x32xf32> to vector<64x1xf32>
    %313 = vector.extract_strided_slice %3 {offsets = [192, 1408], sizes = [64, 128], strides = [1, 1]} : vector<512x2048xf32> to vector<64x128xf32>
    %314 = vector.broadcast %312 : vector<64x1xf32> to vector<64x128xf32>
    %315 = arith.mulf %314, %313 : vector<64x128xf32>
    %316 = arith.addf %311, %315 : vector<64x128xf32>
    %317 = vector.extract_strided_slice %256 {offsets = [0, 12], sizes = [64, 1], strides = [1, 1]} : vector<64x32xf32> to vector<64x1xf32>
    %318 = vector.extract_strided_slice %3 {offsets = [192, 1536], sizes = [64, 128], strides = [1, 1]} : vector<512x2048xf32> to vector<64x128xf32>
    %319 = vector.broadcast %317 : vector<64x1xf32> to vector<64x128xf32>
    %320 = arith.mulf %319, %318 : vector<64x128xf32>
    %321 = arith.addf %316, %320 : vector<64x128xf32>
    %322 = vector.extract_strided_slice %256 {offsets = [0, 13], sizes = [64, 1], strides = [1, 1]} : vector<64x32xf32> to vector<64x1xf32>
    %323 = vector.extract_strided_slice %3 {offsets = [192, 1664], sizes = [64, 128], strides = [1, 1]} : vector<512x2048xf32> to vector<64x128xf32>
    %324 = vector.broadcast %322 : vector<64x1xf32> to vector<64x128xf32>
    %325 = arith.mulf %324, %323 : vector<64x128xf32>
    %326 = arith.addf %321, %325 : vector<64x128xf32>
    %327 = vector.extract_strided_slice %256 {offsets = [0, 14], sizes = [64, 1], strides = [1, 1]} : vector<64x32xf32> to vector<64x1xf32>
    %328 = vector.extract_strided_slice %3 {offsets = [192, 1792], sizes = [64, 128], strides = [1, 1]} : vector<512x2048xf32> to vector<64x128xf32>
    %329 = vector.broadcast %327 : vector<64x1xf32> to vector<64x128xf32>
    %330 = arith.mulf %329, %328 : vector<64x128xf32>
    %331 = arith.addf %326, %330 : vector<64x128xf32>
    %332 = vector.extract_strided_slice %256 {offsets = [0, 15], sizes = [64, 1], strides = [1, 1]} : vector<64x32xf32> to vector<64x1xf32>
    %333 = vector.extract_strided_slice %3 {offsets = [192, 1920], sizes = [64, 128], strides = [1, 1]} : vector<512x2048xf32> to vector<64x128xf32>
    %334 = vector.broadcast %332 : vector<64x1xf32> to vector<64x128xf32>
    %335 = arith.mulf %334, %333 : vector<64x128xf32>
    %336 = arith.addf %331, %335 : vector<64x128xf32>
    %337 = arith.truncf %336 : vector<64x128xf32> to vector<64x128xbf16>
    %c192 = arith.constant 192 : index
    %c0_9 = arith.constant 0 : index
    %338 = vector.load %arg4[%c192, %c0_9] : memref<512x128xbf16, #tpu.memory_space<vmem>>, vector<64x128xbf16>
    tpu.vector_store %arg4[%c192, %c0_9], %337 {strides = array<i32>} : memref<512x128xbf16, #tpu.memory_space<vmem>>, vector<64x128xbf16>,
    %339 = vector.extract_strided_slice %0 {offsets = [256, 0], sizes = [64, 32], strides = [1, 1]} : vector<512x32xf32> to vector<64x32xf32>
    %340 = vector.extract_strided_slice %339 {offsets = [0, 0], sizes = [64, 1], strides = [1, 1]} : vector<64x32xf32> to vector<64x1xf32>
    %341 = vector.extract_strided_slice %3 {offsets = [256, 0], sizes = [64, 128], strides = [1, 1]} : vector<512x2048xf32> to vector<64x128xf32>
    %342 = vector.broadcast %340 : vector<64x1xf32> to vector<64x128xf32>
    %343 = arith.mulf %342, %341 : vector<64x128xf32>
    %344 = arith.addf %6, %343 : vector<64x128xf32>
    %345 = vector.extract_strided_slice %339 {offsets = [0, 1], sizes = [64, 1], strides = [1, 1]} : vector<64x32xf32> to vector<64x1xf32>
    %346 = vector.extract_strided_slice %3 {offsets = [256, 128], sizes = [64, 128], strides = [1, 1]} : vector<512x2048xf32> to vector<64x128xf32>
    %347 = vector.broadcast %345 : vector<64x1xf32> to vector<64x128xf32>
    %348 = arith.mulf %347, %346 : vector<64x128xf32>
    %349 = arith.addf %344, %348 : vector<64x128xf32>
    %350 = vector.extract_strided_slice %339 {offsets = [0, 2], sizes = [64, 1], strides = [1, 1]} : vector<64x32xf32> to vector<64x1xf32>
    %351 = vector.extract_strided_slice %3 {offsets = [256, 256], sizes = [64, 128], strides = [1, 1]} : vector<512x2048xf32> to vector<64x128xf32>
    %352 = vector.broadcast %350 : vector<64x1xf32> to vector<64x128xf32>
    %353 = arith.mulf %352, %351 : vector<64x128xf32>
    %354 = arith.addf %349, %353 : vector<64x128xf32>
    %355 = vector.extract_strided_slice %339 {offsets = [0, 3], sizes = [64, 1], strides = [1, 1]} : vector<64x32xf32> to vector<64x1xf32>
    %356 = vector.extract_strided_slice %3 {offsets = [256, 384], sizes = [64, 128], strides = [1, 1]} : vector<512x2048xf32> to vector<64x128xf32>
    %357 = vector.broadcast %355 : vector<64x1xf32> to vector<64x128xf32>
    %358 = arith.mulf %357, %356 : vector<64x128xf32>
    %359 = arith.addf %354, %358 : vector<64x128xf32>
    %360 = vector.extract_strided_slice %339 {offsets = [0, 4], sizes = [64, 1], strides = [1, 1]} : vector<64x32xf32> to vector<64x1xf32>
    %361 = vector.extract_strided_slice %3 {offsets = [256, 512], sizes = [64, 128], strides = [1, 1]} : vector<512x2048xf32> to vector<64x128xf32>
    %362 = vector.broadcast %360 : vector<64x1xf32> to vector<64x128xf32>
    %363 = arith.mulf %362, %361 : vector<64x128xf32>
    %364 = arith.addf %359, %363 : vector<64x128xf32>
    %365 = vector.extract_strided_slice %339 {offsets = [0, 5], sizes = [64, 1], strides = [1, 1]} : vector<64x32xf32> to vector<64x1xf32>
    %366 = vector.extract_strided_slice %3 {offsets = [256, 640], sizes = [64, 128], strides = [1, 1]} : vector<512x2048xf32> to vector<64x128xf32>
    %367 = vector.broadcast %365 : vector<64x1xf32> to vector<64x128xf32>
    %368 = arith.mulf %367, %366 : vector<64x128xf32>
    %369 = arith.addf %364, %368 : vector<64x128xf32>
    %370 = vector.extract_strided_slice %339 {offsets = [0, 6], sizes = [64, 1], strides = [1, 1]} : vector<64x32xf32> to vector<64x1xf32>
    %371 = vector.extract_strided_slice %3 {offsets = [256, 768], sizes = [64, 128], strides = [1, 1]} : vector<512x2048xf32> to vector<64x128xf32>
    %372 = vector.broadcast %370 : vector<64x1xf32> to vector<64x128xf32>
    %373 = arith.mulf %372, %371 : vector<64x128xf32>
    %374 = arith.addf %369, %373 : vector<64x128xf32>
    %375 = vector.extract_strided_slice %339 {offsets = [0, 7], sizes = [64, 1], strides = [1, 1]} : vector<64x32xf32> to vector<64x1xf32>
    %376 = vector.extract_strided_slice %3 {offsets = [256, 896], sizes = [64, 128], strides = [1, 1]} : vector<512x2048xf32> to vector<64x128xf32>
    %377 = vector.broadcast %375 : vector<64x1xf32> to vector<64x128xf32>
    %378 = arith.mulf %377, %376 : vector<64x128xf32>
    %379 = arith.addf %374, %378 : vector<64x128xf32>
    %380 = vector.extract_strided_slice %339 {offsets = [0, 8], sizes = [64, 1], strides = [1, 1]} : vector<64x32xf32> to vector<64x1xf32>
    %381 = vector.extract_strided_slice %3 {offsets = [256, 1024], sizes = [64, 128], strides = [1, 1]} : vector<512x2048xf32> to vector<64x128xf32>
    %382 = vector.broadcast %380 : vector<64x1xf32> to vector<64x128xf32>
    %383 = arith.mulf %382, %381 : vector<64x128xf32>
    %384 = arith.addf %379, %383 : vector<64x128xf32>
    %385 = vector.extract_strided_slice %339 {offsets = [0, 9], sizes = [64, 1], strides = [1, 1]} : vector<64x32xf32> to vector<64x1xf32>
    %386 = vector.extract_strided_slice %3 {offsets = [256, 1152], sizes = [64, 128], strides = [1, 1]} : vector<512x2048xf32> to vector<64x128xf32>
    %387 = vector.broadcast %385 : vector<64x1xf32> to vector<64x128xf32>
    %388 = arith.mulf %387, %386 : vector<64x128xf32>
    %389 = arith.addf %384, %388 : vector<64x128xf32>
    %390 = vector.extract_strided_slice %339 {offsets = [0, 10], sizes = [64, 1], strides = [1, 1]} : vector<64x32xf32> to vector<64x1xf32>
    %391 = vector.extract_strided_slice %3 {offsets = [256, 1280], sizes = [64, 128], strides = [1, 1]} : vector<512x2048xf32> to vector<64x128xf32>
    %392 = vector.broadcast %390 : vector<64x1xf32> to vector<64x128xf32>
    %393 = arith.mulf %392, %391 : vector<64x128xf32>
    %394 = arith.addf %389, %393 : vector<64x128xf32>
    %395 = vector.extract_strided_slice %339 {offsets = [0, 11], sizes = [64, 1], strides = [1, 1]} : vector<64x32xf32> to vector<64x1xf32>
    %396 = vector.extract_strided_slice %3 {offsets = [256, 1408], sizes = [64, 128], strides = [1, 1]} : vector<512x2048xf32> to vector<64x128xf32>
    %397 = vector.broadcast %395 : vector<64x1xf32> to vector<64x128xf32>
    %398 = arith.mulf %397, %396 : vector<64x128xf32>
    %399 = arith.addf %394, %398 : vector<64x128xf32>
    %400 = vector.extract_strided_slice %339 {offsets = [0, 12], sizes = [64, 1], strides = [1, 1]} : vector<64x32xf32> to vector<64x1xf32>
    %401 = vector.extract_strided_slice %3 {offsets = [256, 1536], sizes = [64, 128], strides = [1, 1]} : vector<512x2048xf32> to vector<64x128xf32>
    %402 = vector.broadcast %400 : vector<64x1xf32> to vector<64x128xf32>
    %403 = arith.mulf %402, %401 : vector<64x128xf32>
    %404 = arith.addf %399, %403 : vector<64x128xf32>
    %405 = vector.extract_strided_slice %339 {offsets = [0, 13], sizes = [64, 1], strides = [1, 1]} : vector<64x32xf32> to vector<64x1xf32>
    %406 = vector.extract_strided_slice %3 {offsets = [256, 1664], sizes = [64, 128], strides = [1, 1]} : vector<512x2048xf32> to vector<64x128xf32>
    %407 = vector.broadcast %405 : vector<64x1xf32> to vector<64x128xf32>
    %408 = arith.mulf %407, %406 : vector<64x128xf32>
    %409 = arith.addf %404, %408 : vector<64x128xf32>
    %410 = vector.extract_strided_slice %339 {offsets = [0, 14], sizes = [64, 1], strides = [1, 1]} : vector<64x32xf32> to vector<64x1xf32>
    %411 = vector.extract_strided_slice %3 {offsets = [256, 1792], sizes = [64, 128], strides = [1, 1]} : vector<512x2048xf32> to vector<64x128xf32>
    %412 = vector.broadcast %410 : vector<64x1xf32> to vector<64x128xf32>
    %413 = arith.mulf %412, %411 : vector<64x128xf32>
    %414 = arith.addf %409, %413 : vector<64x128xf32>
    %415 = vector.extract_strided_slice %339 {offsets = [0, 15], sizes = [64, 1], strides = [1, 1]} : vector<64x32xf32> to vector<64x1xf32>
    %416 = vector.extract_strided_slice %3 {offsets = [256, 1920], sizes = [64, 128], strides = [1, 1]} : vector<512x2048xf32> to vector<64x128xf32>
    %417 = vector.broadcast %415 : vector<64x1xf32> to vector<64x128xf32>
    %418 = arith.mulf %417, %416 : vector<64x128xf32>
    %419 = arith.addf %414, %418 : vector<64x128xf32>
    %420 = arith.truncf %419 : vector<64x128xf32> to vector<64x128xbf16>
    %c256 = arith.constant 256 : index
    %c0_10 = arith.constant 0 : index
    %421 = vector.load %arg4[%c256, %c0_10] : memref<512x128xbf16, #tpu.memory_space<vmem>>, vector<64x128xbf16>
    tpu.vector_store %arg4[%c256, %c0_10], %420 {strides = array<i32>} : memref<512x128xbf16, #tpu.memory_space<vmem>>, vector<64x128xbf16>,
    %422 = vector.extract_strided_slice %0 {offsets = [320, 0], sizes = [64, 32], strides = [1, 1]} : vector<512x32xf32> to vector<64x32xf32>
    %423 = vector.extract_strided_slice %422 {offsets = [0, 0], sizes = [64, 1], strides = [1, 1]} : vector<64x32xf32> to vector<64x1xf32>
    %424 = vector.extract_strided_slice %3 {offsets = [320, 0], sizes = [64, 128], strides = [1, 1]} : vector<512x2048xf32> to vector<64x128xf32>
    %425 = vector.broadcast %423 : vector<64x1xf32> to vector<64x128xf32>
    %426 = arith.mulf %425, %424 : vector<64x128xf32>
    %427 = arith.addf %6, %426 : vector<64x128xf32>
    %428 = vector.extract_strided_slice %422 {offsets = [0, 1], sizes = [64, 1], strides = [1, 1]} : vector<64x32xf32> to vector<64x1xf32>
    %429 = vector.extract_strided_slice %3 {offsets = [320, 128], sizes = [64, 128], strides = [1, 1]} : vector<512x2048xf32> to vector<64x128xf32>
    %430 = vector.broadcast %428 : vector<64x1xf32> to vector<64x128xf32>
    %431 = arith.mulf %430, %429 : vector<64x128xf32>
    %432 = arith.addf %427, %431 : vector<64x128xf32>
    %433 = vector.extract_strided_slice %422 {offsets = [0, 2], sizes = [64, 1], strides = [1, 1]} : vector<64x32xf32> to vector<64x1xf32>
    %434 = vector.extract_strided_slice %3 {offsets = [320, 256], sizes = [64, 128], strides = [1, 1]} : vector<512x2048xf32> to vector<64x128xf32>
    %435 = vector.broadcast %433 : vector<64x1xf32> to vector<64x128xf32>
    %436 = arith.mulf %435, %434 : vector<64x128xf32>
    %437 = arith.addf %432, %436 : vector<64x128xf32>
    %438 = vector.extract_strided_slice %422 {offsets = [0, 3], sizes = [64, 1], strides = [1, 1]} : vector<64x32xf32> to vector<64x1xf32>
    %439 = vector.extract_strided_slice %3 {offsets = [320, 384], sizes = [64, 128], strides = [1, 1]} : vector<512x2048xf32> to vector<64x128xf32>
    %440 = vector.broadcast %438 : vector<64x1xf32> to vector<64x128xf32>
    %441 = arith.mulf %440, %439 : vector<64x128xf32>
    %442 = arith.addf %437, %441 : vector<64x128xf32>
    %443 = vector.extract_strided_slice %422 {offsets = [0, 4], sizes = [64, 1], strides = [1, 1]} : vector<64x32xf32> to vector<64x1xf32>
    %444 = vector.extract_strided_slice %3 {offsets = [320, 512], sizes = [64, 128], strides = [1, 1]} : vector<512x2048xf32> to vector<64x128xf32>
    %445 = vector.broadcast %443 : vector<64x1xf32> to vector<64x128xf32>
    %446 = arith.mulf %445, %444 : vector<64x128xf32>
    %447 = arith.addf %442, %446 : vector<64x128xf32>
    %448 = vector.extract_strided_slice %422 {offsets = [0, 5], sizes = [64, 1], strides = [1, 1]} : vector<64x32xf32> to vector<64x1xf32>
    %449 = vector.extract_strided_slice %3 {offsets = [320, 640], sizes = [64, 128], strides = [1, 1]} : vector<512x2048xf32> to vector<64x128xf32>
    %450 = vector.broadcast %448 : vector<64x1xf32> to vector<64x128xf32>
    %451 = arith.mulf %450, %449 : vector<64x128xf32>
    %452 = arith.addf %447, %451 : vector<64x128xf32>
    %453 = vector.extract_strided_slice %422 {offsets = [0, 6], sizes = [64, 1], strides = [1, 1]} : vector<64x32xf32> to vector<64x1xf32>
    %454 = vector.extract_strided_slice %3 {offsets = [320, 768], sizes = [64, 128], strides = [1, 1]} : vector<512x2048xf32> to vector<64x128xf32>
    %455 = vector.broadcast %453 : vector<64x1xf32> to vector<64x128xf32>
    %456 = arith.mulf %455, %454 : vector<64x128xf32>
    %457 = arith.addf %452, %456 : vector<64x128xf32>
    %458 = vector.extract_strided_slice %422 {offsets = [0, 7], sizes = [64, 1], strides = [1, 1]} : vector<64x32xf32> to vector<64x1xf32>
    %459 = vector.extract_strided_slice %3 {offsets = [320, 896], sizes = [64, 128], strides = [1, 1]} : vector<512x2048xf32> to vector<64x128xf32>
    %460 = vector.broadcast %458 : vector<64x1xf32> to vector<64x128xf32>
    %461 = arith.mulf %460, %459 : vector<64x128xf32>
    %462 = arith.addf %457, %461 : vector<64x128xf32>
    %463 = vector.extract_strided_slice %422 {offsets = [0, 8], sizes = [64, 1], strides = [1, 1]} : vector<64x32xf32> to vector<64x1xf32>
    %464 = vector.extract_strided_slice %3 {offsets = [320, 1024], sizes = [64, 128], strides = [1, 1]} : vector<512x2048xf32> to vector<64x128xf32>
    %465 = vector.broadcast %463 : vector<64x1xf32> to vector<64x128xf32>
    %466 = arith.mulf %465, %464 : vector<64x128xf32>
    %467 = arith.addf %462, %466 : vector<64x128xf32>
    %468 = vector.extract_strided_slice %422 {offsets = [0, 9], sizes = [64, 1], strides = [1, 1]} : vector<64x32xf32> to vector<64x1xf32>
    %469 = vector.extract_strided_slice %3 {offsets = [320, 1152], sizes = [64, 128], strides = [1, 1]} : vector<512x2048xf32> to vector<64x128xf32>
    %470 = vector.broadcast %468 : vector<64x1xf32> to vector<64x128xf32>
    %471 = arith.mulf %470, %469 : vector<64x128xf32>
    %472 = arith.addf %467, %471 : vector<64x128xf32>
    %473 = vector.extract_strided_slice %422 {offsets = [0, 10], sizes = [64, 1], strides = [1, 1]} : vector<64x32xf32> to vector<64x1xf32>
    %474 = vector.extract_strided_slice %3 {offsets = [320, 1280], sizes = [64, 128], strides = [1, 1]} : vector<512x2048xf32> to vector<64x128xf32>
    %475 = vector.broadcast %473 : vector<64x1xf32> to vector<64x128xf32>
    %476 = arith.mulf %475, %474 : vector<64x128xf32>
    %477 = arith.addf %472, %476 : vector<64x128xf32>
    %478 = vector.extract_strided_slice %422 {offsets = [0, 11], sizes = [64, 1], strides = [1, 1]} : vector<64x32xf32> to vector<64x1xf32>
    %479 = vector.extract_strided_slice %3 {offsets = [320, 1408], sizes = [64, 128], strides = [1, 1]} : vector<512x2048xf32> to vector<64x128xf32>
    %480 = vector.broadcast %478 : vector<64x1xf32> to vector<64x128xf32>
    %481 = arith.mulf %480, %479 : vector<64x128xf32>
    %482 = arith.addf %477, %481 : vector<64x128xf32>
    %483 = vector.extract_strided_slice %422 {offsets = [0, 12], sizes = [64, 1], strides = [1, 1]} : vector<64x32xf32> to vector<64x1xf32>
    %484 = vector.extract_strided_slice %3 {offsets = [320, 1536], sizes = [64, 128], strides = [1, 1]} : vector<512x2048xf32> to vector<64x128xf32>
    %485 = vector.broadcast %483 : vector<64x1xf32> to vector<64x128xf32>
    %486 = arith.mulf %485, %484 : vector<64x128xf32>
    %487 = arith.addf %482, %486 : vector<64x128xf32>
    %488 = vector.extract_strided_slice %422 {offsets = [0, 13], sizes = [64, 1], strides = [1, 1]} : vector<64x32xf32> to vector<64x1xf32>
    %489 = vector.extract_strided_slice %3 {offsets = [320, 1664], sizes = [64, 128], strides = [1, 1]} : vector<512x2048xf32> to vector<64x128xf32>
    %490 = vector.broadcast %488 : vector<64x1xf32> to vector<64x128xf32>
    %491 = arith.mulf %490, %489 : vector<64x128xf32>
    %492 = arith.addf %487, %491 : vector<64x128xf32>
    %493 = vector.extract_strided_slice %422 {offsets = [0, 14], sizes = [64, 1], strides = [1, 1]} : vector<64x32xf32> to vector<64x1xf32>
    %494 = vector.extract_strided_slice %3 {offsets = [320, 1792], sizes = [64, 128], strides = [1, 1]} : vector<512x2048xf32> to vector<64x128xf32>
    %495 = vector.broadcast %493 : vector<64x1xf32> to vector<64x128xf32>
    %496 = arith.mulf %495, %494 : vector<64x128xf32>
    %497 = arith.addf %492, %496 : vector<64x128xf32>
    %498 = vector.extract_strided_slice %422 {offsets = [0, 15], sizes = [64, 1], strides = [1, 1]} : vector<64x32xf32> to vector<64x1xf32>
    %499 = vector.extract_strided_slice %3 {offsets = [320, 1920], sizes = [64, 128], strides = [1, 1]} : vector<512x2048xf32> to vector<64x128xf32>
    %500 = vector.broadcast %498 : vector<64x1xf32> to vector<64x128xf32>
    %501 = arith.mulf %500, %499 : vector<64x128xf32>
    %502 = arith.addf %497, %501 : vector<64x128xf32>
    %503 = arith.truncf %502 : vector<64x128xf32> to vector<64x128xbf16>
    %c320 = arith.constant 320 : index
    %c0_11 = arith.constant 0 : index
    %504 = vector.load %arg4[%c320, %c0_11] : memref<512x128xbf16, #tpu.memory_space<vmem>>, vector<64x128xbf16>
    tpu.vector_store %arg4[%c320, %c0_11], %503 {strides = array<i32>} : memref<512x128xbf16, #tpu.memory_space<vmem>>, vector<64x128xbf16>,
    %505 = vector.extract_strided_slice %0 {offsets = [384, 0], sizes = [64, 32], strides = [1, 1]} : vector<512x32xf32> to vector<64x32xf32>
    %506 = vector.extract_strided_slice %505 {offsets = [0, 0], sizes = [64, 1], strides = [1, 1]} : vector<64x32xf32> to vector<64x1xf32>
    %507 = vector.extract_strided_slice %3 {offsets = [384, 0], sizes = [64, 128], strides = [1, 1]} : vector<512x2048xf32> to vector<64x128xf32>
    %508 = vector.broadcast %506 : vector<64x1xf32> to vector<64x128xf32>
    %509 = arith.mulf %508, %507 : vector<64x128xf32>
    %510 = arith.addf %6, %509 : vector<64x128xf32>
    %511 = vector.extract_strided_slice %505 {offsets = [0, 1], sizes = [64, 1], strides = [1, 1]} : vector<64x32xf32> to vector<64x1xf32>
    %512 = vector.extract_strided_slice %3 {offsets = [384, 128], sizes = [64, 128], strides = [1, 1]} : vector<512x2048xf32> to vector<64x128xf32>
    %513 = vector.broadcast %511 : vector<64x1xf32> to vector<64x128xf32>
    %514 = arith.mulf %513, %512 : vector<64x128xf32>
    %515 = arith.addf %510, %514 : vector<64x128xf32>
    %516 = vector.extract_strided_slice %505 {offsets = [0, 2], sizes = [64, 1], strides = [1, 1]} : vector<64x32xf32> to vector<64x1xf32>
    %517 = vector.extract_strided_slice %3 {offsets = [384, 256], sizes = [64, 128], strides = [1, 1]} : vector<512x2048xf32> to vector<64x128xf32>
    %518 = vector.broadcast %516 : vector<64x1xf32> to vector<64x128xf32>
    %519 = arith.mulf %518, %517 : vector<64x128xf32>
    %520 = arith.addf %515, %519 : vector<64x128xf32>
    %521 = vector.extract_strided_slice %505 {offsets = [0, 3], sizes = [64, 1], strides = [1, 1]} : vector<64x32xf32> to vector<64x1xf32>
    %522 = vector.extract_strided_slice %3 {offsets = [384, 384], sizes = [64, 128], strides = [1, 1]} : vector<512x2048xf32> to vector<64x128xf32>
    %523 = vector.broadcast %521 : vector<64x1xf32> to vector<64x128xf32>
    %524 = arith.mulf %523, %522 : vector<64x128xf32>
    %525 = arith.addf %520, %524 : vector<64x128xf32>
    %526 = vector.extract_strided_slice %505 {offsets = [0, 4], sizes = [64, 1], strides = [1, 1]} : vector<64x32xf32> to vector<64x1xf32>
    %527 = vector.extract_strided_slice %3 {offsets = [384, 512], sizes = [64, 128], strides = [1, 1]} : vector<512x2048xf32> to vector<64x128xf32>
    %528 = vector.broadcast %526 : vector<64x1xf32> to vector<64x128xf32>
    %529 = arith.mulf %528, %527 : vector<64x128xf32>
    %530 = arith.addf %525, %529 : vector<64x128xf32>
    %531 = vector.extract_strided_slice %505 {offsets = [0, 5], sizes = [64, 1], strides = [1, 1]} : vector<64x32xf32> to vector<64x1xf32>
    %532 = vector.extract_strided_slice %3 {offsets = [384, 640], sizes = [64, 128], strides = [1, 1]} : vector<512x2048xf32> to vector<64x128xf32>
    %533 = vector.broadcast %531 : vector<64x1xf32> to vector<64x128xf32>
    %534 = arith.mulf %533, %532 : vector<64x128xf32>
    %535 = arith.addf %530, %534 : vector<64x128xf32>
    %536 = vector.extract_strided_slice %505 {offsets = [0, 6], sizes = [64, 1], strides = [1, 1]} : vector<64x32xf32> to vector<64x1xf32>
    %537 = vector.extract_strided_slice %3 {offsets = [384, 768], sizes = [64, 128], strides = [1, 1]} : vector<512x2048xf32> to vector<64x128xf32>
    %538 = vector.broadcast %536 : vector<64x1xf32> to vector<64x128xf32>
    %539 = arith.mulf %538, %537 : vector<64x128xf32>
    %540 = arith.addf %535, %539 : vector<64x128xf32>
    %541 = vector.extract_strided_slice %505 {offsets = [0, 7], sizes = [64, 1], strides = [1, 1]} : vector<64x32xf32> to vector<64x1xf32>
    %542 = vector.extract_strided_slice %3 {offsets = [384, 896], sizes = [64, 128], strides = [1, 1]} : vector<512x2048xf32> to vector<64x128xf32>
    %543 = vector.broadcast %541 : vector<64x1xf32> to vector<64x128xf32>
    %544 = arith.mulf %543, %542 : vector<64x128xf32>
    %545 = arith.addf %540, %544 : vector<64x128xf32>
    %546 = vector.extract_strided_slice %505 {offsets = [0, 8], sizes = [64, 1], strides = [1, 1]} : vector<64x32xf32> to vector<64x1xf32>
    %547 = vector.extract_strided_slice %3 {offsets = [384, 1024], sizes = [64, 128], strides = [1, 1]} : vector<512x2048xf32> to vector<64x128xf32>
    %548 = vector.broadcast %546 : vector<64x1xf32> to vector<64x128xf32>
    %549 = arith.mulf %548, %547 : vector<64x128xf32>
    %550 = arith.addf %545, %549 : vector<64x128xf32>
    %551 = vector.extract_strided_slice %505 {offsets = [0, 9], sizes = [64, 1], strides = [1, 1]} : vector<64x32xf32> to vector<64x1xf32>
    %552 = vector.extract_strided_slice %3 {offsets = [384, 1152], sizes = [64, 128], strides = [1, 1]} : vector<512x2048xf32> to vector<64x128xf32>
    %553 = vector.broadcast %551 : vector<64x1xf32> to vector<64x128xf32>
    %554 = arith.mulf %553, %552 : vector<64x128xf32>
    %555 = arith.addf %550, %554 : vector<64x128xf32>
    %556 = vector.extract_strided_slice %505 {offsets = [0, 10], sizes = [64, 1], strides = [1, 1]} : vector<64x32xf32> to vector<64x1xf32>
    %557 = vector.extract_strided_slice %3 {offsets = [384, 1280], sizes = [64, 128], strides = [1, 1]} : vector<512x2048xf32> to vector<64x128xf32>
    %558 = vector.broadcast %556 : vector<64x1xf32> to vector<64x128xf32>
    %559 = arith.mulf %558, %557 : vector<64x128xf32>
    %560 = arith.addf %555, %559 : vector<64x128xf32>
    %561 = vector.extract_strided_slice %505 {offsets = [0, 11], sizes = [64, 1], strides = [1, 1]} : vector<64x32xf32> to vector<64x1xf32>
    %562 = vector.extract_strided_slice %3 {offsets = [384, 1408], sizes = [64, 128], strides = [1, 1]} : vector<512x2048xf32> to vector<64x128xf32>
    %563 = vector.broadcast %561 : vector<64x1xf32> to vector<64x128xf32>
    %564 = arith.mulf %563, %562 : vector<64x128xf32>
    %565 = arith.addf %560, %564 : vector<64x128xf32>
    %566 = vector.extract_strided_slice %505 {offsets = [0, 12], sizes = [64, 1], strides = [1, 1]} : vector<64x32xf32> to vector<64x1xf32>
    %567 = vector.extract_strided_slice %3 {offsets = [384, 1536], sizes = [64, 128], strides = [1, 1]} : vector<512x2048xf32> to vector<64x128xf32>
    %568 = vector.broadcast %566 : vector<64x1xf32> to vector<64x128xf32>
    %569 = arith.mulf %568, %567 : vector<64x128xf32>
    %570 = arith.addf %565, %569 : vector<64x128xf32>
    %571 = vector.extract_strided_slice %505 {offsets = [0, 13], sizes = [64, 1], strides = [1, 1]} : vector<64x32xf32> to vector<64x1xf32>
    %572 = vector.extract_strided_slice %3 {offsets = [384, 1664], sizes = [64, 128], strides = [1, 1]} : vector<512x2048xf32> to vector<64x128xf32>
    %573 = vector.broadcast %571 : vector<64x1xf32> to vector<64x128xf32>
    %574 = arith.mulf %573, %572 : vector<64x128xf32>
    %575 = arith.addf %570, %574 : vector<64x128xf32>
    %576 = vector.extract_strided_slice %505 {offsets = [0, 14], sizes = [64, 1], strides = [1, 1]} : vector<64x32xf32> to vector<64x1xf32>
    %577 = vector.extract_strided_slice %3 {offsets = [384, 1792], sizes = [64, 128], strides = [1, 1]} : vector<512x2048xf32> to vector<64x128xf32>
    %578 = vector.broadcast %576 : vector<64x1xf32> to vector<64x128xf32>
    %579 = arith.mulf %578, %577 : vector<64x128xf32>
    %580 = arith.addf %575, %579 : vector<64x128xf32>
    %581 = vector.extract_strided_slice %505 {offsets = [0, 15], sizes = [64, 1], strides = [1, 1]} : vector<64x32xf32> to vector<64x1xf32>
    %582 = vector.extract_strided_slice %3 {offsets = [384, 1920], sizes = [64, 128], strides = [1, 1]} : vector<512x2048xf32> to vector<64x128xf32>
    %583 = vector.broadcast %581 : vector<64x1xf32> to vector<64x128xf32>
    %584 = arith.mulf %583, %582 : vector<64x128xf32>
    %585 = arith.addf %580, %584 : vector<64x128xf32>
    %586 = arith.truncf %585 : vector<64x128xf32> to vector<64x128xbf16>
    %c384 = arith.constant 384 : index
    %c0_12 = arith.constant 0 : index
    %587 = vector.load %arg4[%c384, %c0_12] : memref<512x128xbf16, #tpu.memory_space<vmem>>, vector<64x128xbf16>
    tpu.vector_store %arg4[%c384, %c0_12], %586 {strides = array<i32>} : memref<512x128xbf16, #tpu.memory_space<vmem>>, vector<64x128xbf16>,
    %588 = vector.extract_strided_slice %0 {offsets = [448, 0], sizes = [64, 32], strides = [1, 1]} : vector<512x32xf32> to vector<64x32xf32>
    %589 = vector.extract_strided_slice %588 {offsets = [0, 0], sizes = [64, 1], strides = [1, 1]} : vector<64x32xf32> to vector<64x1xf32>
    %590 = vector.extract_strided_slice %3 {offsets = [448, 0], sizes = [64, 128], strides = [1, 1]} : vector<512x2048xf32> to vector<64x128xf32>
    %591 = vector.broadcast %589 : vector<64x1xf32> to vector<64x128xf32>
    %592 = arith.mulf %591, %590 : vector<64x128xf32>
    %593 = arith.addf %6, %592 : vector<64x128xf32>
    %594 = vector.extract_strided_slice %588 {offsets = [0, 1], sizes = [64, 1], strides = [1, 1]} : vector<64x32xf32> to vector<64x1xf32>
    %595 = vector.extract_strided_slice %3 {offsets = [448, 128], sizes = [64, 128], strides = [1, 1]} : vector<512x2048xf32> to vector<64x128xf32>
    %596 = vector.broadcast %594 : vector<64x1xf32> to vector<64x128xf32>
    %597 = arith.mulf %596, %595 : vector<64x128xf32>
    %598 = arith.addf %593, %597 : vector<64x128xf32>
    %599 = vector.extract_strided_slice %588 {offsets = [0, 2], sizes = [64, 1], strides = [1, 1]} : vector<64x32xf32> to vector<64x1xf32>
    %600 = vector.extract_strided_slice %3 {offsets = [448, 256], sizes = [64, 128], strides = [1, 1]} : vector<512x2048xf32> to vector<64x128xf32>
    %601 = vector.broadcast %599 : vector<64x1xf32> to vector<64x128xf32>
    %602 = arith.mulf %601, %600 : vector<64x128xf32>
    %603 = arith.addf %598, %602 : vector<64x128xf32>
    %604 = vector.extract_strided_slice %588 {offsets = [0, 3], sizes = [64, 1], strides = [1, 1]} : vector<64x32xf32> to vector<64x1xf32>
    %605 = vector.extract_strided_slice %3 {offsets = [448, 384], sizes = [64, 128], strides = [1, 1]} : vector<512x2048xf32> to vector<64x128xf32>
    %606 = vector.broadcast %604 : vector<64x1xf32> to vector<64x128xf32>
    %607 = arith.mulf %606, %605 : vector<64x128xf32>
    %608 = arith.addf %603, %607 : vector<64x128xf32>
    %609 = vector.extract_strided_slice %588 {offsets = [0, 4], sizes = [64, 1], strides = [1, 1]} : vector<64x32xf32> to vector<64x1xf32>
    %610 = vector.extract_strided_slice %3 {offsets = [448, 512], sizes = [64, 128], strides = [1, 1]} : vector<512x2048xf32> to vector<64x128xf32>
    %611 = vector.broadcast %609 : vector<64x1xf32> to vector<64x128xf32>
    %612 = arith.mulf %611, %610 : vector<64x128xf32>
    %613 = arith.addf %608, %612 : vector<64x128xf32>
    %614 = vector.extract_strided_slice %588 {offsets = [0, 5], sizes = [64, 1], strides = [1, 1]} : vector<64x32xf32> to vector<64x1xf32>
    %615 = vector.extract_strided_slice %3 {offsets = [448, 640], sizes = [64, 128], strides = [1, 1]} : vector<512x2048xf32> to vector<64x128xf32>
    %616 = vector.broadcast %614 : vector<64x1xf32> to vector<64x128xf32>
    %617 = arith.mulf %616, %615 : vector<64x128xf32>
    %618 = arith.addf %613, %617 : vector<64x128xf32>
    %619 = vector.extract_strided_slice %588 {offsets = [0, 6], sizes = [64, 1], strides = [1, 1]} : vector<64x32xf32> to vector<64x1xf32>
    %620 = vector.extract_strided_slice %3 {offsets = [448, 768], sizes = [64, 128], strides = [1, 1]} : vector<512x2048xf32> to vector<64x128xf32>
    %621 = vector.broadcast %619 : vector<64x1xf32> to vector<64x128xf32>
    %622 = arith.mulf %621, %620 : vector<64x128xf32>
    %623 = arith.addf %618, %622 : vector<64x128xf32>
    %624 = vector.extract_strided_slice %588 {offsets = [0, 7], sizes = [64, 1], strides = [1, 1]} : vector<64x32xf32> to vector<64x1xf32>
    %625 = vector.extract_strided_slice %3 {offsets = [448, 896], sizes = [64, 128], strides = [1, 1]} : vector<512x2048xf32> to vector<64x128xf32>
    %626 = vector.broadcast %624 : vector<64x1xf32> to vector<64x128xf32>
    %627 = arith.mulf %626, %625 : vector<64x128xf32>
    %628 = arith.addf %623, %627 : vector<64x128xf32>
    %629 = vector.extract_strided_slice %588 {offsets = [0, 8], sizes = [64, 1], strides = [1, 1]} : vector<64x32xf32> to vector<64x1xf32>
    %630 = vector.extract_strided_slice %3 {offsets = [448, 1024], sizes = [64, 128], strides = [1, 1]} : vector<512x2048xf32> to vector<64x128xf32>
    %631 = vector.broadcast %629 : vector<64x1xf32> to vector<64x128xf32>
    %632 = arith.mulf %631, %630 : vector<64x128xf32>
    %633 = arith.addf %628, %632 : vector<64x128xf32>
    %634 = vector.extract_strided_slice %588 {offsets = [0, 9], sizes = [64, 1], strides = [1, 1]} : vector<64x32xf32> to vector<64x1xf32>
    %635 = vector.extract_strided_slice %3 {offsets = [448, 1152], sizes = [64, 128], strides = [1, 1]} : vector<512x2048xf32> to vector<64x128xf32>
    %636 = vector.broadcast %634 : vector<64x1xf32> to vector<64x128xf32>
    %637 = arith.mulf %636, %635 : vector<64x128xf32>
    %638 = arith.addf %633, %637 : vector<64x128xf32>
    %639 = vector.extract_strided_slice %588 {offsets = [0, 10], sizes = [64, 1], strides = [1, 1]} : vector<64x32xf32> to vector<64x1xf32>
    %640 = vector.extract_strided_slice %3 {offsets = [448, 1280], sizes = [64, 128], strides = [1, 1]} : vector<512x2048xf32> to vector<64x128xf32>
    %641 = vector.broadcast %639 : vector<64x1xf32> to vector<64x128xf32>
    %642 = arith.mulf %641, %640 : vector<64x128xf32>
    %643 = arith.addf %638, %642 : vector<64x128xf32>
    %644 = vector.extract_strided_slice %588 {offsets = [0, 11], sizes = [64, 1], strides = [1, 1]} : vector<64x32xf32> to vector<64x1xf32>
    %645 = vector.extract_strided_slice %3 {offsets = [448, 1408], sizes = [64, 128], strides = [1, 1]} : vector<512x2048xf32> to vector<64x128xf32>
    %646 = vector.broadcast %644 : vector<64x1xf32> to vector<64x128xf32>
    %647 = arith.mulf %646, %645 : vector<64x128xf32>
    %648 = arith.addf %643, %647 : vector<64x128xf32>
    %649 = vector.extract_strided_slice %588 {offsets = [0, 12], sizes = [64, 1], strides = [1, 1]} : vector<64x32xf32> to vector<64x1xf32>
    %650 = vector.extract_strided_slice %3 {offsets = [448, 1536], sizes = [64, 128], strides = [1, 1]} : vector<512x2048xf32> to vector<64x128xf32>
    %651 = vector.broadcast %649 : vector<64x1xf32> to vector<64x128xf32>
    %652 = arith.mulf %651, %650 : vector<64x128xf32>
    %653 = arith.addf %648, %652 : vector<64x128xf32>
    %654 = vector.extract_strided_slice %588 {offsets = [0, 13], sizes = [64, 1], strides = [1, 1]} : vector<64x32xf32> to vector<64x1xf32>
    %655 = vector.extract_strided_slice %3 {offsets = [448, 1664], sizes = [64, 128], strides = [1, 1]} : vector<512x2048xf32> to vector<64x128xf32>
    %656 = vector.broadcast %654 : vector<64x1xf32> to vector<64x128xf32>
    %657 = arith.mulf %656, %655 : vector<64x128xf32>
    %658 = arith.addf %653, %657 : vector<64x128xf32>
    %659 = vector.extract_strided_slice %588 {offsets = [0, 14], sizes = [64, 1], strides = [1, 1]} : vector<64x32xf32> to vector<64x1xf32>
    %660 = vector.extract_strided_slice %3 {offsets = [448, 1792], sizes = [64, 128], strides = [1, 1]} : vector<512x2048xf32> to vector<64x128xf32>
    %661 = vector.broadcast %659 : vector<64x1xf32> to vector<64x128xf32>
    %662 = arith.mulf %661, %660 : vector<64x128xf32>
    %663 = arith.addf %658, %662 : vector<64x128xf32>
    %664 = vector.extract_strided_slice %588 {offsets = [0, 15], sizes = [64, 1], strides = [1, 1]} : vector<64x32xf32> to vector<64x1xf32>
    %665 = vector.extract_strided_slice %3 {offsets = [448, 1920], sizes = [64, 128], strides = [1, 1]} : vector<512x2048xf32> to vector<64x128xf32>
    %666 = vector.broadcast %664 : vector<64x1xf32> to vector<64x128xf32>
    %667 = arith.mulf %666, %665 : vector<64x128xf32>
    %668 = arith.addf %663, %667 : vector<64x128xf32>
    %669 = arith.truncf %668 : vector<64x128xf32> to vector<64x128xbf16>
    %c448 = arith.constant 448 : index
    %c0_13 = arith.constant 0 : index
    %670 = vector.load %arg4[%c448, %c0_13] : memref<512x128xbf16, #tpu.memory_space<vmem>>, vector<64x128xbf16>
    tpu.vector_store %arg4[%c448, %c0_13], %669 {strides = array<i32>} : memref<512x128xbf16, #tpu.memory_space<vmem>>, vector<64x128xbf16>,
    return
  }
  func.func @transform_0(%arg0: i32) -> (i32, i32) {
    %c0_i32 = arith.constant 0 : i32
    %c0_i32_0 = arith.constant 0 : i32
    return %arg0, %c0_i32 : i32, i32
  }
  func.func @transform_1(%arg0: i32) -> (i32, i32) {
    %c0_i32 = arith.constant 0 : i32
    %c0_i32_0 = arith.constant 0 : i32
    %c0_i32_1 = arith.constant 0 : i32
    return %c0_i32, %c0_i32_0 : i32, i32
  }
  func.func @transform_2(%arg0: i32) -> (i32, i32) {
    %c0_i32 = arith.constant 0 : i32
    %c0_i32_0 = arith.constant 0 : i32
    %c0_i32_1 = arith.constant 0 : i32
    return %c0_i32, %c0_i32_0 : i32, i32
  }
  func.func @transform_3(%arg0: i32) -> (i32, i32) {
    %c0_i32 = arith.constant 0 : i32
    %c0_i32_0 = arith.constant 0 : i32
    return %arg0, %c0_i32 : i32, i32
  }
}

</mosaic_0001>

<llo_original>
// kernel: qpr_forward.1
$region0: #{qpr_forward.1}
  #allocation0 [shape = 'u32[]', space=smem, size = 0x4, offset = 0x4, fixed_abs, tag = 'smem constant byte address 0x4 - core index']
  #allocation1 [shape = 'u32[144,128]{1,0:T(1,128)}', space=vmem, size = 0x12000, scoped, tag = 'internal scratch']
  %s0 = inlined_call_operand.vmem [shape: f32[512,32], index: 0, kind: input, shape index: {}]
  %s1 = inlined_call_operand.vmem [shape: bf16[32,2048], index: 1, kind: input, shape index: {}]
  %s2 = inlined_call_operand.vmem [shape: f32[1,128], index: 2, kind: input, shape index: {}]
  %s3 = inlined_call_operand.vmem [shape: bf16[512,128], index: 3, kind: output, shape index: {}]
  %s4 = sld [smem:[#allocation0]]
  $region22: #{qpr_forward.1} parent=0
    _
  %s6 = ssub.s32 1, %s4
  %s7 = scalar_select 0, %s6, %s4
  // Predicated region
  $region2: #{qpr_forward.1} parent=0 // pred_check
    _
  $region3: #{qpr_forward.1} parent=0 // pred_check_branch
    %9 = sbr.rel (0) target = $region5
  $region4: #{qpr_forward.1} parent=0 // pred_region
    _
  $region5: #{qpr_forward.1} parent=0 // pred_fallthru
    _
  // Predicated region
  $region6: #{qpr_forward.1} parent=0 // pred_check
    _
  $region7: #{qpr_forward.1} parent=0 // pred_check_branch
    %11 = sbr.rel (0) target = $region9
  $region8: #{qpr_forward.1} parent=0 // pred_region
    _
  $region9: #{qpr_forward.1} parent=0 // pred_fallthru
    _
  // Predicated region
  $region10: #{qpr_forward.1} parent=0 // pred_check
    _
  $region11: #{qpr_forward.1} parent=0 // pred_check_branch
    %13 = sbr.rel (0) target = $region13
  $region12: #{qpr_forward.1} parent=0 // pred_region
    _
  $region13: #{qpr_forward.1} parent=0 // pred_fallthru
    _
  %v15 = vld [vmem:[%s0] sm:$0xff]
  %v16 = vld [vmem:[%s0 + $0x8] sm:$0xff]
  %v17 = vld [vmem:[%s0 + $0x10] sm:$0xff]
  %v18 = vld [vmem:[%s0 + $0x18] sm:$0xff]
  %v19 = vld [vmem:[%s0 + $0x20] sm:$0xff]
  %v20 = vld [vmem:[%s0 + $0x28] sm:$0xff]
  %v21 = vld [vmem:[%s0 + $0x30] sm:$0xff]
  %v22 = vld [vmem:[%s0 + $0x38] sm:$0xff]
  %v23 = vld [vmem:[%s0 + $0x40] sm:$0xff]
  %v24 = vld [vmem:[%s0 + $0x48] sm:$0xff]
  %v25 = vld [vmem:[%s0 + $0x50] sm:$0xff]
  %v26 = vld [vmem:[%s0 + $0x58] sm:$0xff]
  %v27 = vld [vmem:[%s0 + $0x60] sm:$0xff]
  %v28 = vld [vmem:[%s0 + $0x68] sm:$0xff]
  %v29 = vld [vmem:[%s0 + $0x70] sm:$0xff]
  %v30 = vld [vmem:[%s0 + $0x78] sm:$0xff]
  %v31 = vld [vmem:[%s0 + $0x80] sm:$0xff]
  %v32 = vld [vmem:[%s0 + $0x88] sm:$0xff]
  %v33 = vld [vmem:[%s0 + $0x90] sm:$0xff]
  %v34 = vld [vmem:[%s0 + $0x98] sm:$0xff]
  %v35 = vld [vmem:[%s0 + $0xa0] sm:$0xff]
  %v36 = vld [vmem:[%s0 + $0xa8] sm:$0xff]
  %v37 = vld [vmem:[%s0 + $0xb0] sm:$0xff]
  %v38 = vld [vmem:[%s0 + $0xb8] sm:$0xff]
  %v39 = vld [vmem:[%s0 + $0xc0] sm:$0xff]
  %v40 = vld [vmem:[%s0 + $0xc8] sm:$0xff]
  %v41 = vld [vmem:[%s0 + $0xd0] sm:$0xff]
  %v42 = vld [vmem:[%s0 + $0xd8] sm:$0xff]
  %v43 = vld [vmem:[%s0 + $0xe0] sm:$0xff]
  %v44 = vld [vmem:[%s0 + $0xe8] sm:$0xff]
  %v45 = vld [vmem:[%s0 + $0xf0] sm:$0xff]
  %v46 = vld [vmem:[%s0 + $0xf8] sm:$0xff]
  %v47 = vld [vmem:[%s0 + $0x100] sm:$0xff]
  %v48 = vld [vmem:[%s0 + $0x108] sm:$0xff]
  %v49 = vld [vmem:[%s0 + $0x110] sm:$0xff]
  %v50 = vld [vmem:[%s0 + $0x118] sm:$0xff]
  %v51 = vld [vmem:[%s0 + $0x120] sm:$0xff]
  %v52 = vld [vmem:[%s0 + $0x128] sm:$0xff]
  %v53 = vld [vmem:[%s0 + $0x130] sm:$0xff]
  %v54 = vld [vmem:[%s0 + $0x138] sm:$0xff]
  %v55 = vld [vmem:[%s0 + $0x140] sm:$0xff]
  %v56 = vld [vmem:[%s0 + $0x148] sm:$0xff]
  %v57 = vld [vmem:[%s0 + $0x150] sm:$0xff]
  %v58 = vld [vmem:[%s0 + $0x158] sm:$0xff]
  %v59 = vld [vmem:[%s0 + $0x160] sm:$0xff]
  %v60 = vld [vmem:[%s0 + $0x168] sm:$0xff]
  %v61 = vld [vmem:[%s0 + $0x170] sm:$0xff]
  %v62 = vld [vmem:[%s0 + $0x178] sm:$0xff]
  %v63 = vld [vmem:[%s0 + $0x180] sm:$0xff]
  %v64 = vld [vmem:[%s0 + $0x188] sm:$0xff]
  %v65 = vld [vmem:[%s0 + $0x190] sm:$0xff]
  %v66 = vld [vmem:[%s0 + $0x198] sm:$0xff]
  %v67 = vld [vmem:[%s0 + $0x1a0] sm:$0xff]
  %v68 = vld [vmem:[%s0 + $0x1a8] sm:$0xff]
  %v69 = vld [vmem:[%s0 + $0x1b0] sm:$0xff]
  %v70 = vld [vmem:[%s0 + $0x1b8] sm:$0xff]
  %v71 = vld [vmem:[%s0 + $0x1c0] sm:$0xff]
  %v72 = vld [vmem:[%s0 + $0x1c8] sm:$0xff]
  %v73 = vld [vmem:[%s0 + $0x1d0] sm:$0xff]
  %v74 = vld [vmem:[%s0 + $0x1d8] sm:$0xff]
  %v75 = vld [vmem:[%s0 + $0x1e0] sm:$0xff]
  %v76 = vld [vmem:[%s0 + $0x1e8] sm:$0xff]
  %v77 = vld [vmem:[%s0 + $0x1f0] sm:$0xff]
  %v78 = vld [vmem:[%s0 + $0x1f8] sm:$0xff]
  %v79 = vpack.c.bf16 %v16, %v15
  %v80 = vpack.c.bf16 %v18, %v17
  %v81 = vpack.c.bf16 %v20, %v19
  %v82 = vpack.c.bf16 %v22, %v21
  %v83 = vpack.c.bf16 %v24, %v23
  %v84 = vpack.c.bf16 %v26, %v25
  %v85 = vpack.c.bf16 %v28, %v27
  %v86 = vpack.c.bf16 %v30, %v29
  %v87 = vpack.c.bf16 %v32, %v31
  %v88 = vpack.c.bf16 %v34, %v33
  %v89 = vpack.c.bf16 %v36, %v35
  %v90 = vpack.c.bf16 %v38, %v37
  %v91 = vpack.c.bf16 %v40, %v39
  %v92 = vpack.c.bf16 %v42, %v41
  %v93 = vpack.c.bf16 %v44, %v43
  %v94 = vpack.c.bf16 %v46, %v45
  %v95 = vpack.c.bf16 %v48, %v47
  %v96 = vpack.c.bf16 %v50, %v49
  %v97 = vpack.c.bf16 %v52, %v51
  %v98 = vpack.c.bf16 %v54, %v53
  %v99 = vpack.c.bf16 %v56, %v55
  %v100 = vpack.c.bf16 %v58, %v57
  %v101 = vpack.c.bf16 %v60, %v59
  %v102 = vpack.c.bf16 %v62, %v61
  %v103 = vpack.c.bf16 %v64, %v63
  %v104 = vpack.c.bf16 %v66, %v65
  %v105 = vpack.c.bf16 %v68, %v67
  %v106 = vpack.c.bf16 %v70, %v69
  %v107 = vpack.c.bf16 %v72, %v71
  %v108 = vpack.c.bf16 %v74, %v73
  %v109 = vpack.c.bf16 %v76, %v75
  %v110 = vpack.c.bf16 %v78, %v77
  %v111 = vld [vmem:[%s1] sm:$0xff]
  %v112 = vld [vmem:[%s1 + $0x8] sm:$0xff]
  %v113 = vld [vmem:[%s1 + $0x10] sm:$0xff]
  %v114 = vld [vmem:[%s1 + $0x18] sm:$0xff]
  %v115 = vld [vmem:[%s1 + $0x20] sm:$0xff]
  %v116 = vld [vmem:[%s1 + $0x28] sm:$0xff]
  %v117 = vld [vmem:[%s1 + $0x30] sm:$0xff]
  %v118 = vld [vmem:[%s1 + $0x38] sm:$0xff]
  %v119 = vld [vmem:[%s1 + $0x40] sm:$0xff]
  %v120 = vld [vmem:[%s1 + $0x48] sm:$0xff]
  %v121 = vld [vmem:[%s1 + $0x50] sm:$0xff]
  %v122 = vld [vmem:[%s1 + $0x58] sm:$0xff]
  %v123 = vld [vmem:[%s1 + $0x60] sm:$0xff]
  %v124 = vld [vmem:[%s1 + $0x68] sm:$0xff]
  %v125 = vld [vmem:[%s1 + $0x70] sm:$0xff]
  %v126 = vld [vmem:[%s1 + $0x78] sm:$0xff]
  %v127 = vld [vmem:[%s1 + $0x80] sm:$0xff]
  %v128 = vld [vmem:[%s1 + $0x88] sm:$0xff]
  %v129 = vld [vmem:[%s1 + $0x90] sm:$0xff]
  %v130 = vld [vmem:[%s1 + $0x98] sm:$0xff]
  %v131 = vld [vmem:[%s1 + $0xa0] sm:$0xff]
  %v132 = vld [vmem:[%s1 + $0xa8] sm:$0xff]
  %v133 = vld [vmem:[%s1 + $0xb0] sm:$0xff]
  %v134 = vld [vmem:[%s1 + $0xb8] sm:$0xff]
  %v135 = vld [vmem:[%s1 + $0xc0] sm:$0xff]
  %v136 = vld [vmem:[%s1 + $0xc8] sm:$0xff]
  %v137 = vld [vmem:[%s1 + $0xd0] sm:$0xff]
  %v138 = vld [vmem:[%s1 + $0xd8] sm:$0xff]
  %v139 = vld [vmem:[%s1 + $0xe0] sm:$0xff]
  %v140 = vld [vmem:[%s1 + $0xe8] sm:$0xff]
  %v141 = vld [vmem:[%s1 + $0xf0] sm:$0xff]
  %v142 = vld [vmem:[%s1 + $0xf8] sm:$0xff]
  %v175 = vunpack.c.l.b16 %v111
  %v176 = vunpack.c.h.b16 %v111
  %v177 = vunpack.c.l.b16 %v112
  %v178 = vunpack.c.h.b16 %v112
  %v179 = vunpack.c.l.b16 %v113
  %v180 = vunpack.c.h.b16 %v113
  %v181 = vunpack.c.l.b16 %v114
  %v182 = vunpack.c.h.b16 %v114
  %v183 = vunpack.c.l.b16 %v115
  %v184 = vunpack.c.h.b16 %v115
  %v185 = vunpack.c.l.b16 %v116
  %v186 = vunpack.c.h.b16 %v116
  %v187 = vunpack.c.l.b16 %v117
  %v188 = vunpack.c.h.b16 %v117
  %v189 = vunpack.c.l.b16 %v118
  %v190 = vunpack.c.h.b16 %v118
  %v191 = vunpack.c.l.b16 %v119
  %v192 = vunpack.c.h.b16 %v119
  %v193 = vunpack.c.l.b16 %v120
  %v194 = vunpack.c.h.b16 %v120
  %v195 = vunpack.c.l.b16 %v121
  %v196 = vunpack.c.h.b16 %v121
  %v197 = vunpack.c.l.b16 %v122
  %v198 = vunpack.c.h.b16 %v122
  %v199 = vunpack.c.l.b16 %v123
  %v200 = vunpack.c.h.b16 %v123
  %v201 = vunpack.c.l.b16 %v124
  %v202 = vunpack.c.h.b16 %v124
  %v203 = vunpack.c.l.b16 %v125
  %v204 = vunpack.c.h.b16 %v125
  %v205 = vunpack.c.l.b16 %v126
  %v206 = vunpack.c.h.b16 %v126
  %v207 = vunpack.c.l.b16 %v127
  %v208 = vunpack.c.h.b16 %v127
  %v209 = vunpack.c.l.b16 %v128
  %v210 = vunpack.c.h.b16 %v128
  %v211 = vunpack.c.l.b16 %v129
  %v212 = vunpack.c.h.b16 %v129
  %v213 = vunpack.c.l.b16 %v130
  %v214 = vunpack.c.h.b16 %v130
  %v215 = vunpack.c.l.b16 %v131
  %v216 = vunpack.c.h.b16 %v131
  %v217 = vunpack.c.l.b16 %v132
  %v218 = vunpack.c.h.b16 %v132
  %v219 = vunpack.c.l.b16 %v133
  %v220 = vunpack.c.h.b16 %v133
  %v221 = vunpack.c.l.b16 %v134
  %v222 = vunpack.c.h.b16 %v134
  %v223 = vunpack.c.l.b16 %v135
  %v224 = vunpack.c.h.b16 %v135
  %v225 = vunpack.c.l.b16 %v136
  %v226 = vunpack.c.h.b16 %v136
  %v227 = vunpack.c.l.b16 %v137
  %v228 = vunpack.c.h.b16 %v137
  %v229 = vunpack.c.l.b16 %v138
  %v230 = vunpack.c.h.b16 %v138
  %v231 = vunpack.c.l.b16 %v139
  %v232 = vunpack.c.h.b16 %v139
  %v233 = vunpack.c.l.b16 %v140
  %v234 = vunpack.c.h.b16 %v140
  %v235 = vunpack.c.l.b16 %v141
  %v236 = vunpack.c.h.b16 %v141
  %v237 = vunpack.c.l.b16 %v142
  %v238 = vunpack.c.h.b16 %v142
  %v239 = vpack.c.b16 %v191, %v175
  %v240 = vpack.c.b16 %v192, %v176
  %v241 = vpack.c.b16 %v193, %v177
  %v242 = vpack.c.b16 %v194, %v178
  %v243 = vpack.c.b16 %v195, %v179
  %v244 = vpack.c.b16 %v196, %v180
  %v245 = vpack.c.b16 %v197, %v181
  %v246 = vpack.c.b16 %v198, %v182
  %v247 = vpack.c.b16 %v199, %v183
  %v248 = vpack.c.b16 %v200, %v184
  %v249 = vpack.c.b16 %v201, %v185
  %v250 = vpack.c.b16 %v202, %v186
  %v251 = vpack.c.b16 %v203, %v187
  %v252 = vpack.c.b16 %v204, %v188
  %v253 = vpack.c.b16 %v205, %v189
  %v254 = vpack.c.b16 %v206, %v190
  %v255 = vpack.c.b16 %v223, %v207
  %v256 = vpack.c.b16 %v224, %v208
  %v257 = vpack.c.b16 %v225, %v209
  %v258 = vpack.c.b16 %v226, %v210
  %v259 = vpack.c.b16 %v227, %v211
  %v260 = vpack.c.b16 %v228, %v212
  %v261 = vpack.c.b16 %v229, %v213
  %v262 = vpack.c.b16 %v230, %v214
  %v263 = vpack.c.b16 %v231, %v215
  %v264 = vpack.c.b16 %v232, %v216
  %v265 = vpack.c.b16 %v233, %v217
  %v266 = vpack.c.b16 %v234, %v218
  %v267 = vpack.c.b16 %v235, %v219
  %v268 = vpack.c.b16 %v236, %v220
  %v269 = vpack.c.b16 %v237, %v221
  %v270 = vpack.c.b16 %v238, %v222
  %vm303 = vcmask 261120
  %v305 = vsel %vm303, %v79, 0
  %v308 = vsel %vm303, %v80, 0
  %v311 = vsel %vm303, %v81, 0
  %v314 = vsel %vm303, %v82, 0
  %v317 = vsel %vm303, %v83, 0
  %v320 = vsel %vm303, %v84, 0
  %v323 = vsel %vm303, %v85, 0
  %v326 = vsel %vm303, %v86, 0
  %v329 = vsel %vm303, %v87, 0
  %v332 = vsel %vm303, %v88, 0
  %v335 = vsel %vm303, %v89, 0
  %v338 = vsel %vm303, %v90, 0
  %v341 = vsel %vm303, %v91, 0
  %v344 = vsel %vm303, %v92, 0
  %v347 = vsel %vm303, %v93, 0
  %v350 = vsel %vm303, %v94, 0
  %v353 = vsel %vm303, %v95, 0
  %v356 = vsel %vm303, %v96, 0
  %v359 = vsel %vm303, %v97, 0
  %v362 = vsel %vm303, %v98, 0
  %v365 = vsel %vm303, %v99, 0
  %v368 = vsel %vm303, %v100, 0
  %v371 = vsel %vm303, %v101, 0
  %v374 = vsel %vm303, %v102, 0
  %v377 = vsel %vm303, %v103, 0
  %v380 = vsel %vm303, %v104, 0
  %v383 = vsel %vm303, %v105, 0
  %v386 = vsel %vm303, %v106, 0
  %v389 = vsel %vm303, %v107, 0
  %v392 = vsel %vm303, %v108, 0
  %v395 = vsel %vm303, %v109, 0
  %v398 = vsel %vm303, %v110, 0
  %400 = vmatprep.subr.bf16.mxu0 %v240
  %401 = vmatpush1.bf16.msra.mxu0 %v239
  %402 = vmatprep.subr.bf16.mxu0 %v256
  %403 = vmatpush1.bf16.msra.mxu0 %v255
  %404 = vmatprep.subr.bf16.mxu0 0
  %405 = vmatpush1.bf16.msra.mxu0 0
  %406 = vmatprep.subr.bf16.mxu0 0
  %407 = vmatpush1.bf16.msra.mxu0 0
  %408 = vmatprep.subr.bf16.mxu0 0
  %409 = vmatpush1.bf16.msra.mxu0 0
  %410 = vmatprep.subr.bf16.mxu0 0
  %411 = vmatpush1.bf16.msra.mxu0 0
  %412 = vmatprep.subr.bf16.mxu0 0
  %413 = vmatpush1.bf16.msra.mxu0 0
  %414 = vmatprep.subr.bf16.mxu0 0
  %415 = vmatpush1.bf16.msra.mxu0 0
  %416 = vmatprep.subr.bf16.mxu0 0
  %417 = vmatpush1.bf16.msra.mxu0 0
  %418 = vmatprep.subr.bf16.mxu0 0
  %419 = vmatpush1.bf16.msra.mxu0 0
  %420 = vmatprep.subr.bf16.mxu0 0
  %421 = vmatpush1.bf16.msra.mxu0 0
  %422 = vmatprep.subr.bf16.mxu0 0
  %423 = vmatpush1.bf16.msra.mxu0 0
  %424 = vmatprep.subr.bf16.mxu0 0
  %425 = vmatpush1.bf16.msra.mxu0 0
  %426 = vmatprep.subr.bf16.mxu0 0
  %427 = vmatpush1.bf16.msra.mxu0 0
  %428 = vmatprep.subr.bf16.mxu0 0
  %429 = vmatpush1.bf16.msra.mxu0 0
  %430 = vmatprep.subr.bf16.mxu0 0
  %431 = vmatpush1.bf16.msra.mxu0 0
  %432 = vmatprep.mubr.bf16.mxu0 0
  %433 = vmatmul.mubr.bf16.gmra.mrb[0].mxu0 %v305
  %v434 = vpop.f32.mrb[0].mxu0
  %v435 = vadd.f32 0.0, %v434
  %v436 = vpop.f32.mrb[0].mxu0
  %v437 = vadd.f32 0.0, %v436
  %v438 = vpop.f32.mrb[0].mxu0
  %v439 = vadd.f32 0.0, %v438
  %v440 = vpop.f32.mrb[0].mxu0
  %v441 = vadd.f32 0.0, %v440
  %442 = vmatprep.mubr.bf16.mxu0 0
  %443 = vmatmul.mubr.bf16.gmra.mrb[0].mxu0 %v308
  %v444 = vpop.f32.mrb[0].mxu0
  %v445 = vadd.f32 0.0, %v444
  %v446 = vpop.f32.mrb[0].mxu0
  %v447 = vadd.f32 0.0, %v446
  %v448 = vpop.f32.mrb[0].mxu0
  %v449 = vadd.f32 0.0, %v448
  %v450 = vpop.f32.mrb[0].mxu0
  %v451 = vadd.f32 0.0, %v450
  %452 = vmatprep.mubr.bf16.mxu0 0
  %453 = vmatmul.mubr.bf16.gmra.mrb[0].mxu0 %v311
  %v454 = vpop.f32.mrb[0].mxu0
  %v455 = vadd.f32 0.0, %v454
  %v456 = vpop.f32.mrb[0].mxu0
  %v457 = vadd.f32 0.0, %v456
  %v458 = vpop.f32.mrb[0].mxu0
  %v459 = vadd.f32 0.0, %v458
  %v460 = vpop.f32.mrb[0].mxu0
  %v461 = vadd.f32 0.0, %v460
  %462 = vmatprep.mubr.bf16.mxu0 0
  %463 = vmatmul.mubr.bf16.gmra.mrb[0].mxu0 %v314
  %v464 = vpop.f32.mrb[0].mxu0
  %v465 = vadd.f32 0.0, %v464
  %v466 = vpop.f32.mrb[0].mxu0
  %v467 = vadd.f32 0.0, %v466
  %v468 = vpop.f32.mrb[0].mxu0
  %v469 = vadd.f32 0.0, %v468
  %v470 = vpop.f32.mrb[0].mxu0
  %v471 = vadd.f32 0.0, %v470
  %472 = vmatprep.mubr.bf16.mxu0 0
  %473 = vmatmul.mubr.bf16.gmra.mrb[0].mxu0 %v317
  %v474 = vpop.f32.mrb[0].mxu0
  %v475 = vadd.f32 0.0, %v474
  %v476 = vpop.f32.mrb[0].mxu0
  %v477 = vadd.f32 0.0, %v476
  %v478 = vpop.f32.mrb[0].mxu0
  %v479 = vadd.f32 0.0, %v478
  %v480 = vpop.f32.mrb[0].mxu0
  %v481 = vadd.f32 0.0, %v480
  %482 = vmatprep.mubr.bf16.mxu0 0
  %483 = vmatmul.mubr.bf16.gmra.mrb[0].mxu0 %v320
  %v484 = vpop.f32.mrb[0].mxu0
  %v485 = vadd.f32 0.0, %v484
  %v486 = vpop.f32.mrb[0].mxu0
  %v487 = vadd.f32 0.0, %v486
  %v488 = vpop.f32.mrb[0].mxu0
  %v489 = vadd.f32 0.0, %v488
  %v490 = vpop.f32.mrb[0].mxu0
  %v491 = vadd.f32 0.0, %v490
  %492 = vmatprep.mubr.bf16.mxu0 0
  %493 = vmatmul.mubr.bf16.gmra.mrb[0].mxu0 %v323
  %v494 = vpop.f32.mrb[0].mxu0
  %v495 = vadd.f32 0.0, %v494
  %v496 = vpop.f32.mrb[0].mxu0
  %v497 = vadd.f32 0.0, %v496
  %v498 = vpop.f32.mrb[0].mxu0
  %v499 = vadd.f32 0.0, %v498
  %v500 = vpop.f32.mrb[0].mxu0
  %v501 = vadd.f32 0.0, %v500
  %502 = vmatprep.mubr.bf16.mxu0 0
  %503 = vmatmul.mubr.bf16.gmra.mrb[0].mxu0 %v326
  %v504 = vpop.f32.mrb[0].mxu0
  %v505 = vadd.f32 0.0, %v504
  %v506 = vpop.f32.mrb[0].mxu0
  %v507 = vadd.f32 0.0, %v506
  %v508 = vpop.f32.mrb[0].mxu0
  %v509 = vadd.f32 0.0, %v508
  %v510 = vpop.f32.mrb[0].mxu0
  %v511 = vadd.f32 0.0, %v510
  %512 = vmatprep.mubr.bf16.mxu0 0
  %513 = vmatmul.mubr.bf16.gmra.mrb[0].mxu0 %v329
  %v514 = vpop.f32.mrb[0].mxu0
  %v515 = vadd.f32 0.0, %v514
  %v516 = vpop.f32.mrb[0].mxu0
  %v517 = vadd.f32 0.0, %v516
  %v518 = vpop.f32.mrb[0].mxu0
  %v519 = vadd.f32 0.0, %v518
  %v520 = vpop.f32.mrb[0].mxu0
  %v521 = vadd.f32 0.0, %v520
  %522 = vmatprep.mubr.bf16.mxu0 0
  %523 = vmatmul.mubr.bf16.gmra.mrb[0].mxu0 %v332
  %v524 = vpop.f32.mrb[0].mxu0
  %v525 = vadd.f32 0.0, %v524
  %v526 = vpop.f32.mrb[0].mxu0
  %v527 = vadd.f32 0.0, %v526
  %v528 = vpop.f32.mrb[0].mxu0
  %v529 = vadd.f32 0.0, %v528
  %v530 = vpop.f32.mrb[0].mxu0
  %v531 = vadd.f32 0.0, %v530
  %532 = vmatprep.mubr.bf16.mxu0 0
  %533 = vmatmul.mubr.bf16.gmra.mrb[0].mxu0 %v335
  %v534 = vpop.f32.mrb[0].mxu0
  %v535 = vadd.f32 0.0, %v534
  %v536 = vpop.f32.mrb[0].mxu0
  %v537 = vadd.f32 0.0, %v536
  %v538 = vpop.f32.mrb[0].mxu0
  %v539 = vadd.f32 0.0, %v538
  %v540 = vpop.f32.mrb[0].mxu0
  %v541 = vadd.f32 0.0, %v540
  %542 = vmatprep.mubr.bf16.mxu0 0
  %543 = vmatmul.mubr.bf16.gmra.mrb[0].mxu0 %v338
  %v544 = vpop.f32.mrb[0].mxu0
  %v545 = vadd.f32 0.0, %v544
  %v546 = vpop.f32.mrb[0].mxu0
  %v547 = vadd.f32 0.0, %v546
  %v548 = vpop.f32.mrb[0].mxu0
  %v549 = vadd.f32 0.0, %v548
  %v550 = vpop.f32.mrb[0].mxu0
  %v551 = vadd.f32 0.0, %v550
  %552 = vmatprep.mubr.bf16.mxu0 0
  %553 = vmatmul.mubr.bf16.gmra.mrb[0].mxu0 %v341
  %v554 = vpop.f32.mrb[0].mxu0
  %v555 = vadd.f32 0.0, %v554
  %v556 = vpop.f32.mrb[0].mxu0
  %v557 = vadd.f32 0.0, %v556
  %v558 = vpop.f32.mrb[0].mxu0
  %v559 = vadd.f32 0.0, %v558
  %v560 = vpop.f32.mrb[0].mxu0
  %v561 = vadd.f32 0.0, %v560
  %562 = vmatprep.mubr.bf16.mxu0 0
  %563 = vmatmul.mubr.bf16.gmra.mrb[0].mxu0 %v344
  %v564 = vpop.f32.mrb[0].mxu0
  %v565 = vadd.f32 0.0, %v564
  %v566 = vpop.f32.mrb[0].mxu0
  %v567 = vadd.f32 0.0, %v566
  %v568 = vpop.f32.mrb[0].mxu0
  %v569 = vadd.f32 0.0, %v568
  %v570 = vpop.f32.mrb[0].mxu0
  %v571 = vadd.f32 0.0, %v570
  %572 = vmatprep.mubr.bf16.mxu0 0
  %573 = vmatmul.mubr.bf16.gmra.mrb[0].mxu0 %v347
  %v574 = vpop.f32.mrb[0].mxu0
  %v575 = vadd.f32 0.0, %v574
  %v576 = vpop.f32.mrb[0].mxu0
  %v577 = vadd.f32 0.0, %v576
  %v578 = vpop.f32.mrb[0].mxu0
  %v579 = vadd.f32 0.0, %v578
  %v580 = vpop.f32.mrb[0].mxu0
  %v581 = vadd.f32 0.0, %v580
  %582 = vmatprep.mubr.bf16.mxu0 0
  %583 = vmatmul.mubr.bf16.gmra.mrb[0].mxu0 %v350
  %v584 = vpop.f32.mrb[0].mxu0
  %v585 = vadd.f32 0.0, %v584
  %v586 = vpop.f32.mrb[0].mxu0
  %v587 = vadd.f32 0.0, %v586
  %v588 = vpop.f32.mrb[0].mxu0
  %v589 = vadd.f32 0.0, %v588
  %v590 = vpop.f32.mrb[0].mxu0
  %v591 = vadd.f32 0.0, %v590
  %592 = vmatprep.mubr.bf16.mxu0 0
  %593 = vmatmul.mubr.bf16.gmra.mrb[0].mxu0 %v353
  %v594 = vpop.f32.mrb[0].mxu0
  %v595 = vadd.f32 0.0, %v594
  %v596 = vpop.f32.mrb[0].mxu0
  %v597 = vadd.f32 0.0, %v596
  %v598 = vpop.f32.mrb[0].mxu0
  %v599 = vadd.f32 0.0, %v598
  %v600 = vpop.f32.mrb[0].mxu0
  %v601 = vadd.f32 0.0, %v600
  %602 = vmatprep.mubr.bf16.mxu0 0
  %603 = vmatmul.mubr.bf16.gmra.mrb[0].mxu0 %v356
  %v604 = vpop.f32.mrb[0].mxu0
  %v605 = vadd.f32 0.0, %v604
  %v606 = vpop.f32.mrb[0].mxu0
  %v607 = vadd.f32 0.0, %v606
  %v608 = vpop.f32.mrb[0].mxu0
  %v609 = vadd.f32 0.0, %v608
  %v610 = vpop.f32.mrb[0].mxu0
  %v611 = vadd.f32 0.0, %v610
  %612 = vmatprep.mubr.bf16.mxu0 0
  %613 = vmatmul.mubr.bf16.gmra.mrb[0].mxu0 %v359
  %v614 = vpop.f32.mrb[0].mxu0
  %v615 = vadd.f32 0.0, %v614
  %v616 = vpop.f32.mrb[0].mxu0
  %v617 = vadd.f32 0.0, %v616
  %v618 = vpop.f32.mrb[0].mxu0
  %v619 = vadd.f32 0.0, %v618
  %v620 = vpop.f32.mrb[0].mxu0
  %v621 = vadd.f32 0.0, %v620
  %622 = vmatprep.mubr.bf16.mxu0 0
  %623 = vmatmul.mubr.bf16.gmra.mrb[0].mxu0 %v362
  %v624 = vpop.f32.mrb[0].mxu0
  %v625 = vadd.f32 0.0, %v624
  %v626 = vpop.f32.mrb[0].mxu0
  %v627 = vadd.f32 0.0, %v626
  %v628 = vpop.f32.mrb[0].mxu0
  %v629 = vadd.f32 0.0, %v628
  %v630 = vpop.f32.mrb[0].mxu0
  %v631 = vadd.f32 0.0, %v630
  %632 = vmatprep.mubr.bf16.mxu0 0
  %633 = vmatmul.mubr.bf16.gmra.mrb[0].mxu0 %v365
  %v634 = vpop.f32.mrb[0].mxu0
  %v635 = vadd.f32 0.0, %v634
  %v636 = vpop.f32.mrb[0].mxu0
  %v637 = vadd.f32 0.0, %v636
  %v638 = vpop.f32.mrb[0].mxu0
  %v639 = vadd.f32 0.0, %v638
  %v640 = vpop.f32.mrb[0].mxu0
  %v641 = vadd.f32 0.0, %v640
  %642 = vmatprep.mubr.bf16.mxu0 0
  %643 = vmatmul.mubr.bf16.gmra.mrb[0].mxu0 %v368
  %v644 = vpop.f32.mrb[0].mxu0
  %v645 = vadd.f32 0.0, %v644
  %v646 = vpop.f32.mrb[0].mxu0
  %v647 = vadd.f32 0.0, %v646
  %v648 = vpop.f32.mrb[0].mxu0
  %v649 = vadd.f32 0.0, %v648
  %v650 = vpop.f32.mrb[0].mxu0
  %v651 = vadd.f32 0.0, %v650
  %652 = vmatprep.mubr.bf16.mxu0 0
  %653 = vmatmul.mubr.bf16.gmra.mrb[0].mxu0 %v371
  %v654 = vpop.f32.mrb[0].mxu0
  %v655 = vadd.f32 0.0, %v654
  %v656 = vpop.f32.mrb[0].mxu0
  %v657 = vadd.f32 0.0, %v656
  %v658 = vpop.f32.mrb[0].mxu0
  %v659 = vadd.f32 0.0, %v658
  %v660 = vpop.f32.mrb[0].mxu0
  %v661 = vadd.f32 0.0, %v660
  %662 = vmatprep.mubr.bf16.mxu0 0
  %663 = vmatmul.mubr.bf16.gmra.mrb[0].mxu0 %v374
  %v664 = vpop.f32.mrb[0].mxu0
  %v665 = vadd.f32 0.0, %v664
  %v666 = vpop.f32.mrb[0].mxu0
  %v667 = vadd.f32 0.0, %v666
  %v668 = vpop.f32.mrb[0].mxu0
  %v669 = vadd.f32 0.0, %v668
  %v670 = vpop.f32.mrb[0].mxu0
  %v671 = vadd.f32 0.0, %v670
  %672 = vmatprep.mubr.bf16.mxu0 0
  %673 = vmatmul.mubr.bf16.gmra.mrb[0].mxu0 %v377
  %v674 = vpop.f32.mrb[0].mxu0
  %v675 = vadd.f32 0.0, %v674
  %v676 = vpop.f32.mrb[0].mxu0
  %v677 = vadd.f32 0.0, %v676
  %v678 = vpop.f32.mrb[0].mxu0
  %v679 = vadd.f32 0.0, %v678
  %v680 = vpop.f32.mrb[0].mxu0
  %v681 = vadd.f32 0.0, %v680
  %682 = vmatprep.mubr.bf16.mxu0 0
  %683 = vmatmul.mubr.bf16.gmra.mrb[0].mxu0 %v380
  %v684 = vpop.f32.mrb[0].mxu0
  %v685 = vadd.f32 0.0, %v684
  %v686 = vpop.f32.mrb[0].mxu0
  %v687 = vadd.f32 0.0, %v686
  %v688 = vpop.f32.mrb[0].mxu0
  %v689 = vadd.f32 0.0, %v688
  %v690 = vpop.f32.mrb[0].mxu0
  %v691 = vadd.f32 0.0, %v690
  %692 = vmatprep.mubr.bf16.mxu0 0
  %693 = vmatmul.mubr.bf16.gmra.mrb[0].mxu0 %v383
  %v694 = vpop.f32.mrb[0].mxu0
  %v695 = vadd.f32 0.0, %v694
  %v696 = vpop.f32.mrb[0].mxu0
  %v697 = vadd.f32 0.0, %v696
  %v698 = vpop.f32.mrb[0].mxu0
  %v699 = vadd.f32 0.0, %v698
  %v700 = vpop.f32.mrb[0].mxu0
  %v701 = vadd.f32 0.0, %v700
  %702 = vmatprep.mubr.bf16.mxu0 0
  %703 = vmatmul.mubr.bf16.gmra.mrb[0].mxu0 %v386
  %v704 = vpop.f32.mrb[0].mxu0
  %v705 = vadd.f32 0.0, %v704
  %v706 = vpop.f32.mrb[0].mxu0
  %v707 = vadd.f32 0.0, %v706
  %v708 = vpop.f32.mrb[0].mxu0
  %v709 = vadd.f32 0.0, %v708
  %v710 = vpop.f32.mrb[0].mxu0
  %v711 = vadd.f32 0.0, %v710
  %712 = vmatprep.mubr.bf16.mxu0 0
  %713 = vmatmul.mubr.bf16.gmra.mrb[0].mxu0 %v389
  %v714 = vpop.f32.mrb[0].mxu0
  %v715 = vadd.f32 0.0, %v714
  %v716 = vpop.f32.mrb[0].mxu0
  %v717 = vadd.f32 0.0, %v716
  %v718 = vpop.f32.mrb[0].mxu0
  %v719 = vadd.f32 0.0, %v718
  %v720 = vpop.f32.mrb[0].mxu0
  %v721 = vadd.f32 0.0, %v720
  %722 = vmatprep.mubr.bf16.mxu0 0
  %723 = vmatmul.mubr.bf16.gmra.mrb[0].mxu0 %v392
  %v724 = vpop.f32.mrb[0].mxu0
  %v725 = vadd.f32 0.0, %v724
  %v726 = vpop.f32.mrb[0].mxu0
  %v727 = vadd.f32 0.0, %v726
  %v728 = vpop.f32.mrb[0].mxu0
  %v729 = vadd.f32 0.0, %v728
  %v730 = vpop.f32.mrb[0].mxu0
  %v731 = vadd.f32 0.0, %v730
  %732 = vmatprep.mubr.bf16.mxu0 0
  %733 = vmatmul.mubr.bf16.gmra.mrb[0].mxu0 %v395
  %v734 = vpop.f32.mrb[0].mxu0
  %v735 = vadd.f32 0.0, %v734
  %v736 = vpop.f32.mrb[0].mxu0
  %v737 = vadd.f32 0.0, %v736
  %v738 = vpop.f32.mrb[0].mxu0
  %v739 = vadd.f32 0.0, %v738
  %v740 = vpop.f32.mrb[0].mxu0
  %v741 = vadd.f32 0.0, %v740
  %742 = vmatprep.mubr.bf16.mxu0 0
  %743 = vmatmul.mubr.bf16.gmra.mrb[0].mxu0 %v398
  %v744 = vpop.f32.mrb[0].mxu0
  %v745 = vadd.f32 0.0, %v744
  %v746 = vpop.f32.mrb[0].mxu0
  %v747 = vadd.f32 0.0, %v746
  %v748 = vpop.f32.mrb[0].mxu0
  %v749 = vadd.f32 0.0, %v748
  %v750 = vpop.f32.mrb[0].mxu0
  %v751 = vadd.f32 0.0, %v750
  %752 = vdwg.mxu0
  %753 = vmatprep.subr.bf16.mxu0 %v242
  %754 = vmatpush1.bf16.msra.mxu0 %v241
  %755 = vmatprep.subr.bf16.mxu0 %v258
  %756 = vmatpush1.bf16.msra.mxu0 %v257
  %757 = vmatprep.subr.bf16.mxu0 0
  %758 = vmatpush1.bf16.msra.mxu0 0
  %759 = vmatprep.subr.bf16.mxu0 0
  %760 = vmatpush1.bf16.msra.mxu0 0
  %761 = vmatprep.subr.bf16.mxu0 0
  %762 = vmatpush1.bf16.msra.mxu0 0
  %763 = vmatprep.subr.bf16.mxu0 0
  %764 = vmatpush1.bf16.msra.mxu0 0
  %765 = vmatprep.subr.bf16.mxu0 0
  %766 = vmatpush1.bf16.msra.mxu0 0
  %767 = vmatprep.subr.bf16.mxu0 0
  %768 = vmatpush1.bf16.msra.mxu0 0
  %769 = vmatprep.subr.bf16.mxu0 0
  %770 = vmatpush1.bf16.msra.mxu0 0
  %771 = vmatprep.subr.bf16.mxu0 0
  %772 = vmatpush1.bf16.msra.mxu0 0
  %773 = vmatprep.subr.bf16.mxu0 0
  %774 = vmatpush1.bf16.msra.mxu0 0
  %775 = vmatprep.subr.bf16.mxu0 0
  %776 = vmatpush1.bf16.msra.mxu0 0
  %777 = vmatprep.subr.bf16.mxu0 0
  %778 = vmatpush1.bf16.msra.mxu0 0
  %779 = vmatprep.subr.bf16.mxu0 0
  %780 = vmatpush1.bf16.msra.mxu0 0
  %781 = vmatprep.subr.bf16.mxu0 0
  %782 = vmatpush1.bf16.msra.mxu0 0
  %783 = vmatprep.subr.bf16.mxu0 0
  %784 = vmatpush1.bf16.msra.mxu0 0
  %785 = vmatprep.mubr.bf16.mxu0 0
  %786 = vmatmul.mubr.bf16.gmra.mrb[0].mxu0 %v305
  %v787 = vpop.f32.mrb[0].mxu0
  %v788 = vadd.f32 0.0, %v787
  %v789 = vpop.f32.mrb[0].mxu0
  %v790 = vadd.f32 0.0, %v789
  %v791 = vpop.f32.mrb[0].mxu0
  %v792 = vadd.f32 0.0, %v791
  %v793 = vpop.f32.mrb[0].mxu0
  %v794 = vadd.f32 0.0, %v793
  %795 = vmatprep.mubr.bf16.mxu0 0
  %796 = vmatmul.mubr.bf16.gmra.mrb[0].mxu0 %v308
  %v797 = vpop.f32.mrb[0].mxu0
  %v798 = vadd.f32 0.0, %v797
  %v799 = vpop.f32.mrb[0].mxu0
  %v800 = vadd.f32 0.0, %v799
  %v801 = vpop.f32.mrb[0].mxu0
  %v802 = vadd.f32 0.0, %v801
  %v803 = vpop.f32.mrb[0].mxu0
  %v804 = vadd.f32 0.0, %v803
  %805 = vmatprep.mubr.bf16.mxu0 0
  %806 = vmatmul.mubr.bf16.gmra.mrb[0].mxu0 %v311
  %v807 = vpop.f32.mrb[0].mxu0
  %v808 = vadd.f32 0.0, %v807
  %v809 = vpop.f32.mrb[0].mxu0
  %v810 = vadd.f32 0.0, %v809
  %v811 = vpop.f32.mrb[0].mxu0
  %v812 = vadd.f32 0.0, %v811
  %v813 = vpop.f32.mrb[0].mxu0
  %v814 = vadd.f32 0.0, %v813
  %815 = vmatprep.mubr.bf16.mxu0 0
  %816 = vmatmul.mubr.bf16.gmra.mrb[0].mxu0 %v314
  %v817 = vpop.f32.mrb[0].mxu0
  %v818 = vadd.f32 0.0, %v817
  %v819 = vpop.f32.mrb[0].mxu0
  %v820 = vadd.f32 0.0, %v819
  %v821 = vpop.f32.mrb[0].mxu0
  %v822 = vadd.f32 0.0, %v821
  %v823 = vpop.f32.mrb[0].mxu0
  %v824 = vadd.f32 0.0, %v823
  %825 = vmatprep.mubr.bf16.mxu0 0
  %826 = vmatmul.mubr.bf16.gmra.mrb[0].mxu0 %v317
  %v827 = vpop.f32.mrb[0].mxu0
  %v828 = vadd.f32 0.0, %v827
  %v829 = vpop.f32.mrb[0].mxu0
  %v830 = vadd.f32 0.0, %v829
  %v831 = vpop.f32.mrb[0].mxu0
  %v832 = vadd.f32 0.0, %v831
  %v833 = vpop.f32.mrb[0].mxu0
  %v834 = vadd.f32 0.0, %v833
  %835 = vmatprep.mubr.bf16.mxu0 0
  %836 = vmatmul.mubr.bf16.gmra.mrb[0].mxu0 %v320
  %v837 = vpop.f32.mrb[0].mxu0
  %v838 = vadd.f32 0.0, %v837
  %v839 = vpop.f32.mrb[0].mxu0
  %v840 = vadd.f32 0.0, %v839
  %v841 = vpop.f32.mrb[0].mxu0
  %v842 = vadd.f32 0.0, %v841
  %v843 = vpop.f32.mrb[0].mxu0
  %v844 = vadd.f32 0.0, %v843
  %845 = vmatprep.mubr.bf16.mxu0 0
  %846 = vmatmul.mubr.bf16.gmra.mrb[0].mxu0 %v323
  %v847 = vpop.f32.mrb[0].mxu0
  %v848 = vadd.f32 0.0, %v847
  %v849 = vpop.f32.mrb[0].mxu0
  %v850 = vadd.f32 0.0, %v849
  %v851 = vpop.f32.mrb[0].mxu0
  %v852 = vadd.f32 0.0, %v851
  %v853 = vpop.f32.mrb[0].mxu0
  %v854 = vadd.f32 0.0, %v853
  %855 = vmatprep.mubr.bf16.mxu0 0
  %856 = vmatmul.mubr.bf16.gmra.mrb[0].mxu0 %v326
  %v857 = vpop.f32.mrb[0].mxu0
  %v858 = vadd.f32 0.0, %v857
  %v859 = vpop.f32.mrb[0].mxu0
  %v860 = vadd.f32 0.0, %v859
  %v861 = vpop.f32.mrb[0].mxu0
  %v862 = vadd.f32 0.0, %v861
  %v863 = vpop.f32.mrb[0].mxu0
  %v864 = vadd.f32 0.0, %v863
  %865 = vmatprep.mubr.bf16.mxu0 0
  %866 = vmatmul.mubr.bf16.gmra.mrb[0].mxu0 %v329
  %v867 = vpop.f32.mrb[0].mxu0
  %v868 = vadd.f32 0.0, %v867
  %v869 = vpop.f32.mrb[0].mxu0
  %v870 = vadd.f32 0.0, %v869
  %v871 = vpop.f32.mrb[0].mxu0
  %v872 = vadd.f32 0.0, %v871
  %v873 = vpop.f32.mrb[0].mxu0
  %v874 = vadd.f32 0.0, %v873
  %875 = vmatprep.mubr.bf16.mxu0 0
  %876 = vmatmul.mubr.bf16.gmra.mrb[0].mxu0 %v332
  %v877 = vpop.f32.mrb[0].mxu0
  %v878 = vadd.f32 0.0, %v877
  %v879 = vpop.f32.mrb[0].mxu0
  %v880 = vadd.f32 0.0, %v879
  %v881 = vpop.f32.mrb[0].mxu0
  %v882 = vadd.f32 0.0, %v881
  %v883 = vpop.f32.mrb[0].mxu0
  %v884 = vadd.f32 0.0, %v883
  %885 = vmatprep.mubr.bf16.mxu0 0
  %886 = vmatmul.mubr.bf16.gmra.mrb[0].mxu0 %v335
  %v887 = vpop.f32.mrb[0].mxu0
  %v888 = vadd.f32 0.0, %v887
  %v889 = vpop.f32.mrb[0].mxu0
  %v890 = vadd.f32 0.0, %v889
  %v891 = vpop.f32.mrb[0].mxu0
  %v892 = vadd.f32 0.0, %v891
  %v893 = vpop.f32.mrb[0].mxu0
  %v894 = vadd.f32 0.0, %v893
  %895 = vmatprep.mubr.bf16.mxu0 0
  %896 = vmatmul.mubr.bf16.gmra.mrb[0].mxu0 %v338
  %v897 = vpop.f32.mrb[0].mxu0
  %v898 = vadd.f32 0.0, %v897
  %v899 = vpop.f32.mrb[0].mxu0
  %v900 = vadd.f32 0.0, %v899
  %v901 = vpop.f32.mrb[0].mxu0
  %v902 = vadd.f32 0.0, %v901
  %v903 = vpop.f32.mrb[0].mxu0
  %v904 = vadd.f32 0.0, %v903
  %905 = vmatprep.mubr.bf16.mxu0 0
  %906 = vmatmul.mubr.bf16.gmra.mrb[0].mxu0 %v341
  %v907 = vpop.f32.mrb[0].mxu0
  %v908 = vadd.f32 0.0, %v907
  %v909 = vpop.f32.mrb[0].mxu0
  %v910 = vadd.f32 0.0, %v909
  %v911 = vpop.f32.mrb[0].mxu0
  %v912 = vadd.f32 0.0, %v911
  %v913 = vpop.f32.mrb[0].mxu0
  %v914 = vadd.f32 0.0, %v913
  %915 = vmatprep.mubr.bf16.mxu0 0
  %916 = vmatmul.mubr.bf16.gmra.mrb[0].mxu0 %v344
  %v917 = vpop.f32.mrb[0].mxu0
  %v918 = vadd.f32 0.0, %v917
  %v919 = vpop.f32.mrb[0].mxu0
  %v920 = vadd.f32 0.0, %v919
  %v921 = vpop.f32.mrb[0].mxu0
  %v922 = vadd.f32 0.0, %v921
  %v923 = vpop.f32.mrb[0].mxu0
  %v924 = vadd.f32 0.0, %v923
  %925 = vmatprep.mubr.bf16.mxu0 0
  %926 = vmatmul.mubr.bf16.gmra.mrb[0].mxu0 %v347
  %v927 = vpop.f32.mrb[0].mxu0
  %v928 = vadd.f32 0.0, %v927
  %v929 = vpop.f32.mrb[0].mxu0
  %v930 = vadd.f32 0.0, %v929
  %v931 = vpop.f32.mrb[0].mxu0
  %v932 = vadd.f32 0.0, %v931
  %v933 = vpop.f32.mrb[0].mxu0
  %v934 = vadd.f32 0.0, %v933
  %935 = vmatprep.mubr.bf16.mxu0 0
  %936 = vmatmul.mubr.bf16.gmra.mrb[0].mxu0 %v350
  %v937 = vpop.f32.mrb[0].mxu0
  %v938 = vadd.f32 0.0, %v937
  %v939 = vpop.f32.mrb[0].mxu0
  %v940 = vadd.f32 0.0, %v939
  %v941 = vpop.f32.mrb[0].mxu0
  %v942 = vadd.f32 0.0, %v941
  %v943 = vpop.f32.mrb[0].mxu0
  %v944 = vadd.f32 0.0, %v943
  %945 = vmatprep.mubr.bf16.mxu0 0
  %946 = vmatmul.mubr.bf16.gmra.mrb[0].mxu0 %v353
  %v947 = vpop.f32.mrb[0].mxu0
  %v948 = vadd.f32 0.0, %v947
  %v949 = vpop.f32.mrb[0].mxu0
  %v950 = vadd.f32 0.0, %v949
  %v951 = vpop.f32.mrb[0].mxu0
  %v952 = vadd.f32 0.0, %v951
  %v953 = vpop.f32.mrb[0].mxu0
  %v954 = vadd.f32 0.0, %v953
  %955 = vmatprep.mubr.bf16.mxu0 0
  %956 = vmatmul.mubr.bf16.gmra.mrb[0].mxu0 %v356
  %v957 = vpop.f32.mrb[0].mxu0
  %v958 = vadd.f32 0.0, %v957
  %v959 = vpop.f32.mrb[0].mxu0
  %v960 = vadd.f32 0.0, %v959
  %v961 = vpop.f32.mrb[0].mxu0
  %v962 = vadd.f32 0.0, %v961
  %v963 = vpop.f32.mrb[0].mxu0
  %v964 = vadd.f32 0.0, %v963
  %965 = vmatprep.mubr.bf16.mxu0 0
  %966 = vmatmul.mubr.bf16.gmra.mrb[0].mxu0 %v359
  %v967 = vpop.f32.mrb[0].mxu0
  %v968 = vadd.f32 0.0, %v967
  %v969 = vpop.f32.mrb[0].mxu0
  %v970 = vadd.f32 0.0, %v969
  %v971 = vpop.f32.mrb[0].mxu0
  %v972 = vadd.f32 0.0, %v971
  %v973 = vpop.f32.mrb[0].mxu0
  %v974 = vadd.f32 0.0, %v973
  %975 = vmatprep.mubr.bf16.mxu0 0
  %976 = vmatmul.mubr.bf16.gmra.mrb[0].mxu0 %v362
  %v977 = vpop.f32.mrb[0].mxu0
  %v978 = vadd.f32 0.0, %v977
  %v979 = vpop.f32.mrb[0].mxu0
  %v980 = vadd.f32 0.0, %v979
  %v981 = vpop.f32.mrb[0].mxu0
  %v982 = vadd.f32 0.0, %v981
  %v983 = vpop.f32.mrb[0].mxu0
  %v984 = vadd.f32 0.0, %v983
  %985 = vmatprep.mubr.bf16.mxu0 0
  %986 = vmatmul.mubr.bf16.gmra.mrb[0].mxu0 %v365
  %v987 = vpop.f32.mrb[0].mxu0
  %v988 = vadd.f32 0.0, %v987
  %v989 = vpop.f32.mrb[0].mxu0
  %v990 = vadd.f32 0.0, %v989
  %v991 = vpop.f32.mrb[0].mxu0
  %v992 = vadd.f32 0.0, %v991
  %v993 = vpop.f32.mrb[0].mxu0
  %v994 = vadd.f32 0.0, %v993
  %995 = vmatprep.mubr.bf16.mxu0 0
  %996 = vmatmul.mubr.bf16.gmra.mrb[0].mxu0 %v368
  %v997 = vpop.f32.mrb[0].mxu0
  %v998 = vadd.f32 0.0, %v997
  %v999 = vpop.f32.mrb[0].mxu0
  %v1000 = vadd.f32 0.0, %v999
  %v1001 = vpop.f32.mrb[0].mxu0
  %v1002 = vadd.f32 0.0, %v1001
  %v1003 = vpop.f32.mrb[0].mxu0
  %v1004 = vadd.f32 0.0, %v1003
  %1005 = vmatprep.mubr.bf16.mxu0 0
  %1006 = vmatmul.mubr.bf16.gmra.mrb[0].mxu0 %v371
  %v1007 = vpop.f32.mrb[0].mxu0
  %v1008 = vadd.f32 0.0, %v1007
  %v1009 = vpop.f32.mrb[0].mxu0
  %v1010 = vadd.f32 0.0, %v1009
  %v1011 = vpop.f32.mrb[0].mxu0
  %v1012 = vadd.f32 0.0, %v1011
  %v1013 = vpop.f32.mrb[0].mxu0
  %v1014 = vadd.f32 0.0, %v1013
  %1015 = vmatprep.mubr.bf16.mxu0 0
  %1016 = vmatmul.mubr.bf16.gmra.mrb[0].mxu0 %v374
  %v1017 = vpop.f32.mrb[0].mxu0
  %v1018 = vadd.f32 0.0, %v1017
  %v1019 = vpop.f32.mrb[0].mxu0
  %v1020 = vadd.f32 0.0, %v1019
  %v1021 = vpop.f32.mrb[0].mxu0
  %v1022 = vadd.f32 0.0, %v1021
  %v1023 = vpop.f32.mrb[0].mxu0
  %v1024 = vadd.f32 0.0, %v1023
  %1025 = vmatprep.mubr.bf16.mxu0 0
  %1026 = vmatmul.mubr.bf16.gmra.mrb[0].mxu0 %v377
  %v1027 = vpop.f32.mrb[0].mxu0
  %v1028 = vadd.f32 0.0, %v1027
  %v1029 = vpop.f32.mrb[0].mxu0
  %v1030 = vadd.f32 0.0, %v1029
  %v1031 = vpop.f32.mrb[0].mxu0
  %v1032 = vadd.f32 0.0, %v1031
  %v1033 = vpop.f32.mrb[0].mxu0
  %v1034 = vadd.f32 0.0, %v1033
  %1035 = vmatprep.mubr.bf16.mxu0 0
  %1036 = vmatmul.mubr.bf16.gmra.mrb[0].mxu0 %v380
  %v1037 = vpop.f32.mrb[0].mxu0
  %v1038 = vadd.f32 0.0, %v1037
  %v1039 = vpop.f32.mrb[0].mxu0
  %v1040 = vadd.f32 0.0, %v1039
  %v1041 = vpop.f32.mrb[0].mxu0
  %v1042 = vadd.f32 0.0, %v1041
  %v1043 = vpop.f32.mrb[0].mxu0
  %v1044 = vadd.f32 0.0, %v1043
  %1045 = vmatprep.mubr.bf16.mxu0 0
  %1046 = vmatmul.mubr.bf16.gmra.mrb[0].mxu0 %v383
  %v1047 = vpop.f32.mrb[0].mxu0
  %v1048 = vadd.f32 0.0, %v1047
  %v1049 = vpop.f32.mrb[0].mxu0
  %v1050 = vadd.f32 0.0, %v1049
  %v1051 = vpop.f32.mrb[0].mxu0
  %v1052 = vadd.f32 0.0, %v1051
  %v1053 = vpop.f32.mrb[0].mxu0
  %v1054 = vadd.f32 0.0, %v1053
  %1055 = vmatprep.mubr.bf16.mxu0 0
  %1056 = vmatmul.mubr.bf16.gmra.mrb[0].mxu0 %v386
  %v1057 = vpop.f32.mrb[0].mxu0
  %v1058 = vadd.f32 0.0, %v1057
  %v1059 = vpop.f32.mrb[0].mxu0
  %v1060 = vadd.f32 0.0, %v1059
  %v1061 = vpop.f32.mrb[0].mxu0
  %v1062 = vadd.f32 0.0, %v1061
  %v1063 = vpop.f32.mrb[0].mxu0
  %v1064 = vadd.f32 0.0, %v1063
  %1065 = vmatprep.mubr.bf16.mxu0 0
  %1066 = vmatmul.mubr.bf16.gmra.mrb[0].mxu0 %v389
  %v1067 = vpop.f32.mrb[0].mxu0
  %v1068 = vadd.f32 0.0, %v1067
  %v1069 = vpop.f32.mrb[0].mxu0
  %v1070 = vadd.f32 0.0, %v1069
  %v1071 = vpop.f32.mrb[0].mxu0
  %v1072 = vadd.f32 0.0, %v1071
  %v1073 = vpop.f32.mrb[0].mxu0
  %v1074 = vadd.f32 0.0, %v1073
  %1075 = vmatprep.mubr.bf16.mxu0 0
  %1076 = vmatmul.mubr.bf16.gmra.mrb[0].mxu0 %v392
  %v1077 = vpop.f32.mrb[0].mxu0
  %v1078 = vadd.f32 0.0, %v1077
  %v1079 = vpop.f32.mrb[0].mxu0
  %v1080 = vadd.f32 0.0, %v1079
  %v1081 = vpop.f32.mrb[0].mxu0
  %v1082 = vadd.f32 0.0, %v1081
  %v1083 = vpop.f32.mrb[0].mxu0
  %v1084 = vadd.f32 0.0, %v1083
  %1085 = vmatprep.mubr.bf16.mxu0 0
  %1086 = vmatmul.mubr.bf16.gmra.mrb[0].mxu0 %v395
  %v1087 = vpop.f32.mrb[0].mxu0
  %v1088 = vadd.f32 0.0, %v1087
  %v1089 = vpop.f32.mrb[0].mxu0
  %v1090 = vadd.f32 0.0, %v1089
  %v1091 = vpop.f32.mrb[0].mxu0
  %v1092 = vadd.f32 0.0, %v1091
  %v1093 = vpop.f32.mrb[0].mxu0
  %v1094 = vadd.f32 0.0, %v1093
  %1095 = vmatprep.mubr.bf16.mxu0 0
  %1096 = vmatmul.mubr.bf16.gmra.mrb[0].mxu0 %v398
  %v1097 = vpop.f32.mrb[0].mxu0
  %v1098 = vadd.f32 0.0, %v1097
  %v1099 = vpop.f32.mrb[0].mxu0
  %v1100 = vadd.f32 0.0, %v1099
  %v1101 = vpop.f32.mrb[0].mxu0
  %v1102 = vadd.f32 0.0, %v1101
  %v1103 = vpop.f32.mrb[0].mxu0
  %v1104 = vadd.f32 0.0, %v1103
  %1105 = vdwg.mxu0
  %1106 = vmatprep.subr.bf16.mxu0 %v244
  %1107 = vmatpush1.bf16.msra.mxu0 %v243
  %1108 = vmatprep.subr.bf16.mxu0 %v260
  %1109 = vmatpush1.bf16.msra.mxu0 %v259
  %1110 = vmatprep.subr.bf16.mxu0 0
  %1111 = vmatpush1.bf16.msra.mxu0 0
  %1112 = vmatprep.subr.bf16.mxu0 0
  %1113 = vmatpush1.bf16.msra.mxu0 0
  %1114 = vmatprep.subr.bf16.mxu0 0
  %1115 = vmatpush1.bf16.msra.mxu0 0
  %1116 = vmatprep.subr.bf16.mxu0 0
  %1117 = vmatpush1.bf16.msra.mxu0 0
  %1118 = vmatprep.subr.bf16.mxu0 0
  %1119 = vmatpush1.bf16.msra.mxu0 0
  %1120 = vmatprep.subr.bf16.mxu0 0
  %1121 = vmatpush1.bf16.msra.mxu0 0
  %1122 = vmatprep.subr.bf16.mxu0 0
  %1123 = vmatpush1.bf16.msra.mxu0 0
  %1124 = vmatprep.subr.bf16.mxu0 0
  %1125 = vmatpush1.bf16.msra.mxu0 0
  %1126 = vmatprep.subr.bf16.mxu0 0
  %1127 = vmatpush1.bf16.msra.mxu0 0
  %1128 = vmatprep.subr.bf16.mxu0 0
  %1129 = vmatpush1.bf16.msra.mxu0 0
  %1130 = vmatprep.subr.bf16.mxu0 0
  %1131 = vmatpush1.bf16.msra.mxu0 0
  %1132 = vmatprep.subr.bf16.mxu0 0
  %1133 = vmatpush1.bf16.msra.mxu0 0
  %1134 = vmatprep.subr.bf16.mxu0 0
  %1135 = vmatpush1.bf16.msra.mxu0 0
  %1136 = vmatprep.subr.bf16.mxu0 0
  %1137 = vmatpush1.bf16.msra.mxu0 0
  %1138 = vmatprep.mubr.bf16.mxu0 0
  %1139 = vmatmul.mubr.bf16.gmra.mrb[0].mxu0 %v305
  %v1140 = vpop.f32.mrb[0].mxu0
  %v1141 = vadd.f32 0.0, %v1140
  %v1142 = vpop.f32.mrb[0].mxu0
  %v1143 = vadd.f32 0.0, %v1142
  %v1144 = vpop.f32.mrb[0].mxu0
  %v1145 = vadd.f32 0.0, %v1144
  %v1146 = vpop.f32.mrb[0].mxu0
  %v1147 = vadd.f32 0.0, %v1146
  %1148 = vmatprep.mubr.bf16.mxu0 0
  %1149 = vmatmul.mubr.bf16.gmra.mrb[0].mxu0 %v308
  %v1150 = vpop.f32.mrb[0].mxu0
  %v1151 = vadd.f32 0.0, %v1150
  %v1152 = vpop.f32.mrb[0].mxu0
  %v1153 = vadd.f32 0.0, %v1152
  %v1154 = vpop.f32.mrb[0].mxu0
  %v1155 = vadd.f32 0.0, %v1154
  %v1156 = vpop.f32.mrb[0].mxu0
  %v1157 = vadd.f32 0.0, %v1156
  %1158 = vmatprep.mubr.bf16.mxu0 0
  %1159 = vmatmul.mubr.bf16.gmra.mrb[0].mxu0 %v311
  %v1160 = vpop.f32.mrb[0].mxu0
  %v1161 = vadd.f32 0.0, %v1160
  %v1162 = vpop.f32.mrb[0].mxu0
  %v1163 = vadd.f32 0.0, %v1162
  %v1164 = vpop.f32.mrb[0].mxu0
  %v1165 = vadd.f32 0.0, %v1164
  %v1166 = vpop.f32.mrb[0].mxu0
  %v1167 = vadd.f32 0.0, %v1166
  %1168 = vmatprep.mubr.bf16.mxu0 0
  %1169 = vmatmul.mubr.bf16.gmra.mrb[0].mxu0 %v314
  %v1170 = vpop.f32.mrb[0].mxu0
  %v1171 = vadd.f32 0.0, %v1170
  %v1172 = vpop.f32.mrb[0].mxu0
  %v1173 = vadd.f32 0.0, %v1172
  %v1174 = vpop.f32.mrb[0].mxu0
  %v1175 = vadd.f32 0.0, %v1174
  %v1176 = vpop.f32.mrb[0].mxu0
  %v1177 = vadd.f32 0.0, %v1176
  %1178 = vmatprep.mubr.bf16.mxu0 0
  %1179 = vmatmul.mubr.bf16.gmra.mrb[0].mxu0 %v317
  %v1180 = vpop.f32.mrb[0].mxu0
  %v1181 = vadd.f32 0.0, %v1180
  %v1182 = vpop.f32.mrb[0].mxu0
  %v1183 = vadd.f32 0.0, %v1182
  %v1184 = vpop.f32.mrb[0].mxu0
  %v1185 = vadd.f32 0.0, %v1184
  %v1186 = vpop.f32.mrb[0].mxu0
  %v1187 = vadd.f32 0.0, %v1186
  %1188 = vmatprep.mubr.bf16.mxu0 0
  %1189 = vmatmul.mubr.bf16.gmra.mrb[0].mxu0 %v320
  %v1190 = vpop.f32.mrb[0].mxu0
  %v1191 = vadd.f32 0.0, %v1190
  %v1192 = vpop.f32.mrb[0].mxu0
  %v1193 = vadd.f32 0.0, %v1192
  %v1194 = vpop.f32.mrb[0].mxu0
  %v1195 = vadd.f32 0.0, %v1194
  %v1196 = vpop.f32.mrb[0].mxu0
  %v1197 = vadd.f32 0.0, %v1196
  %1198 = vmatprep.mubr.bf16.mxu0 0
  %1199 = vmatmul.mubr.bf16.gmra.mrb[0].mxu0 %v323
  %v1200 = vpop.f32.mrb[0].mxu0
  %v1201 = vadd.f32 0.0, %v1200
  %v1202 = vpop.f32.mrb[0].mxu0
  %v1203 = vadd.f32 0.0, %v1202
  %v1204 = vpop.f32.mrb[0].mxu0
  %v1205 = vadd.f32 0.0, %v1204
  %v1206 = vpop.f32.mrb[0].mxu0
  %v1207 = vadd.f32 0.0, %v1206
  %1208 = vmatprep.mubr.bf16.mxu0 0
  %1209 = vmatmul.mubr.bf16.gmra.mrb[0].mxu0 %v326
  %v1210 = vpop.f32.mrb[0].mxu0
  %v1211 = vadd.f32 0.0, %v1210
  %v1212 = vpop.f32.mrb[0].mxu0
  %v1213 = vadd.f32 0.0, %v1212
  %v1214 = vpop.f32.mrb[0].mxu0
  %v1215 = vadd.f32 0.0, %v1214
  %v1216 = vpop.f32.mrb[0].mxu0
  %v1217 = vadd.f32 0.0, %v1216
  %1218 = vmatprep.mubr.bf16.mxu0 0
  %1219 = vmatmul.mubr.bf16.gmra.mrb[0].mxu0 %v329
  %v1220 = vpop.f32.mrb[0].mxu0
  %v1221 = vadd.f32 0.0, %v1220
  %v1222 = vpop.f32.mrb[0].mxu0
  %v1223 = vadd.f32 0.0, %v1222
  %v1224 = vpop.f32.mrb[0].mxu0
  %v1225 = vadd.f32 0.0, %v1224
  %v1226 = vpop.f32.mrb[0].mxu0
  %v1227 = vadd.f32 0.0, %v1226
  %1228 = vmatprep.mubr.bf16.mxu0 0
  %1229 = vmatmul.mubr.bf16.gmra.mrb[0].mxu0 %v332
  %v1230 = vpop.f32.mrb[0].mxu0
  %v1231 = vadd.f32 0.0, %v1230
  %v1232 = vpop.f32.mrb[0].mxu0
  %v1233 = vadd.f32 0.0, %v1232
  %v1234 = vpop.f32.mrb[0].mxu0
  %v1235 = vadd.f32 0.0, %v1234
  %v1236 = vpop.f32.mrb[0].mxu0
  %v1237 = vadd.f32 0.0, %v1236
  %1238 = vmatprep.mubr.bf16.mxu0 0
  %1239 = vmatmul.mubr.bf16.gmra.mrb[0].mxu0 %v335
  %v1240 = vpop.f32.mrb[0].mxu0
  %v1241 = vadd.f32 0.0, %v1240
  %v1242 = vpop.f32.mrb[0].mxu0
  %v1243 = vadd.f32 0.0, %v1242
  %v1244 = vpop.f32.mrb[0].mxu0
  %v1245 = vadd.f32 0.0, %v1244
  %v1246 = vpop.f32.mrb[0].mxu0
  %v1247 = vadd.f32 0.0, %v1246
  %1248 = vmatprep.mubr.bf16.mxu0 0
  %1249 = vmatmul.mubr.bf16.gmra.mrb[0].mxu0 %v338
  %v1250 = vpop.f32.mrb[0].mxu0
  %v1251 = vadd.f32 0.0, %v1250
  %v1252 = vpop.f32.mrb[0].mxu0
  %v1253 = vadd.f32 0.0, %v1252
  %v1254 = vpop.f32.mrb[0].mxu0
  %v1255 = vadd.f32 0.0, %v1254
  %v1256 = vpop.f32.mrb[0].mxu0
  %v1257 = vadd.f32 0.0, %v1256
  %1258 = vmatprep.mubr.bf16.mxu0 0
  %1259 = vmatmul.mubr.bf16.gmra.mrb[0].mxu0 %v341
  %v1260 = vpop.f32.mrb[0].mxu0
  %v1261 = vadd.f32 0.0, %v1260
  %v1262 = vpop.f32.mrb[0].mxu0
  %v1263 = vadd.f32 0.0, %v1262
  %v1264 = vpop.f32.mrb[0].mxu0
  %v1265 = vadd.f32 0.0, %v1264
  %v1266 = vpop.f32.mrb[0].mxu0
  %v1267 = vadd.f32 0.0, %v1266
  %1268 = vmatprep.mubr.bf16.mxu0 0
  %1269 = vmatmul.mubr.bf16.gmra.mrb[0].mxu0 %v344
  %v1270 = vpop.f32.mrb[0].mxu0
  %v1271 = vadd.f32 0.0, %v1270
  %v1272 = vpop.f32.mrb[0].mxu0
  %v1273 = vadd.f32 0.0, %v1272
  %v1274 = vpop.f32.mrb[0].mxu0
  %v1275 = vadd.f32 0.0, %v1274
  %v1276 = vpop.f32.mrb[0].mxu0
  %v1277 = vadd.f32 0.0, %v1276
  %1278 = vmatprep.mubr.bf16.mxu0 0
  %1279 = vmatmul.mubr.bf16.gmra.mrb[0].mxu0 %v347
  %v1280 = vpop.f32.mrb[0].mxu0
  %v1281 = vadd.f32 0.0, %v1280
  %v1282 = vpop.f32.mrb[0].mxu0
  %v1283 = vadd.f32 0.0, %v1282
  %v1284 = vpop.f32.mrb[0].mxu0
  %v1285 = vadd.f32 0.0, %v1284
  %v1286 = vpop.f32.mrb[0].mxu0
  %v1287 = vadd.f32 0.0, %v1286
  %1288 = vmatprep.mubr.bf16.mxu0 0
  %1289 = vmatmul.mubr.bf16.gmra.mrb[0].mxu0 %v350
  %v1290 = vpop.f32.mrb[0].mxu0
  %v1291 = vadd.f32 0.0, %v1290
  %v1292 = vpop.f32.mrb[0].mxu0
  %v1293 = vadd.f32 0.0, %v1292
  %v1294 = vpop.f32.mrb[0].mxu0
  %v1295 = vadd.f32 0.0, %v1294
  %v1296 = vpop.f32.mrb[0].mxu0
  %v1297 = vadd.f32 0.0, %v1296
  %1298 = vmatprep.mubr.bf16.mxu0 0
  %1299 = vmatmul.mubr.bf16.gmra.mrb[0].mxu0 %v353
  %v1300 = vpop.f32.mrb[0].mxu0
  %v1301 = vadd.f32 0.0, %v1300
  %v1302 = vpop.f32.mrb[0].mxu0
  %v1303 = vadd.f32 0.0, %v1302
  %v1304 = vpop.f32.mrb[0].mxu0
  %v1305 = vadd.f32 0.0, %v1304
  %v1306 = vpop.f32.mrb[0].mxu0
  %v1307 = vadd.f32 0.0, %v1306
  %1308 = vmatprep.mubr.bf16.mxu0 0
  %1309 = vmatmul.mubr.bf16.gmra.mrb[0].mxu0 %v356
  %v1310 = vpop.f32.mrb[0].mxu0
  %v1311 = vadd.f32 0.0, %v1310
  %v1312 = vpop.f32.mrb[0].mxu0
  %v1313 = vadd.f32 0.0, %v1312
  %v1314 = vpop.f32.mrb[0].mxu0
  %v1315 = vadd.f32 0.0, %v1314
  %v1316 = vpop.f32.mrb[0].mxu0
  %v1317 = vadd.f32 0.0, %v1316
  %1318 = vmatprep.mubr.bf16.mxu0 0
  %1319 = vmatmul.mubr.bf16.gmra.mrb[0].mxu0 %v359
  %v1320 = vpop.f32.mrb[0].mxu0
  %v1321 = vadd.f32 0.0, %v1320
  %v1322 = vpop.f32.mrb[0].mxu0
  %v1323 = vadd.f32 0.0, %v1322
  %v1324 = vpop.f32.mrb[0].mxu0
  %v1325 = vadd.f32 0.0, %v1324
  %v1326 = vpop.f32.mrb[0].mxu0
  %v1327 = vadd.f32 0.0, %v1326
  %1328 = vmatprep.mubr.bf16.mxu0 0
  %1329 = vmatmul.mubr.bf16.gmra.mrb[0].mxu0 %v362
  %v1330 = vpop.f32.mrb[0].mxu0
  %v1331 = vadd.f32 0.0, %v1330
  %v1332 = vpop.f32.mrb[0].mxu0
  %v1333 = vadd.f32 0.0, %v1332
  %v1334 = vpop.f32.mrb[0].mxu0
  %v1335 = vadd.f32 0.0, %v1334
  %v1336 = vpop.f32.mrb[0].mxu0
  %v1337 = vadd.f32 0.0, %v1336
  %1338 = vmatprep.mubr.bf16.mxu0 0
  %1339 = vmatmul.mubr.bf16.gmra.mrb[0].mxu0 %v365
  %v1340 = vpop.f32.mrb[0].mxu0
  %v1341 = vadd.f32 0.0, %v1340
  %v1342 = vpop.f32.mrb[0].mxu0
  %v1343 = vadd.f32 0.0, %v1342
  %v1344 = vpop.f32.mrb[0].mxu0
  %v1345 = vadd.f32 0.0, %v1344
  %v1346 = vpop.f32.mrb[0].mxu0
  %v1347 = vadd.f32 0.0, %v1346
  %1348 = vmatprep.mubr.bf16.mxu0 0
  %1349 = vmatmul.mubr.bf16.gmra.mrb[0].mxu0 %v368
  %v1350 = vpop.f32.mrb[0].mxu0
  %v1351 = vadd.f32 0.0, %v1350
  %v1352 = vpop.f32.mrb[0].mxu0
  %v1353 = vadd.f32 0.0, %v1352
  %v1354 = vpop.f32.mrb[0].mxu0
  %v1355 = vadd.f32 0.0, %v1354
  %v1356 = vpop.f32.mrb[0].mxu0
  %v1357 = vadd.f32 0.0, %v1356
  %1358 = vmatprep.mubr.bf16.mxu0 0
  %1359 = vmatmul.mubr.bf16.gmra.mrb[0].mxu0 %v371
  %v1360 = vpop.f32.mrb[0].mxu0
  %v1361 = vadd.f32 0.0, %v1360
  %v1362 = vpop.f32.mrb[0].mxu0
  %v1363 = vadd.f32 0.0, %v1362
  %v1364 = vpop.f32.mrb[0].mxu0
  %v1365 = vadd.f32 0.0, %v1364
  %v1366 = vpop.f32.mrb[0].mxu0
  %v1367 = vadd.f32 0.0, %v1366
  %1368 = vmatprep.mubr.bf16.mxu0 0
  %1369 = vmatmul.mubr.bf16.gmra.mrb[0].mxu0 %v374
  %v1370 = vpop.f32.mrb[0].mxu0
  %v1371 = vadd.f32 0.0, %v1370
  %v1372 = vpop.f32.mrb[0].mxu0
  %v1373 = vadd.f32 0.0, %v1372
  %v1374 = vpop.f32.mrb[0].mxu0
  %v1375 = vadd.f32 0.0, %v1374
  %v1376 = vpop.f32.mrb[0].mxu0
  %v1377 = vadd.f32 0.0, %v1376
  %1378 = vmatprep.mubr.bf16.mxu0 0
  %1379 = vmatmul.mubr.bf16.gmra.mrb[0].mxu0 %v377
  %v1380 = vpop.f32.mrb[0].mxu0
  %v1381 = vadd.f32 0.0, %v1380
  %v1382 = vpop.f32.mrb[0].mxu0
  %v1383 = vadd.f32 0.0, %v1382
  %v1384 = vpop.f32.mrb[0].mxu0
  %v1385 = vadd.f32 0.0, %v1384
  %v1386 = vpop.f32.mrb[0].mxu0
  %v1387 = vadd.f32 0.0, %v1386
  %1388 = vmatprep.mubr.bf16.mxu0 0
  %1389 = vmatmul.mubr.bf16.gmra.mrb[0].mxu0 %v380
  %v1390 = vpop.f32.mrb[0].mxu0
  %v1391 = vadd.f32 0.0, %v1390
  %v1392 = vpop.f32.mrb[0].mxu0
  %v1393 = vadd.f32 0.0, %v1392
  %v1394 = vpop.f32.mrb[0].mxu0
  %v1395 = vadd.f32 0.0, %v1394
  %v1396 = vpop.f32.mrb[0].mxu0
  %v1397 = vadd.f32 0.0, %v1396
  %1398 = vmatprep.mubr.bf16.mxu0 0
  %1399 = vmatmul.mubr.bf16.gmra.mrb[0].mxu0 %v383
  %v1400 = vpop.f32.mrb[0].mxu0
  %v1401 = vadd.f32 0.0, %v1400
  %v1402 = vpop.f32.mrb[0].mxu0
  %v1403 = vadd.f32 0.0, %v1402
  %v1404 = vpop.f32.mrb[0].mxu0
  %v1405 = vadd.f32 0.0, %v1404
  %v1406 = vpop.f32.mrb[0].mxu0
  %v1407 = vadd.f32 0.0, %v1406
  %1408 = vmatprep.mubr.bf16.mxu0 0
  %1409 = vmatmul.mubr.bf16.gmra.mrb[0].mxu0 %v386
  %v1410 = vpop.f32.mrb[0].mxu0
  %v1411 = vadd.f32 0.0, %v1410
  %v1412 = vpop.f32.mrb[0].mxu0
  %v1413 = vadd.f32 0.0, %v1412
  %v1414 = vpop.f32.mrb[0].mxu0
  %v1415 = vadd.f32 0.0, %v1414
  %v1416 = vpop.f32.mrb[0].mxu0
  %v1417 = vadd.f32 0.0, %v1416
  %1418 = vmatprep.mubr.bf16.mxu0 0
  %1419 = vmatmul.mubr.bf16.gmra.mrb[0].mxu0 %v389
  %v1420 = vpop.f32.mrb[0].mxu0
  %v1421 = vadd.f32 0.0, %v1420
  %v1422 = vpop.f32.mrb[0].mxu0
  %v1423 = vadd.f32 0.0, %v1422
  %v1424 = vpop.f32.mrb[0].mxu0
  %v1425 = vadd.f32 0.0, %v1424
  %v1426 = vpop.f32.mrb[0].mxu0
  %v1427 = vadd.f32 0.0, %v1426
  %1428 = vmatprep.mubr.bf16.mxu0 0
  %1429 = vmatmul.mubr.bf16.gmra.mrb[0].mxu0 %v392
  %v1430 = vpop.f32.mrb[0].mxu0
  %v1431 = vadd.f32 0.0, %v1430
  %v1432 = vpop.f32.mrb[0].mxu0
  %v1433 = vadd.f32 0.0, %v1432
  %v1434 = vpop.f32.mrb[0].mxu0
  %v1435 = vadd.f32 0.0, %v1434
  %v1436 = vpop.f32.mrb[0].mxu0
  %v1437 = vadd.f32 0.0, %v1436
  %1438 = vmatprep.mubr.bf16.mxu0 0
  %1439 = vmatmul.mubr.bf16.gmra.mrb[0].mxu0 %v395
  %v1440 = vpop.f32.mrb[0].mxu0
  %v1441 = vadd.f32 0.0, %v1440
  %v1442 = vpop.f32.mrb[0].mxu0
  %v1443 = vadd.f32 0.0, %v1442
  %v1444 = vpop.f32.mrb[0].mxu0
  %v1445 = vadd.f32 0.0, %v1444
  %v1446 = vpop.f32.mrb[0].mxu0
  %v1447 = vadd.f32 0.0, %v1446
  %1448 = vmatprep.mubr.bf16.mxu0 0
  %1449 = vmatmul.mubr.bf16.gmra.mrb[0].mxu0 %v398
  %v1450 = vpop.f32.mrb[0].mxu0
  %v1451 = vadd.f32 0.0, %v1450
  %v1452 = vpop.f32.mrb[0].mxu0
  %v1453 = vadd.f32 0.0, %v1452
  %v1454 = vpop.f32.mrb[0].mxu0
  %v1455 = vadd.f32 0.0, %v1454
  %v1456 = vpop.f32.mrb[0].mxu0
  %v1457 = vadd.f32 0.0, %v1456
  %1458 = vdwg.mxu0
  %1459 = vmatprep.subr.bf16.mxu0 %v246
  %1460 = vmatpush1.bf16.msra.mxu0 %v245
  %1461 = vmatprep.subr.bf16.mxu0 %v262
  %1462 = vmatpush1.bf16.msra.mxu0 %v261
  %1463 = vmatprep.subr.bf16.mxu0 0
  %1464 = vmatpush1.bf16.msra.mxu0 0
  %1465 = vmatprep.subr.bf16.mxu0 0
  %1466 = vmatpush1.bf16.msra.mxu0 0
  %1467 = vmatprep.subr.bf16.mxu0 0
  %1468 = vmatpush1.bf16.msra.mxu0 0
  %1469 = vmatprep.subr.bf16.mxu0 0
  %1470 = vmatpush1.bf16.msra.mxu0 0
  %1471 = vmatprep.subr.bf16.mxu0 0
  %1472 = vmatpush1.bf16.msra.mxu0 0
  %1473 = vmatprep.subr.bf16.mxu0 0
  %1474 = vmatpush1.bf16.msra.mxu0 0
  %1475 = vmatprep.subr.bf16.mxu0 0
  %1476 = vmatpush1.bf16.msra.mxu0 0
  %1477 = vmatprep.subr.bf16.mxu0 0
  %1478 = vmatpush1.bf16.msra.mxu0 0
  %1479 = vmatprep.subr.bf16.mxu0 0
  %1480 = vmatpush1.bf16.msra.mxu0 0
  %1481 = vmatprep.subr.bf16.mxu0 0
  %1482 = vmatpush1.bf16.msra.mxu0 0
  %1483 = vmatprep.subr.bf16.mxu0 0
  %1484 = vmatpush1.bf16.msra.mxu0 0
  %1485 = vmatprep.subr.bf16.mxu0 0
  %1486 = vmatpush1.bf16.msra.mxu0 0
  %1487 = vmatprep.subr.bf16.mxu0 0
  %1488 = vmatpush1.bf16.msra.mxu0 0
  %1489 = vmatprep.subr.bf16.mxu0 0
  %1490 = vmatpush1.bf16.msra.mxu0 0
  %1491 = vmatprep.mubr.bf16.mxu0 0
  %1492 = vmatmul.mubr.bf16.gmra.mrb[0].mxu0 %v305
  %v1493 = vpop.f32.mrb[0].mxu0
  %v1494 = vadd.f32 0.0, %v1493
  %v1495 = vpop.f32.mrb[0].mxu0
  %v1496 = vadd.f32 0.0, %v1495
  %v1497 = vpop.f32.mrb[0].mxu0
  %v1498 = vadd.f32 0.0, %v1497
  %v1499 = vpop.f32.mrb[0].mxu0
  %v1500 = vadd.f32 0.0, %v1499
  %1501 = vmatprep.mubr.bf16.mxu0 0
  %1502 = vmatmul.mubr.bf16.gmra.mrb[0].mxu0 %v308
  %v1503 = vpop.f32.mrb[0].mxu0
  %v1504 = vadd.f32 0.0, %v1503
  %v1505 = vpop.f32.mrb[0].mxu0
  %v1506 = vadd.f32 0.0, %v1505
  %v1507 = vpop.f32.mrb[0].mxu0
  %v1508 = vadd.f32 0.0, %v1507
  %v1509 = vpop.f32.mrb[0].mxu0
  %v1510 = vadd.f32 0.0, %v1509
  %1511 = vmatprep.mubr.bf16.mxu0 0
  %1512 = vmatmul.mubr.bf16.gmra.mrb[0].mxu0 %v311
  %v1513 = vpop.f32.mrb[0].mxu0
  %v1514 = vadd.f32 0.0, %v1513
  %v1515 = vpop.f32.mrb[0].mxu0
  %v1516 = vadd.f32 0.0, %v1515
  %v1517 = vpop.f32.mrb[0].mxu0
  %v1518 = vadd.f32 0.0, %v1517
  %v1519 = vpop.f32.mrb[0].mxu0
  %v1520 = vadd.f32 0.0, %v1519
  %1521 = vmatprep.mubr.bf16.mxu0 0
  %1522 = vmatmul.mubr.bf16.gmra.mrb[0].mxu0 %v314
  %v1523 = vpop.f32.mrb[0].mxu0
  %v1524 = vadd.f32 0.0, %v1523
  %v1525 = vpop.f32.mrb[0].mxu0
  %v1526 = vadd.f32 0.0, %v1525
  %v1527 = vpop.f32.mrb[0].mxu0
  %v1528 = vadd.f32 0.0, %v1527
  %v1529 = vpop.f32.mrb[0].mxu0
  %v1530 = vadd.f32 0.0, %v1529
  %1531 = vmatprep.mubr.bf16.mxu0 0
  %1532 = vmatmul.mubr.bf16.gmra.mrb[0].mxu0 %v317
  %v1533 = vpop.f32.mrb[0].mxu0
  %v1534 = vadd.f32 0.0, %v1533
  %v1535 = vpop.f32.mrb[0].mxu0
  %v1536 = vadd.f32 0.0, %v1535
  %v1537 = vpop.f32.mrb[0].mxu0
  %v1538 = vadd.f32 0.0, %v1537
  %v1539 = vpop.f32.mrb[0].mxu0
  %v1540 = vadd.f32 0.0, %v1539
  %1541 = vmatprep.mubr.bf16.mxu0 0
  %1542 = vmatmul.mubr.bf16.gmra.mrb[0].mxu0 %v320
  %v1543 = vpop.f32.mrb[0].mxu0
  %v1544 = vadd.f32 0.0, %v1543
  %v1545 = vpop.f32.mrb[0].mxu0
  %v1546 = vadd.f32 0.0, %v1545
  %v1547 = vpop.f32.mrb[0].mxu0
  %v1548 = vadd.f32 0.0, %v1547
  %v1549 = vpop.f32.mrb[0].mxu0
  %v1550 = vadd.f32 0.0, %v1549
  %1551 = vmatprep.mubr.bf16.mxu0 0
  %1552 = vmatmul.mubr.bf16.gmra.mrb[0].mxu0 %v323
  %v1553 = vpop.f32.mrb[0].mxu0
  %v1554 = vadd.f32 0.0, %v1553
  %v1555 = vpop.f32.mrb[0].mxu0
  %v1556 = vadd.f32 0.0, %v1555
  %v1557 = vpop.f32.mrb[0].mxu0
  %v1558 = vadd.f32 0.0, %v1557
  %v1559 = vpop.f32.mrb[0].mxu0
  %v1560 = vadd.f32 0.0, %v1559
  %1561 = vmatprep.mubr.bf16.mxu0 0
  %1562 = vmatmul.mubr.bf16.gmra.mrb[0].mxu0 %v326
  %v1563 = vpop.f32.mrb[0].mxu0
  %v1564 = vadd.f32 0.0, %v1563
  %v1565 = vpop.f32.mrb[0].mxu0
  %v1566 = vadd.f32 0.0, %v1565
  %v1567 = vpop.f32.mrb[0].mxu0
  %v1568 = vadd.f32 0.0, %v1567
  %v1569 = vpop.f32.mrb[0].mxu0
  %v1570 = vadd.f32 0.0, %v1569
  %1571 = vmatprep.mubr.bf16.mxu0 0
  %1572 = vmatmul.mubr.bf16.gmra.mrb[0].mxu0 %v329
  %v1573 = vpop.f32.mrb[0].mxu0
  %v1574 = vadd.f32 0.0, %v1573
  %v1575 = vpop.f32.mrb[0].mxu0
  %v1576 = vadd.f32 0.0, %v1575
  %v1577 = vpop.f32.mrb[0].mxu0
  %v1578 = vadd.f32 0.0, %v1577
  %v1579 = vpop.f32.mrb[0].mxu0
  %v1580 = vadd.f32 0.0, %v1579
  %1581 = vmatprep.mubr.bf16.mxu0 0
  %1582 = vmatmul.mubr.bf16.gmra.mrb[0].mxu0 %v332
  %v1583 = vpop.f32.mrb[0].mxu0
  %v1584 = vadd.f32 0.0, %v1583
  %v1585 = vpop.f32.mrb[0].mxu0
  %v1586 = vadd.f32 0.0, %v1585
  %v1587 = vpop.f32.mrb[0].mxu0
  %v1588 = vadd.f32 0.0, %v1587
  %v1589 = vpop.f32.mrb[0].mxu0
  %v1590 = vadd.f32 0.0, %v1589
  %1591 = vmatprep.mubr.bf16.mxu0 0
  %1592 = vmatmul.mubr.bf16.gmra.mrb[0].mxu0 %v335
  %v1593 = vpop.f32.mrb[0].mxu0
  %v1594 = vadd.f32 0.0, %v1593
  %v1595 = vpop.f32.mrb[0].mxu0
  %v1596 = vadd.f32 0.0, %v1595
  %v1597 = vpop.f32.mrb[0].mxu0
  %v1598 = vadd.f32 0.0, %v1597
  %v1599 = vpop.f32.mrb[0].mxu0
  %v1600 = vadd.f32 0.0, %v1599
  %1601 = vmatprep.mubr.bf16.mxu0 0
  %1602 = vmatmul.mubr.bf16.gmra.mrb[0].mxu0 %v338
  %v1603 = vpop.f32.mrb[0].mxu0
  %v1604 = vadd.f32 0.0, %v1603
  %v1605 = vpop.f32.mrb[0].mxu0
  %v1606 = vadd.f32 0.0, %v1605
  %v1607 = vpop.f32.mrb[0].mxu0
  %v1608 = vadd.f32 0.0, %v1607
  %v1609 = vpop.f32.mrb[0].mxu0
  %v1610 = vadd.f32 0.0, %v1609
  %1611 = vmatprep.mubr.bf16.mxu0 0
  %1612 = vmatmul.mubr.bf16.gmra.mrb[0].mxu0 %v341
  %v1613 = vpop.f32.mrb[0].mxu0
  %v1614 = vadd.f32 0.0, %v1613
  %v1615 = vpop.f32.mrb[0].mxu0
  %v1616 = vadd.f32 0.0, %v1615
  %v1617 = vpop.f32.mrb[0].mxu0
  %v1618 = vadd.f32 0.0, %v1617
  %v1619 = vpop.f32.mrb[0].mxu0
  %v1620 = vadd.f32 0.0, %v1619
  %1621 = vmatprep.mubr.bf16.mxu0 0
  %1622 = vmatmul.mubr.bf16.gmra.mrb[0].mxu0 %v344
  %v1623 = vpop.f32.mrb[0].mxu0
  %v1624 = vadd.f32 0.0, %v1623
  %v1625 = vpop.f32.mrb[0].mxu0
  %v1626 = vadd.f32 0.0, %v1625
  %v1627 = vpop.f32.mrb[0].mxu0
  %v1628 = vadd.f32 0.0, %v1627
  %v1629 = vpop.f32.mrb[0].mxu0
  %v1630 = vadd.f32 0.0, %v1629
  %1631 = vmatprep.mubr.bf16.mxu0 0
  %1632 = vmatmul.mubr.bf16.gmra.mrb[0].mxu0 %v347
  %v1633 = vpop.f32.mrb[0].mxu0
  %v1634 = vadd.f32 0.0, %v1633
  %v1635 = vpop.f32.mrb[0].mxu0
  %v1636 = vadd.f32 0.0, %v1635
  %v1637 = vpop.f32.mrb[0].mxu0
  %v1638 = vadd.f32 0.0, %v1637
  %v1639 = vpop.f32.mrb[0].mxu0
  %v1640 = vadd.f32 0.0, %v1639
  %1641 = vmatprep.mubr.bf16.mxu0 0
  %1642 = vmatmul.mubr.bf16.gmra.mrb[0].mxu0 %v350
  %v1643 = vpop.f32.mrb[0].mxu0
  %v1644 = vadd.f32 0.0, %v1643
  %v1645 = vpop.f32.mrb[0].mxu0
  %v1646 = vadd.f32 0.0, %v1645
  %v1647 = vpop.f32.mrb[0].mxu0
  %v1648 = vadd.f32 0.0, %v1647
  %v1649 = vpop.f32.mrb[0].mxu0
  %v1650 = vadd.f32 0.0, %v1649
  %1651 = vmatprep.mubr.bf16.mxu0 0
  %1652 = vmatmul.mubr.bf16.gmra.mrb[0].mxu0 %v353
  %v1653 = vpop.f32.mrb[0].mxu0
  %v1654 = vadd.f32 0.0, %v1653
  %v1655 = vpop.f32.mrb[0].mxu0
  %v1656 = vadd.f32 0.0, %v1655
  %v1657 = vpop.f32.mrb[0].mxu0
  %v1658 = vadd.f32 0.0, %v1657
  %v1659 = vpop.f32.mrb[0].mxu0
  %v1660 = vadd.f32 0.0, %v1659
  %1661 = vmatprep.mubr.bf16.mxu0 0
  %1662 = vmatmul.mubr.bf16.gmra.mrb[0].mxu0 %v356
  %v1663 = vpop.f32.mrb[0].mxu0
  %v1664 = vadd.f32 0.0, %v1663
  %v1665 = vpop.f32.mrb[0].mxu0
  %v1666 = vadd.f32 0.0, %v1665
  %v1667 = vpop.f32.mrb[0].mxu0
  %v1668 = vadd.f32 0.0, %v1667
  %v1669 = vpop.f32.mrb[0].mxu0
  %v1670 = vadd.f32 0.0, %v1669
  %1671 = vmatprep.mubr.bf16.mxu0 0
  %1672 = vmatmul.mubr.bf16.gmra.mrb[0].mxu0 %v359
  %v1673 = vpop.f32.mrb[0].mxu0
  %v1674 = vadd.f32 0.0, %v1673
  %v1675 = vpop.f32.mrb[0].mxu0
  %v1676 = vadd.f32 0.0, %v1675
  %v1677 = vpop.f32.mrb[0].mxu0
  %v1678 = vadd.f32 0.0, %v1677
  %v1679 = vpop.f32.mrb[0].mxu0
  %v1680 = vadd.f32 0.0, %v1679
  %1681 = vmatprep.mubr.bf16.mxu0 0
  %1682 = vmatmul.mubr.bf16.gmra.mrb[0].mxu0 %v362
  %v1683 = vpop.f32.mrb[0].mxu0
  %v1684 = vadd.f32 0.0, %v1683
  %v1685 = vpop.f32.mrb[0].mxu0
  %v1686 = vadd.f32 0.0, %v1685
  %v1687 = vpop.f32.mrb[0].mxu0
  %v1688 = vadd.f32 0.0, %v1687
  %v1689 = vpop.f32.mrb[0].mxu0
  %v1690 = vadd.f32 0.0, %v1689
  %1691 = vmatprep.mubr.bf16.mxu0 0
  %1692 = vmatmul.mubr.bf16.gmra.mrb[0].mxu0 %v365
  %v1693 = vpop.f32.mrb[0].mxu0
  %v1694 = vadd.f32 0.0, %v1693
  %v1695 = vpop.f32.mrb[0].mxu0
  %v1696 = vadd.f32 0.0, %v1695
  %v1697 = vpop.f32.mrb[0].mxu0
  %v1698 = vadd.f32 0.0, %v1697
  %v1699 = vpop.f32.mrb[0].mxu0
  %v1700 = vadd.f32 0.0, %v1699
  %1701 = vmatprep.mubr.bf16.mxu0 0
  %1702 = vmatmul.mubr.bf16.gmra.mrb[0].mxu0 %v368
  %v1703 = vpop.f32.mrb[0].mxu0
  %v1704 = vadd.f32 0.0, %v1703
  %v1705 = vpop.f32.mrb[0].mxu0
  %v1706 = vadd.f32 0.0, %v1705
  %v1707 = vpop.f32.mrb[0].mxu0
  %v1708 = vadd.f32 0.0, %v1707
  %v1709 = vpop.f32.mrb[0].mxu0
  %v1710 = vadd.f32 0.0, %v1709
  %1711 = vmatprep.mubr.bf16.mxu0 0
  %1712 = vmatmul.mubr.bf16.gmra.mrb[0].mxu0 %v371
  %v1713 = vpop.f32.mrb[0].mxu0
  %v1714 = vadd.f32 0.0, %v1713
  %v1715 = vpop.f32.mrb[0].mxu0
  %v1716 = vadd.f32 0.0, %v1715
  %v1717 = vpop.f32.mrb[0].mxu0
  %v1718 = vadd.f32 0.0, %v1717
  %v1719 = vpop.f32.mrb[0].mxu0
  %v1720 = vadd.f32 0.0, %v1719
  %1721 = vmatprep.mubr.bf16.mxu0 0
  %1722 = vmatmul.mubr.bf16.gmra.mrb[0].mxu0 %v374
  %v1723 = vpop.f32.mrb[0].mxu0
  %v1724 = vadd.f32 0.0, %v1723
  %v1725 = vpop.f32.mrb[0].mxu0
  %v1726 = vadd.f32 0.0, %v1725
  %v1727 = vpop.f32.mrb[0].mxu0
  %v1728 = vadd.f32 0.0, %v1727
  %v1729 = vpop.f32.mrb[0].mxu0
  %v1730 = vadd.f32 0.0, %v1729
  %1731 = vmatprep.mubr.bf16.mxu0 0
  %1732 = vmatmul.mubr.bf16.gmra.mrb[0].mxu0 %v377
  %v1733 = vpop.f32.mrb[0].mxu0
  %v1734 = vadd.f32 0.0, %v1733
  %v1735 = vpop.f32.mrb[0].mxu0
  %v1736 = vadd.f32 0.0, %v1735
  %v1737 = vpop.f32.mrb[0].mxu0
  %v1738 = vadd.f32 0.0, %v1737
  %v1739 = vpop.f32.mrb[0].mxu0
  %v1740 = vadd.f32 0.0, %v1739
  %1741 = vmatprep.mubr.bf16.mxu0 0
  %1742 = vmatmul.mubr.bf16.gmra.mrb[0].mxu0 %v380
  %v1743 = vpop.f32.mrb[0].mxu0
  %v1744 = vadd.f32 0.0, %v1743
  %v1745 = vpop.f32.mrb[0].mxu0
  %v1746 = vadd.f32 0.0, %v1745
  %v1747 = vpop.f32.mrb[0].mxu0
  %v1748 = vadd.f32 0.0, %v1747
  %v1749 = vpop.f32.mrb[0].mxu0
  %v1750 = vadd.f32 0.0, %v1749
  %1751 = vmatprep.mubr.bf16.mxu0 0
  %1752 = vmatmul.mubr.bf16.gmra.mrb[0].mxu0 %v383
  %v1753 = vpop.f32.mrb[0].mxu0
  %v1754 = vadd.f32 0.0, %v1753
  %v1755 = vpop.f32.mrb[0].mxu0
  %v1756 = vadd.f32 0.0, %v1755
  %v1757 = vpop.f32.mrb[0].mxu0
  %v1758 = vadd.f32 0.0, %v1757
  %v1759 = vpop.f32.mrb[0].mxu0
  %v1760 = vadd.f32 0.0, %v1759
  %1761 = vmatprep.mubr.bf16.mxu0 0
  %1762 = vmatmul.mubr.bf16.gmra.mrb[0].mxu0 %v386
  %v1763 = vpop.f32.mrb[0].mxu0
  %v1764 = vadd.f32 0.0, %v1763
  %v1765 = vpop.f32.mrb[0].mxu0
  %v1766 = vadd.f32 0.0, %v1765
  %v1767 = vpop.f32.mrb[0].mxu0
  %v1768 = vadd.f32 0.0, %v1767
  %v1769 = vpop.f32.mrb[0].mxu0
  %v1770 = vadd.f32 0.0, %v1769
  %1771 = vmatprep.mubr.bf16.mxu0 0
  %1772 = vmatmul.mubr.bf16.gmra.mrb[0].mxu0 %v389
  %v1773 = vpop.f32.mrb[0].mxu0
  %v1774 = vadd.f32 0.0, %v1773
  %v1775 = vpop.f32.mrb[0].mxu0
  %v1776 = vadd.f32 0.0, %v1775
  %v1777 = vpop.f32.mrb[0].mxu0
  %v1778 = vadd.f32 0.0, %v1777
  %v1779 = vpop.f32.mrb[0].mxu0
  %v1780 = vadd.f32 0.0, %v1779
  %1781 = vmatprep.mubr.bf16.mxu0 0
  %1782 = vmatmul.mubr.bf16.gmra.mrb[0].mxu0 %v392
  %v1783 = vpop.f32.mrb[0].mxu0
  %v1784 = vadd.f32 0.0, %v1783
  %v1785 = vpop.f32.mrb[0].mxu0
  %v1786 = vadd.f32 0.0, %v1785
  %v1787 = vpop.f32.mrb[0].mxu0
  %v1788 = vadd.f32 0.0, %v1787
  %v1789 = vpop.f32.mrb[0].mxu0
  %v1790 = vadd.f32 0.0, %v1789
  %1791 = vmatprep.mubr.bf16.mxu0 0
  %1792 = vmatmul.mubr.bf16.gmra.mrb[0].mxu0 %v395
  %v1793 = vpop.f32.mrb[0].mxu0
  %v1794 = vadd.f32 0.0, %v1793
  %v1795 = vpop.f32.mrb[0].mxu0
  %v1796 = vadd.f32 0.0, %v1795
  %v1797 = vpop.f32.mrb[0].mxu0
  %v1798 = vadd.f32 0.0, %v1797
  %v1799 = vpop.f32.mrb[0].mxu0
  %v1800 = vadd.f32 0.0, %v1799
  %1801 = vmatprep.mubr.bf16.mxu0 0
  %1802 = vmatmul.mubr.bf16.gmra.mrb[0].mxu0 %v398
  %v1803 = vpop.f32.mrb[0].mxu0
  %v1804 = vadd.f32 0.0, %v1803
  %v1805 = vpop.f32.mrb[0].mxu0
  %v1806 = vadd.f32 0.0, %v1805
  %v1807 = vpop.f32.mrb[0].mxu0
  %v1808 = vadd.f32 0.0, %v1807
  %v1809 = vpop.f32.mrb[0].mxu0
  %v1810 = vadd.f32 0.0, %v1809
  %1811 = vdwg.mxu0
  %1812 = vmatprep.subr.bf16.mxu0 %v248
  %1813 = vmatpush1.bf16.msra.mxu0 %v247
  %1814 = vmatprep.subr.bf16.mxu0 %v264
  %1815 = vmatpush1.bf16.msra.mxu0 %v263
  %1816 = vmatprep.subr.bf16.mxu0 0
  %1817 = vmatpush1.bf16.msra.mxu0 0
  %1818 = vmatprep.subr.bf16.mxu0 0
  %1819 = vmatpush1.bf16.msra.mxu0 0
  %1820 = vmatprep.subr.bf16.mxu0 0
  %1821 = vmatpush1.bf16.msra.mxu0 0
  %1822 = vmatprep.subr.bf16.mxu0 0
  %1823 = vmatpush1.bf16.msra.mxu0 0
  %1824 = vmatprep.subr.bf16.mxu0 0
  %1825 = vmatpush1.bf16.msra.mxu0 0
  %1826 = vmatprep.subr.bf16.mxu0 0
  %1827 = vmatpush1.bf16.msra.mxu0 0
  %1828 = vmatprep.subr.bf16.mxu0 0
  %1829 = vmatpush1.bf16.msra.mxu0 0
  %1830 = vmatprep.subr.bf16.mxu0 0
  %1831 = vmatpush1.bf16.msra.mxu0 0
  %1832 = vmatprep.subr.bf16.mxu0 0
  %1833 = vmatpush1.bf16.msra.mxu0 0
  %1834 = vmatprep.subr.bf16.mxu0 0
  %1835 = vmatpush1.bf16.msra.mxu0 0
  %1836 = vmatprep.subr.bf16.mxu0 0
  %1837 = vmatpush1.bf16.msra.mxu0 0
  %1838 = vmatprep.subr.bf16.mxu0 0
  %1839 = vmatpush1.bf16.msra.mxu0 0
  %1840 = vmatprep.subr.bf16.mxu0 0
  %1841 = vmatpush1.bf16.msra.mxu0 0
  %1842 = vmatprep.subr.bf16.mxu0 0
  %1843 = vmatpush1.bf16.msra.mxu0 0
  %1844 = vmatprep.mubr.bf16.mxu0 0
  %1845 = vmatmul.mubr.bf16.gmra.mrb[0].mxu0 %v305
  %v1846 = vpop.f32.mrb[0].mxu0
  %v1847 = vadd.f32 0.0, %v1846
  %v1848 = vpop.f32.mrb[0].mxu0
  %v1849 = vadd.f32 0.0, %v1848
  %v1850 = vpop.f32.mrb[0].mxu0
  %v1851 = vadd.f32 0.0, %v1850
  %v1852 = vpop.f32.mrb[0].mxu0
  %v1853 = vadd.f32 0.0, %v1852
  %1854 = vmatprep.mubr.bf16.mxu0 0
  %1855 = vmatmul.mubr.bf16.gmra.mrb[0].mxu0 %v308
  %v1856 = vpop.f32.mrb[0].mxu0
  %v1857 = vadd.f32 0.0, %v1856
  %v1858 = vpop.f32.mrb[0].mxu0
  %v1859 = vadd.f32 0.0, %v1858
  %v1860 = vpop.f32.mrb[0].mxu0
  %v1861 = vadd.f32 0.0, %v1860
  %v1862 = vpop.f32.mrb[0].mxu0
  %v1863 = vadd.f32 0.0, %v1862
  %1864 = vmatprep.mubr.bf16.mxu0 0
  %1865 = vmatmul.mubr.bf16.gmra.mrb[0].mxu0 %v311
  %v1866 = vpop.f32.mrb[0].mxu0
  %v1867 = vadd.f32 0.0, %v1866
  %v1868 = vpop.f32.mrb[0].mxu0
  %v1869 = vadd.f32 0.0, %v1868
  %v1870 = vpop.f32.mrb[0].mxu0
  %v1871 = vadd.f32 0.0, %v1870
  %v1872 = vpop.f32.mrb[0].mxu0
  %v1873 = vadd.f32 0.0, %v1872
  %1874 = vmatprep.mubr.bf16.mxu0 0
  %1875 = vmatmul.mubr.bf16.gmra.mrb[0].mxu0 %v314
  %v1876 = vpop.f32.mrb[0].mxu0
  %v1877 = vadd.f32 0.0, %v1876
  %v1878 = vpop.f32.mrb[0].mxu0
  %v1879 = vadd.f32 0.0, %v1878
  %v1880 = vpop.f32.mrb[0].mxu0
  %v1881 = vadd.f32 0.0, %v1880
  %v1882 = vpop.f32.mrb[0].mxu0
  %v1883 = vadd.f32 0.0, %v1882
  %1884 = vmatprep.mubr.bf16.mxu0 0
  %1885 = vmatmul.mubr.bf16.gmra.mrb[0].mxu0 %v317
  %v1886 = vpop.f32.mrb[0].mxu0
  %v1887 = vadd.f32 0.0, %v1886
  %v1888 = vpop.f32.mrb[0].mxu0
  %v1889 = vadd.f32 0.0, %v1888
  %v1890 = vpop.f32.mrb[0].mxu0
  %v1891 = vadd.f32 0.0, %v1890
  %v1892 = vpop.f32.mrb[0].mxu0
  %v1893 = vadd.f32 0.0, %v1892
  %1894 = vmatprep.mubr.bf16.mxu0 0
  %1895 = vmatmul.mubr.bf16.gmra.mrb[0].mxu0 %v320
  %v1896 = vpop.f32.mrb[0].mxu0
  %v1897 = vadd.f32 0.0, %v1896
  %v1898 = vpop.f32.mrb[0].mxu0
  %v1899 = vadd.f32 0.0, %v1898
  %v1900 = vpop.f32.mrb[0].mxu0
  %v1901 = vadd.f32 0.0, %v1900
  %v1902 = vpop.f32.mrb[0].mxu0
  %v1903 = vadd.f32 0.0, %v1902
  %1904 = vmatprep.mubr.bf16.mxu0 0
  %1905 = vmatmul.mubr.bf16.gmra.mrb[0].mxu0 %v323
  %v1906 = vpop.f32.mrb[0].mxu0
  %v1907 = vadd.f32 0.0, %v1906
  %v1908 = vpop.f32.mrb[0].mxu0
  %v1909 = vadd.f32 0.0, %v1908
  %v1910 = vpop.f32.mrb[0].mxu0
  %v1911 = vadd.f32 0.0, %v1910
  %v1912 = vpop.f32.mrb[0].mxu0
  %v1913 = vadd.f32 0.0, %v1912
  %1914 = vmatprep.mubr.bf16.mxu0 0
  %1915 = vmatmul.mubr.bf16.gmra.mrb[0].mxu0 %v326
  %v1916 = vpop.f32.mrb[0].mxu0
  %v1917 = vadd.f32 0.0, %v1916
  %v1918 = vpop.f32.mrb[0].mxu0
  %v1919 = vadd.f32 0.0, %v1918
  %v1920 = vpop.f32.mrb[0].mxu0
  %v1921 = vadd.f32 0.0, %v1920
  %v1922 = vpop.f32.mrb[0].mxu0
  %v1923 = vadd.f32 0.0, %v1922
  %1924 = vmatprep.mubr.bf16.mxu0 0
  %1925 = vmatmul.mubr.bf16.gmra.mrb[0].mxu0 %v329
  %v1926 = vpop.f32.mrb[0].mxu0
  %v1927 = vadd.f32 0.0, %v1926
  %v1928 = vpop.f32.mrb[0].mxu0
  %v1929 = vadd.f32 0.0, %v1928
  %v1930 = vpop.f32.mrb[0].mxu0
  %v1931 = vadd.f32 0.0, %v1930
  %v1932 = vpop.f32.mrb[0].mxu0
  %v1933 = vadd.f32 0.0, %v1932
  %1934 = vmatprep.mubr.bf16.mxu0 0
  %1935 = vmatmul.mubr.bf16.gmra.mrb[0].mxu0 %v332
  %v1936 = vpop.f32.mrb[0].mxu0
  %v1937 = vadd.f32 0.0, %v1936
  %v1938 = vpop.f32.mrb[0].mxu0
  %v1939 = vadd.f32 0.0, %v1938
  %v1940 = vpop.f32.mrb[0].mxu0
  %v1941 = vadd.f32 0.0, %v1940
  %v1942 = vpop.f32.mrb[0].mxu0
  %v1943 = vadd.f32 0.0, %v1942
  %1944 = vmatprep.mubr.bf16.mxu0 0
  %1945 = vmatmul.mubr.bf16.gmra.mrb[0].mxu0 %v335
  %v1946 = vpop.f32.mrb[0].mxu0
  %v1947 = vadd.f32 0.0, %v1946
  %v1948 = vpop.f32.mrb[0].mxu0
  %v1949 = vadd.f32 0.0, %v1948
  %v1950 = vpop.f32.mrb[0].mxu0
  %v1951 = vadd.f32 0.0, %v1950
  %v1952 = vpop.f32.mrb[0].mxu0
  %v1953 = vadd.f32 0.0, %v1952
  %1954 = vmatprep.mubr.bf16.mxu0 0
  %1955 = vmatmul.mubr.bf16.gmra.mrb[0].mxu0 %v338
  %v1956 = vpop.f32.mrb[0].mxu0
  %v1957 = vadd.f32 0.0, %v1956
  %v1958 = vpop.f32.mrb[0].mxu0
  %v1959 = vadd.f32 0.0, %v1958
  %v1960 = vpop.f32.mrb[0].mxu0
  %v1961 = vadd.f32 0.0, %v1960
  %v1962 = vpop.f32.mrb[0].mxu0
  %v1963 = vadd.f32 0.0, %v1962
  %1964 = vmatprep.mubr.bf16.mxu0 0
  %1965 = vmatmul.mubr.bf16.gmra.mrb[0].mxu0 %v341
  %v1966 = vpop.f32.mrb[0].mxu0
  %v1967 = vadd.f32 0.0, %v1966
  %v1968 = vpop.f32.mrb[0].mxu0
  %v1969 = vadd.f32 0.0, %v1968
  %v1970 = vpop.f32.mrb[0].mxu0
  %v1971 = vadd.f32 0.0, %v1970
  %v1972 = vpop.f32.mrb[0].mxu0
  %v1973 = vadd.f32 0.0, %v1972
  %1974 = vmatprep.mubr.bf16.mxu0 0
  %1975 = vmatmul.mubr.bf16.gmra.mrb[0].mxu0 %v344
  %v1976 = vpop.f32.mrb[0].mxu0
  %v1977 = vadd.f32 0.0, %v1976
  %v1978 = vpop.f32.mrb[0].mxu0
  %v1979 = vadd.f32 0.0, %v1978
  %v1980 = vpop.f32.mrb[0].mxu0
  %v1981 = vadd.f32 0.0, %v1980
  %v1982 = vpop.f32.mrb[0].mxu0
  %v1983 = vadd.f32 0.0, %v1982
  %1984 = vmatprep.mubr.bf16.mxu0 0
  %1985 = vmatmul.mubr.bf16.gmra.mrb[0].mxu0 %v347
  %v1986 = vpop.f32.mrb[0].mxu0
  %v1987 = vadd.f32 0.0, %v1986
  %v1988 = vpop.f32.mrb[0].mxu0
  %v1989 = vadd.f32 0.0, %v1988
  %v1990 = vpop.f32.mrb[0].mxu0
  %v1991 = vadd.f32 0.0, %v1990
  %v1992 = vpop.f32.mrb[0].mxu0
  %v1993 = vadd.f32 0.0, %v1992
  %1994 = vmatprep.mubr.bf16.mxu0 0
  %1995 = vmatmul.mubr.bf16.gmra.mrb[0].mxu0 %v350
  %v1996 = vpop.f32.mrb[0].mxu0
  %v1997 = vadd.f32 0.0, %v1996
  %v1998 = vpop.f32.mrb[0].mxu0
  %v1999 = vadd.f32 0.0, %v1998
  %v2000 = vpop.f32.mrb[0].mxu0
  %v2001 = vadd.f32 0.0, %v2000
  %v2002 = vpop.f32.mrb[0].mxu0
  %v2003 = vadd.f32 0.0, %v2002
  %2004 = vmatprep.mubr.bf16.mxu0 0
  %2005 = vmatmul.mubr.bf16.gmra.mrb[0].mxu0 %v353
  %v2006 = vpop.f32.mrb[0].mxu0
  %v2007 = vadd.f32 0.0, %v2006
  %v2008 = vpop.f32.mrb[0].mxu0
  %v2009 = vadd.f32 0.0, %v2008
  %v2010 = vpop.f32.mrb[0].mxu0
  %v2011 = vadd.f32 0.0, %v2010
  %v2012 = vpop.f32.mrb[0].mxu0
  %v2013 = vadd.f32 0.0, %v2012
  %2014 = vmatprep.mubr.bf16.mxu0 0
  %2015 = vmatmul.mubr.bf16.gmra.mrb[0].mxu0 %v356
  %v2016 = vpop.f32.mrb[0].mxu0
  %v2017 = vadd.f32 0.0, %v2016
  %v2018 = vpop.f32.mrb[0].mxu0
  %v2019 = vadd.f32 0.0, %v2018
  %v2020 = vpop.f32.mrb[0].mxu0
  %v2021 = vadd.f32 0.0, %v2020
  %v2022 = vpop.f32.mrb[0].mxu0
  %v2023 = vadd.f32 0.0, %v2022
  %2024 = vmatprep.mubr.bf16.mxu0 0
  %2025 = vmatmul.mubr.bf16.gmra.mrb[0].mxu0 %v359
  %v2026 = vpop.f32.mrb[0].mxu0
  %v2027 = vadd.f32 0.0, %v2026
  %v2028 = vpop.f32.mrb[0].mxu0
  %v2029 = vadd.f32 0.0, %v2028
  %v2030 = vpop.f32.mrb[0].mxu0
  %v2031 = vadd.f32 0.0, %v2030
  %v2032 = vpop.f32.mrb[0].mxu0
  %v2033 = vadd.f32 0.0, %v2032
  %2034 = vmatprep.mubr.bf16.mxu0 0
  %2035 = vmatmul.mubr.bf16.gmra.mrb[0].mxu0 %v362
  %v2036 = vpop.f32.mrb[0].mxu0
  %v2037 = vadd.f32 0.0, %v2036
  %v2038 = vpop.f32.mrb[0].mxu0
  %v2039 = vadd.f32 0.0, %v2038
  %v2040 = vpop.f32.mrb[0].mxu0
  %v2041 = vadd.f32 0.0, %v2040
  %v2042 = vpop.f32.mrb[0].mxu0
  %v2043 = vadd.f32 0.0, %v2042
  %2044 = vmatprep.mubr.bf16.mxu0 0
  %2045 = vmatmul.mubr.bf16.gmra.mrb[0].mxu0 %v365
  %v2046 = vpop.f32.mrb[0].mxu0
  %v2047 = vadd.f32 0.0, %v2046
  %v2048 = vpop.f32.mrb[0].mxu0
  %v2049 = vadd.f32 0.0, %v2048
  %v2050 = vpop.f32.mrb[0].mxu0
  %v2051 = vadd.f32 0.0, %v2050
  %v2052 = vpop.f32.mrb[0].mxu0
  %v2053 = vadd.f32 0.0, %v2052
  %2054 = vmatprep.mubr.bf16.mxu0 0
  %2055 = vmatmul.mubr.bf16.gmra.mrb[0].mxu0 %v368
  %v2056 = vpop.f32.mrb[0].mxu0
  %v2057 = vadd.f32 0.0, %v2056
  %v2058 = vpop.f32.mrb[0].mxu0
  %v2059 = vadd.f32 0.0, %v2058
  %v2060 = vpop.f32.mrb[0].mxu0
  %v2061 = vadd.f32 0.0, %v2060
  %v2062 = vpop.f32.mrb[0].mxu0
  %v2063 = vadd.f32 0.0, %v2062
  %2064 = vmatprep.mubr.bf16.mxu0 0
  %2065 = vmatmul.mubr.bf16.gmra.mrb[0].mxu0 %v371
  %v2066 = vpop.f32.mrb[0].mxu0
  %v2067 = vadd.f32 0.0, %v2066
  %v2068 = vpop.f32.mrb[0].mxu0
  %v2069 = vadd.f32 0.0, %v2068
  %v2070 = vpop.f32.mrb[0].mxu0
  %v2071 = vadd.f32 0.0, %v2070
  %v2072 = vpop.f32.mrb[0].mxu0
  %v2073 = vadd.f32 0.0, %v2072
  %2074 = vmatprep.mubr.bf16.mxu0 0
  %2075 = vmatmul.mubr.bf16.gmra.mrb[0].mxu0 %v374
  %v2076 = vpop.f32.mrb[0].mxu0
  %v2077 = vadd.f32 0.0, %v2076
  %v2078 = vpop.f32.mrb[0].mxu0
  %v2079 = vadd.f32 0.0, %v2078
  %v2080 = vpop.f32.mrb[0].mxu0
  %v2081 = vadd.f32 0.0, %v2080
  %v2082 = vpop.f32.mrb[0].mxu0
  %v2083 = vadd.f32 0.0, %v2082
  %2084 = vmatprep.mubr.bf16.mxu0 0
  %2085 = vmatmul.mubr.bf16.gmra.mrb[0].mxu0 %v377
  %v2086 = vpop.f32.mrb[0].mxu0
  %v2087 = vadd.f32 0.0, %v2086
  %v2088 = vpop.f32.mrb[0].mxu0
  %v2089 = vadd.f32 0.0, %v2088
  %v2090 = vpop.f32.mrb[0].mxu0
  %v2091 = vadd.f32 0.0, %v2090
  %v2092 = vpop.f32.mrb[0].mxu0
  %v2093 = vadd.f32 0.0, %v2092
  %2094 = vmatprep.mubr.bf16.mxu0 0
  %2095 = vmatmul.mubr.bf16.gmra.mrb[0].mxu0 %v380
  %v2096 = vpop.f32.mrb[0].mxu0
  %v2097 = vadd.f32 0.0, %v2096
  %v2098 = vpop.f32.mrb[0].mxu0
  %v2099 = vadd.f32 0.0, %v2098
  %v2100 = vpop.f32.mrb[0].mxu0
  %v2101 = vadd.f32 0.0, %v2100
  %v2102 = vpop.f32.mrb[0].mxu0
  %v2103 = vadd.f32 0.0, %v2102
  %2104 = vmatprep.mubr.bf16.mxu0 0
  %2105 = vmatmul.mubr.bf16.gmra.mrb[0].mxu0 %v383
  %v2106 = vpop.f32.mrb[0].mxu0
  %v2107 = vadd.f32 0.0, %v2106
  %v2108 = vpop.f32.mrb[0].mxu0
  %v2109 = vadd.f32 0.0, %v2108
  %v2110 = vpop.f32.mrb[0].mxu0
  %v2111 = vadd.f32 0.0, %v2110
  %v2112 = vpop.f32.mrb[0].mxu0
  %v2113 = vadd.f32 0.0, %v2112
  %2114 = vmatprep.mubr.bf16.mxu0 0
  %2115 = vmatmul.mubr.bf16.gmra.mrb[0].mxu0 %v386
  %v2116 = vpop.f32.mrb[0].mxu0
  %v2117 = vadd.f32 0.0, %v2116
  %v2118 = vpop.f32.mrb[0].mxu0
  %v2119 = vadd.f32 0.0, %v2118
  %v2120 = vpop.f32.mrb[0].mxu0
  %v2121 = vadd.f32 0.0, %v2120
  %v2122 = vpop.f32.mrb[0].mxu0
  %v2123 = vadd.f32 0.0, %v2122
  %2124 = vmatprep.mubr.bf16.mxu0 0
  %2125 = vmatmul.mubr.bf16.gmra.mrb[0].mxu0 %v389
  %v2126 = vpop.f32.mrb[0].mxu0
  %v2127 = vadd.f32 0.0, %v2126
  %v2128 = vpop.f32.mrb[0].mxu0
  %v2129 = vadd.f32 0.0, %v2128
  %v2130 = vpop.f32.mrb[0].mxu0
  %v2131 = vadd.f32 0.0, %v2130
  %v2132 = vpop.f32.mrb[0].mxu0
  %v2133 = vadd.f32 0.0, %v2132
  %2134 = vmatprep.mubr.bf16.mxu0 0
  %2135 = vmatmul.mubr.bf16.gmra.mrb[0].mxu0 %v392
  %v2136 = vpop.f32.mrb[0].mxu0
  %v2137 = vadd.f32 0.0, %v2136
  %v2138 = vpop.f32.mrb[0].mxu0
  %v2139 = vadd.f32 0.0, %v2138
  %v2140 = vpop.f32.mrb[0].mxu0
  %v2141 = vadd.f32 0.0, %v2140
  %v2142 = vpop.f32.mrb[0].mxu0
  %v2143 = vadd.f32 0.0, %v2142
  %2144 = vmatprep.mubr.bf16.mxu0 0
  %2145 = vmatmul.mubr.bf16.gmra.mrb[0].mxu0 %v395
  %v2146 = vpop.f32.mrb[0].mxu0
  %v2147 = vadd.f32 0.0, %v2146
  %v2148 = vpop.f32.mrb[0].mxu0
  %v2149 = vadd.f32 0.0, %v2148
  %v2150 = vpop.f32.mrb[0].mxu0
  %v2151 = vadd.f32 0.0, %v2150
  %v2152 = vpop.f32.mrb[0].mxu0
  %v2153 = vadd.f32 0.0, %v2152
  %2154 = vmatprep.mubr.bf16.mxu0 0
  %2155 = vmatmul.mubr.bf16.gmra.mrb[0].mxu0 %v398
  %v2156 = vpop.f32.mrb[0].mxu0
  %v2157 = vadd.f32 0.0, %v2156
  %v2158 = vpop.f32.mrb[0].mxu0
  %v2159 = vadd.f32 0.0, %v2158
  %v2160 = vpop.f32.mrb[0].mxu0
  %v2161 = vadd.f32 0.0, %v2160
  %v2162 = vpop.f32.mrb[0].mxu0
  %v2163 = vadd.f32 0.0, %v2162
  %2164 = vdwg.mxu0
  %2165 = vmatprep.subr.bf16.mxu0 %v250
  %2166 = vmatpush1.bf16.msra.mxu0 %v249
  %2167 = vmatprep.subr.bf16.mxu0 %v266
  %2168 = vmatpush1.bf16.msra.mxu0 %v265
  %2169 = vmatprep.subr.bf16.mxu0 0
  %2170 = vmatpush1.bf16.msra.mxu0 0
  %2171 = vmatprep.subr.bf16.mxu0 0
  %2172 = vmatpush1.bf16.msra.mxu0 0
  %2173 = vmatprep.subr.bf16.mxu0 0
  %2174 = vmatpush1.bf16.msra.mxu0 0
  %2175 = vmatprep.subr.bf16.mxu0 0
  %2176 = vmatpush1.bf16.msra.mxu0 0
  %2177 = vmatprep.subr.bf16.mxu0 0
  %2178 = vmatpush1.bf16.msra.mxu0 0
  %2179 = vmatprep.subr.bf16.mxu0 0
  %2180 = vmatpush1.bf16.msra.mxu0 0
  %2181 = vmatprep.subr.bf16.mxu0 0
  %2182 = vmatpush1.bf16.msra.mxu0 0
  %2183 = vmatprep.subr.bf16.mxu0 0
  %2184 = vmatpush1.bf16.msra.mxu0 0
  %2185 = vmatprep.subr.bf16.mxu0 0
  %2186 = vmatpush1.bf16.msra.mxu0 0
  %2187 = vmatprep.subr.bf16.mxu0 0
  %2188 = vmatpush1.bf16.msra.mxu0 0
  %2189 = vmatprep.subr.bf16.mxu0 0
  %2190 = vmatpush1.bf16.msra.mxu0 0
  %2191 = vmatprep.subr.bf16.mxu0 0
  %2192 = vmatpush1.bf16.msra.mxu0 0
  %2193 = vmatprep.subr.bf16.mxu0 0
  %2194 = vmatpush1.bf16.msra.mxu0 0
  %2195 = vmatprep.subr.bf16.mxu0 0
  %2196 = vmatpush1.bf16.msra.mxu0 0
  %2197 = vmatprep.mubr.bf16.mxu0 0
  %2198 = vmatmul.mubr.bf16.gmra.mrb[0].mxu0 %v305
  %v2199 = vpop.f32.mrb[0].mxu0
  %v2200 = vadd.f32 0.0, %v2199
  %v2201 = vpop.f32.mrb[0].mxu0
  %v2202 = vadd.f32 0.0, %v2201
  %v2203 = vpop.f32.mrb[0].mxu0
  %v2204 = vadd.f32 0.0, %v2203
  %v2205 = vpop.f32.mrb[0].mxu0
  %v2206 = vadd.f32 0.0, %v2205
  %2207 = vmatprep.mubr.bf16.mxu0 0
  %2208 = vmatmul.mubr.bf16.gmra.mrb[0].mxu0 %v308
  %v2209 = vpop.f32.mrb[0].mxu0
  %v2210 = vadd.f32 0.0, %v2209
  %v2211 = vpop.f32.mrb[0].mxu0
  %v2212 = vadd.f32 0.0, %v2211
  %v2213 = vpop.f32.mrb[0].mxu0
  %v2214 = vadd.f32 0.0, %v2213
  %v2215 = vpop.f32.mrb[0].mxu0
  %v2216 = vadd.f32 0.0, %v2215
  %2217 = vmatprep.mubr.bf16.mxu0 0
  %2218 = vmatmul.mubr.bf16.gmra.mrb[0].mxu0 %v311
  %v2219 = vpop.f32.mrb[0].mxu0
  %v2220 = vadd.f32 0.0, %v2219
  %v2221 = vpop.f32.mrb[0].mxu0
  %v2222 = vadd.f32 0.0, %v2221
  %v2223 = vpop.f32.mrb[0].mxu0
  %v2224 = vadd.f32 0.0, %v2223
  %v2225 = vpop.f32.mrb[0].mxu0
  %v2226 = vadd.f32 0.0, %v2225
  %2227 = vmatprep.mubr.bf16.mxu0 0
  %2228 = vmatmul.mubr.bf16.gmra.mrb[0].mxu0 %v314
  %v2229 = vpop.f32.mrb[0].mxu0
  %v2230 = vadd.f32 0.0, %v2229
  %v2231 = vpop.f32.mrb[0].mxu0
  %v2232 = vadd.f32 0.0, %v2231
  %v2233 = vpop.f32.mrb[0].mxu0
  %v2234 = vadd.f32 0.0, %v2233
  %v2235 = vpop.f32.mrb[0].mxu0
  %v2236 = vadd.f32 0.0, %v2235
  %2237 = vmatprep.mubr.bf16.mxu0 0
  %2238 = vmatmul.mubr.bf16.gmra.mrb[0].mxu0 %v317
  %v2239 = vpop.f32.mrb[0].mxu0
  %v2240 = vadd.f32 0.0, %v2239
  %v2241 = vpop.f32.mrb[0].mxu0
  %v2242 = vadd.f32 0.0, %v2241
  %v2243 = vpop.f32.mrb[0].mxu0
  %v2244 = vadd.f32 0.0, %v2243
  %v2245 = vpop.f32.mrb[0].mxu0
  %v2246 = vadd.f32 0.0, %v2245
  %2247 = vmatprep.mubr.bf16.mxu0 0
  %2248 = vmatmul.mubr.bf16.gmra.mrb[0].mxu0 %v320
  %v2249 = vpop.f32.mrb[0].mxu0
  %v2250 = vadd.f32 0.0, %v2249
  %v2251 = vpop.f32.mrb[0].mxu0
  %v2252 = vadd.f32 0.0, %v2251
  %v2253 = vpop.f32.mrb[0].mxu0
  %v2254 = vadd.f32 0.0, %v2253
  %v2255 = vpop.f32.mrb[0].mxu0
  %v2256 = vadd.f32 0.0, %v2255
  %2257 = vmatprep.mubr.bf16.mxu0 0
  %2258 = vmatmul.mubr.bf16.gmra.mrb[0].mxu0 %v323
  %v2259 = vpop.f32.mrb[0].mxu0
  %v2260 = vadd.f32 0.0, %v2259
  %v2261 = vpop.f32.mrb[0].mxu0
  %v2262 = vadd.f32 0.0, %v2261
  %v2263 = vpop.f32.mrb[0].mxu0
  %v2264 = vadd.f32 0.0, %v2263
  %v2265 = vpop.f32.mrb[0].mxu0
  %v2266 = vadd.f32 0.0, %v2265
  %2267 = vmatprep.mubr.bf16.mxu0 0
  %2268 = vmatmul.mubr.bf16.gmra.mrb[0].mxu0 %v326
  %v2269 = vpop.f32.mrb[0].mxu0
  %v2270 = vadd.f32 0.0, %v2269
  %v2271 = vpop.f32.mrb[0].mxu0
  %v2272 = vadd.f32 0.0, %v2271
  %v2273 = vpop.f32.mrb[0].mxu0
  %v2274 = vadd.f32 0.0, %v2273
  %v2275 = vpop.f32.mrb[0].mxu0
  %v2276 = vadd.f32 0.0, %v2275
  %2277 = vmatprep.mubr.bf16.mxu0 0
  %2278 = vmatmul.mubr.bf16.gmra.mrb[0].mxu0 %v329
  %v2279 = vpop.f32.mrb[0].mxu0
  %v2280 = vadd.f32 0.0, %v2279
  %v2281 = vpop.f32.mrb[0].mxu0
  %v2282 = vadd.f32 0.0, %v2281
  %v2283 = vpop.f32.mrb[0].mxu0
  %v2284 = vadd.f32 0.0, %v2283
  %v2285 = vpop.f32.mrb[0].mxu0
  %v2286 = vadd.f32 0.0, %v2285
  %2287 = vmatprep.mubr.bf16.mxu0 0
  %2288 = vmatmul.mubr.bf16.gmra.mrb[0].mxu0 %v332
  %v2289 = vpop.f32.mrb[0].mxu0
  %v2290 = vadd.f32 0.0, %v2289
  %v2291 = vpop.f32.mrb[0].mxu0
  %v2292 = vadd.f32 0.0, %v2291
  %v2293 = vpop.f32.mrb[0].mxu0
  %v2294 = vadd.f32 0.0, %v2293
  %v2295 = vpop.f32.mrb[0].mxu0
  %v2296 = vadd.f32 0.0, %v2295
  %2297 = vmatprep.mubr.bf16.mxu0 0
  %2298 = vmatmul.mubr.bf16.gmra.mrb[0].mxu0 %v335
  %v2299 = vpop.f32.mrb[0].mxu0
  %v2300 = vadd.f32 0.0, %v2299
  %v2301 = vpop.f32.mrb[0].mxu0
  %v2302 = vadd.f32 0.0, %v2301
  %v2303 = vpop.f32.mrb[0].mxu0
  %v2304 = vadd.f32 0.0, %v2303
  %v2305 = vpop.f32.mrb[0].mxu0
  %v2306 = vadd.f32 0.0, %v2305
  %2307 = vmatprep.mubr.bf16.mxu0 0
  %2308 = vmatmul.mubr.bf16.gmra.mrb[0].mxu0 %v338
  %v2309 = vpop.f32.mrb[0].mxu0
  %v2310 = vadd.f32 0.0, %v2309
  %v2311 = vpop.f32.mrb[0].mxu0
  %v2312 = vadd.f32 0.0, %v2311
  %v2313 = vpop.f32.mrb[0].mxu0
  %v2314 = vadd.f32 0.0, %v2313
  %v2315 = vpop.f32.mrb[0].mxu0
  %v2316 = vadd.f32 0.0, %v2315
  %2317 = vmatprep.mubr.bf16.mxu0 0
  %2318 = vmatmul.mubr.bf16.gmra.mrb[0].mxu0 %v341
  %v2319 = vpop.f32.mrb[0].mxu0
  %v2320 = vadd.f32 0.0, %v2319
  %v2321 = vpop.f32.mrb[0].mxu0
  %v2322 = vadd.f32 0.0, %v2321
  %v2323 = vpop.f32.mrb[0].mxu0
  %v2324 = vadd.f32 0.0, %v2323
  %v2325 = vpop.f32.mrb[0].mxu0
  %v2326 = vadd.f32 0.0, %v2325
  %2327 = vmatprep.mubr.bf16.mxu0 0
  %2328 = vmatmul.mubr.bf16.gmra.mrb[0].mxu0 %v344
  %v2329 = vpop.f32.mrb[0].mxu0
  %v2330 = vadd.f32 0.0, %v2329
  %v2331 = vpop.f32.mrb[0].mxu0
  %v2332 = vadd.f32 0.0, %v2331
  %v2333 = vpop.f32.mrb[0].mxu0
  %v2334 = vadd.f32 0.0, %v2333
  %v2335 = vpop.f32.mrb[0].mxu0
  %v2336 = vadd.f32 0.0, %v2335
  %2337 = vmatprep.mubr.bf16.mxu0 0
  %2338 = vmatmul.mubr.bf16.gmra.mrb[0].mxu0 %v347
  %v2339 = vpop.f32.mrb[0].mxu0
  %v2340 = vadd.f32 0.0, %v2339
  %v2341 = vpop.f32.mrb[0].mxu0
  %v2342 = vadd.f32 0.0, %v2341
  %v2343 = vpop.f32.mrb[0].mxu0
  %v2344 = vadd.f32 0.0, %v2343
  %v2345 = vpop.f32.mrb[0].mxu0
  %v2346 = vadd.f32 0.0, %v2345
  %2347 = vmatprep.mubr.bf16.mxu0 0
  %2348 = vmatmul.mubr.bf16.gmra.mrb[0].mxu0 %v350
  %v2349 = vpop.f32.mrb[0].mxu0
  %v2350 = vadd.f32 0.0, %v2349
  %v2351 = vpop.f32.mrb[0].mxu0
  %v2352 = vadd.f32 0.0, %v2351
  %v2353 = vpop.f32.mrb[0].mxu0
  %v2354 = vadd.f32 0.0, %v2353
  %v2355 = vpop.f32.mrb[0].mxu0
  %v2356 = vadd.f32 0.0, %v2355
  %2357 = vmatprep.mubr.bf16.mxu0 0
  %2358 = vmatmul.mubr.bf16.gmra.mrb[0].mxu0 %v353
  %v2359 = vpop.f32.mrb[0].mxu0
  %v2360 = vadd.f32 0.0, %v2359
  %v2361 = vpop.f32.mrb[0].mxu0
  %v2362 = vadd.f32 0.0, %v2361
  %v2363 = vpop.f32.mrb[0].mxu0
  %v2364 = vadd.f32 0.0, %v2363
  %v2365 = vpop.f32.mrb[0].mxu0
  %v2366 = vadd.f32 0.0, %v2365
  %2367 = vmatprep.mubr.bf16.mxu0 0
  %2368 = vmatmul.mubr.bf16.gmra.mrb[0].mxu0 %v356
  %v2369 = vpop.f32.mrb[0].mxu0
  %v2370 = vadd.f32 0.0, %v2369
  %v2371 = vpop.f32.mrb[0].mxu0
  %v2372 = vadd.f32 0.0, %v2371
  %v2373 = vpop.f32.mrb[0].mxu0
  %v2374 = vadd.f32 0.0, %v2373
  %v2375 = vpop.f32.mrb[0].mxu0
  %v2376 = vadd.f32 0.0, %v2375
  %2377 = vmatprep.mubr.bf16.mxu0 0
  %2378 = vmatmul.mubr.bf16.gmra.mrb[0].mxu0 %v359
  %v2379 = vpop.f32.mrb[0].mxu0
  %v2380 = vadd.f32 0.0, %v2379
  %v2381 = vpop.f32.mrb[0].mxu0
  %v2382 = vadd.f32 0.0, %v2381
  %v2383 = vpop.f32.mrb[0].mxu0
  %v2384 = vadd.f32 0.0, %v2383
  %v2385 = vpop.f32.mrb[0].mxu0
  %v2386 = vadd.f32 0.0, %v2385
  %2387 = vmatprep.mubr.bf16.mxu0 0
  %2388 = vmatmul.mubr.bf16.gmra.mrb[0].mxu0 %v362
  %v2389 = vpop.f32.mrb[0].mxu0
  %v2390 = vadd.f32 0.0, %v2389
  %v2391 = vpop.f32.mrb[0].mxu0
  %v2392 = vadd.f32 0.0, %v2391
  %v2393 = vpop.f32.mrb[0].mxu0
  %v2394 = vadd.f32 0.0, %v2393
  %v2395 = vpop.f32.mrb[0].mxu0
  %v2396 = vadd.f32 0.0, %v2395
  %2397 = vmatprep.mubr.bf16.mxu0 0
  %2398 = vmatmul.mubr.bf16.gmra.mrb[0].mxu0 %v365
  %v2399 = vpop.f32.mrb[0].mxu0
  %v2400 = vadd.f32 0.0, %v2399
  %v2401 = vpop.f32.mrb[0].mxu0
  %v2402 = vadd.f32 0.0, %v2401
  %v2403 = vpop.f32.mrb[0].mxu0
  %v2404 = vadd.f32 0.0, %v2403
  %v2405 = vpop.f32.mrb[0].mxu0
  %v2406 = vadd.f32 0.0, %v2405
  %2407 = vmatprep.mubr.bf16.mxu0 0
  %2408 = vmatmul.mubr.bf16.gmra.mrb[0].mxu0 %v368
  %v2409 = vpop.f32.mrb[0].mxu0
  %v2410 = vadd.f32 0.0, %v2409
  %v2411 = vpop.f32.mrb[0].mxu0
  %v2412 = vadd.f32 0.0, %v2411
  %v2413 = vpop.f32.mrb[0].mxu0
  %v2414 = vadd.f32 0.0, %v2413
  %v2415 = vpop.f32.mrb[0].mxu0
  %v2416 = vadd.f32 0.0, %v2415
  %2417 = vmatprep.mubr.bf16.mxu0 0
  %2418 = vmatmul.mubr.bf16.gmra.mrb[0].mxu0 %v371
  %v2419 = vpop.f32.mrb[0].mxu0
  %v2420 = vadd.f32 0.0, %v2419
  %v2421 = vpop.f32.mrb[0].mxu0
  %v2422 = vadd.f32 0.0, %v2421
  %v2423 = vpop.f32.mrb[0].mxu0
  %v2424 = vadd.f32 0.0, %v2423
  %v2425 = vpop.f32.mrb[0].mxu0
  %v2426 = vadd.f32 0.0, %v2425
  %2427 = vmatprep.mubr.bf16.mxu0 0
  %2428 = vmatmul.mubr.bf16.gmra.mrb[0].mxu0 %v374
  %v2429 = vpop.f32.mrb[0].mxu0
  %v2430 = vadd.f32 0.0, %v2429
  %v2431 = vpop.f32.mrb[0].mxu0
  %v2432 = vadd.f32 0.0, %v2431
  %v2433 = vpop.f32.mrb[0].mxu0
  %v2434 = vadd.f32 0.0, %v2433
  %v2435 = vpop.f32.mrb[0].mxu0
  %v2436 = vadd.f32 0.0, %v2435
  %2437 = vmatprep.mubr.bf16.mxu0 0
  %2438 = vmatmul.mubr.bf16.gmra.mrb[0].mxu0 %v377
  %v2439 = vpop.f32.mrb[0].mxu0
  %v2440 = vadd.f32 0.0, %v2439
  %v2441 = vpop.f32.mrb[0].mxu0
  %v2442 = vadd.f32 0.0, %v2441
  %v2443 = vpop.f32.mrb[0].mxu0
  %v2444 = vadd.f32 0.0, %v2443
  %v2445 = vpop.f32.mrb[0].mxu0
  %v2446 = vadd.f32 0.0, %v2445
  %2447 = vmatprep.mubr.bf16.mxu0 0
  %2448 = vmatmul.mubr.bf16.gmra.mrb[0].mxu0 %v380
  %v2449 = vpop.f32.mrb[0].mxu0
  %v2450 = vadd.f32 0.0, %v2449
  %v2451 = vpop.f32.mrb[0].mxu0
  %v2452 = vadd.f32 0.0, %v2451
  %v2453 = vpop.f32.mrb[0].mxu0
  %v2454 = vadd.f32 0.0, %v2453
  %v2455 = vpop.f32.mrb[0].mxu0
  %v2456 = vadd.f32 0.0, %v2455
  %2457 = vmatprep.mubr.bf16.mxu0 0
  %2458 = vmatmul.mubr.bf16.gmra.mrb[0].mxu0 %v383
  %v2459 = vpop.f32.mrb[0].mxu0
  %v2460 = vadd.f32 0.0, %v2459
  %v2461 = vpop.f32.mrb[0].mxu0
  %v2462 = vadd.f32 0.0, %v2461
  %v2463 = vpop.f32.mrb[0].mxu0
  %v2464 = vadd.f32 0.0, %v2463
  %v2465 = vpop.f32.mrb[0].mxu0
  %v2466 = vadd.f32 0.0, %v2465
  %2467 = vmatprep.mubr.bf16.mxu0 0
  %2468 = vmatmul.mubr.bf16.gmra.mrb[0].mxu0 %v386
  %v2469 = vpop.f32.mrb[0].mxu0
  %v2470 = vadd.f32 0.0, %v2469
  %v2471 = vpop.f32.mrb[0].mxu0
  %v2472 = vadd.f32 0.0, %v2471
  %v2473 = vpop.f32.mrb[0].mxu0
  %v2474 = vadd.f32 0.0, %v2473
  %v2475 = vpop.f32.mrb[0].mxu0
  %v2476 = vadd.f32 0.0, %v2475
  %2477 = vmatprep.mubr.bf16.mxu0 0
  %2478 = vmatmul.mubr.bf16.gmra.mrb[0].mxu0 %v389
  %v2479 = vpop.f32.mrb[0].mxu0
  %v2480 = vadd.f32 0.0, %v2479
  %v2481 = vpop.f32.mrb[0].mxu0
  %v2482 = vadd.f32 0.0, %v2481
  %v2483 = vpop.f32.mrb[0].mxu0
  %v2484 = vadd.f32 0.0, %v2483
  %v2485 = vpop.f32.mrb[0].mxu0
  %v2486 = vadd.f32 0.0, %v2485
  %2487 = vmatprep.mubr.bf16.mxu0 0
  %2488 = vmatmul.mubr.bf16.gmra.mrb[0].mxu0 %v392
  %v2489 = vpop.f32.mrb[0].mxu0
  %v2490 = vadd.f32 0.0, %v2489
  %v2491 = vpop.f32.mrb[0].mxu0
  %v2492 = vadd.f32 0.0, %v2491
  %v2493 = vpop.f32.mrb[0].mxu0
  %v2494 = vadd.f32 0.0, %v2493
  %v2495 = vpop.f32.mrb[0].mxu0
  %v2496 = vadd.f32 0.0, %v2495
  %2497 = vmatprep.mubr.bf16.mxu0 0
  %2498 = vmatmul.mubr.bf16.gmra.mrb[0].mxu0 %v395
  %v2499 = vpop.f32.mrb[0].mxu0
  %v2500 = vadd.f32 0.0, %v2499
  %v2501 = vpop.f32.mrb[0].mxu0
  %v2502 = vadd.f32 0.0, %v2501
  %v2503 = vpop.f32.mrb[0].mxu0
  %v2504 = vadd.f32 0.0, %v2503
  %v2505 = vpop.f32.mrb[0].mxu0
  %v2506 = vadd.f32 0.0, %v2505
  %2507 = vmatprep.mubr.bf16.mxu0 0
  %2508 = vmatmul.mubr.bf16.gmra.mrb[0].mxu0 %v398
  %v2509 = vpop.f32.mrb[0].mxu0
  %v2510 = vadd.f32 0.0, %v2509
  %v2511 = vpop.f32.mrb[0].mxu0
  %v2512 = vadd.f32 0.0, %v2511
  %v2513 = vpop.f32.mrb[0].mxu0
  %v2514 = vadd.f32 0.0, %v2513
  %v2515 = vpop.f32.mrb[0].mxu0
  %v2516 = vadd.f32 0.0, %v2515
  %2517 = vdwg.mxu0
  %2518 = vmatprep.subr.bf16.mxu0 %v252
  %2519 = vmatpush1.bf16.msra.mxu0 %v251
  %2520 = vmatprep.subr.bf16.mxu0 %v268
  %2521 = vmatpush1.bf16.msra.mxu0 %v267
  %2522 = vmatprep.subr.bf16.mxu0 0
  %2523 = vmatpush1.bf16.msra.mxu0 0
  %2524 = vmatprep.subr.bf16.mxu0 0
  %2525 = vmatpush1.bf16.msra.mxu0 0
  %2526 = vmatprep.subr.bf16.mxu0 0
  %2527 = vmatpush1.bf16.msra.mxu0 0
  %2528 = vmatprep.subr.bf16.mxu0 0
  %2529 = vmatpush1.bf16.msra.mxu0 0
  %2530 = vmatprep.subr.bf16.mxu0 0
  %2531 = vmatpush1.bf16.msra.mxu0 0
  %2532 = vmatprep.subr.bf16.mxu0 0
  %2533 = vmatpush1.bf16.msra.mxu0 0
  %2534 = vmatprep.subr.bf16.mxu0 0
  %2535 = vmatpush1.bf16.msra.mxu0 0
  %2536 = vmatprep.subr.bf16.mxu0 0
  %2537 = vmatpush1.bf16.msra.mxu0 0
  %2538 = vmatprep.subr.bf16.mxu0 0
  %2539 = vmatpush1.bf16.msra.mxu0 0
  %2540 = vmatprep.subr.bf16.mxu0 0
  %2541 = vmatpush1.bf16.msra.mxu0 0
  %2542 = vmatprep.subr.bf16.mxu0 0
  %2543 = vmatpush1.bf16.msra.mxu0 0
  %2544 = vmatprep.subr.bf16.mxu0 0
  %2545 = vmatpush1.bf16.msra.mxu0 0
  %2546 = vmatprep.subr.bf16.mxu0 0
  %2547 = vmatpush1.bf16.msra.mxu0 0
  %2548 = vmatprep.subr.bf16.mxu0 0
  %2549 = vmatpush1.bf16.msra.mxu0 0
  %2550 = vmatprep.mubr.bf16.mxu0 0
  %2551 = vmatmul.mubr.bf16.gmra.mrb[0].mxu0 %v305
  %v2552 = vpop.f32.mrb[0].mxu0
  %v2553 = vadd.f32 0.0, %v2552
  %v2554 = vpop.f32.mrb[0].mxu0
  %v2555 = vadd.f32 0.0, %v2554
  %v2556 = vpop.f32.mrb[0].mxu0
  %v2557 = vadd.f32 0.0, %v2556
  %v2558 = vpop.f32.mrb[0].mxu0
  %v2559 = vadd.f32 0.0, %v2558
  %2560 = vmatprep.mubr.bf16.mxu0 0
  %2561 = vmatmul.mubr.bf16.gmra.mrb[0].mxu0 %v308
  %v2562 = vpop.f32.mrb[0].mxu0
  %v2563 = vadd.f32 0.0, %v2562
  %v2564 = vpop.f32.mrb[0].mxu0
  %v2565 = vadd.f32 0.0, %v2564
  %v2566 = vpop.f32.mrb[0].mxu0
  %v2567 = vadd.f32 0.0, %v2566
  %v2568 = vpop.f32.mrb[0].mxu0
  %v2569 = vadd.f32 0.0, %v2568
  %2570 = vmatprep.mubr.bf16.mxu0 0
  %2571 = vmatmul.mubr.bf16.gmra.mrb[0].mxu0 %v311
  %v2572 = vpop.f32.mrb[0].mxu0
  %v2573 = vadd.f32 0.0, %v2572
  %v2574 = vpop.f32.mrb[0].mxu0
  %v2575 = vadd.f32 0.0, %v2574
  %v2576 = vpop.f32.mrb[0].mxu0
  %v2577 = vadd.f32 0.0, %v2576
  %v2578 = vpop.f32.mrb[0].mxu0
  %v2579 = vadd.f32 0.0, %v2578
  %2580 = vmatprep.mubr.bf16.mxu0 0
  %2581 = vmatmul.mubr.bf16.gmra.mrb[0].mxu0 %v314
  %v2582 = vpop.f32.mrb[0].mxu0
  %v2583 = vadd.f32 0.0, %v2582
  %v2584 = vpop.f32.mrb[0].mxu0
  %v2585 = vadd.f32 0.0, %v2584
  %v2586 = vpop.f32.mrb[0].mxu0
  %v2587 = vadd.f32 0.0, %v2586
  %v2588 = vpop.f32.mrb[0].mxu0
  %v2589 = vadd.f32 0.0, %v2588
  %2590 = vmatprep.mubr.bf16.mxu0 0
  %2591 = vmatmul.mubr.bf16.gmra.mrb[0].mxu0 %v317
  %v2592 = vpop.f32.mrb[0].mxu0
  %v2593 = vadd.f32 0.0, %v2592
  %v2594 = vpop.f32.mrb[0].mxu0
  %v2595 = vadd.f32 0.0, %v2594
  %v2596 = vpop.f32.mrb[0].mxu0
  %v2597 = vadd.f32 0.0, %v2596
  %v2598 = vpop.f32.mrb[0].mxu0
  %v2599 = vadd.f32 0.0, %v2598
  %2600 = vmatprep.mubr.bf16.mxu0 0
  %2601 = vmatmul.mubr.bf16.gmra.mrb[0].mxu0 %v320
  %v2602 = vpop.f32.mrb[0].mxu0
  %v2603 = vadd.f32 0.0, %v2602
  %v2604 = vpop.f32.mrb[0].mxu0
  %v2605 = vadd.f32 0.0, %v2604
  %v2606 = vpop.f32.mrb[0].mxu0
  %v2607 = vadd.f32 0.0, %v2606
  %v2608 = vpop.f32.mrb[0].mxu0
  %v2609 = vadd.f32 0.0, %v2608
  %2610 = vmatprep.mubr.bf16.mxu0 0
  %2611 = vmatmul.mubr.bf16.gmra.mrb[0].mxu0 %v323
  %v2612 = vpop.f32.mrb[0].mxu0
  %v2613 = vadd.f32 0.0, %v2612
  %v2614 = vpop.f32.mrb[0].mxu0
  %v2615 = vadd.f32 0.0, %v2614
  %v2616 = vpop.f32.mrb[0].mxu0
  %v2617 = vadd.f32 0.0, %v2616
  %v2618 = vpop.f32.mrb[0].mxu0
  %v2619 = vadd.f32 0.0, %v2618
  %2620 = vmatprep.mubr.bf16.mxu0 0
  %2621 = vmatmul.mubr.bf16.gmra.mrb[0].mxu0 %v326
  %v2622 = vpop.f32.mrb[0].mxu0
  %v2623 = vadd.f32 0.0, %v2622
  %v2624 = vpop.f32.mrb[0].mxu0
  %v2625 = vadd.f32 0.0, %v2624
  %v2626 = vpop.f32.mrb[0].mxu0
  %v2627 = vadd.f32 0.0, %v2626
  %v2628 = vpop.f32.mrb[0].mxu0
  %v2629 = vadd.f32 0.0, %v2628
  %2630 = vmatprep.mubr.bf16.mxu0 0
  %2631 = vmatmul.mubr.bf16.gmra.mrb[0].mxu0 %v329
  %v2632 = vpop.f32.mrb[0].mxu0
  %v2633 = vadd.f32 0.0, %v2632
  %v2634 = vpop.f32.mrb[0].mxu0
  %v2635 = vadd.f32 0.0, %v2634
  %v2636 = vpop.f32.mrb[0].mxu0
  %v2637 = vadd.f32 0.0, %v2636
  %v2638 = vpop.f32.mrb[0].mxu0
  %v2639 = vadd.f32 0.0, %v2638
  %2640 = vmatprep.mubr.bf16.mxu0 0
  %2641 = vmatmul.mubr.bf16.gmra.mrb[0].mxu0 %v332
  %v2642 = vpop.f32.mrb[0].mxu0
  %v2643 = vadd.f32 0.0, %v2642
  %v2644 = vpop.f32.mrb[0].mxu0
  %v2645 = vadd.f32 0.0, %v2644
  %v2646 = vpop.f32.mrb[0].mxu0
  %v2647 = vadd.f32 0.0, %v2646
  %v2648 = vpop.f32.mrb[0].mxu0
  %v2649 = vadd.f32 0.0, %v2648
  %2650 = vmatprep.mubr.bf16.mxu0 0
  %2651 = vmatmul.mubr.bf16.gmra.mrb[0].mxu0 %v335
  %v2652 = vpop.f32.mrb[0].mxu0
  %v2653 = vadd.f32 0.0, %v2652
  %v2654 = vpop.f32.mrb[0].mxu0
  %v2655 = vadd.f32 0.0, %v2654
  %v2656 = vpop.f32.mrb[0].mxu0
  %v2657 = vadd.f32 0.0, %v2656
  %v2658 = vpop.f32.mrb[0].mxu0
  %v2659 = vadd.f32 0.0, %v2658
  %2660 = vmatprep.mubr.bf16.mxu0 0
  %2661 = vmatmul.mubr.bf16.gmra.mrb[0].mxu0 %v338
  %v2662 = vpop.f32.mrb[0].mxu0
  %v2663 = vadd.f32 0.0, %v2662
  %v2664 = vpop.f32.mrb[0].mxu0
  %v2665 = vadd.f32 0.0, %v2664
  %v2666 = vpop.f32.mrb[0].mxu0
  %v2667 = vadd.f32 0.0, %v2666
  %v2668 = vpop.f32.mrb[0].mxu0
  %v2669 = vadd.f32 0.0, %v2668
  %2670 = vmatprep.mubr.bf16.mxu0 0
  %2671 = vmatmul.mubr.bf16.gmra.mrb[0].mxu0 %v341
  %v2672 = vpop.f32.mrb[0].mxu0
  %v2673 = vadd.f32 0.0, %v2672
  %v2674 = vpop.f32.mrb[0].mxu0
  %v2675 = vadd.f32 0.0, %v2674
  %v2676 = vpop.f32.mrb[0].mxu0
  %v2677 = vadd.f32 0.0, %v2676
  %v2678 = vpop.f32.mrb[0].mxu0
  %v2679 = vadd.f32 0.0, %v2678
  %2680 = vmatprep.mubr.bf16.mxu0 0
  %2681 = vmatmul.mubr.bf16.gmra.mrb[0].mxu0 %v344
  %v2682 = vpop.f32.mrb[0].mxu0
  %v2683 = vadd.f32 0.0, %v2682
  %v2684 = vpop.f32.mrb[0].mxu0
  %v2685 = vadd.f32 0.0, %v2684
  %v2686 = vpop.f32.mrb[0].mxu0
  %v2687 = vadd.f32 0.0, %v2686
  %v2688 = vpop.f32.mrb[0].mxu0
  %v2689 = vadd.f32 0.0, %v2688
  %2690 = vmatprep.mubr.bf16.mxu0 0
  %2691 = vmatmul.mubr.bf16.gmra.mrb[0].mxu0 %v347
  %v2692 = vpop.f32.mrb[0].mxu0
  %v2693 = vadd.f32 0.0, %v2692
  %v2694 = vpop.f32.mrb[0].mxu0
  %v2695 = vadd.f32 0.0, %v2694
  %v2696 = vpop.f32.mrb[0].mxu0
  %v2697 = vadd.f32 0.0, %v2696
  %v2698 = vpop.f32.mrb[0].mxu0
  %v2699 = vadd.f32 0.0, %v2698
  %2700 = vmatprep.mubr.bf16.mxu0 0
  %2701 = vmatmul.mubr.bf16.gmra.mrb[0].mxu0 %v350
  %v2702 = vpop.f32.mrb[0].mxu0
  %v2703 = vadd.f32 0.0, %v2702
  %v2704 = vpop.f32.mrb[0].mxu0
  %v2705 = vadd.f32 0.0, %v2704
  %v2706 = vpop.f32.mrb[0].mxu0
  %v2707 = vadd.f32 0.0, %v2706
  %v2708 = vpop.f32.mrb[0].mxu0
  %v2709 = vadd.f32 0.0, %v2708
  %2710 = vmatprep.mubr.bf16.mxu0 0
  %2711 = vmatmul.mubr.bf16.gmra.mrb[0].mxu0 %v353
  %v2712 = vpop.f32.mrb[0].mxu0
  %v2713 = vadd.f32 0.0, %v2712
  %v2714 = vpop.f32.mrb[0].mxu0
  %v2715 = vadd.f32 0.0, %v2714
  %v2716 = vpop.f32.mrb[0].mxu0
  %v2717 = vadd.f32 0.0, %v2716
  %v2718 = vpop.f32.mrb[0].mxu0
  %v2719 = vadd.f32 0.0, %v2718
  %2720 = vmatprep.mubr.bf16.mxu0 0
  %2721 = vmatmul.mubr.bf16.gmra.mrb[0].mxu0 %v356
  %v2722 = vpop.f32.mrb[0].mxu0
  %v2723 = vadd.f32 0.0, %v2722
  %v2724 = vpop.f32.mrb[0].mxu0
  %v2725 = vadd.f32 0.0, %v2724
  %v2726 = vpop.f32.mrb[0].mxu0
  %v2727 = vadd.f32 0.0, %v2726
  %v2728 = vpop.f32.mrb[0].mxu0
  %v2729 = vadd.f32 0.0, %v2728
  %2730 = vmatprep.mubr.bf16.mxu0 0
  %2731 = vmatmul.mubr.bf16.gmra.mrb[0].mxu0 %v359
  %v2732 = vpop.f32.mrb[0].mxu0
  %v2733 = vadd.f32 0.0, %v2732
  %v2734 = vpop.f32.mrb[0].mxu0
  %v2735 = vadd.f32 0.0, %v2734
  %v2736 = vpop.f32.mrb[0].mxu0
  %v2737 = vadd.f32 0.0, %v2736
  %v2738 = vpop.f32.mrb[0].mxu0
  %v2739 = vadd.f32 0.0, %v2738
  %2740 = vmatprep.mubr.bf16.mxu0 0
  %2741 = vmatmul.mubr.bf16.gmra.mrb[0].mxu0 %v362
  %v2742 = vpop.f32.mrb[0].mxu0
  %v2743 = vadd.f32 0.0, %v2742
  %v2744 = vpop.f32.mrb[0].mxu0
  %v2745 = vadd.f32 0.0, %v2744
  %v2746 = vpop.f32.mrb[0].mxu0
  %v2747 = vadd.f32 0.0, %v2746
  %v2748 = vpop.f32.mrb[0].mxu0
  %v2749 = vadd.f32 0.0, %v2748
  %2750 = vmatprep.mubr.bf16.mxu0 0
  %2751 = vmatmul.mubr.bf16.gmra.mrb[0].mxu0 %v365
  %v2752 = vpop.f32.mrb[0].mxu0
  %v2753 = vadd.f32 0.0, %v2752
  %v2754 = vpop.f32.mrb[0].mxu0
  %v2755 = vadd.f32 0.0, %v2754
  %v2756 = vpop.f32.mrb[0].mxu0
  %v2757 = vadd.f32 0.0, %v2756
  %v2758 = vpop.f32.mrb[0].mxu0
  %v2759 = vadd.f32 0.0, %v2758
  %2760 = vmatprep.mubr.bf16.mxu0 0
  %2761 = vmatmul.mubr.bf16.gmra.mrb[0].mxu0 %v368
  %v2762 = vpop.f32.mrb[0].mxu0
  %v2763 = vadd.f32 0.0, %v2762
  %v2764 = vpop.f32.mrb[0].mxu0
  %v2765 = vadd.f32 0.0, %v2764
  %v2766 = vpop.f32.mrb[0].mxu0
  %v2767 = vadd.f32 0.0, %v2766
  %v2768 = vpop.f32.mrb[0].mxu0
  %v2769 = vadd.f32 0.0, %v2768
  %2770 = vmatprep.mubr.bf16.mxu0 0
  %2771 = vmatmul.mubr.bf16.gmra.mrb[0].mxu0 %v371
  %v2772 = vpop.f32.mrb[0].mxu0
  %v2773 = vadd.f32 0.0, %v2772
  %v2774 = vpop.f32.mrb[0].mxu0
  %v2775 = vadd.f32 0.0, %v2774
  %v2776 = vpop.f32.mrb[0].mxu0
  %v2777 = vadd.f32 0.0, %v2776
  %v2778 = vpop.f32.mrb[0].mxu0
  %v2779 = vadd.f32 0.0, %v2778
  %2780 = vmatprep.mubr.bf16.mxu0 0
  %2781 = vmatmul.mubr.bf16.gmra.mrb[0].mxu0 %v374
  %v2782 = vpop.f32.mrb[0].mxu0
  %v2783 = vadd.f32 0.0, %v2782
  %v2784 = vpop.f32.mrb[0].mxu0
  %v2785 = vadd.f32 0.0, %v2784
  %v2786 = vpop.f32.mrb[0].mxu0
  %v2787 = vadd.f32 0.0, %v2786
  %v2788 = vpop.f32.mrb[0].mxu0
  %v2789 = vadd.f32 0.0, %v2788
  %2790 = vmatprep.mubr.bf16.mxu0 0
  %2791 = vmatmul.mubr.bf16.gmra.mrb[0].mxu0 %v377
  %v2792 = vpop.f32.mrb[0].mxu0
  %v2793 = vadd.f32 0.0, %v2792
  %v2794 = vpop.f32.mrb[0].mxu0
  %v2795 = vadd.f32 0.0, %v2794
  %v2796 = vpop.f32.mrb[0].mxu0
  %v2797 = vadd.f32 0.0, %v2796
  %v2798 = vpop.f32.mrb[0].mxu0
  %v2799 = vadd.f32 0.0, %v2798
  %2800 = vmatprep.mubr.bf16.mxu0 0
  %2801 = vmatmul.mubr.bf16.gmra.mrb[0].mxu0 %v380
  %v2802 = vpop.f32.mrb[0].mxu0
  %v2803 = vadd.f32 0.0, %v2802
  %v2804 = vpop.f32.mrb[0].mxu0
  %v2805 = vadd.f32 0.0, %v2804
  %v2806 = vpop.f32.mrb[0].mxu0
  %v2807 = vadd.f32 0.0, %v2806
  %v2808 = vpop.f32.mrb[0].mxu0
  %v2809 = vadd.f32 0.0, %v2808
  %2810 = vmatprep.mubr.bf16.mxu0 0
  %2811 = vmatmul.mubr.bf16.gmra.mrb[0].mxu0 %v383
  %v2812 = vpop.f32.mrb[0].mxu0
  %v2813 = vadd.f32 0.0, %v2812
  %v2814 = vpop.f32.mrb[0].mxu0
  %v2815 = vadd.f32 0.0, %v2814
  %v2816 = vpop.f32.mrb[0].mxu0
  %v2817 = vadd.f32 0.0, %v2816
  %v2818 = vpop.f32.mrb[0].mxu0
  %v2819 = vadd.f32 0.0, %v2818
  %2820 = vmatprep.mubr.bf16.mxu0 0
  %2821 = vmatmul.mubr.bf16.gmra.mrb[0].mxu0 %v386
  %v2822 = vpop.f32.mrb[0].mxu0
  %v2823 = vadd.f32 0.0, %v2822
  %v2824 = vpop.f32.mrb[0].mxu0
  %v2825 = vadd.f32 0.0, %v2824
  %v2826 = vpop.f32.mrb[0].mxu0
  %v2827 = vadd.f32 0.0, %v2826
  %v2828 = vpop.f32.mrb[0].mxu0
  %v2829 = vadd.f32 0.0, %v2828
  %2830 = vmatprep.mubr.bf16.mxu0 0
  %2831 = vmatmul.mubr.bf16.gmra.mrb[0].mxu0 %v389
  %v2832 = vpop.f32.mrb[0].mxu0
  %v2833 = vadd.f32 0.0, %v2832
  %v2834 = vpop.f32.mrb[0].mxu0
  %v2835 = vadd.f32 0.0, %v2834
  %v2836 = vpop.f32.mrb[0].mxu0
  %v2837 = vadd.f32 0.0, %v2836
  %v2838 = vpop.f32.mrb[0].mxu0
  %v2839 = vadd.f32 0.0, %v2838
  %2840 = vmatprep.mubr.bf16.mxu0 0
  %2841 = vmatmul.mubr.bf16.gmra.mrb[0].mxu0 %v392
  %v2842 = vpop.f32.mrb[0].mxu0
  %v2843 = vadd.f32 0.0, %v2842
  %v2844 = vpop.f32.mrb[0].mxu0
  %v2845 = vadd.f32 0.0, %v2844
  %v2846 = vpop.f32.mrb[0].mxu0
  %v2847 = vadd.f32 0.0, %v2846
  %v2848 = vpop.f32.mrb[0].mxu0
  %v2849 = vadd.f32 0.0, %v2848
  %2850 = vmatprep.mubr.bf16.mxu0 0
  %2851 = vmatmul.mubr.bf16.gmra.mrb[0].mxu0 %v395
  %v2852 = vpop.f32.mrb[0].mxu0
  %v2853 = vadd.f32 0.0, %v2852
  %v2854 = vpop.f32.mrb[0].mxu0
  %v2855 = vadd.f32 0.0, %v2854
  %v2856 = vpop.f32.mrb[0].mxu0
  %v2857 = vadd.f32 0.0, %v2856
  %v2858 = vpop.f32.mrb[0].mxu0
  %v2859 = vadd.f32 0.0, %v2858
  %2860 = vmatprep.mubr.bf16.mxu0 0
  %2861 = vmatmul.mubr.bf16.gmra.mrb[0].mxu0 %v398
  %v2862 = vpop.f32.mrb[0].mxu0
  %v2863 = vadd.f32 0.0, %v2862
  %v2864 = vpop.f32.mrb[0].mxu0
  %v2865 = vadd.f32 0.0, %v2864
  %v2866 = vpop.f32.mrb[0].mxu0
  %v2867 = vadd.f32 0.0, %v2866
  %v2868 = vpop.f32.mrb[0].mxu0
  %v2869 = vadd.f32 0.0, %v2868
  %2870 = vdwg.mxu0
  %2871 = vmatprep.subr.bf16.mxu0 %v254
  %2872 = vmatpush1.bf16.msra.mxu0 %v253
  %2873 = vmatprep.subr.bf16.mxu0 %v270
  %2874 = vmatpush1.bf16.msra.mxu0 %v269
  %2875 = vmatprep.subr.bf16.mxu0 0
  %2876 = vmatpush1.bf16.msra.mxu0 0
  %2877 = vmatprep.subr.bf16.mxu0 0
  %2878 = vmatpush1.bf16.msra.mxu0 0
  %2879 = vmatprep.subr.bf16.mxu0 0
  %2880 = vmatpush1.bf16.msra.mxu0 0
  %2881 = vmatprep.subr.bf16.mxu0 0
  %2882 = vmatpush1.bf16.msra.mxu0 0
  %2883 = vmatprep.subr.bf16.mxu0 0
  %2884 = vmatpush1.bf16.msra.mxu0 0
  %2885 = vmatprep.subr.bf16.mxu0 0
  %2886 = vmatpush1.bf16.msra.mxu0 0
  %2887 = vmatprep.subr.bf16.mxu0 0
  %2888 = vmatpush1.bf16.msra.mxu0 0
  %2889 = vmatprep.subr.bf16.mxu0 0
  %2890 = vmatpush1.bf16.msra.mxu0 0
  %2891 = vmatprep.subr.bf16.mxu0 0
  %2892 = vmatpush1.bf16.msra.mxu0 0
  %2893 = vmatprep.subr.bf16.mxu0 0
  %2894 = vmatpush1.bf16.msra.mxu0 0
  %2895 = vmatprep.subr.bf16.mxu0 0
  %2896 = vmatpush1.bf16.msra.mxu0 0
  %2897 = vmatprep.subr.bf16.mxu0 0
  %2898 = vmatpush1.bf16.msra.mxu0 0
  %2899 = vmatprep.subr.bf16.mxu0 0
  %2900 = vmatpush1.bf16.msra.mxu0 0
  %2901 = vmatprep.subr.bf16.mxu0 0
  %2902 = vmatpush1.bf16.msra.mxu0 0
  %2903 = vmatprep.mubr.bf16.mxu0 0
  %2904 = vmatmul.mubr.bf16.gmra.mrb[0].mxu0 %v305
  %v2905 = vpop.f32.mrb[0].mxu0
  %v2906 = vadd.f32 0.0, %v2905
  %v2907 = vpop.f32.mrb[0].mxu0
  %v2908 = vadd.f32 0.0, %v2907
  %v2909 = vpop.f32.mrb[0].mxu0
  %v2910 = vadd.f32 0.0, %v2909
  %v2911 = vpop.f32.mrb[0].mxu0
  %v2912 = vadd.f32 0.0, %v2911
  %2913 = vmatprep.mubr.bf16.mxu0 0
  %2914 = vmatmul.mubr.bf16.gmra.mrb[0].mxu0 %v308
  %v2915 = vpop.f32.mrb[0].mxu0
  %v2916 = vadd.f32 0.0, %v2915
  %v2917 = vpop.f32.mrb[0].mxu0
  %v2918 = vadd.f32 0.0, %v2917
  %v2919 = vpop.f32.mrb[0].mxu0
  %v2920 = vadd.f32 0.0, %v2919
  %v2921 = vpop.f32.mrb[0].mxu0
  %v2922 = vadd.f32 0.0, %v2921
  %2923 = vmatprep.mubr.bf16.mxu0 0
  %2924 = vmatmul.mubr.bf16.gmra.mrb[0].mxu0 %v311
  %v2925 = vpop.f32.mrb[0].mxu0
  %v2926 = vadd.f32 0.0, %v2925
  %v2927 = vpop.f32.mrb[0].mxu0
  %v2928 = vadd.f32 0.0, %v2927
  %v2929 = vpop.f32.mrb[0].mxu0
  %v2930 = vadd.f32 0.0, %v2929
  %v2931 = vpop.f32.mrb[0].mxu0
  %v2932 = vadd.f32 0.0, %v2931
  %2933 = vmatprep.mubr.bf16.mxu0 0
  %2934 = vmatmul.mubr.bf16.gmra.mrb[0].mxu0 %v314
  %v2935 = vpop.f32.mrb[0].mxu0
  %v2936 = vadd.f32 0.0, %v2935
  %v2937 = vpop.f32.mrb[0].mxu0
  %v2938 = vadd.f32 0.0, %v2937
  %v2939 = vpop.f32.mrb[0].mxu0
  %v2940 = vadd.f32 0.0, %v2939
  %v2941 = vpop.f32.mrb[0].mxu0
  %v2942 = vadd.f32 0.0, %v2941
  %2943 = vmatprep.mubr.bf16.mxu0 0
  %2944 = vmatmul.mubr.bf16.gmra.mrb[0].mxu0 %v317
  %v2945 = vpop.f32.mrb[0].mxu0
  %v2946 = vadd.f32 0.0, %v2945
  %v2947 = vpop.f32.mrb[0].mxu0
  %v2948 = vadd.f32 0.0, %v2947
  %v2949 = vpop.f32.mrb[0].mxu0
  %v2950 = vadd.f32 0.0, %v2949
  %v2951 = vpop.f32.mrb[0].mxu0
  %v2952 = vadd.f32 0.0, %v2951
  %2953 = vmatprep.mubr.bf16.mxu0 0
  %2954 = vmatmul.mubr.bf16.gmra.mrb[0].mxu0 %v320
  %v2955 = vpop.f32.mrb[0].mxu0
  %v2956 = vadd.f32 0.0, %v2955
  %v2957 = vpop.f32.mrb[0].mxu0
  %v2958 = vadd.f32 0.0, %v2957
  %v2959 = vpop.f32.mrb[0].mxu0
  %v2960 = vadd.f32 0.0, %v2959
  %v2961 = vpop.f32.mrb[0].mxu0
  %v2962 = vadd.f32 0.0, %v2961
  %2963 = vmatprep.mubr.bf16.mxu0 0
  %2964 = vmatmul.mubr.bf16.gmra.mrb[0].mxu0 %v323
  %v2965 = vpop.f32.mrb[0].mxu0
  %v2966 = vadd.f32 0.0, %v2965
  %v2967 = vpop.f32.mrb[0].mxu0
  %v2968 = vadd.f32 0.0, %v2967
  %v2969 = vpop.f32.mrb[0].mxu0
  %v2970 = vadd.f32 0.0, %v2969
  %v2971 = vpop.f32.mrb[0].mxu0
  %v2972 = vadd.f32 0.0, %v2971
  %2973 = vmatprep.mubr.bf16.mxu0 0
  %2974 = vmatmul.mubr.bf16.gmra.mrb[0].mxu0 %v326
  %v2975 = vpop.f32.mrb[0].mxu0
  %v2976 = vadd.f32 0.0, %v2975
  %v2977 = vpop.f32.mrb[0].mxu0
  %v2978 = vadd.f32 0.0, %v2977
  %v2979 = vpop.f32.mrb[0].mxu0
  %v2980 = vadd.f32 0.0, %v2979
  %v2981 = vpop.f32.mrb[0].mxu0
  %v2982 = vadd.f32 0.0, %v2981
  %2983 = vmatprep.mubr.bf16.mxu0 0
  %2984 = vmatmul.mubr.bf16.gmra.mrb[0].mxu0 %v329
  %v2985 = vpop.f32.mrb[0].mxu0
  %v2986 = vadd.f32 0.0, %v2985
  %v2987 = vpop.f32.mrb[0].mxu0
  %v2988 = vadd.f32 0.0, %v2987
  %v2989 = vpop.f32.mrb[0].mxu0
  %v2990 = vadd.f32 0.0, %v2989
  %v2991 = vpop.f32.mrb[0].mxu0
  %v2992 = vadd.f32 0.0, %v2991
  %2993 = vmatprep.mubr.bf16.mxu0 0
  %2994 = vmatmul.mubr.bf16.gmra.mrb[0].mxu0 %v332
  %v2995 = vpop.f32.mrb[0].mxu0
  %v2996 = vadd.f32 0.0, %v2995
  %v2997 = vpop.f32.mrb[0].mxu0
  %v2998 = vadd.f32 0.0, %v2997
  %v2999 = vpop.f32.mrb[0].mxu0
  %v3000 = vadd.f32 0.0, %v2999
  %v3001 = vpop.f32.mrb[0].mxu0
  %v3002 = vadd.f32 0.0, %v3001
  %3003 = vmatprep.mubr.bf16.mxu0 0
  %3004 = vmatmul.mubr.bf16.gmra.mrb[0].mxu0 %v335
  %v3005 = vpop.f32.mrb[0].mxu0
  %v3006 = vadd.f32 0.0, %v3005
  %v3007 = vpop.f32.mrb[0].mxu0
  %v3008 = vadd.f32 0.0, %v3007
  %v3009 = vpop.f32.mrb[0].mxu0
  %v3010 = vadd.f32 0.0, %v3009
  %v3011 = vpop.f32.mrb[0].mxu0
  %v3012 = vadd.f32 0.0, %v3011
  %3013 = vmatprep.mubr.bf16.mxu0 0
  %3014 = vmatmul.mubr.bf16.gmra.mrb[0].mxu0 %v338
  %v3015 = vpop.f32.mrb[0].mxu0
  %v3016 = vadd.f32 0.0, %v3015
  %v3017 = vpop.f32.mrb[0].mxu0
  %v3018 = vadd.f32 0.0, %v3017
  %v3019 = vpop.f32.mrb[0].mxu0
  %v3020 = vadd.f32 0.0, %v3019
  %v3021 = vpop.f32.mrb[0].mxu0
  %v3022 = vadd.f32 0.0, %v3021
  %3023 = vmatprep.mubr.bf16.mxu0 0
  %3024 = vmatmul.mubr.bf16.gmra.mrb[0].mxu0 %v341
  %v3025 = vpop.f32.mrb[0].mxu0
  %v3026 = vadd.f32 0.0, %v3025
  %v3027 = vpop.f32.mrb[0].mxu0
  %v3028 = vadd.f32 0.0, %v3027
  %v3029 = vpop.f32.mrb[0].mxu0
  %v3030 = vadd.f32 0.0, %v3029
  %v3031 = vpop.f32.mrb[0].mxu0
  %v3032 = vadd.f32 0.0, %v3031
  %3033 = vmatprep.mubr.bf16.mxu0 0
  %3034 = vmatmul.mubr.bf16.gmra.mrb[0].mxu0 %v344
  %v3035 = vpop.f32.mrb[0].mxu0
  %v3036 = vadd.f32 0.0, %v3035
  %v3037 = vpop.f32.mrb[0].mxu0
  %v3038 = vadd.f32 0.0, %v3037
  %v3039 = vpop.f32.mrb[0].mxu0
  %v3040 = vadd.f32 0.0, %v3039
  %v3041 = vpop.f32.mrb[0].mxu0
  %v3042 = vadd.f32 0.0, %v3041
  %3043 = vmatprep.mubr.bf16.mxu0 0
  %3044 = vmatmul.mubr.bf16.gmra.mrb[0].mxu0 %v347
  %v3045 = vpop.f32.mrb[0].mxu0
  %v3046 = vadd.f32 0.0, %v3045
  %v3047 = vpop.f32.mrb[0].mxu0
  %v3048 = vadd.f32 0.0, %v3047
  %v3049 = vpop.f32.mrb[0].mxu0
  %v3050 = vadd.f32 0.0, %v3049
  %v3051 = vpop.f32.mrb[0].mxu0
  %v3052 = vadd.f32 0.0, %v3051
  %3053 = vmatprep.mubr.bf16.mxu0 0
  %3054 = vmatmul.mubr.bf16.gmra.mrb[0].mxu0 %v350
  %v3055 = vpop.f32.mrb[0].mxu0
  %v3056 = vadd.f32 0.0, %v3055
  %v3057 = vpop.f32.mrb[0].mxu0
  %v3058 = vadd.f32 0.0, %v3057
  %v3059 = vpop.f32.mrb[0].mxu0
  %v3060 = vadd.f32 0.0, %v3059
  %v3061 = vpop.f32.mrb[0].mxu0
  %v3062 = vadd.f32 0.0, %v3061
  %3063 = vmatprep.mubr.bf16.mxu0 0
  %3064 = vmatmul.mubr.bf16.gmra.mrb[0].mxu0 %v353
  %v3065 = vpop.f32.mrb[0].mxu0
  %v3066 = vadd.f32 0.0, %v3065
  %v3067 = vpop.f32.mrb[0].mxu0
  %v3068 = vadd.f32 0.0, %v3067
  %v3069 = vpop.f32.mrb[0].mxu0
  %v3070 = vadd.f32 0.0, %v3069
  %v3071 = vpop.f32.mrb[0].mxu0
  %v3072 = vadd.f32 0.0, %v3071
  %3073 = vmatprep.mubr.bf16.mxu0 0
  %3074 = vmatmul.mubr.bf16.gmra.mrb[0].mxu0 %v356
  %v3075 = vpop.f32.mrb[0].mxu0
  %v3076 = vadd.f32 0.0, %v3075
  %v3077 = vpop.f32.mrb[0].mxu0
  %v3078 = vadd.f32 0.0, %v3077
  %v3079 = vpop.f32.mrb[0].mxu0
  %v3080 = vadd.f32 0.0, %v3079
  %v3081 = vpop.f32.mrb[0].mxu0
  %v3082 = vadd.f32 0.0, %v3081
  %3083 = vmatprep.mubr.bf16.mxu0 0
  %3084 = vmatmul.mubr.bf16.gmra.mrb[0].mxu0 %v359
  %v3085 = vpop.f32.mrb[0].mxu0
  %v3086 = vadd.f32 0.0, %v3085
  %v3087 = vpop.f32.mrb[0].mxu0
  %v3088 = vadd.f32 0.0, %v3087
  %v3089 = vpop.f32.mrb[0].mxu0
  %v3090 = vadd.f32 0.0, %v3089
  %v3091 = vpop.f32.mrb[0].mxu0
  %v3092 = vadd.f32 0.0, %v3091
  %3093 = vmatprep.mubr.bf16.mxu0 0
  %3094 = vmatmul.mubr.bf16.gmra.mrb[0].mxu0 %v362
  %v3095 = vpop.f32.mrb[0].mxu0
  %v3096 = vadd.f32 0.0, %v3095
  %v3097 = vpop.f32.mrb[0].mxu0
  %v3098 = vadd.f32 0.0, %v3097
  %v3099 = vpop.f32.mrb[0].mxu0
  %v3100 = vadd.f32 0.0, %v3099
  %v3101 = vpop.f32.mrb[0].mxu0
  %v3102 = vadd.f32 0.0, %v3101
  %3103 = vmatprep.mubr.bf16.mxu0 0
  %3104 = vmatmul.mubr.bf16.gmra.mrb[0].mxu0 %v365
  %v3105 = vpop.f32.mrb[0].mxu0
  %v3106 = vadd.f32 0.0, %v3105
  %v3107 = vpop.f32.mrb[0].mxu0
  %v3108 = vadd.f32 0.0, %v3107
  %v3109 = vpop.f32.mrb[0].mxu0
  %v3110 = vadd.f32 0.0, %v3109
  %v3111 = vpop.f32.mrb[0].mxu0
  %v3112 = vadd.f32 0.0, %v3111
  %3113 = vmatprep.mubr.bf16.mxu0 0
  %3114 = vmatmul.mubr.bf16.gmra.mrb[0].mxu0 %v368
  %v3115 = vpop.f32.mrb[0].mxu0
  %v3116 = vadd.f32 0.0, %v3115
  %v3117 = vpop.f32.mrb[0].mxu0
  %v3118 = vadd.f32 0.0, %v3117
  %v3119 = vpop.f32.mrb[0].mxu0
  %v3120 = vadd.f32 0.0, %v3119
  %v3121 = vpop.f32.mrb[0].mxu0
  %v3122 = vadd.f32 0.0, %v3121
  %3123 = vmatprep.mubr.bf16.mxu0 0
  %3124 = vmatmul.mubr.bf16.gmra.mrb[0].mxu0 %v371
  %v3125 = vpop.f32.mrb[0].mxu0
  %v3126 = vadd.f32 0.0, %v3125
  %v3127 = vpop.f32.mrb[0].mxu0
  %v3128 = vadd.f32 0.0, %v3127
  %v3129 = vpop.f32.mrb[0].mxu0
  %v3130 = vadd.f32 0.0, %v3129
  %v3131 = vpop.f32.mrb[0].mxu0
  %v3132 = vadd.f32 0.0, %v3131
  %3133 = vmatprep.mubr.bf16.mxu0 0
  %3134 = vmatmul.mubr.bf16.gmra.mrb[0].mxu0 %v374
  %v3135 = vpop.f32.mrb[0].mxu0
  %v3136 = vadd.f32 0.0, %v3135
  %v3137 = vpop.f32.mrb[0].mxu0
  %v3138 = vadd.f32 0.0, %v3137
  %v3139 = vpop.f32.mrb[0].mxu0
  %v3140 = vadd.f32 0.0, %v3139
  %v3141 = vpop.f32.mrb[0].mxu0
  %v3142 = vadd.f32 0.0, %v3141
  %3143 = vmatprep.mubr.bf16.mxu0 0
  %3144 = vmatmul.mubr.bf16.gmra.mrb[0].mxu0 %v377
  %v3145 = vpop.f32.mrb[0].mxu0
  %v3146 = vadd.f32 0.0, %v3145
  %v3147 = vpop.f32.mrb[0].mxu0
  %v3148 = vadd.f32 0.0, %v3147
  %v3149 = vpop.f32.mrb[0].mxu0
  %v3150 = vadd.f32 0.0, %v3149
  %v3151 = vpop.f32.mrb[0].mxu0
  %v3152 = vadd.f32 0.0, %v3151
  %3153 = vmatprep.mubr.bf16.mxu0 0
  %3154 = vmatmul.mubr.bf16.gmra.mrb[0].mxu0 %v380
  %v3155 = vpop.f32.mrb[0].mxu0
  %v3156 = vadd.f32 0.0, %v3155
  %v3157 = vpop.f32.mrb[0].mxu0
  %v3158 = vadd.f32 0.0, %v3157
  %v3159 = vpop.f32.mrb[0].mxu0
  %v3160 = vadd.f32 0.0, %v3159
  %v3161 = vpop.f32.mrb[0].mxu0
  %v3162 = vadd.f32 0.0, %v3161
  %3163 = vmatprep.mubr.bf16.mxu0 0
  %3164 = vmatmul.mubr.bf16.gmra.mrb[0].mxu0 %v383
  %v3165 = vpop.f32.mrb[0].mxu0
  %v3166 = vadd.f32 0.0, %v3165
  %v3167 = vpop.f32.mrb[0].mxu0
  %v3168 = vadd.f32 0.0, %v3167
  %v3169 = vpop.f32.mrb[0].mxu0
  %v3170 = vadd.f32 0.0, %v3169
  %v3171 = vpop.f32.mrb[0].mxu0
  %v3172 = vadd.f32 0.0, %v3171
  %3173 = vmatprep.mubr.bf16.mxu0 0
  %3174 = vmatmul.mubr.bf16.gmra.mrb[0].mxu0 %v386
  %v3175 = vpop.f32.mrb[0].mxu0
  %v3176 = vadd.f32 0.0, %v3175
  %v3177 = vpop.f32.mrb[0].mxu0
  %v3178 = vadd.f32 0.0, %v3177
  %v3179 = vpop.f32.mrb[0].mxu0
  %v3180 = vadd.f32 0.0, %v3179
  %v3181 = vpop.f32.mrb[0].mxu0
  %v3182 = vadd.f32 0.0, %v3181
  %3183 = vmatprep.mubr.bf16.mxu0 0
  %3184 = vmatmul.mubr.bf16.gmra.mrb[0].mxu0 %v389
  %v3185 = vpop.f32.mrb[0].mxu0
  %v3186 = vadd.f32 0.0, %v3185
  %v3187 = vpop.f32.mrb[0].mxu0
  %v3188 = vadd.f32 0.0, %v3187
  %v3189 = vpop.f32.mrb[0].mxu0
  %v3190 = vadd.f32 0.0, %v3189
  %v3191 = vpop.f32.mrb[0].mxu0
  %v3192 = vadd.f32 0.0, %v3191
  %3193 = vmatprep.mubr.bf16.mxu0 0
  %3194 = vmatmul.mubr.bf16.gmra.mrb[0].mxu0 %v392
  %v3195 = vpop.f32.mrb[0].mxu0
  %v3196 = vadd.f32 0.0, %v3195
  %v3197 = vpop.f32.mrb[0].mxu0
  %v3198 = vadd.f32 0.0, %v3197
  %v3199 = vpop.f32.mrb[0].mxu0
  %v3200 = vadd.f32 0.0, %v3199
  %v3201 = vpop.f32.mrb[0].mxu0
  %v3202 = vadd.f32 0.0, %v3201
  %3203 = vmatprep.mubr.bf16.mxu0 0
  %3204 = vmatmul.mubr.bf16.gmra.mrb[0].mxu0 %v395
  %v3205 = vpop.f32.mrb[0].mxu0
  %v3206 = vadd.f32 0.0, %v3205
  %v3207 = vpop.f32.mrb[0].mxu0
  %v3208 = vadd.f32 0.0, %v3207
  %v3209 = vpop.f32.mrb[0].mxu0
  %v3210 = vadd.f32 0.0, %v3209
  %v3211 = vpop.f32.mrb[0].mxu0
  %v3212 = vadd.f32 0.0, %v3211
  %3213 = vmatprep.mubr.bf16.mxu0 0
  %3214 = vmatmul.mubr.bf16.gmra.mrb[0].mxu0 %v398
  %v3215 = vpop.f32.mrb[0].mxu0
  %v3216 = vadd.f32 0.0, %v3215
  %v3217 = vpop.f32.mrb[0].mxu0
  %v3218 = vadd.f32 0.0, %v3217
  %v3219 = vpop.f32.mrb[0].mxu0
  %v3220 = vadd.f32 0.0, %v3219
  %v3221 = vpop.f32.mrb[0].mxu0
  %v3222 = vadd.f32 0.0, %v3221
  %3223 = vdwg.mxu0
  %v3224 = vld [vmem:[%s2] sm:$0x1]
  %v3226 = vlaneseq
  %v3227 = vshrl.u32 %v3226, 7
  %v3228 = vsub.s32 0, %v3227
  %v3229 = vrot.slane %v3224, %v3228
  %3232 = vset.pattern.permute.xlu0 0
  %3233 = vperm.xlu0 %3232, %v15
  %v3234 = vpop.permute.xlu0 %3233
  %3237 = vset.pattern.permute.xlu0 0
  %3238 = vperm.xlu0 %3237, %v16
  %v3239 = vpop.permute.xlu0 %3238
  %3242 = vset.pattern.permute.xlu0 0
  %3243 = vperm.xlu0 %3242, %v17
  %v3244 = vpop.permute.xlu0 %3243
  %3247 = vset.pattern.permute.xlu0 0
  %3248 = vperm.xlu0 %3247, %v18
  %v3249 = vpop.permute.xlu0 %3248
  %3252 = vset.pattern.permute.xlu0 0
  %3253 = vperm.xlu0 %3252, %v19
  %v3254 = vpop.permute.xlu0 %3253
  %3257 = vset.pattern.permute.xlu0 0
  %3258 = vperm.xlu0 %3257, %v20
  %v3259 = vpop.permute.xlu0 %3258
  %3262 = vset.pattern.permute.xlu0 0
  %3263 = vperm.xlu0 %3262, %v21
  %v3264 = vpop.permute.xlu0 %3263
  %3267 = vset.pattern.permute.xlu0 0
  %3268 = vperm.xlu0 %3267, %v22
  %v3269 = vpop.permute.xlu0 %3268
  %v3271 = vmul.f32 %v3234, %v435
  %v3272 = vmul.f32 %v3239, %v439
  %v3273 = vmul.f32 %v3244, %v445
  %v3274 = vmul.f32 %v3249, %v449
  %v3275 = vmul.f32 %v3254, %v455
  %v3276 = vmul.f32 %v3259, %v459
  %v3277 = vmul.f32 %v3264, %v465
  %v3278 = vmul.f32 %v3269, %v469
  %v3279 = vadd.f32 %v3229, %v3271
  %v3280 = vadd.f32 %v3229, %v3272
  %v3281 = vadd.f32 %v3229, %v3273
  %v3282 = vadd.f32 %v3229, %v3274
  %v3283 = vadd.f32 %v3229, %v3275
  %v3284 = vadd.f32 %v3229, %v3276
  %v3285 = vadd.f32 %v3229, %v3277
  %v3286 = vadd.f32 %v3229, %v3278
  %3287 = vset.pattern.permute.xlu0 1
  %3288 = vperm.xlu0 %3287, %v15
  %v3289 = vpop.permute.xlu0 %3288
  %3291 = vset.pattern.permute.xlu0 1
  %3292 = vperm.xlu0 %3291, %v16
  %v3293 = vpop.permute.xlu0 %3292
  %3295 = vset.pattern.permute.xlu0 1
  %3296 = vperm.xlu0 %3295, %v17
  %v3297 = vpop.permute.xlu0 %3296
  %3299 = vset.pattern.permute.xlu0 1
  %3300 = vperm.xlu0 %3299, %v18
  %v3301 = vpop.permute.xlu0 %3300
  %3303 = vset.pattern.permute.xlu0 1
  %3304 = vperm.xlu0 %3303, %v19
  %v3305 = vpop.permute.xlu0 %3304
  %3307 = vset.pattern.permute.xlu0 1
  %3308 = vperm.xlu0 %3307, %v20
  %v3309 = vpop.permute.xlu0 %3308
  %3311 = vset.pattern.permute.xlu0 1
  %3312 = vperm.xlu0 %3311, %v21
  %v3313 = vpop.permute.xlu0 %3312
  %3315 = vset.pattern.permute.xlu0 1
  %3316 = vperm.xlu0 %3315, %v22
  %v3317 = vpop.permute.xlu0 %3316
  %v3319 = vmul.f32 %v3289, %v437
  %v3320 = vmul.f32 %v3293, %v441
  %v3321 = vmul.f32 %v3297, %v447
  %v3322 = vmul.f32 %v3301, %v451
  %v3323 = vmul.f32 %v3305, %v457
  %v3324 = vmul.f32 %v3309, %v461
  %v3325 = vmul.f32 %v3313, %v467
  %v3326 = vmul.f32 %v3317, %v471
  %v3327 = vadd.f32 %v3279, %v3319
  %v3328 = vadd.f32 %v3280, %v3320
  %v3329 = vadd.f32 %v3281, %v3321
  %v3330 = vadd.f32 %v3282, %v3322
  %v3331 = vadd.f32 %v3283, %v3323
  %v3332 = vadd.f32 %v3284, %v3324
  %v3333 = vadd.f32 %v3285, %v3325
  %v3334 = vadd.f32 %v3286, %v3326
  %3335 = vset.pattern.permute.xlu0 2
  %3336 = vperm.xlu0 %3335, %v15
  %v3337 = vpop.permute.xlu0 %3336
  %3339 = vset.pattern.permute.xlu0 2
  %3340 = vperm.xlu0 %3339, %v16
  %v3341 = vpop.permute.xlu0 %3340
  %3343 = vset.pattern.permute.xlu0 2
  %3344 = vperm.xlu0 %3343, %v17
  %v3345 = vpop.permute.xlu0 %3344
  %3347 = vset.pattern.permute.xlu0 2
  %3348 = vperm.xlu0 %3347, %v18
  %v3349 = vpop.permute.xlu0 %3348
  %3351 = vset.pattern.permute.xlu0 2
  %3352 = vperm.xlu0 %3351, %v19
  %v3353 = vpop.permute.xlu0 %3352
  %3355 = vset.pattern.permute.xlu0 2
  %3356 = vperm.xlu0 %3355, %v20
  %v3357 = vpop.permute.xlu0 %3356
  %3359 = vset.pattern.permute.xlu0 2
  %3360 = vperm.xlu0 %3359, %v21
  %v3361 = vpop.permute.xlu0 %3360
  %3363 = vset.pattern.permute.xlu0 2
  %3364 = vperm.xlu0 %3363, %v22
  %v3365 = vpop.permute.xlu0 %3364
  %v3367 = vmul.f32 %v3337, %v788
  %v3368 = vmul.f32 %v3341, %v792
  %v3369 = vmul.f32 %v3345, %v798
  %v3370 = vmul.f32 %v3349, %v802
  %v3371 = vmul.f32 %v3353, %v808
  %v3372 = vmul.f32 %v3357, %v812
  %v3373 = vmul.f32 %v3361, %v818
  %v3374 = vmul.f32 %v3365, %v822
  %v3375 = vadd.f32 %v3327, %v3367
  %v3376 = vadd.f32 %v3328, %v3368
  %v3377 = vadd.f32 %v3329, %v3369
  %v3378 = vadd.f32 %v3330, %v3370
  %v3379 = vadd.f32 %v3331, %v3371
  %v3380 = vadd.f32 %v3332, %v3372
  %v3381 = vadd.f32 %v3333, %v3373
  %v3382 = vadd.f32 %v3334, %v3374
  %3383 = vset.pattern.permute.xlu0 3
  %3384 = vperm.xlu0 %3383, %v15
  %v3385 = vpop.permute.xlu0 %3384
  %3387 = vset.pattern.permute.xlu0 3
  %3388 = vperm.xlu0 %3387, %v16
  %v3389 = vpop.permute.xlu0 %3388
  %3391 = vset.pattern.permute.xlu0 3
  %3392 = vperm.xlu0 %3391, %v17
  %v3393 = vpop.permute.xlu0 %3392
  %3395 = vset.pattern.permute.xlu0 3
  %3396 = vperm.xlu0 %3395, %v18
  %v3397 = vpop.permute.xlu0 %3396
  %3399 = vset.pattern.permute.xlu0 3
  %3400 = vperm.xlu0 %3399, %v19
  %v3401 = vpop.permute.xlu0 %3400
  %3403 = vset.pattern.permute.xlu0 3
  %3404 = vperm.xlu0 %3403, %v20
  %v3405 = vpop.permute.xlu0 %3404
  %3407 = vset.pattern.permute.xlu0 3
  %3408 = vperm.xlu0 %3407, %v21
  %v3409 = vpop.permute.xlu0 %3408
  %3411 = vset.pattern.permute.xlu0 3
  %3412 = vperm.xlu0 %3411, %v22
  %v3413 = vpop.permute.xlu0 %3412
  %v3415 = vmul.f32 %v3385, %v790
  %v3416 = vmul.f32 %v3389, %v794
  %v3417 = vmul.f32 %v3393, %v800
  %v3418 = vmul.f32 %v3397, %v804
  %v3419 = vmul.f32 %v3401, %v810
  %v3420 = vmul.f32 %v3405, %v814
  %v3421 = vmul.f32 %v3409, %v820
  %v3422 = vmul.f32 %v3413, %v824
  %v3423 = vadd.f32 %v3375, %v3415
  %v3424 = vadd.f32 %v3376, %v3416
  %v3425 = vadd.f32 %v3377, %v3417
  %v3426 = vadd.f32 %v3378, %v3418
  %v3427 = vadd.f32 %v3379, %v3419
  %v3428 = vadd.f32 %v3380, %v3420
  %v3429 = vadd.f32 %v3381, %v3421
  %v3430 = vadd.f32 %v3382, %v3422
  %3431 = vset.pattern.permute.xlu0 4
  %3432 = vperm.xlu0 %3431, %v15
  %v3433 = vpop.permute.xlu0 %3432
  %3435 = vset.pattern.permute.xlu0 4
  %3436 = vperm.xlu0 %3435, %v16
  %v3437 = vpop.permute.xlu0 %3436
  %3439 = vset.pattern.permute.xlu0 4
  %3440 = vperm.xlu0 %3439, %v17
  %v3441 = vpop.permute.xlu0 %3440
  %3443 = vset.pattern.permute.xlu0 4
  %3444 = vperm.xlu0 %3443, %v18
  %v3445 = vpop.permute.xlu0 %3444
  %3447 = vset.pattern.permute.xlu0 4
  %3448 = vperm.xlu0 %3447, %v19
  %v3449 = vpop.permute.xlu0 %3448
  %3451 = vset.pattern.permute.xlu0 4
  %3452 = vperm.xlu0 %3451, %v20
  %v3453 = vpop.permute.xlu0 %3452
  %3455 = vset.pattern.permute.xlu0 4
  %3456 = vperm.xlu0 %3455, %v21
  %v3457 = vpop.permute.xlu0 %3456
  %3459 = vset.pattern.permute.xlu0 4
  %3460 = vperm.xlu0 %3459, %v22
  %v3461 = vpop.permute.xlu0 %3460
  %v3463 = vmul.f32 %v3433, %v1141
  %v3464 = vmul.f32 %v3437, %v1145
  %v3465 = vmul.f32 %v3441, %v1151
  %v3466 = vmul.f32 %v3445, %v1155
  %v3467 = vmul.f32 %v3449, %v1161
  %v3468 = vmul.f32 %v3453, %v1165
  %v3469 = vmul.f32 %v3457, %v1171
  %v3470 = vmul.f32 %v3461, %v1175
  %v3471 = vadd.f32 %v3423, %v3463
  %v3472 = vadd.f32 %v3424, %v3464
  %v3473 = vadd.f32 %v3425, %v3465
  %v3474 = vadd.f32 %v3426, %v3466
  %v3475 = vadd.f32 %v3427, %v3467
  %v3476 = vadd.f32 %v3428, %v3468
  %v3477 = vadd.f32 %v3429, %v3469
  %v3478 = vadd.f32 %v3430, %v3470
  %3479 = vset.pattern.permute.xlu0 5
  %3480 = vperm.xlu0 %3479, %v15
  %v3481 = vpop.permute.xlu0 %3480
  %3483 = vset.pattern.permute.xlu0 5
  %3484 = vperm.xlu0 %3483, %v16
  %v3485 = vpop.permute.xlu0 %3484
  %3487 = vset.pattern.permute.xlu0 5
  %3488 = vperm.xlu0 %3487, %v17
  %v3489 = vpop.permute.xlu0 %3488
  %3491 = vset.pattern.permute.xlu0 5
  %3492 = vperm.xlu0 %3491, %v18
  %v3493 = vpop.permute.xlu0 %3492
  %3495 = vset.pattern.permute.xlu0 5
  %3496 = vperm.xlu0 %3495, %v19
  %v3497 = vpop.permute.xlu0 %3496
  %3499 = vset.pattern.permute.xlu0 5
  %3500 = vperm.xlu0 %3499, %v20
  %v3501 = vpop.permute.xlu0 %3500
  %3503 = vset.pattern.permute.xlu0 5
  %3504 = vperm.xlu0 %3503, %v21
  %v3505 = vpop.permute.xlu0 %3504
  %3507 = vset.pattern.permute.xlu0 5
  %3508 = vperm.xlu0 %3507, %v22
  %v3509 = vpop.permute.xlu0 %3508
  %v3511 = vmul.f32 %v3481, %v1143
  %v3512 = vmul.f32 %v3485, %v1147
  %v3513 = vmul.f32 %v3489, %v1153
  %v3514 = vmul.f32 %v3493, %v1157
  %v3515 = vmul.f32 %v3497, %v1163
  %v3516 = vmul.f32 %v3501, %v1167
  %v3517 = vmul.f32 %v3505, %v1173
  %v3518 = vmul.f32 %v3509, %v1177
  %v3519 = vadd.f32 %v3471, %v3511
  %v3520 = vadd.f32 %v3472, %v3512
  %v3521 = vadd.f32 %v3473, %v3513
  %v3522 = vadd.f32 %v3474, %v3514
  %v3523 = vadd.f32 %v3475, %v3515
  %v3524 = vadd.f32 %v3476, %v3516
  %v3525 = vadd.f32 %v3477, %v3517
  %v3526 = vadd.f32 %v3478, %v3518
  %3527 = vset.pattern.permute.xlu0 6
  %3528 = vperm.xlu0 %3527, %v15
  %v3529 = vpop.permute.xlu0 %3528
  %3531 = vset.pattern.permute.xlu0 6
  %3532 = vperm.xlu0 %3531, %v16
  %v3533 = vpop.permute.xlu0 %3532
  %3535 = vset.pattern.permute.xlu0 6
  %3536 = vperm.xlu0 %3535, %v17
  %v3537 = vpop.permute.xlu0 %3536
  %3539 = vset.pattern.permute.xlu0 6
  %3540 = vperm.xlu0 %3539, %v18
  %v3541 = vpop.permute.xlu0 %3540
  %3543 = vset.pattern.permute.xlu0 6
  %3544 = vperm.xlu0 %3543, %v19
  %v3545 = vpop.permute.xlu0 %3544
  %3547 = vset.pattern.permute.xlu0 6
  %3548 = vperm.xlu0 %3547, %v20
  %v3549 = vpop.permute.xlu0 %3548
  %3551 = vset.pattern.permute.xlu0 6
  %3552 = vperm.xlu0 %3551, %v21
  %v3553 = vpop.permute.xlu0 %3552
  %3555 = vset.pattern.permute.xlu0 6
  %3556 = vperm.xlu0 %3555, %v22
  %v3557 = vpop.permute.xlu0 %3556
  %v3559 = vmul.f32 %v3529, %v1494
  %v3560 = vmul.f32 %v3533, %v1498
  %v3561 = vmul.f32 %v3537, %v1504
  %v3562 = vmul.f32 %v3541, %v1508
  %v3563 = vmul.f32 %v3545, %v1514
  %v3564 = vmul.f32 %v3549, %v1518
  %v3565 = vmul.f32 %v3553, %v1524
  %v3566 = vmul.f32 %v3557, %v1528
  %v3567 = vadd.f32 %v3519, %v3559
  %v3568 = vadd.f32 %v3520, %v3560
  %v3569 = vadd.f32 %v3521, %v3561
  %v3570 = vadd.f32 %v3522, %v3562
  %v3571 = vadd.f32 %v3523, %v3563
  %v3572 = vadd.f32 %v3524, %v3564
  %v3573 = vadd.f32 %v3525, %v3565
  %v3574 = vadd.f32 %v3526, %v3566
  %3575 = vset.pattern.permute.xlu0 7
  %3576 = vperm.xlu0 %3575, %v15
  %v3577 = vpop.permute.xlu0 %3576
  %3579 = vset.pattern.permute.xlu0 7
  %3580 = vperm.xlu0 %3579, %v16
  %v3581 = vpop.permute.xlu0 %3580
  %3583 = vset.pattern.permute.xlu0 7
  %3584 = vperm.xlu0 %3583, %v17
  %v3585 = vpop.permute.xlu0 %3584
  %3587 = vset.pattern.permute.xlu0 7
  %3588 = vperm.xlu0 %3587, %v18
  %v3589 = vpop.permute.xlu0 %3588
  %3591 = vset.pattern.permute.xlu0 7
  %3592 = vperm.xlu0 %3591, %v19
  %v3593 = vpop.permute.xlu0 %3592
  %3595 = vset.pattern.permute.xlu0 7
  %3596 = vperm.xlu0 %3595, %v20
  %v3597 = vpop.permute.xlu0 %3596
  %3599 = vset.pattern.permute.xlu0 7
  %3600 = vperm.xlu0 %3599, %v21
  %v3601 = vpop.permute.xlu0 %3600
  %3603 = vset.pattern.permute.xlu0 7
  %3604 = vperm.xlu0 %3603, %v22
  %v3605 = vpop.permute.xlu0 %3604
  %v3607 = vmul.f32 %v3577, %v1496
  %v3608 = vmul.f32 %v3581, %v1500
  %v3609 = vmul.f32 %v3585, %v1506
  %v3610 = vmul.f32 %v3589, %v1510
  %v3611 = vmul.f32 %v3593, %v1516
  %v3612 = vmul.f32 %v3597, %v1520
  %v3613 = vmul.f32 %v3601, %v1526
  %v3614 = vmul.f32 %v3605, %v1530
  %v3615 = vadd.f32 %v3567, %v3607
  %v3616 = vadd.f32 %v3568, %v3608
  %v3617 = vadd.f32 %v3569, %v3609
  %v3618 = vadd.f32 %v3570, %v3610
  %v3619 = vadd.f32 %v3571, %v3611
  %v3620 = vadd.f32 %v3572, %v3612
  %v3621 = vadd.f32 %v3573, %v3613
  %v3622 = vadd.f32 %v3574, %v3614
  %3623 = vset.pattern.permute.xlu0 8
  %3624 = vperm.xlu0 %3623, %v15
  %v3625 = vpop.permute.xlu0 %3624
  %3627 = vset.pattern.permute.xlu0 8
  %3628 = vperm.xlu0 %3627, %v16
  %v3629 = vpop.permute.xlu0 %3628
  %3631 = vset.pattern.permute.xlu0 8
  %3632 = vperm.xlu0 %3631, %v17
  %v3633 = vpop.permute.xlu0 %3632
  %3635 = vset.pattern.permute.xlu0 8
  %3636 = vperm.xlu0 %3635, %v18
  %v3637 = vpop.permute.xlu0 %3636
  %3639 = vset.pattern.permute.xlu0 8
  %3640 = vperm.xlu0 %3639, %v19
  %v3641 = vpop.permute.xlu0 %3640
  %3643 = vset.pattern.permute.xlu0 8
  %3644 = vperm.xlu0 %3643, %v20
  %v3645 = vpop.permute.xlu0 %3644
  %3647 = vset.pattern.permute.xlu0 8
  %3648 = vperm.xlu0 %3647, %v21
  %v3649 = vpop.permute.xlu0 %3648
  %3651 = vset.pattern.permute.xlu0 8
  %3652 = vperm.xlu0 %3651, %v22
  %v3653 = vpop.permute.xlu0 %3652
  %v3655 = vmul.f32 %v3625, %v1847
  %v3656 = vmul.f32 %v3629, %v1851
  %v3657 = vmul.f32 %v3633, %v1857
  %v3658 = vmul.f32 %v3637, %v1861
  %v3659 = vmul.f32 %v3641, %v1867
  %v3660 = vmul.f32 %v3645, %v1871
  %v3661 = vmul.f32 %v3649, %v1877
  %v3662 = vmul.f32 %v3653, %v1881
  %v3663 = vadd.f32 %v3615, %v3655
  %v3664 = vadd.f32 %v3616, %v3656
  %v3665 = vadd.f32 %v3617, %v3657
  %v3666 = vadd.f32 %v3618, %v3658
  %v3667 = vadd.f32 %v3619, %v3659
  %v3668 = vadd.f32 %v3620, %v3660
  %v3669 = vadd.f32 %v3621, %v3661
  %v3670 = vadd.f32 %v3622, %v3662
  %3671 = vset.pattern.permute.xlu0 9
  %3672 = vperm.xlu0 %3671, %v15
  %v3673 = vpop.permute.xlu0 %3672
  %3675 = vset.pattern.permute.xlu0 9
  %3676 = vperm.xlu0 %3675, %v16
  %v3677 = vpop.permute.xlu0 %3676
  %3679 = vset.pattern.permute.xlu0 9
  %3680 = vperm.xlu0 %3679, %v17
  %v3681 = vpop.permute.xlu0 %3680
  %3683 = vset.pattern.permute.xlu0 9
  %3684 = vperm.xlu0 %3683, %v18
  %v3685 = vpop.permute.xlu0 %3684
  %3687 = vset.pattern.permute.xlu0 9
  %3688 = vperm.xlu0 %3687, %v19
  %v3689 = vpop.permute.xlu0 %3688
  %3691 = vset.pattern.permute.xlu0 9
  %3692 = vperm.xlu0 %3691, %v20
  %v3693 = vpop.permute.xlu0 %3692
  %3695 = vset.pattern.permute.xlu0 9
  %3696 = vperm.xlu0 %3695, %v21
  %v3697 = vpop.permute.xlu0 %3696
  %3699 = vset.pattern.permute.xlu0 9
  %3700 = vperm.xlu0 %3699, %v22
  %v3701 = vpop.permute.xlu0 %3700
  %v3703 = vmul.f32 %v3673, %v1849
  %v3704 = vmul.f32 %v3677, %v1853
  %v3705 = vmul.f32 %v3681, %v1859
  %v3706 = vmul.f32 %v3685, %v1863
  %v3707 = vmul.f32 %v3689, %v1869
  %v3708 = vmul.f32 %v3693, %v1873
  %v3709 = vmul.f32 %v3697, %v1879
  %v3710 = vmul.f32 %v3701, %v1883
  %v3711 = vadd.f32 %v3663, %v3703
  %v3712 = vadd.f32 %v3664, %v3704
  %v3713 = vadd.f32 %v3665, %v3705
  %v3714 = vadd.f32 %v3666, %v3706
  %v3715 = vadd.f32 %v3667, %v3707
  %v3716 = vadd.f32 %v3668, %v3708
  %v3717 = vadd.f32 %v3669, %v3709
  %v3718 = vadd.f32 %v3670, %v3710
  %3719 = vset.pattern.permute.xlu0 10
  %3720 = vperm.xlu0 %3719, %v15
  %v3721 = vpop.permute.xlu0 %3720
  %3723 = vset.pattern.permute.xlu0 10
  %3724 = vperm.xlu0 %3723, %v16
  %v3725 = vpop.permute.xlu0 %3724
  %3727 = vset.pattern.permute.xlu0 10
  %3728 = vperm.xlu0 %3727, %v17
  %v3729 = vpop.permute.xlu0 %3728
  %3731 = vset.pattern.permute.xlu0 10
  %3732 = vperm.xlu0 %3731, %v18
  %v3733 = vpop.permute.xlu0 %3732
  %3735 = vset.pattern.permute.xlu0 10
  %3736 = vperm.xlu0 %3735, %v19
  %v3737 = vpop.permute.xlu0 %3736
  %3739 = vset.pattern.permute.xlu0 10
  %3740 = vperm.xlu0 %3739, %v20
  %v3741 = vpop.permute.xlu0 %3740
  %3743 = vset.pattern.permute.xlu0 10
  %3744 = vperm.xlu0 %3743, %v21
  %v3745 = vpop.permute.xlu0 %3744
  %3747 = vset.pattern.permute.xlu0 10
  %3748 = vperm.xlu0 %3747, %v22
  %v3749 = vpop.permute.xlu0 %3748
  %v3751 = vmul.f32 %v3721, %v2200
  %v3752 = vmul.f32 %v3725, %v2204
  %v3753 = vmul.f32 %v3729, %v2210
  %v3754 = vmul.f32 %v3733, %v2214
  %v3755 = vmul.f32 %v3737, %v2220
  %v3756 = vmul.f32 %v3741, %v2224
  %v3757 = vmul.f32 %v3745, %v2230
  %v3758 = vmul.f32 %v3749, %v2234
  %v3759 = vadd.f32 %v3711, %v3751
  %v3760 = vadd.f32 %v3712, %v3752
  %v3761 = vadd.f32 %v3713, %v3753
  %v3762 = vadd.f32 %v3714, %v3754
  %v3763 = vadd.f32 %v3715, %v3755
  %v3764 = vadd.f32 %v3716, %v3756
  %v3765 = vadd.f32 %v3717, %v3757
  %v3766 = vadd.f32 %v3718, %v3758
  %3767 = vset.pattern.permute.xlu0 11
  %3768 = vperm.xlu0 %3767, %v15
  %v3769 = vpop.permute.xlu0 %3768
  %3771 = vset.pattern.permute.xlu0 11
  %3772 = vperm.xlu0 %3771, %v16
  %v3773 = vpop.permute.xlu0 %3772
  %3775 = vset.pattern.permute.xlu0 11
  %3776 = vperm.xlu0 %3775, %v17
  %v3777 = vpop.permute.xlu0 %3776
  %3779 = vset.pattern.permute.xlu0 11
  %3780 = vperm.xlu0 %3779, %v18
  %v3781 = vpop.permute.xlu0 %3780
  %3783 = vset.pattern.permute.xlu0 11
  %3784 = vperm.xlu0 %3783, %v19
  %v3785 = vpop.permute.xlu0 %3784
  %3787 = vset.pattern.permute.xlu0 11
  %3788 = vperm.xlu0 %3787, %v20
  %v3789 = vpop.permute.xlu0 %3788
  %3791 = vset.pattern.permute.xlu0 11
  %3792 = vperm.xlu0 %3791, %v21
  %v3793 = vpop.permute.xlu0 %3792
  %3795 = vset.pattern.permute.xlu0 11
  %3796 = vperm.xlu0 %3795, %v22
  %v3797 = vpop.permute.xlu0 %3796
  %v3799 = vmul.f32 %v3769, %v2202
  %v3800 = vmul.f32 %v3773, %v2206
  %v3801 = vmul.f32 %v3777, %v2212
  %v3802 = vmul.f32 %v3781, %v2216
  %v3803 = vmul.f32 %v3785, %v2222
  %v3804 = vmul.f32 %v3789, %v2226
  %v3805 = vmul.f32 %v3793, %v2232
  %v3806 = vmul.f32 %v3797, %v2236
  %v3807 = vadd.f32 %v3759, %v3799
  %v3808 = vadd.f32 %v3760, %v3800
  %v3809 = vadd.f32 %v3761, %v3801
  %v3810 = vadd.f32 %v3762, %v3802
  %v3811 = vadd.f32 %v3763, %v3803
  %v3812 = vadd.f32 %v3764, %v3804
  %v3813 = vadd.f32 %v3765, %v3805
  %v3814 = vadd.f32 %v3766, %v3806
  %3815 = vset.pattern.permute.xlu0 12
  %3816 = vperm.xlu0 %3815, %v15
  %v3817 = vpop.permute.xlu0 %3816
  %3819 = vset.pattern.permute.xlu0 12
  %3820 = vperm.xlu0 %3819, %v16
  %v3821 = vpop.permute.xlu0 %3820
  %3823 = vset.pattern.permute.xlu0 12
  %3824 = vperm.xlu0 %3823, %v17
  %v3825 = vpop.permute.xlu0 %3824
  %3827 = vset.pattern.permute.xlu0 12
  %3828 = vperm.xlu0 %3827, %v18
  %v3829 = vpop.permute.xlu0 %3828
  %3831 = vset.pattern.permute.xlu0 12
  %3832 = vperm.xlu0 %3831, %v19
  %v3833 = vpop.permute.xlu0 %3832
  %3835 = vset.pattern.permute.xlu0 12
  %3836 = vperm.xlu0 %3835, %v20
  %v3837 = vpop.permute.xlu0 %3836
  %3839 = vset.pattern.permute.xlu0 12
  %3840 = vperm.xlu0 %3839, %v21
  %v3841 = vpop.permute.xlu0 %3840
  %3843 = vset.pattern.permute.xlu0 12
  %3844 = vperm.xlu0 %3843, %v22
  %v3845 = vpop.permute.xlu0 %3844
  %v3847 = vmul.f32 %v3817, %v2553
  %v3848 = vmul.f32 %v3821, %v2557
  %v3849 = vmul.f32 %v3825, %v2563
  %v3850 = vmul.f32 %v3829, %v2567
  %v3851 = vmul.f32 %v3833, %v2573
  %v3852 = vmul.f32 %v3837, %v2577
  %v3853 = vmul.f32 %v3841, %v2583
  %v3854 = vmul.f32 %v3845, %v2587
  %v3855 = vadd.f32 %v3807, %v3847
  %v3856 = vadd.f32 %v3808, %v3848
  %v3857 = vadd.f32 %v3809, %v3849
  %v3858 = vadd.f32 %v3810, %v3850
  %v3859 = vadd.f32 %v3811, %v3851
  %v3860 = vadd.f32 %v3812, %v3852
  %v3861 = vadd.f32 %v3813, %v3853
  %v3862 = vadd.f32 %v3814, %v3854
  %3863 = vset.pattern.permute.xlu0 13
  %3864 = vperm.xlu0 %3863, %v15
  %v3865 = vpop.permute.xlu0 %3864
  %3867 = vset.pattern.permute.xlu0 13
  %3868 = vperm.xlu0 %3867, %v16
  %v3869 = vpop.permute.xlu0 %3868
  %3871 = vset.pattern.permute.xlu0 13
  %3872 = vperm.xlu0 %3871, %v17
  %v3873 = vpop.permute.xlu0 %3872
  %3875 = vset.pattern.permute.xlu0 13
  %3876 = vperm.xlu0 %3875, %v18
  %v3877 = vpop.permute.xlu0 %3876
  %3879 = vset.pattern.permute.xlu0 13
  %3880 = vperm.xlu0 %3879, %v19
  %v3881 = vpop.permute.xlu0 %3880
  %3883 = vset.pattern.permute.xlu0 13
  %3884 = vperm.xlu0 %3883, %v20
  %v3885 = vpop.permute.xlu0 %3884
  %3887 = vset.pattern.permute.xlu0 13
  %3888 = vperm.xlu0 %3887, %v21
  %v3889 = vpop.permute.xlu0 %3888
  %3891 = vset.pattern.permute.xlu0 13
  %3892 = vperm.xlu0 %3891, %v22
  %v3893 = vpop.permute.xlu0 %3892
  %v3895 = vmul.f32 %v3865, %v2555
  %v3896 = vmul.f32 %v3869, %v2559
  %v3897 = vmul.f32 %v3873, %v2565
  %v3898 = vmul.f32 %v3877, %v2569
  %v3899 = vmul.f32 %v3881, %v2575
  %v3900 = vmul.f32 %v3885, %v2579
  %v3901 = vmul.f32 %v3889, %v2585
  %v3902 = vmul.f32 %v3893, %v2589
  %v3903 = vadd.f32 %v3855, %v3895
  %v3904 = vadd.f32 %v3856, %v3896
  %v3905 = vadd.f32 %v3857, %v3897
  %v3906 = vadd.f32 %v3858, %v3898
  %v3907 = vadd.f32 %v3859, %v3899
  %v3908 = vadd.f32 %v3860, %v3900
  %v3909 = vadd.f32 %v3861, %v3901
  %v3910 = vadd.f32 %v3862, %v3902
  %3911 = vset.pattern.permute.xlu0 14
  %3912 = vperm.xlu0 %3911, %v15
  %v3913 = vpop.permute.xlu0 %3912
  %3915 = vset.pattern.permute.xlu0 14
  %3916 = vperm.xlu0 %3915, %v16
  %v3917 = vpop.permute.xlu0 %3916
  %3919 = vset.pattern.permute.xlu0 14
  %3920 = vperm.xlu0 %3919, %v17
  %v3921 = vpop.permute.xlu0 %3920
  %3923 = vset.pattern.permute.xlu0 14
  %3924 = vperm.xlu0 %3923, %v18
  %v3925 = vpop.permute.xlu0 %3924
  %3927 = vset.pattern.permute.xlu0 14
  %3928 = vperm.xlu0 %3927, %v19
  %v3929 = vpop.permute.xlu0 %3928
  %3931 = vset.pattern.permute.xlu0 14
  %3932 = vperm.xlu0 %3931, %v20
  %v3933 = vpop.permute.xlu0 %3932
  %3935 = vset.pattern.permute.xlu0 14
  %3936 = vperm.xlu0 %3935, %v21
  %v3937 = vpop.permute.xlu0 %3936
  %3939 = vset.pattern.permute.xlu0 14
  %3940 = vperm.xlu0 %3939, %v22
  %v3941 = vpop.permute.xlu0 %3940
  %v3943 = vmul.f32 %v3913, %v2906
  %v3944 = vmul.f32 %v3917, %v2910
  %v3945 = vmul.f32 %v3921, %v2916
  %v3946 = vmul.f32 %v3925, %v2920
  %v3947 = vmul.f32 %v3929, %v2926
  %v3948 = vmul.f32 %v3933, %v2930
  %v3949 = vmul.f32 %v3937, %v2936
  %v3950 = vmul.f32 %v3941, %v2940
  %v3951 = vadd.f32 %v3903, %v3943
  %v3952 = vadd.f32 %v3904, %v3944
  %v3953 = vadd.f32 %v3905, %v3945
  %v3954 = vadd.f32 %v3906, %v3946
  %v3955 = vadd.f32 %v3907, %v3947
  %v3956 = vadd.f32 %v3908, %v3948
  %v3957 = vadd.f32 %v3909, %v3949
  %v3958 = vadd.f32 %v3910, %v3950
  %3959 = vset.pattern.permute.xlu0 15
  %3960 = vperm.xlu0 %3959, %v15
  %v3961 = vpop.permute.xlu0 %3960
  %3963 = vset.pattern.permute.xlu0 15
  %3964 = vperm.xlu0 %3963, %v16
  %v3965 = vpop.permute.xlu0 %3964
  %3967 = vset.pattern.permute.xlu0 15
  %3968 = vperm.xlu0 %3967, %v17
  %v3969 = vpop.permute.xlu0 %3968
  %3971 = vset.pattern.permute.xlu0 15
  %3972 = vperm.xlu0 %3971, %v18
  %v3973 = vpop.permute.xlu0 %3972
  %3975 = vset.pattern.permute.xlu0 15
  %3976 = vperm.xlu0 %3975, %v19
  %v3977 = vpop.permute.xlu0 %3976
  %3979 = vset.pattern.permute.xlu0 15
  %3980 = vperm.xlu0 %3979, %v20
  %v3981 = vpop.permute.xlu0 %3980
  %3983 = vset.pattern.permute.xlu0 15
  %3984 = vperm.xlu0 %3983, %v21
  %v3985 = vpop.permute.xlu0 %3984
  %3987 = vset.pattern.permute.xlu0 15
  %3988 = vperm.xlu0 %3987, %v22
  %v3989 = vpop.permute.xlu0 %3988
  %v3991 = vmul.f32 %v3961, %v2908
  %v3992 = vmul.f32 %v3965, %v2912
  %v3993 = vmul.f32 %v3969, %v2918
  %v3994 = vmul.f32 %v3973, %v2922
  %v3995 = vmul.f32 %v3977, %v2928
  %v3996 = vmul.f32 %v3981, %v2932
  %v3997 = vmul.f32 %v3985, %v2938
  %v3998 = vmul.f32 %v3989, %v2942
  %v3999 = vadd.f32 %v3951, %v3991
  %v4000 = vadd.f32 %v3952, %v3992
  %v4001 = vadd.f32 %v3953, %v3993
  %v4002 = vadd.f32 %v3954, %v3994
  %v4003 = vadd.f32 %v3955, %v3995
  %v4004 = vadd.f32 %v3956, %v3996
  %v4005 = vadd.f32 %v3957, %v3997
  %v4006 = vadd.f32 %v3958, %v3998
  %v4007 = vpack.c.bf16 %v4000, %v3999
  %v4008 = vpack.c.bf16 %v4002, %v4001
  %v4009 = vpack.c.bf16 %v4004, %v4003
  %v4010 = vpack.c.bf16 %v4006, %v4005
  %v4015 = vunpack.c.l.b16 %v4007
  %v4016 = vunpack.c.h.b16 %v4007
  %v4017 = vunpack.c.l.b16 %v4008
  %v4018 = vunpack.c.h.b16 %v4008
  %v4019 = vunpack.c.l.b16 %v4009
  %v4020 = vunpack.c.h.b16 %v4009
  %v4021 = vunpack.c.l.b16 %v4010
  %v4022 = vunpack.c.h.b16 %v4010
  %v4023 = vpack.c.b16 %v4015, %v4015
  %v4024 = vpack.c.b16 %v4016, %v4016
  %v4025 = vpack.c.b16 %v4017, %v4017
  %v4026 = vpack.c.b16 %v4018, %v4018
  %v4027 = vpack.c.b16 %v4019, %v4019
  %v4028 = vpack.c.b16 %v4020, %v4020
  %v4029 = vpack.c.b16 %v4021, %v4021
  %v4030 = vpack.c.b16 %v4022, %v4022
  %4039 = vst [vmem:[%s3] sm:$0xf] %v4023
  %4040 = vst [vmem:[%s3 + $0x4] sm:$0xf] %v4024
  %4041 = vst [vmem:[%s3 + $0x8] sm:$0xf] %v4025
  %4042 = vst [vmem:[%s3 + $0xc] sm:$0xf] %v4026
  %4043 = vst [vmem:[%s3 + $0x10] sm:$0xf] %v4027
  %4044 = vst [vmem:[%s3 + $0x14] sm:$0xf] %v4028
  %4045 = vst [vmem:[%s3 + $0x18] sm:$0xf] %v4029
  %4046 = vst [vmem:[%s3 + $0x1c] sm:$0xf] %v4030
  %4048 = vset.pattern.permute.xlu0 0
  %4049 = vperm.xlu0 %4048, %v23
  %v4050 = vpop.permute.xlu0 %4049
  %4053 = vset.pattern.permute.xlu0 0
  %4054 = vperm.xlu0 %4053, %v24
  %v4055 = vpop.permute.xlu0 %4054
  %4058 = vset.pattern.permute.xlu0 0
  %4059 = vperm.xlu0 %4058, %v25
  %v4060 = vpop.permute.xlu0 %4059
  %4063 = vset.pattern.permute.xlu0 0
  %4064 = vperm.xlu0 %4063, %v26
  %v4065 = vpop.permute.xlu0 %4064
  %4068 = vset.pattern.permute.xlu0 0
  %4069 = vperm.xlu0 %4068, %v27
  %v4070 = vpop.permute.xlu0 %4069
  %4073 = vset.pattern.permute.xlu0 0
  %4074 = vperm.xlu0 %4073, %v28
  %v4075 = vpop.permute.xlu0 %4074
  %4078 = vset.pattern.permute.xlu0 0
  %4079 = vperm.xlu0 %4078, %v29
  %v4080 = vpop.permute.xlu0 %4079
  %4083 = vset.pattern.permute.xlu0 0
  %4084 = vperm.xlu0 %4083, %v30
  %v4085 = vpop.permute.xlu0 %4084
  %v4087 = vmul.f32 %v4050, %v475
  %v4088 = vmul.f32 %v4055, %v479
  %v4089 = vmul.f32 %v4060, %v485
  %v4090 = vmul.f32 %v4065, %v489
  %v4091 = vmul.f32 %v4070, %v495
  %v4092 = vmul.f32 %v4075, %v499
  %v4093 = vmul.f32 %v4080, %v505
  %v4094 = vmul.f32 %v4085, %v509
  %v4095 = vadd.f32 %v3229, %v4087
  %v4096 = vadd.f32 %v3229, %v4088
  %v4097 = vadd.f32 %v3229, %v4089
  %v4098 = vadd.f32 %v3229, %v4090
  %v4099 = vadd.f32 %v3229, %v4091
  %v4100 = vadd.f32 %v3229, %v4092
  %v4101 = vadd.f32 %v3229, %v4093
  %v4102 = vadd.f32 %v3229, %v4094
  %4103 = vset.pattern.permute.xlu0 1
  %4104 = vperm.xlu0 %4103, %v23
  %v4105 = vpop.permute.xlu0 %4104
  %4107 = vset.pattern.permute.xlu0 1
  %4108 = vperm.xlu0 %4107, %v24
  %v4109 = vpop.permute.xlu0 %4108
  %4111 = vset.pattern.permute.xlu0 1
  %4112 = vperm.xlu0 %4111, %v25
  %v4113 = vpop.permute.xlu0 %4112
  %4115 = vset.pattern.permute.xlu0 1
  %4116 = vperm.xlu0 %4115, %v26
  %v4117 = vpop.permute.xlu0 %4116
  %4119 = vset.pattern.permute.xlu0 1
  %4120 = vperm.xlu0 %4119, %v27
  %v4121 = vpop.permute.xlu0 %4120
  %4123 = vset.pattern.permute.xlu0 1
  %4124 = vperm.xlu0 %4123, %v28
  %v4125 = vpop.permute.xlu0 %4124
  %4127 = vset.pattern.permute.xlu0 1
  %4128 = vperm.xlu0 %4127, %v29
  %v4129 = vpop.permute.xlu0 %4128
  %4131 = vset.pattern.permute.xlu0 1
  %4132 = vperm.xlu0 %4131, %v30
  %v4133 = vpop.permute.xlu0 %4132
  %v4135 = vmul.f32 %v4105, %v477
  %v4136 = vmul.f32 %v4109, %v481
  %v4137 = vmul.f32 %v4113, %v487
  %v4138 = vmul.f32 %v4117, %v491
  %v4139 = vmul.f32 %v4121, %v497
  %v4140 = vmul.f32 %v4125, %v501
  %v4141 = vmul.f32 %v4129, %v507
  %v4142 = vmul.f32 %v4133, %v511
  %v4143 = vadd.f32 %v4095, %v4135
  %v4144 = vadd.f32 %v4096, %v4136
  %v4145 = vadd.f32 %v4097, %v4137
  %v4146 = vadd.f32 %v4098, %v4138
  %v4147 = vadd.f32 %v4099, %v4139
  %v4148 = vadd.f32 %v4100, %v4140
  %v4149 = vadd.f32 %v4101, %v4141
  %v4150 = vadd.f32 %v4102, %v4142
  %4151 = vset.pattern.permute.xlu0 2
  %4152 = vperm.xlu0 %4151, %v23
  %v4153 = vpop.permute.xlu0 %4152
  %4155 = vset.pattern.permute.xlu0 2
  %4156 = vperm.xlu0 %4155, %v24
  %v4157 = vpop.permute.xlu0 %4156
  %4159 = vset.pattern.permute.xlu0 2
  %4160 = vperm.xlu0 %4159, %v25
  %v4161 = vpop.permute.xlu0 %4160
  %4163 = vset.pattern.permute.xlu0 2
  %4164 = vperm.xlu0 %4163, %v26
  %v4165 = vpop.permute.xlu0 %4164
  %4167 = vset.pattern.permute.xlu0 2
  %4168 = vperm.xlu0 %4167, %v27
  %v4169 = vpop.permute.xlu0 %4168
  %4171 = vset.pattern.permute.xlu0 2
  %4172 = vperm.xlu0 %4171, %v28
  %v4173 = vpop.permute.xlu0 %4172
  %4175 = vset.pattern.permute.xlu0 2
  %4176 = vperm.xlu0 %4175, %v29
  %v4177 = vpop.permute.xlu0 %4176
  %4179 = vset.pattern.permute.xlu0 2
  %4180 = vperm.xlu0 %4179, %v30
  %v4181 = vpop.permute.xlu0 %4180
  %v4183 = vmul.f32 %v4153, %v828
  %v4184 = vmul.f32 %v4157, %v832
  %v4185 = vmul.f32 %v4161, %v838
  %v4186 = vmul.f32 %v4165, %v842
  %v4187 = vmul.f32 %v4169, %v848
  %v4188 = vmul.f32 %v4173, %v852
  %v4189 = vmul.f32 %v4177, %v858
  %v4190 = vmul.f32 %v4181, %v862
  %v4191 = vadd.f32 %v4143, %v4183
  %v4192 = vadd.f32 %v4144, %v4184
  %v4193 = vadd.f32 %v4145, %v4185
  %v4194 = vadd.f32 %v4146, %v4186
  %v4195 = vadd.f32 %v4147, %v4187
  %v4196 = vadd.f32 %v4148, %v4188
  %v4197 = vadd.f32 %v4149, %v4189
  %v4198 = vadd.f32 %v4150, %v4190
  %4199 = vset.pattern.permute.xlu0 3
  %4200 = vperm.xlu0 %4199, %v23
  %v4201 = vpop.permute.xlu0 %4200
  %4203 = vset.pattern.permute.xlu0 3
  %4204 = vperm.xlu0 %4203, %v24
  %v4205 = vpop.permute.xlu0 %4204
  %4207 = vset.pattern.permute.xlu0 3
  %4208 = vperm.xlu0 %4207, %v25
  %v4209 = vpop.permute.xlu0 %4208
  %4211 = vset.pattern.permute.xlu0 3
  %4212 = vperm.xlu0 %4211, %v26
  %v4213 = vpop.permute.xlu0 %4212
  %4215 = vset.pattern.permute.xlu0 3
  %4216 = vperm.xlu0 %4215, %v27
  %v4217 = vpop.permute.xlu0 %4216
  %4219 = vset.pattern.permute.xlu0 3
  %4220 = vperm.xlu0 %4219, %v28
  %v4221 = vpop.permute.xlu0 %4220
  %4223 = vset.pattern.permute.xlu0 3
  %4224 = vperm.xlu0 %4223, %v29
  %v4225 = vpop.permute.xlu0 %4224
  %4227 = vset.pattern.permute.xlu0 3
  %4228 = vperm.xlu0 %4227, %v30
  %v4229 = vpop.permute.xlu0 %4228
  %v4231 = vmul.f32 %v4201, %v830
  %v4232 = vmul.f32 %v4205, %v834
  %v4233 = vmul.f32 %v4209, %v840
  %v4234 = vmul.f32 %v4213, %v844
  %v4235 = vmul.f32 %v4217, %v850
  %v4236 = vmul.f32 %v4221, %v854
  %v4237 = vmul.f32 %v4225, %v860
  %v4238 = vmul.f32 %v4229, %v864
  %v4239 = vadd.f32 %v4191, %v4231
  %v4240 = vadd.f32 %v4192, %v4232
  %v4241 = vadd.f32 %v4193, %v4233
  %v4242 = vadd.f32 %v4194, %v4234
  %v4243 = vadd.f32 %v4195, %v4235
  %v4244 = vadd.f32 %v4196, %v4236
  %v4245 = vadd.f32 %v4197, %v4237
  %v4246 = vadd.f32 %v4198, %v4238
  %4247 = vset.pattern.permute.xlu0 4
  %4248 = vperm.xlu0 %4247, %v23
  %v4249 = vpop.permute.xlu0 %4248
  %4251 = vset.pattern.permute.xlu0 4
  %4252 = vperm.xlu0 %4251, %v24
  %v4253 = vpop.permute.xlu0 %4252
  %4255 = vset.pattern.permute.xlu0 4
  %4256 = vperm.xlu0 %4255, %v25
  %v4257 = vpop.permute.xlu0 %4256
  %4259 = vset.pattern.permute.xlu0 4
  %4260 = vperm.xlu0 %4259, %v26
  %v4261 = vpop.permute.xlu0 %4260
  %4263 = vset.pattern.permute.xlu0 4
  %4264 = vperm.xlu0 %4263, %v27
  %v4265 = vpop.permute.xlu0 %4264
  %4267 = vset.pattern.permute.xlu0 4
  %4268 = vperm.xlu0 %4267, %v28
  %v4269 = vpop.permute.xlu0 %4268
  %4271 = vset.pattern.permute.xlu0 4
  %4272 = vperm.xlu0 %4271, %v29
  %v4273 = vpop.permute.xlu0 %4272
  %4275 = vset.pattern.permute.xlu0 4
  %4276 = vperm.xlu0 %4275, %v30
  %v4277 = vpop.permute.xlu0 %4276
  %v4279 = vmul.f32 %v4249, %v1181
  %v4280 = vmul.f32 %v4253, %v1185
  %v4281 = vmul.f32 %v4257, %v1191
  %v4282 = vmul.f32 %v4261, %v1195
  %v4283 = vmul.f32 %v4265, %v1201
  %v4284 = vmul.f32 %v4269, %v1205
  %v4285 = vmul.f32 %v4273, %v1211
  %v4286 = vmul.f32 %v4277, %v1215
  %v4287 = vadd.f32 %v4239, %v4279
  %v4288 = vadd.f32 %v4240, %v4280
  %v4289 = vadd.f32 %v4241, %v4281
  %v4290 = vadd.f32 %v4242, %v4282
  %v4291 = vadd.f32 %v4243, %v4283
  %v4292 = vadd.f32 %v4244, %v4284
  %v4293 = vadd.f32 %v4245, %v4285
  %v4294 = vadd.f32 %v4246, %v4286
  %4295 = vset.pattern.permute.xlu0 5
  %4296 = vperm.xlu0 %4295, %v23
  %v4297 = vpop.permute.xlu0 %4296
  %4299 = vset.pattern.permute.xlu0 5
  %4300 = vperm.xlu0 %4299, %v24
  %v4301 = vpop.permute.xlu0 %4300
  %4303 = vset.pattern.permute.xlu0 5
  %4304 = vperm.xlu0 %4303, %v25
  %v4305 = vpop.permute.xlu0 %4304
  %4307 = vset.pattern.permute.xlu0 5
  %4308 = vperm.xlu0 %4307, %v26
  %v4309 = vpop.permute.xlu0 %4308
  %4311 = vset.pattern.permute.xlu0 5
  %4312 = vperm.xlu0 %4311, %v27
  %v4313 = vpop.permute.xlu0 %4312
  %4315 = vset.pattern.permute.xlu0 5
  %4316 = vperm.xlu0 %4315, %v28
  %v4317 = vpop.permute.xlu0 %4316
  %4319 = vset.pattern.permute.xlu0 5
  %4320 = vperm.xlu0 %4319, %v29
  %v4321 = vpop.permute.xlu0 %4320
  %4323 = vset.pattern.permute.xlu0 5
  %4324 = vperm.xlu0 %4323, %v30
  %v4325 = vpop.permute.xlu0 %4324
  %v4327 = vmul.f32 %v4297, %v1183
  %v4328 = vmul.f32 %v4301, %v1187
  %v4329 = vmul.f32 %v4305, %v1193
  %v4330 = vmul.f32 %v4309, %v1197
  %v4331 = vmul.f32 %v4313, %v1203
  %v4332 = vmul.f32 %v4317, %v1207
  %v4333 = vmul.f32 %v4321, %v1213
  %v4334 = vmul.f32 %v4325, %v1217
  %v4335 = vadd.f32 %v4287, %v4327
  %v4336 = vadd.f32 %v4288, %v4328
  %v4337 = vadd.f32 %v4289, %v4329
  %v4338 = vadd.f32 %v4290, %v4330
  %v4339 = vadd.f32 %v4291, %v4331
  %v4340 = vadd.f32 %v4292, %v4332
  %v4341 = vadd.f32 %v4293, %v4333
  %v4342 = vadd.f32 %v4294, %v4334
  %4343 = vset.pattern.permute.xlu0 6
  %4344 = vperm.xlu0 %4343, %v23
  %v4345 = vpop.permute.xlu0 %4344
  %4347 = vset.pattern.permute.xlu0 6
  %4348 = vperm.xlu0 %4347, %v24
  %v4349 = vpop.permute.xlu0 %4348
  %4351 = vset.pattern.permute.xlu0 6
  %4352 = vperm.xlu0 %4351, %v25
  %v4353 = vpop.permute.xlu0 %4352
  %4355 = vset.pattern.permute.xlu0 6
  %4356 = vperm.xlu0 %4355, %v26
  %v4357 = vpop.permute.xlu0 %4356
  %4359 = vset.pattern.permute.xlu0 6
  %4360 = vperm.xlu0 %4359, %v27
  %v4361 = vpop.permute.xlu0 %4360
  %4363 = vset.pattern.permute.xlu0 6
  %4364 = vperm.xlu0 %4363, %v28
  %v4365 = vpop.permute.xlu0 %4364
  %4367 = vset.pattern.permute.xlu0 6
  %4368 = vperm.xlu0 %4367, %v29
  %v4369 = vpop.permute.xlu0 %4368
  %4371 = vset.pattern.permute.xlu0 6
  %4372 = vperm.xlu0 %4371, %v30
  %v4373 = vpop.permute.xlu0 %4372
  %v4375 = vmul.f32 %v4345, %v1534
  %v4376 = vmul.f32 %v4349, %v1538
  %v4377 = vmul.f32 %v4353, %v1544
  %v4378 = vmul.f32 %v4357, %v1548
  %v4379 = vmul.f32 %v4361, %v1554
  %v4380 = vmul.f32 %v4365, %v1558
  %v4381 = vmul.f32 %v4369, %v1564
  %v4382 = vmul.f32 %v4373, %v1568
  %v4383 = vadd.f32 %v4335, %v4375
  %v4384 = vadd.f32 %v4336, %v4376
  %v4385 = vadd.f32 %v4337, %v4377
  %v4386 = vadd.f32 %v4338, %v4378
  %v4387 = vadd.f32 %v4339, %v4379
  %v4388 = vadd.f32 %v4340, %v4380
  %v4389 = vadd.f32 %v4341, %v4381
  %v4390 = vadd.f32 %v4342, %v4382
  %4391 = vset.pattern.permute.xlu0 7
  %4392 = vperm.xlu0 %4391, %v23
  %v4393 = vpop.permute.xlu0 %4392
  %4395 = vset.pattern.permute.xlu0 7
  %4396 = vperm.xlu0 %4395, %v24
  %v4397 = vpop.permute.xlu0 %4396
  %4399 = vset.pattern.permute.xlu0 7
  %4400 = vperm.xlu0 %4399, %v25
  %v4401 = vpop.permute.xlu0 %4400
  %4403 = vset.pattern.permute.xlu0 7
  %4404 = vperm.xlu0 %4403, %v26
  %v4405 = vpop.permute.xlu0 %4404
  %4407 = vset.pattern.permute.xlu0 7
  %4408 = vperm.xlu0 %4407, %v27
  %v4409 = vpop.permute.xlu0 %4408
  %4411 = vset.pattern.permute.xlu0 7
  %4412 = vperm.xlu0 %4411, %v28
  %v4413 = vpop.permute.xlu0 %4412
  %4415 = vset.pattern.permute.xlu0 7
  %4416 = vperm.xlu0 %4415, %v29
  %v4417 = vpop.permute.xlu0 %4416
  %4419 = vset.pattern.permute.xlu0 7
  %4420 = vperm.xlu0 %4419, %v30
  %v4421 = vpop.permute.xlu0 %4420
  %v4423 = vmul.f32 %v4393, %v1536
  %v4424 = vmul.f32 %v4397, %v1540
  %v4425 = vmul.f32 %v4401, %v1546
  %v4426 = vmul.f32 %v4405, %v1550
  %v4427 = vmul.f32 %v4409, %v1556
  %v4428 = vmul.f32 %v4413, %v1560
  %v4429 = vmul.f32 %v4417, %v1566
  %v4430 = vmul.f32 %v4421, %v1570
  %v4431 = vadd.f32 %v4383, %v4423
  %v4432 = vadd.f32 %v4384, %v4424
  %v4433 = vadd.f32 %v4385, %v4425
  %v4434 = vadd.f32 %v4386, %v4426
  %v4435 = vadd.f32 %v4387, %v4427
  %v4436 = vadd.f32 %v4388, %v4428
  %v4437 = vadd.f32 %v4389, %v4429
  %v4438 = vadd.f32 %v4390, %v4430
  %4439 = vset.pattern.permute.xlu0 8
  %4440 = vperm.xlu0 %4439, %v23
  %v4441 = vpop.permute.xlu0 %4440
  %4443 = vset.pattern.permute.xlu0 8
  %4444 = vperm.xlu0 %4443, %v24
  %v4445 = vpop.permute.xlu0 %4444
  %4447 = vset.pattern.permute.xlu0 8
  %4448 = vperm.xlu0 %4447, %v25
  %v4449 = vpop.permute.xlu0 %4448
  %4451 = vset.pattern.permute.xlu0 8
  %4452 = vperm.xlu0 %4451, %v26
  %v4453 = vpop.permute.xlu0 %4452
  %4455 = vset.pattern.permute.xlu0 8
  %4456 = vperm.xlu0 %4455, %v27
  %v4457 = vpop.permute.xlu0 %4456
  %4459 = vset.pattern.permute.xlu0 8
  %4460 = vperm.xlu0 %4459, %v28
  %v4461 = vpop.permute.xlu0 %4460
  %4463 = vset.pattern.permute.xlu0 8
  %4464 = vperm.xlu0 %4463, %v29
  %v4465 = vpop.permute.xlu0 %4464
  %4467 = vset.pattern.permute.xlu0 8
  %4468 = vperm.xlu0 %4467, %v30
  %v4469 = vpop.permute.xlu0 %4468
  %v4471 = vmul.f32 %v4441, %v1887
  %v4472 = vmul.f32 %v4445, %v1891
  %v4473 = vmul.f32 %v4449, %v1897
  %v4474 = vmul.f32 %v4453, %v1901
  %v4475 = vmul.f32 %v4457, %v1907
  %v4476 = vmul.f32 %v4461, %v1911
  %v4477 = vmul.f32 %v4465, %v1917
  %v4478 = vmul.f32 %v4469, %v1921
  %v4479 = vadd.f32 %v4431, %v4471
  %v4480 = vadd.f32 %v4432, %v4472
  %v4481 = vadd.f32 %v4433, %v4473
  %v4482 = vadd.f32 %v4434, %v4474
  %v4483 = vadd.f32 %v4435, %v4475
  %v4484 = vadd.f32 %v4436, %v4476
  %v4485 = vadd.f32 %v4437, %v4477
  %v4486 = vadd.f32 %v4438, %v4478
  %4487 = vset.pattern.permute.xlu0 9
  %4488 = vperm.xlu0 %4487, %v23
  %v4489 = vpop.permute.xlu0 %4488
  %4491 = vset.pattern.permute.xlu0 9
  %4492 = vperm.xlu0 %4491, %v24
  %v4493 = vpop.permute.xlu0 %4492
  %4495 = vset.pattern.permute.xlu0 9
  %4496 = vperm.xlu0 %4495, %v25
  %v4497 = vpop.permute.xlu0 %4496
  %4499 = vset.pattern.permute.xlu0 9
  %4500 = vperm.xlu0 %4499, %v26
  %v4501 = vpop.permute.xlu0 %4500
  %4503 = vset.pattern.permute.xlu0 9
  %4504 = vperm.xlu0 %4503, %v27
  %v4505 = vpop.permute.xlu0 %4504
  %4507 = vset.pattern.permute.xlu0 9
  %4508 = vperm.xlu0 %4507, %v28
  %v4509 = vpop.permute.xlu0 %4508
  %4511 = vset.pattern.permute.xlu0 9
  %4512 = vperm.xlu0 %4511, %v29
  %v4513 = vpop.permute.xlu0 %4512
  %4515 = vset.pattern.permute.xlu0 9
  %4516 = vperm.xlu0 %4515, %v30
  %v4517 = vpop.permute.xlu0 %4516
  %v4519 = vmul.f32 %v4489, %v1889
  %v4520 = vmul.f32 %v4493, %v1893
  %v4521 = vmul.f32 %v4497, %v1899
  %v4522 = vmul.f32 %v4501, %v1903
  %v4523 = vmul.f32 %v4505, %v1909
  %v4524 = vmul.f32 %v4509, %v1913
  %v4525 = vmul.f32 %v4513, %v1919
  %v4526 = vmul.f32 %v4517, %v1923
  %v4527 = vadd.f32 %v4479, %v4519
  %v4528 = vadd.f32 %v4480, %v4520
  %v4529 = vadd.f32 %v4481, %v4521
  %v4530 = vadd.f32 %v4482, %v4522
  %v4531 = vadd.f32 %v4483, %v4523
  %v4532 = vadd.f32 %v4484, %v4524
  %v4533 = vadd.f32 %v4485, %v4525
  %v4534 = vadd.f32 %v4486, %v4526
  %4535 = vset.pattern.permute.xlu0 10
  %4536 = vperm.xlu0 %4535, %v23
  %v4537 = vpop.permute.xlu0 %4536
  %4539 = vset.pattern.permute.xlu0 10
  %4540 = vperm.xlu0 %4539, %v24
  %v4541 = vpop.permute.xlu0 %4540
  %4543 = vset.pattern.permute.xlu0 10
  %4544 = vperm.xlu0 %4543, %v25
  %v4545 = vpop.permute.xlu0 %4544
  %4547 = vset.pattern.permute.xlu0 10
  %4548 = vperm.xlu0 %4547, %v26
  %v4549 = vpop.permute.xlu0 %4548
  %4551 = vset.pattern.permute.xlu0 10
  %4552 = vperm.xlu0 %4551, %v27
  %v4553 = vpop.permute.xlu0 %4552
  %4555 = vset.pattern.permute.xlu0 10
  %4556 = vperm.xlu0 %4555, %v28
  %v4557 = vpop.permute.xlu0 %4556
  %4559 = vset.pattern.permute.xlu0 10
  %4560 = vperm.xlu0 %4559, %v29
  %v4561 = vpop.permute.xlu0 %4560
  %4563 = vset.pattern.permute.xlu0 10
  %4564 = vperm.xlu0 %4563, %v30
  %v4565 = vpop.permute.xlu0 %4564
  %v4567 = vmul.f32 %v4537, %v2240
  %v4568 = vmul.f32 %v4541, %v2244
  %v4569 = vmul.f32 %v4545, %v2250
  %v4570 = vmul.f32 %v4549, %v2254
  %v4571 = vmul.f32 %v4553, %v2260
  %v4572 = vmul.f32 %v4557, %v2264
  %v4573 = vmul.f32 %v4561, %v2270
  %v4574 = vmul.f32 %v4565, %v2274
  %v4575 = vadd.f32 %v4527, %v4567
  %v4576 = vadd.f32 %v4528, %v4568
  %v4577 = vadd.f32 %v4529, %v4569
  %v4578 = vadd.f32 %v4530, %v4570
  %v4579 = vadd.f32 %v4531, %v4571
  %v4580 = vadd.f32 %v4532, %v4572
  %v4581 = vadd.f32 %v4533, %v4573
  %v4582 = vadd.f32 %v4534, %v4574
  %4583 = vset.pattern.permute.xlu0 11
  %4584 = vperm.xlu0 %4583, %v23
  %v4585 = vpop.permute.xlu0 %4584
  %4587 = vset.pattern.permute.xlu0 11
  %4588 = vperm.xlu0 %4587, %v24
  %v4589 = vpop.permute.xlu0 %4588
  %4591 = vset.pattern.permute.xlu0 11
  %4592 = vperm.xlu0 %4591, %v25
  %v4593 = vpop.permute.xlu0 %4592
  %4595 = vset.pattern.permute.xlu0 11
  %4596 = vperm.xlu0 %4595, %v26
  %v4597 = vpop.permute.xlu0 %4596
  %4599 = vset.pattern.permute.xlu0 11
  %4600 = vperm.xlu0 %4599, %v27
  %v4601 = vpop.permute.xlu0 %4600
  %4603 = vset.pattern.permute.xlu0 11
  %4604 = vperm.xlu0 %4603, %v28
  %v4605 = vpop.permute.xlu0 %4604
  %4607 = vset.pattern.permute.xlu0 11
  %4608 = vperm.xlu0 %4607, %v29
  %v4609 = vpop.permute.xlu0 %4608
  %4611 = vset.pattern.permute.xlu0 11
  %4612 = vperm.xlu0 %4611, %v30
  %v4613 = vpop.permute.xlu0 %4612
  %v4615 = vmul.f32 %v4585, %v2242
  %v4616 = vmul.f32 %v4589, %v2246
  %v4617 = vmul.f32 %v4593, %v2252
  %v4618 = vmul.f32 %v4597, %v2256
  %v4619 = vmul.f32 %v4601, %v2262
  %v4620 = vmul.f32 %v4605, %v2266
  %v4621 = vmul.f32 %v4609, %v2272
  %v4622 = vmul.f32 %v4613, %v2276
  %v4623 = vadd.f32 %v4575, %v4615
  %v4624 = vadd.f32 %v4576, %v4616
  %v4625 = vadd.f32 %v4577, %v4617
  %v4626 = vadd.f32 %v4578, %v4618
  %v4627 = vadd.f32 %v4579, %v4619
  %v4628 = vadd.f32 %v4580, %v4620
  %v4629 = vadd.f32 %v4581, %v4621
  %v4630 = vadd.f32 %v4582, %v4622
  %4631 = vset.pattern.permute.xlu0 12
  %4632 = vperm.xlu0 %4631, %v23
  %v4633 = vpop.permute.xlu0 %4632
  %4635 = vset.pattern.permute.xlu0 12
  %4636 = vperm.xlu0 %4635, %v24
  %v4637 = vpop.permute.xlu0 %4636
  %4639 = vset.pattern.permute.xlu0 12
  %4640 = vperm.xlu0 %4639, %v25
  %v4641 = vpop.permute.xlu0 %4640
  %4643 = vset.pattern.permute.xlu0 12
  %4644 = vperm.xlu0 %4643, %v26
  %v4645 = vpop.permute.xlu0 %4644
  %4647 = vset.pattern.permute.xlu0 12
  %4648 = vperm.xlu0 %4647, %v27
  %v4649 = vpop.permute.xlu0 %4648
  %4651 = vset.pattern.permute.xlu0 12
  %4652 = vperm.xlu0 %4651, %v28
  %v4653 = vpop.permute.xlu0 %4652
  %4655 = vset.pattern.permute.xlu0 12
  %4656 = vperm.xlu0 %4655, %v29
  %v4657 = vpop.permute.xlu0 %4656
  %4659 = vset.pattern.permute.xlu0 12
  %4660 = vperm.xlu0 %4659, %v30
  %v4661 = vpop.permute.xlu0 %4660
  %v4663 = vmul.f32 %v4633, %v2593
  %v4664 = vmul.f32 %v4637, %v2597
  %v4665 = vmul.f32 %v4641, %v2603
  %v4666 = vmul.f32 %v4645, %v2607
  %v4667 = vmul.f32 %v4649, %v2613
  %v4668 = vmul.f32 %v4653, %v2617
  %v4669 = vmul.f32 %v4657, %v2623
  %v4670 = vmul.f32 %v4661, %v2627
  %v4671 = vadd.f32 %v4623, %v4663
  %v4672 = vadd.f32 %v4624, %v4664
  %v4673 = vadd.f32 %v4625, %v4665
  %v4674 = vadd.f32 %v4626, %v4666
  %v4675 = vadd.f32 %v4627, %v4667
  %v4676 = vadd.f32 %v4628, %v4668
  %v4677 = vadd.f32 %v4629, %v4669
  %v4678 = vadd.f32 %v4630, %v4670
  %4679 = vset.pattern.permute.xlu0 13
  %4680 = vperm.xlu0 %4679, %v23
  %v4681 = vpop.permute.xlu0 %4680
  %4683 = vset.pattern.permute.xlu0 13
  %4684 = vperm.xlu0 %4683, %v24
  %v4685 = vpop.permute.xlu0 %4684
  %4687 = vset.pattern.permute.xlu0 13
  %4688 = vperm.xlu0 %4687, %v25
  %v4689 = vpop.permute.xlu0 %4688
  %4691 = vset.pattern.permute.xlu0 13
  %4692 = vperm.xlu0 %4691, %v26
  %v4693 = vpop.permute.xlu0 %4692
  %4695 = vset.pattern.permute.xlu0 13
  %4696 = vperm.xlu0 %4695, %v27
  %v4697 = vpop.permute.xlu0 %4696
  %4699 = vset.pattern.permute.xlu0 13
  %4700 = vperm.xlu0 %4699, %v28
  %v4701 = vpop.permute.xlu0 %4700
  %4703 = vset.pattern.permute.xlu0 13
  %4704 = vperm.xlu0 %4703, %v29
  %v4705 = vpop.permute.xlu0 %4704
  %4707 = vset.pattern.permute.xlu0 13
  %4708 = vperm.xlu0 %4707, %v30
  %v4709 = vpop.permute.xlu0 %4708
  %v4711 = vmul.f32 %v4681, %v2595
  %v4712 = vmul.f32 %v4685, %v2599
  %v4713 = vmul.f32 %v4689, %v2605
  %v4714 = vmul.f32 %v4693, %v2609
  %v4715 = vmul.f32 %v4697, %v2615
  %v4716 = vmul.f32 %v4701, %v2619
  %v4717 = vmul.f32 %v4705, %v2625
  %v4718 = vmul.f32 %v4709, %v2629
  %v4719 = vadd.f32 %v4671, %v4711
  %v4720 = vadd.f32 %v4672, %v4712
  %v4721 = vadd.f32 %v4673, %v4713
  %v4722 = vadd.f32 %v4674, %v4714
  %v4723 = vadd.f32 %v4675, %v4715
  %v4724 = vadd.f32 %v4676, %v4716
  %v4725 = vadd.f32 %v4677, %v4717
  %v4726 = vadd.f32 %v4678, %v4718
  %4727 = vset.pattern.permute.xlu0 14
  %4728 = vperm.xlu0 %4727, %v23
  %v4729 = vpop.permute.xlu0 %4728
  %4731 = vset.pattern.permute.xlu0 14
  %4732 = vperm.xlu0 %4731, %v24
  %v4733 = vpop.permute.xlu0 %4732
  %4735 = vset.pattern.permute.xlu0 14
  %4736 = vperm.xlu0 %4735, %v25
  %v4737 = vpop.permute.xlu0 %4736
  %4739 = vset.pattern.permute.xlu0 14
  %4740 = vperm.xlu0 %4739, %v26
  %v4741 = vpop.permute.xlu0 %4740
  %4743 = vset.pattern.permute.xlu0 14
  %4744 = vperm.xlu0 %4743, %v27
  %v4745 = vpop.permute.xlu0 %4744
  %4747 = vset.pattern.permute.xlu0 14
  %4748 = vperm.xlu0 %4747, %v28
  %v4749 = vpop.permute.xlu0 %4748
  %4751 = vset.pattern.permute.xlu0 14
  %4752 = vperm.xlu0 %4751, %v29
  %v4753 = vpop.permute.xlu0 %4752
  %4755 = vset.pattern.permute.xlu0 14
  %4756 = vperm.xlu0 %4755, %v30
  %v4757 = vpop.permute.xlu0 %4756
  %v4759 = vmul.f32 %v4729, %v2946
  %v4760 = vmul.f32 %v4733, %v2950
  %v4761 = vmul.f32 %v4737, %v2956
  %v4762 = vmul.f32 %v4741, %v2960
  %v4763 = vmul.f32 %v4745, %v2966
  %v4764 = vmul.f32 %v4749, %v2970
  %v4765 = vmul.f32 %v4753, %v2976
  %v4766 = vmul.f32 %v4757, %v2980
  %v4767 = vadd.f32 %v4719, %v4759
  %v4768 = vadd.f32 %v4720, %v4760
  %v4769 = vadd.f32 %v4721, %v4761
  %v4770 = vadd.f32 %v4722, %v4762
  %v4771 = vadd.f32 %v4723, %v4763
  %v4772 = vadd.f32 %v4724, %v4764
  %v4773 = vadd.f32 %v4725, %v4765
  %v4774 = vadd.f32 %v4726, %v4766
  %4775 = vset.pattern.permute.xlu0 15
  %4776 = vperm.xlu0 %4775, %v23
  %v4777 = vpop.permute.xlu0 %4776
  %4779 = vset.pattern.permute.xlu0 15
  %4780 = vperm.xlu0 %4779, %v24
  %v4781 = vpop.permute.xlu0 %4780
  %4783 = vset.pattern.permute.xlu0 15
  %4784 = vperm.xlu0 %4783, %v25
  %v4785 = vpop.permute.xlu0 %4784
  %4787 = vset.pattern.permute.xlu0 15
  %4788 = vperm.xlu0 %4787, %v26
  %v4789 = vpop.permute.xlu0 %4788
  %4791 = vset.pattern.permute.xlu0 15
  %4792 = vperm.xlu0 %4791, %v27
  %v4793 = vpop.permute.xlu0 %4792
  %4795 = vset.pattern.permute.xlu0 15
  %4796 = vperm.xlu0 %4795, %v28
  %v4797 = vpop.permute.xlu0 %4796
  %4799 = vset.pattern.permute.xlu0 15
  %4800 = vperm.xlu0 %4799, %v29
  %v4801 = vpop.permute.xlu0 %4800
  %4803 = vset.pattern.permute.xlu0 15
  %4804 = vperm.xlu0 %4803, %v30
  %v4805 = vpop.permute.xlu0 %4804
  %v4807 = vmul.f32 %v4777, %v2948
  %v4808 = vmul.f32 %v4781, %v2952
  %v4809 = vmul.f32 %v4785, %v2958
  %v4810 = vmul.f32 %v4789, %v2962
  %v4811 = vmul.f32 %v4793, %v2968
  %v4812 = vmul.f32 %v4797, %v2972
  %v4813 = vmul.f32 %v4801, %v2978
  %v4814 = vmul.f32 %v4805, %v2982
  %v4815 = vadd.f32 %v4767, %v4807
  %v4816 = vadd.f32 %v4768, %v4808
  %v4817 = vadd.f32 %v4769, %v4809
  %v4818 = vadd.f32 %v4770, %v4810
  %v4819 = vadd.f32 %v4771, %v4811
  %v4820 = vadd.f32 %v4772, %v4812
  %v4821 = vadd.f32 %v4773, %v4813
  %v4822 = vadd.f32 %v4774, %v4814
  %v4823 = vpack.c.bf16 %v4816, %v4815
  %v4824 = vpack.c.bf16 %v4818, %v4817
  %v4825 = vpack.c.bf16 %v4820, %v4819
  %v4826 = vpack.c.bf16 %v4822, %v4821
  %v4831 = vunpack.c.l.b16 %v4823
  %v4832 = vunpack.c.h.b16 %v4823
  %v4833 = vunpack.c.l.b16 %v4824
  %v4834 = vunpack.c.h.b16 %v4824
  %v4835 = vunpack.c.l.b16 %v4825
  %v4836 = vunpack.c.h.b16 %v4825
  %v4837 = vunpack.c.l.b16 %v4826
  %v4838 = vunpack.c.h.b16 %v4826
  %v4839 = vpack.c.b16 %v4831, %v4831
  %v4840 = vpack.c.b16 %v4832, %v4832
  %v4841 = vpack.c.b16 %v4833, %v4833
  %v4842 = vpack.c.b16 %v4834, %v4834
  %v4843 = vpack.c.b16 %v4835, %v4835
  %v4844 = vpack.c.b16 %v4836, %v4836
  %v4845 = vpack.c.b16 %v4837, %v4837
  %v4846 = vpack.c.b16 %v4838, %v4838
  %4855 = vst [vmem:[%s3 + $0x20] sm:$0xf] %v4839
  %4856 = vst [vmem:[%s3 + $0x24] sm:$0xf] %v4840
  %4857 = vst [vmem:[%s3 + $0x28] sm:$0xf] %v4841
  %4858 = vst [vmem:[%s3 + $0x2c] sm:$0xf] %v4842
  %4859 = vst [vmem:[%s3 + $0x30] sm:$0xf] %v4843
  %4860 = vst [vmem:[%s3 + $0x34] sm:$0xf] %v4844
  %4861 = vst [vmem:[%s3 + $0x38] sm:$0xf] %v4845
  %4862 = vst [vmem:[%s3 + $0x3c] sm:$0xf] %v4846
  %4864 = vset.pattern.permute.xlu0 0
  %4865 = vperm.xlu0 %4864, %v31
  %v4866 = vpop.permute.xlu0 %4865
  %4869 = vset.pattern.permute.xlu0 0
  %4870 = vperm.xlu0 %4869, %v32
  %v4871 = vpop.permute.xlu0 %4870
  %4874 = vset.pattern.permute.xlu0 0
  %4875 = vperm.xlu0 %4874, %v33
  %v4876 = vpop.permute.xlu0 %4875
  %4879 = vset.pattern.permute.xlu0 0
  %4880 = vperm.xlu0 %4879, %v34
  %v4881 = vpop.permute.xlu0 %4880
  %4884 = vset.pattern.permute.xlu0 0
  %4885 = vperm.xlu0 %4884, %v35
  %v4886 = vpop.permute.xlu0 %4885
  %4889 = vset.pattern.permute.xlu0 0
  %4890 = vperm.xlu0 %4889, %v36
  %v4891 = vpop.permute.xlu0 %4890
  %4894 = vset.pattern.permute.xlu0 0
  %4895 = vperm.xlu0 %4894, %v37
  %v4896 = vpop.permute.xlu0 %4895
  %4899 = vset.pattern.permute.xlu0 0
  %4900 = vperm.xlu0 %4899, %v38
  %v4901 = vpop.permute.xlu0 %4900
  %v4903 = vmul.f32 %v4866, %v515
  %v4904 = vmul.f32 %v4871, %v519
  %v4905 = vmul.f32 %v4876, %v525
  %v4906 = vmul.f32 %v4881, %v529
  %v4907 = vmul.f32 %v4886, %v535
  %v4908 = vmul.f32 %v4891, %v539
  %v4909 = vmul.f32 %v4896, %v545
  %v4910 = vmul.f32 %v4901, %v549
  %v4911 = vadd.f32 %v3229, %v4903
  %v4912 = vadd.f32 %v3229, %v4904
  %v4913 = vadd.f32 %v3229, %v4905
  %v4914 = vadd.f32 %v3229, %v4906
  %v4915 = vadd.f32 %v3229, %v4907
  %v4916 = vadd.f32 %v3229, %v4908
  %v4917 = vadd.f32 %v3229, %v4909
  %v4918 = vadd.f32 %v3229, %v4910
  %4919 = vset.pattern.permute.xlu0 1
  %4920 = vperm.xlu0 %4919, %v31
  %v4921 = vpop.permute.xlu0 %4920
  %4923 = vset.pattern.permute.xlu0 1
  %4924 = vperm.xlu0 %4923, %v32
  %v4925 = vpop.permute.xlu0 %4924
  %4927 = vset.pattern.permute.xlu0 1
  %4928 = vperm.xlu0 %4927, %v33
  %v4929 = vpop.permute.xlu0 %4928
  %4931 = vset.pattern.permute.xlu0 1
  %4932 = vperm.xlu0 %4931, %v34
  %v4933 = vpop.permute.xlu0 %4932
  %4935 = vset.pattern.permute.xlu0 1
  %4936 = vperm.xlu0 %4935, %v35
  %v4937 = vpop.permute.xlu0 %4936
  %4939 = vset.pattern.permute.xlu0 1
  %4940 = vperm.xlu0 %4939, %v36
  %v4941 = vpop.permute.xlu0 %4940
  %4943 = vset.pattern.permute.xlu0 1
  %4944 = vperm.xlu0 %4943, %v37
  %v4945 = vpop.permute.xlu0 %4944
  %4947 = vset.pattern.permute.xlu0 1
  %4948 = vperm.xlu0 %4947, %v38
  %v4949 = vpop.permute.xlu0 %4948
  %v4951 = vmul.f32 %v4921, %v517
  %v4952 = vmul.f32 %v4925, %v521
  %v4953 = vmul.f32 %v4929, %v527
  %v4954 = vmul.f32 %v4933, %v531
  %v4955 = vmul.f32 %v4937, %v537
  %v4956 = vmul.f32 %v4941, %v541
  %v4957 = vmul.f32 %v4945, %v547
  %v4958 = vmul.f32 %v4949, %v551
  %v4959 = vadd.f32 %v4911, %v4951
  %v4960 = vadd.f32 %v4912, %v4952
  %v4961 = vadd.f32 %v4913, %v4953
  %v4962 = vadd.f32 %v4914, %v4954
  %v4963 = vadd.f32 %v4915, %v4955
  %v4964 = vadd.f32 %v4916, %v4956
  %v4965 = vadd.f32 %v4917, %v4957
  %v4966 = vadd.f32 %v4918, %v4958
  %4967 = vset.pattern.permute.xlu0 2
  %4968 = vperm.xlu0 %4967, %v31
  %v4969 = vpop.permute.xlu0 %4968
  %4971 = vset.pattern.permute.xlu0 2
  %4972 = vperm.xlu0 %4971, %v32
  %v4973 = vpop.permute.xlu0 %4972
  %4975 = vset.pattern.permute.xlu0 2
  %4976 = vperm.xlu0 %4975, %v33
  %v4977 = vpop.permute.xlu0 %4976
  %4979 = vset.pattern.permute.xlu0 2
  %4980 = vperm.xlu0 %4979, %v34
  %v4981 = vpop.permute.xlu0 %4980
  %4983 = vset.pattern.permute.xlu0 2
  %4984 = vperm.xlu0 %4983, %v35
  %v4985 = vpop.permute.xlu0 %4984
  %4987 = vset.pattern.permute.xlu0 2
  %4988 = vperm.xlu0 %4987, %v36
  %v4989 = vpop.permute.xlu0 %4988
  %4991 = vset.pattern.permute.xlu0 2
  %4992 = vperm.xlu0 %4991, %v37
  %v4993 = vpop.permute.xlu0 %4992
  %4995 = vset.pattern.permute.xlu0 2
  %4996 = vperm.xlu0 %4995, %v38
  %v4997 = vpop.permute.xlu0 %4996
  %v4999 = vmul.f32 %v4969, %v868
  %v5000 = vmul.f32 %v4973, %v872
  %v5001 = vmul.f32 %v4977, %v878
  %v5002 = vmul.f32 %v4981, %v882
  %v5003 = vmul.f32 %v4985, %v888
  %v5004 = vmul.f32 %v4989, %v892
  %v5005 = vmul.f32 %v4993, %v898
  %v5006 = vmul.f32 %v4997, %v902
  %v5007 = vadd.f32 %v4959, %v4999
  %v5008 = vadd.f32 %v4960, %v5000
  %v5009 = vadd.f32 %v4961, %v5001
  %v5010 = vadd.f32 %v4962, %v5002
  %v5011 = vadd.f32 %v4963, %v5003
  %v5012 = vadd.f32 %v4964, %v5004
  %v5013 = vadd.f32 %v4965, %v5005
  %v5014 = vadd.f32 %v4966, %v5006
  %5015 = vset.pattern.permute.xlu0 3
  %5016 = vperm.xlu0 %5015, %v31
  %v5017 = vpop.permute.xlu0 %5016
  %5019 = vset.pattern.permute.xlu0 3
  %5020 = vperm.xlu0 %5019, %v32
  %v5021 = vpop.permute.xlu0 %5020
  %5023 = vset.pattern.permute.xlu0 3
  %5024 = vperm.xlu0 %5023, %v33
  %v5025 = vpop.permute.xlu0 %5024
  %5027 = vset.pattern.permute.xlu0 3
  %5028 = vperm.xlu0 %5027, %v34
  %v5029 = vpop.permute.xlu0 %5028
  %5031 = vset.pattern.permute.xlu0 3
  %5032 = vperm.xlu0 %5031, %v35
  %v5033 = vpop.permute.xlu0 %5032
  %5035 = vset.pattern.permute.xlu0 3
  %5036 = vperm.xlu0 %5035, %v36
  %v5037 = vpop.permute.xlu0 %5036
  %5039 = vset.pattern.permute.xlu0 3
  %5040 = vperm.xlu0 %5039, %v37
  %v5041 = vpop.permute.xlu0 %5040
  %5043 = vset.pattern.permute.xlu0 3
  %5044 = vperm.xlu0 %5043, %v38
  %v5045 = vpop.permute.xlu0 %5044
  %v5047 = vmul.f32 %v5017, %v870
  %v5048 = vmul.f32 %v5021, %v874
  %v5049 = vmul.f32 %v5025, %v880
  %v5050 = vmul.f32 %v5029, %v884
  %v5051 = vmul.f32 %v5033, %v890
  %v5052 = vmul.f32 %v5037, %v894
  %v5053 = vmul.f32 %v5041, %v900
  %v5054 = vmul.f32 %v5045, %v904
  %v5055 = vadd.f32 %v5007, %v5047
  %v5056 = vadd.f32 %v5008, %v5048
  %v5057 = vadd.f32 %v5009, %v5049
  %v5058 = vadd.f32 %v5010, %v5050
  %v5059 = vadd.f32 %v5011, %v5051
  %v5060 = vadd.f32 %v5012, %v5052
  %v5061 = vadd.f32 %v5013, %v5053
  %v5062 = vadd.f32 %v5014, %v5054
  %5063 = vset.pattern.permute.xlu0 4
  %5064 = vperm.xlu0 %5063, %v31
  %v5065 = vpop.permute.xlu0 %5064
  %5067 = vset.pattern.permute.xlu0 4
  %5068 = vperm.xlu0 %5067, %v32
  %v5069 = vpop.permute.xlu0 %5068
  %5071 = vset.pattern.permute.xlu0 4
  %5072 = vperm.xlu0 %5071, %v33
  %v5073 = vpop.permute.xlu0 %5072
  %5075 = vset.pattern.permute.xlu0 4
  %5076 = vperm.xlu0 %5075, %v34
  %v5077 = vpop.permute.xlu0 %5076
  %5079 = vset.pattern.permute.xlu0 4
  %5080 = vperm.xlu0 %5079, %v35
  %v5081 = vpop.permute.xlu0 %5080
  %5083 = vset.pattern.permute.xlu0 4
  %5084 = vperm.xlu0 %5083, %v36
  %v5085 = vpop.permute.xlu0 %5084
  %5087 = vset.pattern.permute.xlu0 4
  %5088 = vperm.xlu0 %5087, %v37
  %v5089 = vpop.permute.xlu0 %5088
  %5091 = vset.pattern.permute.xlu0 4
  %5092 = vperm.xlu0 %5091, %v38
  %v5093 = vpop.permute.xlu0 %5092
  %v5095 = vmul.f32 %v5065, %v1221
  %v5096 = vmul.f32 %v5069, %v1225
  %v5097 = vmul.f32 %v5073, %v1231
  %v5098 = vmul.f32 %v5077, %v1235
  %v5099 = vmul.f32 %v5081, %v1241
  %v5100 = vmul.f32 %v5085, %v1245
  %v5101 = vmul.f32 %v5089, %v1251
  %v5102 = vmul.f32 %v5093, %v1255
  %v5103 = vadd.f32 %v5055, %v5095
  %v5104 = vadd.f32 %v5056, %v5096
  %v5105 = vadd.f32 %v5057, %v5097
  %v5106 = vadd.f32 %v5058, %v5098
  %v5107 = vadd.f32 %v5059, %v5099
  %v5108 = vadd.f32 %v5060, %v5100
  %v5109 = vadd.f32 %v5061, %v5101
  %v5110 = vadd.f32 %v5062, %v5102
  %5111 = vset.pattern.permute.xlu0 5
  %5112 = vperm.xlu0 %5111, %v31
  %v5113 = vpop.permute.xlu0 %5112
  %5115 = vset.pattern.permute.xlu0 5
  %5116 = vperm.xlu0 %5115, %v32
  %v5117 = vpop.permute.xlu0 %5116
  %5119 = vset.pattern.permute.xlu0 5
  %5120 = vperm.xlu0 %5119, %v33
  %v5121 = vpop.permute.xlu0 %5120
  %5123 = vset.pattern.permute.xlu0 5
  %5124 = vperm.xlu0 %5123, %v34
  %v5125 = vpop.permute.xlu0 %5124
  %5127 = vset.pattern.permute.xlu0 5
  %5128 = vperm.xlu0 %5127, %v35
  %v5129 = vpop.permute.xlu0 %5128
  %5131 = vset.pattern.permute.xlu0 5
  %5132 = vperm.xlu0 %5131, %v36
  %v5133 = vpop.permute.xlu0 %5132
  %5135 = vset.pattern.permute.xlu0 5
  %5136 = vperm.xlu0 %5135, %v37
  %v5137 = vpop.permute.xlu0 %5136
  %5139 = vset.pattern.permute.xlu0 5
  %5140 = vperm.xlu0 %5139, %v38
  %v5141 = vpop.permute.xlu0 %5140
  %v5143 = vmul.f32 %v5113, %v1223
  %v5144 = vmul.f32 %v5117, %v1227
  %v5145 = vmul.f32 %v5121, %v1233
  %v5146 = vmul.f32 %v5125, %v1237
  %v5147 = vmul.f32 %v5129, %v1243
  %v5148 = vmul.f32 %v5133, %v1247
  %v5149 = vmul.f32 %v5137, %v1253
  %v5150 = vmul.f32 %v5141, %v1257
  %v5151 = vadd.f32 %v5103, %v5143
  %v5152 = vadd.f32 %v5104, %v5144
  %v5153 = vadd.f32 %v5105, %v5145
  %v5154 = vadd.f32 %v5106, %v5146
  %v5155 = vadd.f32 %v5107, %v5147
  %v5156 = vadd.f32 %v5108, %v5148
  %v5157 = vadd.f32 %v5109, %v5149
  %v5158 = vadd.f32 %v5110, %v5150
  %5159 = vset.pattern.permute.xlu0 6
  %5160 = vperm.xlu0 %5159, %v31
  %v5161 = vpop.permute.xlu0 %5160
  %5163 = vset.pattern.permute.xlu0 6
  %5164 = vperm.xlu0 %5163, %v32
  %v5165 = vpop.permute.xlu0 %5164
  %5167 = vset.pattern.permute.xlu0 6
  %5168 = vperm.xlu0 %5167, %v33
  %v5169 = vpop.permute.xlu0 %5168
  %5171 = vset.pattern.permute.xlu0 6
  %5172 = vperm.xlu0 %5171, %v34
  %v5173 = vpop.permute.xlu0 %5172
  %5175 = vset.pattern.permute.xlu0 6
  %5176 = vperm.xlu0 %5175, %v35
  %v5177 = vpop.permute.xlu0 %5176
  %5179 = vset.pattern.permute.xlu0 6
  %5180 = vperm.xlu0 %5179, %v36
  %v5181 = vpop.permute.xlu0 %5180
  %5183 = vset.pattern.permute.xlu0 6
  %5184 = vperm.xlu0 %5183, %v37
  %v5185 = vpop.permute.xlu0 %5184
  %5187 = vset.pattern.permute.xlu0 6
  %5188 = vperm.xlu0 %5187, %v38
  %v5189 = vpop.permute.xlu0 %5188
  %v5191 = vmul.f32 %v5161, %v1574
  %v5192 = vmul.f32 %v5165, %v1578
  %v5193 = vmul.f32 %v5169, %v1584
  %v5194 = vmul.f32 %v5173, %v1588
  %v5195 = vmul.f32 %v5177, %v1594
  %v5196 = vmul.f32 %v5181, %v1598
  %v5197 = vmul.f32 %v5185, %v1604
  %v5198 = vmul.f32 %v5189, %v1608
  %v5199 = vadd.f32 %v5151, %v5191
  %v5200 = vadd.f32 %v5152, %v5192
  %v5201 = vadd.f32 %v5153, %v5193
  %v5202 = vadd.f32 %v5154, %v5194
  %v5203 = vadd.f32 %v5155, %v5195
  %v5204 = vadd.f32 %v5156, %v5196
  %v5205 = vadd.f32 %v5157, %v5197
  %v5206 = vadd.f32 %v5158, %v5198
  %5207 = vset.pattern.permute.xlu0 7
  %5208 = vperm.xlu0 %5207, %v31
  %v5209 = vpop.permute.xlu0 %5208
  %5211 = vset.pattern.permute.xlu0 7
  %5212 = vperm.xlu0 %5211, %v32
  %v5213 = vpop.permute.xlu0 %5212
  %5215 = vset.pattern.permute.xlu0 7
  %5216 = vperm.xlu0 %5215, %v33
  %v5217 = vpop.permute.xlu0 %5216
  %5219 = vset.pattern.permute.xlu0 7
  %5220 = vperm.xlu0 %5219, %v34
  %v5221 = vpop.permute.xlu0 %5220
  %5223 = vset.pattern.permute.xlu0 7
  %5224 = vperm.xlu0 %5223, %v35
  %v5225 = vpop.permute.xlu0 %5224
  %5227 = vset.pattern.permute.xlu0 7
  %5228 = vperm.xlu0 %5227, %v36
  %v5229 = vpop.permute.xlu0 %5228
  %5231 = vset.pattern.permute.xlu0 7
  %5232 = vperm.xlu0 %5231, %v37
  %v5233 = vpop.permute.xlu0 %5232
  %5235 = vset.pattern.permute.xlu0 7
  %5236 = vperm.xlu0 %5235, %v38
  %v5237 = vpop.permute.xlu0 %5236
  %v5239 = vmul.f32 %v5209, %v1576
  %v5240 = vmul.f32 %v5213, %v1580
  %v5241 = vmul.f32 %v5217, %v1586
  %v5242 = vmul.f32 %v5221, %v1590
  %v5243 = vmul.f32 %v5225, %v1596
  %v5244 = vmul.f32 %v5229, %v1600
  %v5245 = vmul.f32 %v5233, %v1606
  %v5246 = vmul.f32 %v5237, %v1610
  %v5247 = vadd.f32 %v5199, %v5239
  %v5248 = vadd.f32 %v5200, %v5240
  %v5249 = vadd.f32 %v5201, %v5241
  %v5250 = vadd.f32 %v5202, %v5242
  %v5251 = vadd.f32 %v5203, %v5243
  %v5252 = vadd.f32 %v5204, %v5244
  %v5253 = vadd.f32 %v5205, %v5245
  %v5254 = vadd.f32 %v5206, %v5246
  %5255 = vset.pattern.permute.xlu0 8
  %5256 = vperm.xlu0 %5255, %v31
  %v5257 = vpop.permute.xlu0 %5256
  %5259 = vset.pattern.permute.xlu0 8
  %5260 = vperm.xlu0 %5259, %v32
  %v5261 = vpop.permute.xlu0 %5260
  %5263 = vset.pattern.permute.xlu0 8
  %5264 = vperm.xlu0 %5263, %v33
  %v5265 = vpop.permute.xlu0 %5264
  %5267 = vset.pattern.permute.xlu0 8
  %5268 = vperm.xlu0 %5267, %v34
  %v5269 = vpop.permute.xlu0 %5268
  %5271 = vset.pattern.permute.xlu0 8
  %5272 = vperm.xlu0 %5271, %v35
  %v5273 = vpop.permute.xlu0 %5272
  %5275 = vset.pattern.permute.xlu0 8
  %5276 = vperm.xlu0 %5275, %v36
  %v5277 = vpop.permute.xlu0 %5276
  %5279 = vset.pattern.permute.xlu0 8
  %5280 = vperm.xlu0 %5279, %v37
  %v5281 = vpop.permute.xlu0 %5280
  %5283 = vset.pattern.permute.xlu0 8
  %5284 = vperm.xlu0 %5283, %v38
  %v5285 = vpop.permute.xlu0 %5284
  %v5287 = vmul.f32 %v5257, %v1927
  %v5288 = vmul.f32 %v5261, %v1931
  %v5289 = vmul.f32 %v5265, %v1937
  %v5290 = vmul.f32 %v5269, %v1941
  %v5291 = vmul.f32 %v5273, %v1947
  %v5292 = vmul.f32 %v5277, %v1951
  %v5293 = vmul.f32 %v5281, %v1957
  %v5294 = vmul.f32 %v5285, %v1961
  %v5295 = vadd.f32 %v5247, %v5287
  %v5296 = vadd.f32 %v5248, %v5288
  %v5297 = vadd.f32 %v5249, %v5289
  %v5298 = vadd.f32 %v5250, %v5290
  %v5299 = vadd.f32 %v5251, %v5291
  %v5300 = vadd.f32 %v5252, %v5292
  %v5301 = vadd.f32 %v5253, %v5293
  %v5302 = vadd.f32 %v5254, %v5294
  %5303 = vset.pattern.permute.xlu0 9
  %5304 = vperm.xlu0 %5303, %v31
  %v5305 = vpop.permute.xlu0 %5304
  %5307 = vset.pattern.permute.xlu0 9
  %5308 = vperm.xlu0 %5307, %v32
  %v5309 = vpop.permute.xlu0 %5308
  %5311 = vset.pattern.permute.xlu0 9
  %5312 = vperm.xlu0 %5311, %v33
  %v5313 = vpop.permute.xlu0 %5312
  %5315 = vset.pattern.permute.xlu0 9
  %5316 = vperm.xlu0 %5315, %v34
  %v5317 = vpop.permute.xlu0 %5316
  %5319 = vset.pattern.permute.xlu0 9
  %5320 = vperm.xlu0 %5319, %v35
  %v5321 = vpop.permute.xlu0 %5320
  %5323 = vset.pattern.permute.xlu0 9
  %5324 = vperm.xlu0 %5323, %v36
  %v5325 = vpop.permute.xlu0 %5324
  %5327 = vset.pattern.permute.xlu0 9
  %5328 = vperm.xlu0 %5327, %v37
  %v5329 = vpop.permute.xlu0 %5328
  %5331 = vset.pattern.permute.xlu0 9
  %5332 = vperm.xlu0 %5331, %v38
  %v5333 = vpop.permute.xlu0 %5332
  %v5335 = vmul.f32 %v5305, %v1929
  %v5336 = vmul.f32 %v5309, %v1933
  %v5337 = vmul.f32 %v5313, %v1939
  %v5338 = vmul.f32 %v5317, %v1943
  %v5339 = vmul.f32 %v5321, %v1949
  %v5340 = vmul.f32 %v5325, %v1953
  %v5341 = vmul.f32 %v5329, %v1959
  %v5342 = vmul.f32 %v5333, %v1963
  %v5343 = vadd.f32 %v5295, %v5335
  %v5344 = vadd.f32 %v5296, %v5336
  %v5345 = vadd.f32 %v5297, %v5337
  %v5346 = vadd.f32 %v5298, %v5338
  %v5347 = vadd.f32 %v5299, %v5339
  %v5348 = vadd.f32 %v5300, %v5340
  %v5349 = vadd.f32 %v5301, %v5341
  %v5350 = vadd.f32 %v5302, %v5342
  %5351 = vset.pattern.permute.xlu0 10
  %5352 = vperm.xlu0 %5351, %v31
  %v5353 = vpop.permute.xlu0 %5352
  %5355 = vset.pattern.permute.xlu0 10
  %5356 = vperm.xlu0 %5355, %v32
  %v5357 = vpop.permute.xlu0 %5356
  %5359 = vset.pattern.permute.xlu0 10
  %5360 = vperm.xlu0 %5359, %v33
  %v5361 = vpop.permute.xlu0 %5360
  %5363 = vset.pattern.permute.xlu0 10
  %5364 = vperm.xlu0 %5363, %v34
  %v5365 = vpop.permute.xlu0 %5364
  %5367 = vset.pattern.permute.xlu0 10
  %5368 = vperm.xlu0 %5367, %v35
  %v5369 = vpop.permute.xlu0 %5368
  %5371 = vset.pattern.permute.xlu0 10
  %5372 = vperm.xlu0 %5371, %v36
  %v5373 = vpop.permute.xlu0 %5372
  %5375 = vset.pattern.permute.xlu0 10
  %5376 = vperm.xlu0 %5375, %v37
  %v5377 = vpop.permute.xlu0 %5376
  %5379 = vset.pattern.permute.xlu0 10
  %5380 = vperm.xlu0 %5379, %v38
  %v5381 = vpop.permute.xlu0 %5380
  %v5383 = vmul.f32 %v5353, %v2280
  %v5384 = vmul.f32 %v5357, %v2284
  %v5385 = vmul.f32 %v5361, %v2290
  %v5386 = vmul.f32 %v5365, %v2294
  %v5387 = vmul.f32 %v5369, %v2300
  %v5388 = vmul.f32 %v5373, %v2304
  %v5389 = vmul.f32 %v5377, %v2310
  %v5390 = vmul.f32 %v5381, %v2314
  %v5391 = vadd.f32 %v5343, %v5383
  %v5392 = vadd.f32 %v5344, %v5384
  %v5393 = vadd.f32 %v5345, %v5385
  %v5394 = vadd.f32 %v5346, %v5386
  %v5395 = vadd.f32 %v5347, %v5387
  %v5396 = vadd.f32 %v5348, %v5388
  %v5397 = vadd.f32 %v5349, %v5389
  %v5398 = vadd.f32 %v5350, %v5390
  %5399 = vset.pattern.permute.xlu0 11
  %5400 = vperm.xlu0 %5399, %v31
  %v5401 = vpop.permute.xlu0 %5400
  %5403 = vset.pattern.permute.xlu0 11
  %5404 = vperm.xlu0 %5403, %v32
  %v5405 = vpop.permute.xlu0 %5404
  %5407 = vset.pattern.permute.xlu0 11
  %5408 = vperm.xlu0 %5407, %v33
  %v5409 = vpop.permute.xlu0 %5408
  %5411 = vset.pattern.permute.xlu0 11
  %5412 = vperm.xlu0 %5411, %v34
  %v5413 = vpop.permute.xlu0 %5412
  %5415 = vset.pattern.permute.xlu0 11
  %5416 = vperm.xlu0 %5415, %v35
  %v5417 = vpop.permute.xlu0 %5416
  %5419 = vset.pattern.permute.xlu0 11
  %5420 = vperm.xlu0 %5419, %v36
  %v5421 = vpop.permute.xlu0 %5420
  %5423 = vset.pattern.permute.xlu0 11
  %5424 = vperm.xlu0 %5423, %v37
  %v5425 = vpop.permute.xlu0 %5424
  %5427 = vset.pattern.permute.xlu0 11
  %5428 = vperm.xlu0 %5427, %v38
  %v5429 = vpop.permute.xlu0 %5428
  %v5431 = vmul.f32 %v5401, %v2282
  %v5432 = vmul.f32 %v5405, %v2286
  %v5433 = vmul.f32 %v5409, %v2292
  %v5434 = vmul.f32 %v5413, %v2296
  %v5435 = vmul.f32 %v5417, %v2302
  %v5436 = vmul.f32 %v5421, %v2306
  %v5437 = vmul.f32 %v5425, %v2312
  %v5438 = vmul.f32 %v5429, %v2316
  %v5439 = vadd.f32 %v5391, %v5431
  %v5440 = vadd.f32 %v5392, %v5432
  %v5441 = vadd.f32 %v5393, %v5433
  %v5442 = vadd.f32 %v5394, %v5434
  %v5443 = vadd.f32 %v5395, %v5435
  %v5444 = vadd.f32 %v5396, %v5436
  %v5445 = vadd.f32 %v5397, %v5437
  %v5446 = vadd.f32 %v5398, %v5438
  %5447 = vset.pattern.permute.xlu0 12
  %5448 = vperm.xlu0 %5447, %v31
  %v5449 = vpop.permute.xlu0 %5448
  %5451 = vset.pattern.permute.xlu0 12
  %5452 = vperm.xlu0 %5451, %v32
  %v5453 = vpop.permute.xlu0 %5452
  %5455 = vset.pattern.permute.xlu0 12
  %5456 = vperm.xlu0 %5455, %v33
  %v5457 = vpop.permute.xlu0 %5456
  %5459 = vset.pattern.permute.xlu0 12
  %5460 = vperm.xlu0 %5459, %v34
  %v5461 = vpop.permute.xlu0 %5460
  %5463 = vset.pattern.permute.xlu0 12
  %5464 = vperm.xlu0 %5463, %v35
  %v5465 = vpop.permute.xlu0 %5464
  %5467 = vset.pattern.permute.xlu0 12
  %5468 = vperm.xlu0 %5467, %v36
  %v5469 = vpop.permute.xlu0 %5468
  %5471 = vset.pattern.permute.xlu0 12
  %5472 = vperm.xlu0 %5471, %v37
  %v5473 = vpop.permute.xlu0 %5472
  %5475 = vset.pattern.permute.xlu0 12
  %5476 = vperm.xlu0 %5475, %v38
  %v5477 = vpop.permute.xlu0 %5476
  %v5479 = vmul.f32 %v5449, %v2633
  %v5480 = vmul.f32 %v5453, %v2637
  %v5481 = vmul.f32 %v5457, %v2643
  %v5482 = vmul.f32 %v5461, %v2647
  %v5483 = vmul.f32 %v5465, %v2653
  %v5484 = vmul.f32 %v5469, %v2657
  %v5485 = vmul.f32 %v5473, %v2663
  %v5486 = vmul.f32 %v5477, %v2667
  %v5487 = vadd.f32 %v5439, %v5479
  %v5488 = vadd.f32 %v5440, %v5480
  %v5489 = vadd.f32 %v5441, %v5481
  %v5490 = vadd.f32 %v5442, %v5482
  %v5491 = vadd.f32 %v5443, %v5483
  %v5492 = vadd.f32 %v5444, %v5484
  %v5493 = vadd.f32 %v5445, %v5485
  %v5494 = vadd.f32 %v5446, %v5486
  %5495 = vset.pattern.permute.xlu0 13
  %5496 = vperm.xlu0 %5495, %v31
  %v5497 = vpop.permute.xlu0 %5496
  %5499 = vset.pattern.permute.xlu0 13
  %5500 = vperm.xlu0 %5499, %v32
  %v5501 = vpop.permute.xlu0 %5500
  %5503 = vset.pattern.permute.xlu0 13
  %5504 = vperm.xlu0 %5503, %v33
  %v5505 = vpop.permute.xlu0 %5504
  %5507 = vset.pattern.permute.xlu0 13
  %5508 = vperm.xlu0 %5507, %v34
  %v5509 = vpop.permute.xlu0 %5508
  %5511 = vset.pattern.permute.xlu0 13
  %5512 = vperm.xlu0 %5511, %v35
  %v5513 = vpop.permute.xlu0 %5512
  %5515 = vset.pattern.permute.xlu0 13
  %5516 = vperm.xlu0 %5515, %v36
  %v5517 = vpop.permute.xlu0 %5516
  %5519 = vset.pattern.permute.xlu0 13
  %5520 = vperm.xlu0 %5519, %v37
  %v5521 = vpop.permute.xlu0 %5520
  %5523 = vset.pattern.permute.xlu0 13
  %5524 = vperm.xlu0 %5523, %v38
  %v5525 = vpop.permute.xlu0 %5524
  %v5527 = vmul.f32 %v5497, %v2635
  %v5528 = vmul.f32 %v5501, %v2639
  %v5529 = vmul.f32 %v5505, %v2645
  %v5530 = vmul.f32 %v5509, %v2649
  %v5531 = vmul.f32 %v5513, %v2655
  %v5532 = vmul.f32 %v5517, %v2659
  %v5533 = vmul.f32 %v5521, %v2665
  %v5534 = vmul.f32 %v5525, %v2669
  %v5535 = vadd.f32 %v5487, %v5527
  %v5536 = vadd.f32 %v5488, %v5528
  %v5537 = vadd.f32 %v5489, %v5529
  %v5538 = vadd.f32 %v5490, %v5530
  %v5539 = vadd.f32 %v5491, %v5531
  %v5540 = vadd.f32 %v5492, %v5532
  %v5541 = vadd.f32 %v5493, %v5533
  %v5542 = vadd.f32 %v5494, %v5534
  %5543 = vset.pattern.permute.xlu0 14
  %5544 = vperm.xlu0 %5543, %v31
  %v5545 = vpop.permute.xlu0 %5544
  %5547 = vset.pattern.permute.xlu0 14
  %5548 = vperm.xlu0 %5547, %v32
  %v5549 = vpop.permute.xlu0 %5548
  %5551 = vset.pattern.permute.xlu0 14
  %5552 = vperm.xlu0 %5551, %v33
  %v5553 = vpop.permute.xlu0 %5552
  %5555 = vset.pattern.permute.xlu0 14
  %5556 = vperm.xlu0 %5555, %v34
  %v5557 = vpop.permute.xlu0 %5556
  %5559 = vset.pattern.permute.xlu0 14
  %5560 = vperm.xlu0 %5559, %v35
  %v5561 = vpop.permute.xlu0 %5560
  %5563 = vset.pattern.permute.xlu0 14
  %5564 = vperm.xlu0 %5563, %v36
  %v5565 = vpop.permute.xlu0 %5564
  %5567 = vset.pattern.permute.xlu0 14
  %5568 = vperm.xlu0 %5567, %v37
  %v5569 = vpop.permute.xlu0 %5568
  %5571 = vset.pattern.permute.xlu0 14
  %5572 = vperm.xlu0 %5571, %v38
  %v5573 = vpop.permute.xlu0 %5572
  %v5575 = vmul.f32 %v5545, %v2986
  %v5576 = vmul.f32 %v5549, %v2990
  %v5577 = vmul.f32 %v5553, %v2996
  %v5578 = vmul.f32 %v5557, %v3000
  %v5579 = vmul.f32 %v5561, %v3006
  %v5580 = vmul.f32 %v5565, %v3010
  %v5581 = vmul.f32 %v5569, %v3016
  %v5582 = vmul.f32 %v5573, %v3020
  %v5583 = vadd.f32 %v5535, %v5575
  %v5584 = vadd.f32 %v5536, %v5576
  %v5585 = vadd.f32 %v5537, %v5577
  %v5586 = vadd.f32 %v5538, %v5578
  %v5587 = vadd.f32 %v5539, %v5579
  %v5588 = vadd.f32 %v5540, %v5580
  %v5589 = vadd.f32 %v5541, %v5581
  %v5590 = vadd.f32 %v5542, %v5582
  %5591 = vset.pattern.permute.xlu0 15
  %5592 = vperm.xlu0 %5591, %v31
  %v5593 = vpop.permute.xlu0 %5592
  %5595 = vset.pattern.permute.xlu0 15
  %5596 = vperm.xlu0 %5595, %v32
  %v5597 = vpop.permute.xlu0 %5596
  %5599 = vset.pattern.permute.xlu0 15
  %5600 = vperm.xlu0 %5599, %v33
  %v5601 = vpop.permute.xlu0 %5600
  %5603 = vset.pattern.permute.xlu0 15
  %5604 = vperm.xlu0 %5603, %v34
  %v5605 = vpop.permute.xlu0 %5604
  %5607 = vset.pattern.permute.xlu0 15
  %5608 = vperm.xlu0 %5607, %v35
  %v5609 = vpop.permute.xlu0 %5608
  %5611 = vset.pattern.permute.xlu0 15
  %5612 = vperm.xlu0 %5611, %v36
  %v5613 = vpop.permute.xlu0 %5612
  %5615 = vset.pattern.permute.xlu0 15
  %5616 = vperm.xlu0 %5615, %v37
  %v5617 = vpop.permute.xlu0 %5616
  %5619 = vset.pattern.permute.xlu0 15
  %5620 = vperm.xlu0 %5619, %v38
  %v5621 = vpop.permute.xlu0 %5620
  %v5623 = vmul.f32 %v5593, %v2988
  %v5624 = vmul.f32 %v5597, %v2992
  %v5625 = vmul.f32 %v5601, %v2998
  %v5626 = vmul.f32 %v5605, %v3002
  %v5627 = vmul.f32 %v5609, %v3008
  %v5628 = vmul.f32 %v5613, %v3012
  %v5629 = vmul.f32 %v5617, %v3018
  %v5630 = vmul.f32 %v5621, %v3022
  %v5631 = vadd.f32 %v5583, %v5623
  %v5632 = vadd.f32 %v5584, %v5624
  %v5633 = vadd.f32 %v5585, %v5625
  %v5634 = vadd.f32 %v5586, %v5626
  %v5635 = vadd.f32 %v5587, %v5627
  %v5636 = vadd.f32 %v5588, %v5628
  %v5637 = vadd.f32 %v5589, %v5629
  %v5638 = vadd.f32 %v5590, %v5630
  %v5639 = vpack.c.bf16 %v5632, %v5631
  %v5640 = vpack.c.bf16 %v5634, %v5633
  %v5641 = vpack.c.bf16 %v5636, %v5635
  %v5642 = vpack.c.bf16 %v5638, %v5637
  %v5647 = vunpack.c.l.b16 %v5639
  %v5648 = vunpack.c.h.b16 %v5639
  %v5649 = vunpack.c.l.b16 %v5640
  %v5650 = vunpack.c.h.b16 %v5640
  %v5651 = vunpack.c.l.b16 %v5641
  %v5652 = vunpack.c.h.b16 %v5641
  %v5653 = vunpack.c.l.b16 %v5642
  %v5654 = vunpack.c.h.b16 %v5642
  %v5655 = vpack.c.b16 %v5647, %v5647
  %v5656 = vpack.c.b16 %v5648, %v5648
  %v5657 = vpack.c.b16 %v5649, %v5649
  %v5658 = vpack.c.b16 %v5650, %v5650
  %v5659 = vpack.c.b16 %v5651, %v5651
  %v5660 = vpack.c.b16 %v5652, %v5652
  %v5661 = vpack.c.b16 %v5653, %v5653
  %v5662 = vpack.c.b16 %v5654, %v5654
  %5671 = vst [vmem:[%s3 + $0x40] sm:$0xf] %v5655
  %5672 = vst [vmem:[%s3 + $0x44] sm:$0xf] %v5656
  %5673 = vst [vmem:[%s3 + $0x48] sm:$0xf] %v5657
  %5674 = vst [vmem:[%s3 + $0x4c] sm:$0xf] %v5658
  %5675 = vst [vmem:[%s3 + $0x50] sm:$0xf] %v5659
  %5676 = vst [vmem:[%s3 + $0x54] sm:$0xf] %v5660
  %5677 = vst [vmem:[%s3 + $0x58] sm:$0xf] %v5661
  %5678 = vst [vmem:[%s3 + $0x5c] sm:$0xf] %v5662
  %5680 = vset.pattern.permute.xlu0 0
  %5681 = vperm.xlu0 %5680, %v39
  %v5682 = vpop.permute.xlu0 %5681
  %5685 = vset.pattern.permute.xlu0 0
  %5686 = vperm.xlu0 %5685, %v40
  %v5687 = vpop.permute.xlu0 %5686
  %5690 = vset.pattern.permute.xlu0 0
  %5691 = vperm.xlu0 %5690, %v41
  %v5692 = vpop.permute.xlu0 %5691
  %5695 = vset.pattern.permute.xlu0 0
  %5696 = vperm.xlu0 %5695, %v42
  %v5697 = vpop.permute.xlu0 %5696
  %5700 = vset.pattern.permute.xlu0 0
  %5701 = vperm.xlu0 %5700, %v43
  %v5702 = vpop.permute.xlu0 %5701
  %5705 = vset.pattern.permute.xlu0 0
  %5706 = vperm.xlu0 %5705, %v44
  %v5707 = vpop.permute.xlu0 %5706
  %5710 = vset.pattern.permute.xlu0 0
  %5711 = vperm.xlu0 %5710, %v45
  %v5712 = vpop.permute.xlu0 %5711
  %5715 = vset.pattern.permute.xlu0 0
  %5716 = vperm.xlu0 %5715, %v46
  %v5717 = vpop.permute.xlu0 %5716
  %v5719 = vmul.f32 %v5682, %v555
  %v5720 = vmul.f32 %v5687, %v559
  %v5721 = vmul.f32 %v5692, %v565
  %v5722 = vmul.f32 %v5697, %v569
  %v5723 = vmul.f32 %v5702, %v575
  %v5724 = vmul.f32 %v5707, %v579
  %v5725 = vmul.f32 %v5712, %v585
  %v5726 = vmul.f32 %v5717, %v589
  %v5727 = vadd.f32 %v3229, %v5719
  %v5728 = vadd.f32 %v3229, %v5720
  %v5729 = vadd.f32 %v3229, %v5721
  %v5730 = vadd.f32 %v3229, %v5722
  %v5731 = vadd.f32 %v3229, %v5723
  %v5732 = vadd.f32 %v3229, %v5724
  %v5733 = vadd.f32 %v3229, %v5725
  %v5734 = vadd.f32 %v3229, %v5726
  %5735 = vset.pattern.permute.xlu0 1
  %5736 = vperm.xlu0 %5735, %v39
  %v5737 = vpop.permute.xlu0 %5736
  %5739 = vset.pattern.permute.xlu0 1
  %5740 = vperm.xlu0 %5739, %v40
  %v5741 = vpop.permute.xlu0 %5740
  %5743 = vset.pattern.permute.xlu0 1
  %5744 = vperm.xlu0 %5743, %v41
  %v5745 = vpop.permute.xlu0 %5744
  %5747 = vset.pattern.permute.xlu0 1
  %5748 = vperm.xlu0 %5747, %v42
  %v5749 = vpop.permute.xlu0 %5748
  %5751 = vset.pattern.permute.xlu0 1
  %5752 = vperm.xlu0 %5751, %v43
  %v5753 = vpop.permute.xlu0 %5752
  %5755 = vset.pattern.permute.xlu0 1
  %5756 = vperm.xlu0 %5755, %v44
  %v5757 = vpop.permute.xlu0 %5756
  %5759 = vset.pattern.permute.xlu0 1
  %5760 = vperm.xlu0 %5759, %v45
  %v5761 = vpop.permute.xlu0 %5760
  %5763 = vset.pattern.permute.xlu0 1
  %5764 = vperm.xlu0 %5763, %v46
  %v5765 = vpop.permute.xlu0 %5764
  %v5767 = vmul.f32 %v5737, %v557
  %v5768 = vmul.f32 %v5741, %v561
  %v5769 = vmul.f32 %v5745, %v567
  %v5770 = vmul.f32 %v5749, %v571
  %v5771 = vmul.f32 %v5753, %v577
  %v5772 = vmul.f32 %v5757, %v581
  %v5773 = vmul.f32 %v5761, %v587
  %v5774 = vmul.f32 %v5765, %v591
  %v5775 = vadd.f32 %v5727, %v5767
  %v5776 = vadd.f32 %v5728, %v5768
  %v5777 = vadd.f32 %v5729, %v5769
  %v5778 = vadd.f32 %v5730, %v5770
  %v5779 = vadd.f32 %v5731, %v5771
  %v5780 = vadd.f32 %v5732, %v5772
  %v5781 = vadd.f32 %v5733, %v5773
  %v5782 = vadd.f32 %v5734, %v5774
  %5783 = vset.pattern.permute.xlu0 2
  %5784 = vperm.xlu0 %5783, %v39
  %v5785 = vpop.permute.xlu0 %5784
  %5787 = vset.pattern.permute.xlu0 2
  %5788 = vperm.xlu0 %5787, %v40
  %v5789 = vpop.permute.xlu0 %5788
  %5791 = vset.pattern.permute.xlu0 2
  %5792 = vperm.xlu0 %5791, %v41
  %v5793 = vpop.permute.xlu0 %5792
  %5795 = vset.pattern.permute.xlu0 2
  %5796 = vperm.xlu0 %5795, %v42
  %v5797 = vpop.permute.xlu0 %5796
  %5799 = vset.pattern.permute.xlu0 2
  %5800 = vperm.xlu0 %5799, %v43
  %v5801 = vpop.permute.xlu0 %5800
  %5803 = vset.pattern.permute.xlu0 2
  %5804 = vperm.xlu0 %5803, %v44
  %v5805 = vpop.permute.xlu0 %5804
  %5807 = vset.pattern.permute.xlu0 2
  %5808 = vperm.xlu0 %5807, %v45
  %v5809 = vpop.permute.xlu0 %5808
  %5811 = vset.pattern.permute.xlu0 2
  %5812 = vperm.xlu0 %5811, %v46
  %v5813 = vpop.permute.xlu0 %5812
  %v5815 = vmul.f32 %v5785, %v908
  %v5816 = vmul.f32 %v5789, %v912
  %v5817 = vmul.f32 %v5793, %v918
  %v5818 = vmul.f32 %v5797, %v922
  %v5819 = vmul.f32 %v5801, %v928
  %v5820 = vmul.f32 %v5805, %v932
  %v5821 = vmul.f32 %v5809, %v938
  %v5822 = vmul.f32 %v5813, %v942
  %v5823 = vadd.f32 %v5775, %v5815
  %v5824 = vadd.f32 %v5776, %v5816
  %v5825 = vadd.f32 %v5777, %v5817
  %v5826 = vadd.f32 %v5778, %v5818
  %v5827 = vadd.f32 %v5779, %v5819
  %v5828 = vadd.f32 %v5780, %v5820
  %v5829 = vadd.f32 %v5781, %v5821
  %v5830 = vadd.f32 %v5782, %v5822
  %5831 = vset.pattern.permute.xlu0 3
  %5832 = vperm.xlu0 %5831, %v39
  %v5833 = vpop.permute.xlu0 %5832
  %5835 = vset.pattern.permute.xlu0 3
  %5836 = vperm.xlu0 %5835, %v40
  %v5837 = vpop.permute.xlu0 %5836
  %5839 = vset.pattern.permute.xlu0 3
  %5840 = vperm.xlu0 %5839, %v41
  %v5841 = vpop.permute.xlu0 %5840
  %5843 = vset.pattern.permute.xlu0 3
  %5844 = vperm.xlu0 %5843, %v42
  %v5845 = vpop.permute.xlu0 %5844
  %5847 = vset.pattern.permute.xlu0 3
  %5848 = vperm.xlu0 %5847, %v43
  %v5849 = vpop.permute.xlu0 %5848
  %5851 = vset.pattern.permute.xlu0 3
  %5852 = vperm.xlu0 %5851, %v44
  %v5853 = vpop.permute.xlu0 %5852
  %5855 = vset.pattern.permute.xlu0 3
  %5856 = vperm.xlu0 %5855, %v45
  %v5857 = vpop.permute.xlu0 %5856
  %5859 = vset.pattern.permute.xlu0 3
  %5860 = vperm.xlu0 %5859, %v46
  %v5861 = vpop.permute.xlu0 %5860
  %v5863 = vmul.f32 %v5833, %v910
  %v5864 = vmul.f32 %v5837, %v914
  %v5865 = vmul.f32 %v5841, %v920
  %v5866 = vmul.f32 %v5845, %v924
  %v5867 = vmul.f32 %v5849, %v930
  %v5868 = vmul.f32 %v5853, %v934
  %v5869 = vmul.f32 %v5857, %v940
  %v5870 = vmul.f32 %v5861, %v944
  %v5871 = vadd.f32 %v5823, %v5863
  %v5872 = vadd.f32 %v5824, %v5864
  %v5873 = vadd.f32 %v5825, %v5865
  %v5874 = vadd.f32 %v5826, %v5866
  %v5875 = vadd.f32 %v5827, %v5867
  %v5876 = vadd.f32 %v5828, %v5868
  %v5877 = vadd.f32 %v5829, %v5869
  %v5878 = vadd.f32 %v5830, %v5870
  %5879 = vset.pattern.permute.xlu0 4
  %5880 = vperm.xlu0 %5879, %v39
  %v5881 = vpop.permute.xlu0 %5880
  %5883 = vset.pattern.permute.xlu0 4
  %5884 = vperm.xlu0 %5883, %v40
  %v5885 = vpop.permute.xlu0 %5884
  %5887 = vset.pattern.permute.xlu0 4
  %5888 = vperm.xlu0 %5887, %v41
  %v5889 = vpop.permute.xlu0 %5888
  %5891 = vset.pattern.permute.xlu0 4
  %5892 = vperm.xlu0 %5891, %v42
  %v5893 = vpop.permute.xlu0 %5892
  %5895 = vset.pattern.permute.xlu0 4
  %5896 = vperm.xlu0 %5895, %v43
  %v5897 = vpop.permute.xlu0 %5896
  %5899 = vset.pattern.permute.xlu0 4
  %5900 = vperm.xlu0 %5899, %v44
  %v5901 = vpop.permute.xlu0 %5900
  %5903 = vset.pattern.permute.xlu0 4
  %5904 = vperm.xlu0 %5903, %v45
  %v5905 = vpop.permute.xlu0 %5904
  %5907 = vset.pattern.permute.xlu0 4
  %5908 = vperm.xlu0 %5907, %v46
  %v5909 = vpop.permute.xlu0 %5908
  %v5911 = vmul.f32 %v5881, %v1261
  %v5912 = vmul.f32 %v5885, %v1265
  %v5913 = vmul.f32 %v5889, %v1271
  %v5914 = vmul.f32 %v5893, %v1275
  %v5915 = vmul.f32 %v5897, %v1281
  %v5916 = vmul.f32 %v5901, %v1285
  %v5917 = vmul.f32 %v5905, %v1291
  %v5918 = vmul.f32 %v5909, %v1295
  %v5919 = vadd.f32 %v5871, %v5911
  %v5920 = vadd.f32 %v5872, %v5912
  %v5921 = vadd.f32 %v5873, %v5913
  %v5922 = vadd.f32 %v5874, %v5914
  %v5923 = vadd.f32 %v5875, %v5915
  %v5924 = vadd.f32 %v5876, %v5916
  %v5925 = vadd.f32 %v5877, %v5917
  %v5926 = vadd.f32 %v5878, %v5918
  %5927 = vset.pattern.permute.xlu0 5
  %5928 = vperm.xlu0 %5927, %v39
  %v5929 = vpop.permute.xlu0 %5928
  %5931 = vset.pattern.permute.xlu0 5
  %5932 = vperm.xlu0 %5931, %v40
  %v5933 = vpop.permute.xlu0 %5932
  %5935 = vset.pattern.permute.xlu0 5
  %5936 = vperm.xlu0 %5935, %v41
  %v5937 = vpop.permute.xlu0 %5936
  %5939 = vset.pattern.permute.xlu0 5
  %5940 = vperm.xlu0 %5939, %v42
  %v5941 = vpop.permute.xlu0 %5940
  %5943 = vset.pattern.permute.xlu0 5
  %5944 = vperm.xlu0 %5943, %v43
  %v5945 = vpop.permute.xlu0 %5944
  %5947 = vset.pattern.permute.xlu0 5
  %5948 = vperm.xlu0 %5947, %v44
  %v5949 = vpop.permute.xlu0 %5948
  %5951 = vset.pattern.permute.xlu0 5
  %5952 = vperm.xlu0 %5951, %v45
  %v5953 = vpop.permute.xlu0 %5952
  %5955 = vset.pattern.permute.xlu0 5
  %5956 = vperm.xlu0 %5955, %v46
  %v5957 = vpop.permute.xlu0 %5956
  %v5959 = vmul.f32 %v5929, %v1263
  %v5960 = vmul.f32 %v5933, %v1267
  %v5961 = vmul.f32 %v5937, %v1273
  %v5962 = vmul.f32 %v5941, %v1277
  %v5963 = vmul.f32 %v5945, %v1283
  %v5964 = vmul.f32 %v5949, %v1287
  %v5965 = vmul.f32 %v5953, %v1293
  %v5966 = vmul.f32 %v5957, %v1297
  %v5967 = vadd.f32 %v5919, %v5959
  %v5968 = vadd.f32 %v5920, %v5960
  %v5969 = vadd.f32 %v5921, %v5961
  %v5970 = vadd.f32 %v5922, %v5962
  %v5971 = vadd.f32 %v5923, %v5963
  %v5972 = vadd.f32 %v5924, %v5964
  %v5973 = vadd.f32 %v5925, %v5965
  %v5974 = vadd.f32 %v5926, %v5966
  %5975 = vset.pattern.permute.xlu0 6
  %5976 = vperm.xlu0 %5975, %v39
  %v5977 = vpop.permute.xlu0 %5976
  %5979 = vset.pattern.permute.xlu0 6
  %5980 = vperm.xlu0 %5979, %v40
  %v5981 = vpop.permute.xlu0 %5980
  %5983 = vset.pattern.permute.xlu0 6
  %5984 = vperm.xlu0 %5983, %v41
  %v5985 = vpop.permute.xlu0 %5984
  %5987 = vset.pattern.permute.xlu0 6
  %5988 = vperm.xlu0 %5987, %v42
  %v5989 = vpop.permute.xlu0 %5988
  %5991 = vset.pattern.permute.xlu0 6
  %5992 = vperm.xlu0 %5991, %v43
  %v5993 = vpop.permute.xlu0 %5992
  %5995 = vset.pattern.permute.xlu0 6
  %5996 = vperm.xlu0 %5995, %v44
  %v5997 = vpop.permute.xlu0 %5996
  %5999 = vset.pattern.permute.xlu0 6
  %6000 = vperm.xlu0 %5999, %v45
  %v6001 = vpop.permute.xlu0 %6000
  %6003 = vset.pattern.permute.xlu0 6
  %6004 = vperm.xlu0 %6003, %v46
  %v6005 = vpop.permute.xlu0 %6004
  %v6007 = vmul.f32 %v5977, %v1614
  %v6008 = vmul.f32 %v5981, %v1618
  %v6009 = vmul.f32 %v5985, %v1624
  %v6010 = vmul.f32 %v5989, %v1628
  %v6011 = vmul.f32 %v5993, %v1634
  %v6012 = vmul.f32 %v5997, %v1638
  %v6013 = vmul.f32 %v6001, %v1644
  %v6014 = vmul.f32 %v6005, %v1648
  %v6015 = vadd.f32 %v5967, %v6007
  %v6016 = vadd.f32 %v5968, %v6008
  %v6017 = vadd.f32 %v5969, %v6009
  %v6018 = vadd.f32 %v5970, %v6010
  %v6019 = vadd.f32 %v5971, %v6011
  %v6020 = vadd.f32 %v5972, %v6012
  %v6021 = vadd.f32 %v5973, %v6013
  %v6022 = vadd.f32 %v5974, %v6014
  %6023 = vset.pattern.permute.xlu0 7
  %6024 = vperm.xlu0 %6023, %v39
  %v6025 = vpop.permute.xlu0 %6024
  %6027 = vset.pattern.permute.xlu0 7
  %6028 = vperm.xlu0 %6027, %v40
  %v6029 = vpop.permute.xlu0 %6028
  %6031 = vset.pattern.permute.xlu0 7
  %6032 = vperm.xlu0 %6031, %v41
  %v6033 = vpop.permute.xlu0 %6032
  %6035 = vset.pattern.permute.xlu0 7
  %6036 = vperm.xlu0 %6035, %v42
  %v6037 = vpop.permute.xlu0 %6036
  %6039 = vset.pattern.permute.xlu0 7
  %6040 = vperm.xlu0 %6039, %v43
  %v6041 = vpop.permute.xlu0 %6040
  %6043 = vset.pattern.permute.xlu0 7
  %6044 = vperm.xlu0 %6043, %v44
  %v6045 = vpop.permute.xlu0 %6044
  %6047 = vset.pattern.permute.xlu0 7
  %6048 = vperm.xlu0 %6047, %v45
  %v6049 = vpop.permute.xlu0 %6048
  %6051 = vset.pattern.permute.xlu0 7
  %6052 = vperm.xlu0 %6051, %v46
  %v6053 = vpop.permute.xlu0 %6052
  %v6055 = vmul.f32 %v6025, %v1616
  %v6056 = vmul.f32 %v6029, %v1620
  %v6057 = vmul.f32 %v6033, %v1626
  %v6058 = vmul.f32 %v6037, %v1630
  %v6059 = vmul.f32 %v6041, %v1636
  %v6060 = vmul.f32 %v6045, %v1640
  %v6061 = vmul.f32 %v6049, %v1646
  %v6062 = vmul.f32 %v6053, %v1650
  %v6063 = vadd.f32 %v6015, %v6055
  %v6064 = vadd.f32 %v6016, %v6056
  %v6065 = vadd.f32 %v6017, %v6057
  %v6066 = vadd.f32 %v6018, %v6058
  %v6067 = vadd.f32 %v6019, %v6059
  %v6068 = vadd.f32 %v6020, %v6060
  %v6069 = vadd.f32 %v6021, %v6061
  %v6070 = vadd.f32 %v6022, %v6062
  %6071 = vset.pattern.permute.xlu0 8
  %6072 = vperm.xlu0 %6071, %v39
  %v6073 = vpop.permute.xlu0 %6072
  %6075 = vset.pattern.permute.xlu0 8
  %6076 = vperm.xlu0 %6075, %v40
  %v6077 = vpop.permute.xlu0 %6076
  %6079 = vset.pattern.permute.xlu0 8
  %6080 = vperm.xlu0 %6079, %v41
  %v6081 = vpop.permute.xlu0 %6080
  %6083 = vset.pattern.permute.xlu0 8
  %6084 = vperm.xlu0 %6083, %v42
  %v6085 = vpop.permute.xlu0 %6084
  %6087 = vset.pattern.permute.xlu0 8
  %6088 = vperm.xlu0 %6087, %v43
  %v6089 = vpop.permute.xlu0 %6088
  %6091 = vset.pattern.permute.xlu0 8
  %6092 = vperm.xlu0 %6091, %v44
  %v6093 = vpop.permute.xlu0 %6092
  %6095 = vset.pattern.permute.xlu0 8
  %6096 = vperm.xlu0 %6095, %v45
  %v6097 = vpop.permute.xlu0 %6096
  %6099 = vset.pattern.permute.xlu0 8
  %6100 = vperm.xlu0 %6099, %v46
  %v6101 = vpop.permute.xlu0 %6100
  %v6103 = vmul.f32 %v6073, %v1967
  %v6104 = vmul.f32 %v6077, %v1971
  %v6105 = vmul.f32 %v6081, %v1977
  %v6106 = vmul.f32 %v6085, %v1981
  %v6107 = vmul.f32 %v6089, %v1987
  %v6108 = vmul.f32 %v6093, %v1991
  %v6109 = vmul.f32 %v6097, %v1997
  %v6110 = vmul.f32 %v6101, %v2001
  %v6111 = vadd.f32 %v6063, %v6103
  %v6112 = vadd.f32 %v6064, %v6104
  %v6113 = vadd.f32 %v6065, %v6105
  %v6114 = vadd.f32 %v6066, %v6106
  %v6115 = vadd.f32 %v6067, %v6107
  %v6116 = vadd.f32 %v6068, %v6108
  %v6117 = vadd.f32 %v6069, %v6109
  %v6118 = vadd.f32 %v6070, %v6110
  %6119 = vset.pattern.permute.xlu0 9
  %6120 = vperm.xlu0 %6119, %v39
  %v6121 = vpop.permute.xlu0 %6120
  %6123 = vset.pattern.permute.xlu0 9
  %6124 = vperm.xlu0 %6123, %v40
  %v6125 = vpop.permute.xlu0 %6124
  %6127 = vset.pattern.permute.xlu0 9
  %6128 = vperm.xlu0 %6127, %v41
  %v6129 = vpop.permute.xlu0 %6128
  %6131 = vset.pattern.permute.xlu0 9
  %6132 = vperm.xlu0 %6131, %v42
  %v6133 = vpop.permute.xlu0 %6132
  %6135 = vset.pattern.permute.xlu0 9
  %6136 = vperm.xlu0 %6135, %v43
  %v6137 = vpop.permute.xlu0 %6136
  %6139 = vset.pattern.permute.xlu0 9
  %6140 = vperm.xlu0 %6139, %v44
  %v6141 = vpop.permute.xlu0 %6140
  %6143 = vset.pattern.permute.xlu0 9
  %6144 = vperm.xlu0 %6143, %v45
  %v6145 = vpop.permute.xlu0 %6144
  %6147 = vset.pattern.permute.xlu0 9
  %6148 = vperm.xlu0 %6147, %v46
  %v6149 = vpop.permute.xlu0 %6148
  %v6151 = vmul.f32 %v6121, %v1969
  %v6152 = vmul.f32 %v6125, %v1973
  %v6153 = vmul.f32 %v6129, %v1979
  %v6154 = vmul.f32 %v6133, %v1983
  %v6155 = vmul.f32 %v6137, %v1989
  %v6156 = vmul.f32 %v6141, %v1993
  %v6157 = vmul.f32 %v6145, %v1999
  %v6158 = vmul.f32 %v6149, %v2003
  %v6159 = vadd.f32 %v6111, %v6151
  %v6160 = vadd.f32 %v6112, %v6152
  %v6161 = vadd.f32 %v6113, %v6153
  %v6162 = vadd.f32 %v6114, %v6154
  %v6163 = vadd.f32 %v6115, %v6155
  %v6164 = vadd.f32 %v6116, %v6156
  %v6165 = vadd.f32 %v6117, %v6157
  %v6166 = vadd.f32 %v6118, %v6158
  %6167 = vset.pattern.permute.xlu0 10
  %6168 = vperm.xlu0 %6167, %v39
  %v6169 = vpop.permute.xlu0 %6168
  %6171 = vset.pattern.permute.xlu0 10
  %6172 = vperm.xlu0 %6171, %v40
  %v6173 = vpop.permute.xlu0 %6172
  %6175 = vset.pattern.permute.xlu0 10
  %6176 = vperm.xlu0 %6175, %v41
  %v6177 = vpop.permute.xlu0 %6176
  %6179 = vset.pattern.permute.xlu0 10
  %6180 = vperm.xlu0 %6179, %v42
  %v6181 = vpop.permute.xlu0 %6180
  %6183 = vset.pattern.permute.xlu0 10
  %6184 = vperm.xlu0 %6183, %v43
  %v6185 = vpop.permute.xlu0 %6184
  %6187 = vset.pattern.permute.xlu0 10
  %6188 = vperm.xlu0 %6187, %v44
  %v6189 = vpop.permute.xlu0 %6188
  %6191 = vset.pattern.permute.xlu0 10
  %6192 = vperm.xlu0 %6191, %v45
  %v6193 = vpop.permute.xlu0 %6192
  %6195 = vset.pattern.permute.xlu0 10
  %6196 = vperm.xlu0 %6195, %v46
  %v6197 = vpop.permute.xlu0 %6196
  %v6199 = vmul.f32 %v6169, %v2320
  %v6200 = vmul.f32 %v6173, %v2324
  %v6201 = vmul.f32 %v6177, %v2330
  %v6202 = vmul.f32 %v6181, %v2334
  %v6203 = vmul.f32 %v6185, %v2340
  %v6204 = vmul.f32 %v6189, %v2344
  %v6205 = vmul.f32 %v6193, %v2350
  %v6206 = vmul.f32 %v6197, %v2354
  %v6207 = vadd.f32 %v6159, %v6199
  %v6208 = vadd.f32 %v6160, %v6200
  %v6209 = vadd.f32 %v6161, %v6201
  %v6210 = vadd.f32 %v6162, %v6202
  %v6211 = vadd.f32 %v6163, %v6203
  %v6212 = vadd.f32 %v6164, %v6204
  %v6213 = vadd.f32 %v6165, %v6205
  %v6214 = vadd.f32 %v6166, %v6206
  %6215 = vset.pattern.permute.xlu0 11
  %6216 = vperm.xlu0 %6215, %v39
  %v6217 = vpop.permute.xlu0 %6216
  %6219 = vset.pattern.permute.xlu0 11
  %6220 = vperm.xlu0 %6219, %v40
  %v6221 = vpop.permute.xlu0 %6220
  %6223 = vset.pattern.permute.xlu0 11
  %6224 = vperm.xlu0 %6223, %v41
  %v6225 = vpop.permute.xlu0 %6224
  %6227 = vset.pattern.permute.xlu0 11
  %6228 = vperm.xlu0 %6227, %v42
  %v6229 = vpop.permute.xlu0 %6228
  %6231 = vset.pattern.permute.xlu0 11
  %6232 = vperm.xlu0 %6231, %v43
  %v6233 = vpop.permute.xlu0 %6232
  %6235 = vset.pattern.permute.xlu0 11
  %6236 = vperm.xlu0 %6235, %v44
  %v6237 = vpop.permute.xlu0 %6236
  %6239 = vset.pattern.permute.xlu0 11
  %6240 = vperm.xlu0 %6239, %v45
  %v6241 = vpop.permute.xlu0 %6240
  %6243 = vset.pattern.permute.xlu0 11
  %6244 = vperm.xlu0 %6243, %v46
  %v6245 = vpop.permute.xlu0 %6244
  %v6247 = vmul.f32 %v6217, %v2322
  %v6248 = vmul.f32 %v6221, %v2326
  %v6249 = vmul.f32 %v6225, %v2332
  %v6250 = vmul.f32 %v6229, %v2336
  %v6251 = vmul.f32 %v6233, %v2342
  %v6252 = vmul.f32 %v6237, %v2346
  %v6253 = vmul.f32 %v6241, %v2352
  %v6254 = vmul.f32 %v6245, %v2356
  %v6255 = vadd.f32 %v6207, %v6247
  %v6256 = vadd.f32 %v6208, %v6248
  %v6257 = vadd.f32 %v6209, %v6249
  %v6258 = vadd.f32 %v6210, %v6250
  %v6259 = vadd.f32 %v6211, %v6251
  %v6260 = vadd.f32 %v6212, %v6252
  %v6261 = vadd.f32 %v6213, %v6253
  %v6262 = vadd.f32 %v6214, %v6254
  %6263 = vset.pattern.permute.xlu0 12
  %6264 = vperm.xlu0 %6263, %v39
  %v6265 = vpop.permute.xlu0 %6264
  %6267 = vset.pattern.permute.xlu0 12
  %6268 = vperm.xlu0 %6267, %v40
  %v6269 = vpop.permute.xlu0 %6268
  %6271 = vset.pattern.permute.xlu0 12
  %6272 = vperm.xlu0 %6271, %v41
  %v6273 = vpop.permute.xlu0 %6272
  %6275 = vset.pattern.permute.xlu0 12
  %6276 = vperm.xlu0 %6275, %v42
  %v6277 = vpop.permute.xlu0 %6276
  %6279 = vset.pattern.permute.xlu0 12
  %6280 = vperm.xlu0 %6279, %v43
  %v6281 = vpop.permute.xlu0 %6280
  %6283 = vset.pattern.permute.xlu0 12
  %6284 = vperm.xlu0 %6283, %v44
  %v6285 = vpop.permute.xlu0 %6284
  %6287 = vset.pattern.permute.xlu0 12
  %6288 = vperm.xlu0 %6287, %v45
  %v6289 = vpop.permute.xlu0 %6288
  %6291 = vset.pattern.permute.xlu0 12
  %6292 = vperm.xlu0 %6291, %v46
  %v6293 = vpop.permute.xlu0 %6292
  %v6295 = vmul.f32 %v6265, %v2673
  %v6296 = vmul.f32 %v6269, %v2677
  %v6297 = vmul.f32 %v6273, %v2683
  %v6298 = vmul.f32 %v6277, %v2687
  %v6299 = vmul.f32 %v6281, %v2693
  %v6300 = vmul.f32 %v6285, %v2697
  %v6301 = vmul.f32 %v6289, %v2703
  %v6302 = vmul.f32 %v6293, %v2707
  %v6303 = vadd.f32 %v6255, %v6295
  %v6304 = vadd.f32 %v6256, %v6296
  %v6305 = vadd.f32 %v6257, %v6297
  %v6306 = vadd.f32 %v6258, %v6298
  %v6307 = vadd.f32 %v6259, %v6299
  %v6308 = vadd.f32 %v6260, %v6300
  %v6309 = vadd.f32 %v6261, %v6301
  %v6310 = vadd.f32 %v6262, %v6302
  %6311 = vset.pattern.permute.xlu0 13
  %6312 = vperm.xlu0 %6311, %v39
  %v6313 = vpop.permute.xlu0 %6312
  %6315 = vset.pattern.permute.xlu0 13
  %6316 = vperm.xlu0 %6315, %v40
  %v6317 = vpop.permute.xlu0 %6316
  %6319 = vset.pattern.permute.xlu0 13
  %6320 = vperm.xlu0 %6319, %v41
  %v6321 = vpop.permute.xlu0 %6320
  %6323 = vset.pattern.permute.xlu0 13
  %6324 = vperm.xlu0 %6323, %v42
  %v6325 = vpop.permute.xlu0 %6324
  %6327 = vset.pattern.permute.xlu0 13
  %6328 = vperm.xlu0 %6327, %v43
  %v6329 = vpop.permute.xlu0 %6328
  %6331 = vset.pattern.permute.xlu0 13
  %6332 = vperm.xlu0 %6331, %v44
  %v6333 = vpop.permute.xlu0 %6332
  %6335 = vset.pattern.permute.xlu0 13
  %6336 = vperm.xlu0 %6335, %v45
  %v6337 = vpop.permute.xlu0 %6336
  %6339 = vset.pattern.permute.xlu0 13
  %6340 = vperm.xlu0 %6339, %v46
  %v6341 = vpop.permute.xlu0 %6340
  %v6343 = vmul.f32 %v6313, %v2675
  %v6344 = vmul.f32 %v6317, %v2679
  %v6345 = vmul.f32 %v6321, %v2685
  %v6346 = vmul.f32 %v6325, %v2689
  %v6347 = vmul.f32 %v6329, %v2695
  %v6348 = vmul.f32 %v6333, %v2699
  %v6349 = vmul.f32 %v6337, %v2705
  %v6350 = vmul.f32 %v6341, %v2709
  %v6351 = vadd.f32 %v6303, %v6343
  %v6352 = vadd.f32 %v6304, %v6344
  %v6353 = vadd.f32 %v6305, %v6345
  %v6354 = vadd.f32 %v6306, %v6346
  %v6355 = vadd.f32 %v6307, %v6347
  %v6356 = vadd.f32 %v6308, %v6348
  %v6357 = vadd.f32 %v6309, %v6349
  %v6358 = vadd.f32 %v6310, %v6350
  %6359 = vset.pattern.permute.xlu0 14
  %6360 = vperm.xlu0 %6359, %v39
  %v6361 = vpop.permute.xlu0 %6360
  %6363 = vset.pattern.permute.xlu0 14
  %6364 = vperm.xlu0 %6363, %v40
  %v6365 = vpop.permute.xlu0 %6364
  %6367 = vset.pattern.permute.xlu0 14
  %6368 = vperm.xlu0 %6367, %v41
  %v6369 = vpop.permute.xlu0 %6368
  %6371 = vset.pattern.permute.xlu0 14
  %6372 = vperm.xlu0 %6371, %v42
  %v6373 = vpop.permute.xlu0 %6372
  %6375 = vset.pattern.permute.xlu0 14
  %6376 = vperm.xlu0 %6375, %v43
  %v6377 = vpop.permute.xlu0 %6376
  %6379 = vset.pattern.permute.xlu0 14
  %6380 = vperm.xlu0 %6379, %v44
  %v6381 = vpop.permute.xlu0 %6380
  %6383 = vset.pattern.permute.xlu0 14
  %6384 = vperm.xlu0 %6383, %v45
  %v6385 = vpop.permute.xlu0 %6384
  %6387 = vset.pattern.permute.xlu0 14
  %6388 = vperm.xlu0 %6387, %v46
  %v6389 = vpop.permute.xlu0 %6388
  %v6391 = vmul.f32 %v6361, %v3026
  %v6392 = vmul.f32 %v6365, %v3030
  %v6393 = vmul.f32 %v6369, %v3036
  %v6394 = vmul.f32 %v6373, %v3040
  %v6395 = vmul.f32 %v6377, %v3046
  %v6396 = vmul.f32 %v6381, %v3050
  %v6397 = vmul.f32 %v6385, %v3056
  %v6398 = vmul.f32 %v6389, %v3060
  %v6399 = vadd.f32 %v6351, %v6391
  %v6400 = vadd.f32 %v6352, %v6392
  %v6401 = vadd.f32 %v6353, %v6393
  %v6402 = vadd.f32 %v6354, %v6394
  %v6403 = vadd.f32 %v6355, %v6395
  %v6404 = vadd.f32 %v6356, %v6396
  %v6405 = vadd.f32 %v6357, %v6397
  %v6406 = vadd.f32 %v6358, %v6398
  %6407 = vset.pattern.permute.xlu0 15
  %6408 = vperm.xlu0 %6407, %v39
  %v6409 = vpop.permute.xlu0 %6408
  %6411 = vset.pattern.permute.xlu0 15
  %6412 = vperm.xlu0 %6411, %v40
  %v6413 = vpop.permute.xlu0 %6412
  %6415 = vset.pattern.permute.xlu0 15
  %6416 = vperm.xlu0 %6415, %v41
  %v6417 = vpop.permute.xlu0 %6416
  %6419 = vset.pattern.permute.xlu0 15
  %6420 = vperm.xlu0 %6419, %v42
  %v6421 = vpop.permute.xlu0 %6420
  %6423 = vset.pattern.permute.xlu0 15
  %6424 = vperm.xlu0 %6423, %v43
  %v6425 = vpop.permute.xlu0 %6424
  %6427 = vset.pattern.permute.xlu0 15
  %6428 = vperm.xlu0 %6427, %v44
  %v6429 = vpop.permute.xlu0 %6428
  %6431 = vset.pattern.permute.xlu0 15
  %6432 = vperm.xlu0 %6431, %v45
  %v6433 = vpop.permute.xlu0 %6432
  %6435 = vset.pattern.permute.xlu0 15
  %6436 = vperm.xlu0 %6435, %v46
  %v6437 = vpop.permute.xlu0 %6436
  %v6439 = vmul.f32 %v6409, %v3028
  %v6440 = vmul.f32 %v6413, %v3032
  %v6441 = vmul.f32 %v6417, %v3038
  %v6442 = vmul.f32 %v6421, %v3042
  %v6443 = vmul.f32 %v6425, %v3048
  %v6444 = vmul.f32 %v6429, %v3052
  %v6445 = vmul.f32 %v6433, %v3058
  %v6446 = vmul.f32 %v6437, %v3062
  %v6447 = vadd.f32 %v6399, %v6439
  %v6448 = vadd.f32 %v6400, %v6440
  %v6449 = vadd.f32 %v6401, %v6441
  %v6450 = vadd.f32 %v6402, %v6442
  %v6451 = vadd.f32 %v6403, %v6443
  %v6452 = vadd.f32 %v6404, %v6444
  %v6453 = vadd.f32 %v6405, %v6445
  %v6454 = vadd.f32 %v6406, %v6446
  %v6455 = vpack.c.bf16 %v6448, %v6447
  %v6456 = vpack.c.bf16 %v6450, %v6449
  %v6457 = vpack.c.bf16 %v6452, %v6451
  %v6458 = vpack.c.bf16 %v6454, %v6453
  %v6463 = vunpack.c.l.b16 %v6455
  %v6464 = vunpack.c.h.b16 %v6455
  %v6465 = vunpack.c.l.b16 %v6456
  %v6466 = vunpack.c.h.b16 %v6456
  %v6467 = vunpack.c.l.b16 %v6457
  %v6468 = vunpack.c.h.b16 %v6457
  %v6469 = vunpack.c.l.b16 %v6458
  %v6470 = vunpack.c.h.b16 %v6458
  %v6471 = vpack.c.b16 %v6463, %v6463
  %v6472 = vpack.c.b16 %v6464, %v6464
  %v6473 = vpack.c.b16 %v6465, %v6465
  %v6474 = vpack.c.b16 %v6466, %v6466
  %v6475 = vpack.c.b16 %v6467, %v6467
  %v6476 = vpack.c.b16 %v6468, %v6468
  %v6477 = vpack.c.b16 %v6469, %v6469
  %v6478 = vpack.c.b16 %v6470, %v6470
  %6487 = vst [vmem:[%s3 + $0x60] sm:$0xf] %v6471
  %6488 = vst [vmem:[%s3 + $0x64] sm:$0xf] %v6472
  %6489 = vst [vmem:[%s3 + $0x68] sm:$0xf] %v6473
  %6490 = vst [vmem:[%s3 + $0x6c] sm:$0xf] %v6474
  %6491 = vst [vmem:[%s3 + $0x70] sm:$0xf] %v6475
  %6492 = vst [vmem:[%s3 + $0x74] sm:$0xf] %v6476
  %6493 = vst [vmem:[%s3 + $0x78] sm:$0xf] %v6477
  %6494 = vst [vmem:[%s3 + $0x7c] sm:$0xf] %v6478
  %6496 = vset.pattern.permute.xlu0 0
  %6497 = vperm.xlu0 %6496, %v47
  %v6498 = vpop.permute.xlu0 %6497
  %6501 = vset.pattern.permute.xlu0 0
  %6502 = vperm.xlu0 %6501, %v48
  %v6503 = vpop.permute.xlu0 %6502
  %6506 = vset.pattern.permute.xlu0 0
  %6507 = vperm.xlu0 %6506, %v49
  %v6508 = vpop.permute.xlu0 %6507
  %6511 = vset.pattern.permute.xlu0 0
  %6512 = vperm.xlu0 %6511, %v50
  %v6513 = vpop.permute.xlu0 %6512
  %6516 = vset.pattern.permute.xlu0 0
  %6517 = vperm.xlu0 %6516, %v51
  %v6518 = vpop.permute.xlu0 %6517
  %6521 = vset.pattern.permute.xlu0 0
  %6522 = vperm.xlu0 %6521, %v52
  %v6523 = vpop.permute.xlu0 %6522
  %6526 = vset.pattern.permute.xlu0 0
  %6527 = vperm.xlu0 %6526, %v53
  %v6528 = vpop.permute.xlu0 %6527
  %6531 = vset.pattern.permute.xlu0 0
  %6532 = vperm.xlu0 %6531, %v54
  %v6533 = vpop.permute.xlu0 %6532
  %v6535 = vmul.f32 %v6498, %v595
  %v6536 = vmul.f32 %v6503, %v599
  %v6537 = vmul.f32 %v6508, %v605
  %v6538 = vmul.f32 %v6513, %v609
  %v6539 = vmul.f32 %v6518, %v615
  %v6540 = vmul.f32 %v6523, %v619
  %v6541 = vmul.f32 %v6528, %v625
  %v6542 = vmul.f32 %v6533, %v629
  %v6543 = vadd.f32 %v3229, %v6535
  %v6544 = vadd.f32 %v3229, %v6536
  %v6545 = vadd.f32 %v3229, %v6537
  %v6546 = vadd.f32 %v3229, %v6538
  %v6547 = vadd.f32 %v3229, %v6539
  %v6548 = vadd.f32 %v3229, %v6540
  %v6549 = vadd.f32 %v3229, %v6541
  %v6550 = vadd.f32 %v3229, %v6542
  %6551 = vset.pattern.permute.xlu0 1
  %6552 = vperm.xlu0 %6551, %v47
  %v6553 = vpop.permute.xlu0 %6552
  %6555 = vset.pattern.permute.xlu0 1
  %6556 = vperm.xlu0 %6555, %v48
  %v6557 = vpop.permute.xlu0 %6556
  %6559 = vset.pattern.permute.xlu0 1
  %6560 = vperm.xlu0 %6559, %v49
  %v6561 = vpop.permute.xlu0 %6560
  %6563 = vset.pattern.permute.xlu0 1
  %6564 = vperm.xlu0 %6563, %v50
  %v6565 = vpop.permute.xlu0 %6564
  %6567 = vset.pattern.permute.xlu0 1
  %6568 = vperm.xlu0 %6567, %v51
  %v6569 = vpop.permute.xlu0 %6568
  %6571 = vset.pattern.permute.xlu0 1
  %6572 = vperm.xlu0 %6571, %v52
  %v6573 = vpop.permute.xlu0 %6572
  %6575 = vset.pattern.permute.xlu0 1
  %6576 = vperm.xlu0 %6575, %v53
  %v6577 = vpop.permute.xlu0 %6576
  %6579 = vset.pattern.permute.xlu0 1
  %6580 = vperm.xlu0 %6579, %v54
  %v6581 = vpop.permute.xlu0 %6580
  %v6583 = vmul.f32 %v6553, %v597
  %v6584 = vmul.f32 %v6557, %v601
  %v6585 = vmul.f32 %v6561, %v607
  %v6586 = vmul.f32 %v6565, %v611
  %v6587 = vmul.f32 %v6569, %v617
  %v6588 = vmul.f32 %v6573, %v621
  %v6589 = vmul.f32 %v6577, %v627
  %v6590 = vmul.f32 %v6581, %v631
  %v6591 = vadd.f32 %v6543, %v6583
  %v6592 = vadd.f32 %v6544, %v6584
  %v6593 = vadd.f32 %v6545, %v6585
  %v6594 = vadd.f32 %v6546, %v6586
  %v6595 = vadd.f32 %v6547, %v6587
  %v6596 = vadd.f32 %v6548, %v6588
  %v6597 = vadd.f32 %v6549, %v6589
  %v6598 = vadd.f32 %v6550, %v6590
  %6599 = vset.pattern.permute.xlu0 2
  %6600 = vperm.xlu0 %6599, %v47
  %v6601 = vpop.permute.xlu0 %6600
  %6603 = vset.pattern.permute.xlu0 2
  %6604 = vperm.xlu0 %6603, %v48
  %v6605 = vpop.permute.xlu0 %6604
  %6607 = vset.pattern.permute.xlu0 2
  %6608 = vperm.xlu0 %6607, %v49
  %v6609 = vpop.permute.xlu0 %6608
  %6611 = vset.pattern.permute.xlu0 2
  %6612 = vperm.xlu0 %6611, %v50
  %v6613 = vpop.permute.xlu0 %6612
  %6615 = vset.pattern.permute.xlu0 2
  %6616 = vperm.xlu0 %6615, %v51
  %v6617 = vpop.permute.xlu0 %6616
  %6619 = vset.pattern.permute.xlu0 2
  %6620 = vperm.xlu0 %6619, %v52
  %v6621 = vpop.permute.xlu0 %6620
  %6623 = vset.pattern.permute.xlu0 2
  %6624 = vperm.xlu0 %6623, %v53
  %v6625 = vpop.permute.xlu0 %6624
  %6627 = vset.pattern.permute.xlu0 2
  %6628 = vperm.xlu0 %6627, %v54
  %v6629 = vpop.permute.xlu0 %6628
  %v6631 = vmul.f32 %v6601, %v948
  %v6632 = vmul.f32 %v6605, %v952
  %v6633 = vmul.f32 %v6609, %v958
  %v6634 = vmul.f32 %v6613, %v962
  %v6635 = vmul.f32 %v6617, %v968
  %v6636 = vmul.f32 %v6621, %v972
  %v6637 = vmul.f32 %v6625, %v978
  %v6638 = vmul.f32 %v6629, %v982
  %v6639 = vadd.f32 %v6591, %v6631
  %v6640 = vadd.f32 %v6592, %v6632
  %v6641 = vadd.f32 %v6593, %v6633
  %v6642 = vadd.f32 %v6594, %v6634
  %v6643 = vadd.f32 %v6595, %v6635
  %v6644 = vadd.f32 %v6596, %v6636
  %v6645 = vadd.f32 %v6597, %v6637
  %v6646 = vadd.f32 %v6598, %v6638
  %6647 = vset.pattern.permute.xlu0 3
  %6648 = vperm.xlu0 %6647, %v47
  %v6649 = vpop.permute.xlu0 %6648
  %6651 = vset.pattern.permute.xlu0 3
  %6652 = vperm.xlu0 %6651, %v48
  %v6653 = vpop.permute.xlu0 %6652
  %6655 = vset.pattern.permute.xlu0 3
  %6656 = vperm.xlu0 %6655, %v49
  %v6657 = vpop.permute.xlu0 %6656
  %6659 = vset.pattern.permute.xlu0 3
  %6660 = vperm.xlu0 %6659, %v50
  %v6661 = vpop.permute.xlu0 %6660
  %6663 = vset.pattern.permute.xlu0 3
  %6664 = vperm.xlu0 %6663, %v51
  %v6665 = vpop.permute.xlu0 %6664
  %6667 = vset.pattern.permute.xlu0 3
  %6668 = vperm.xlu0 %6667, %v52
  %v6669 = vpop.permute.xlu0 %6668
  %6671 = vset.pattern.permute.xlu0 3
  %6672 = vperm.xlu0 %6671, %v53
  %v6673 = vpop.permute.xlu0 %6672
  %6675 = vset.pattern.permute.xlu0 3
  %6676 = vperm.xlu0 %6675, %v54
  %v6677 = vpop.permute.xlu0 %6676
  %v6679 = vmul.f32 %v6649, %v950
  %v6680 = vmul.f32 %v6653, %v954
  %v6681 = vmul.f32 %v6657, %v960
  %v6682 = vmul.f32 %v6661, %v964
  %v6683 = vmul.f32 %v6665, %v970
  %v6684 = vmul.f32 %v6669, %v974
  %v6685 = vmul.f32 %v6673, %v980
  %v6686 = vmul.f32 %v6677, %v984
  %v6687 = vadd.f32 %v6639, %v6679
  %v6688 = vadd.f32 %v6640, %v6680
  %v6689 = vadd.f32 %v6641, %v6681
  %v6690 = vadd.f32 %v6642, %v6682
  %v6691 = vadd.f32 %v6643, %v6683
  %v6692 = vadd.f32 %v6644, %v6684
  %v6693 = vadd.f32 %v6645, %v6685
  %v6694 = vadd.f32 %v6646, %v6686
  %6695 = vset.pattern.permute.xlu0 4
  %6696 = vperm.xlu0 %6695, %v47
  %v6697 = vpop.permute.xlu0 %6696
  %6699 = vset.pattern.permute.xlu0 4
  %6700 = vperm.xlu0 %6699, %v48
  %v6701 = vpop.permute.xlu0 %6700
  %6703 = vset.pattern.permute.xlu0 4
  %6704 = vperm.xlu0 %6703, %v49
  %v6705 = vpop.permute.xlu0 %6704
  %6707 = vset.pattern.permute.xlu0 4
  %6708 = vperm.xlu0 %6707, %v50
  %v6709 = vpop.permute.xlu0 %6708
  %6711 = vset.pattern.permute.xlu0 4
  %6712 = vperm.xlu0 %6711, %v51
  %v6713 = vpop.permute.xlu0 %6712
  %6715 = vset.pattern.permute.xlu0 4
  %6716 = vperm.xlu0 %6715, %v52
  %v6717 = vpop.permute.xlu0 %6716
  %6719 = vset.pattern.permute.xlu0 4
  %6720 = vperm.xlu0 %6719, %v53
  %v6721 = vpop.permute.xlu0 %6720
  %6723 = vset.pattern.permute.xlu0 4
  %6724 = vperm.xlu0 %6723, %v54
  %v6725 = vpop.permute.xlu0 %6724
  %v6727 = vmul.f32 %v6697, %v1301
  %v6728 = vmul.f32 %v6701, %v1305
  %v6729 = vmul.f32 %v6705, %v1311
  %v6730 = vmul.f32 %v6709, %v1315
  %v6731 = vmul.f32 %v6713, %v1321
  %v6732 = vmul.f32 %v6717, %v1325
  %v6733 = vmul.f32 %v6721, %v1331
  %v6734 = vmul.f32 %v6725, %v1335
  %v6735 = vadd.f32 %v6687, %v6727
  %v6736 = vadd.f32 %v6688, %v6728
  %v6737 = vadd.f32 %v6689, %v6729
  %v6738 = vadd.f32 %v6690, %v6730
  %v6739 = vadd.f32 %v6691, %v6731
  %v6740 = vadd.f32 %v6692, %v6732
  %v6741 = vadd.f32 %v6693, %v6733
  %v6742 = vadd.f32 %v6694, %v6734
  %6743 = vset.pattern.permute.xlu0 5
  %6744 = vperm.xlu0 %6743, %v47
  %v6745 = vpop.permute.xlu0 %6744
  %6747 = vset.pattern.permute.xlu0 5
  %6748 = vperm.xlu0 %6747, %v48
  %v6749 = vpop.permute.xlu0 %6748
  %6751 = vset.pattern.permute.xlu0 5
  %6752 = vperm.xlu0 %6751, %v49
  %v6753 = vpop.permute.xlu0 %6752
  %6755 = vset.pattern.permute.xlu0 5
  %6756 = vperm.xlu0 %6755, %v50
  %v6757 = vpop.permute.xlu0 %6756
  %6759 = vset.pattern.permute.xlu0 5
  %6760 = vperm.xlu0 %6759, %v51
  %v6761 = vpop.permute.xlu0 %6760
  %6763 = vset.pattern.permute.xlu0 5
  %6764 = vperm.xlu0 %6763, %v52
  %v6765 = vpop.permute.xlu0 %6764
  %6767 = vset.pattern.permute.xlu0 5
  %6768 = vperm.xlu0 %6767, %v53
  %v6769 = vpop.permute.xlu0 %6768
  %6771 = vset.pattern.permute.xlu0 5
  %6772 = vperm.xlu0 %6771, %v54
  %v6773 = vpop.permute.xlu0 %6772
  %v6775 = vmul.f32 %v6745, %v1303
  %v6776 = vmul.f32 %v6749, %v1307
  %v6777 = vmul.f32 %v6753, %v1313
  %v6778 = vmul.f32 %v6757, %v1317
  %v6779 = vmul.f32 %v6761, %v1323
  %v6780 = vmul.f32 %v6765, %v1327
  %v6781 = vmul.f32 %v6769, %v1333
  %v6782 = vmul.f32 %v6773, %v1337
  %v6783 = vadd.f32 %v6735, %v6775
  %v6784 = vadd.f32 %v6736, %v6776
  %v6785 = vadd.f32 %v6737, %v6777
  %v6786 = vadd.f32 %v6738, %v6778
  %v6787 = vadd.f32 %v6739, %v6779
  %v6788 = vadd.f32 %v6740, %v6780
  %v6789 = vadd.f32 %v6741, %v6781
  %v6790 = vadd.f32 %v6742, %v6782
  %6791 = vset.pattern.permute.xlu0 6
  %6792 = vperm.xlu0 %6791, %v47
  %v6793 = vpop.permute.xlu0 %6792
  %6795 = vset.pattern.permute.xlu0 6
  %6796 = vperm.xlu0 %6795, %v48
  %v6797 = vpop.permute.xlu0 %6796
  %6799 = vset.pattern.permute.xlu0 6
  %6800 = vperm.xlu0 %6799, %v49
  %v6801 = vpop.permute.xlu0 %6800
  %6803 = vset.pattern.permute.xlu0 6
  %6804 = vperm.xlu0 %6803, %v50
  %v6805 = vpop.permute.xlu0 %6804
  %6807 = vset.pattern.permute.xlu0 6
  %6808 = vperm.xlu0 %6807, %v51
  %v6809 = vpop.permute.xlu0 %6808
  %6811 = vset.pattern.permute.xlu0 6
  %6812 = vperm.xlu0 %6811, %v52
  %v6813 = vpop.permute.xlu0 %6812
  %6815 = vset.pattern.permute.xlu0 6
  %6816 = vperm.xlu0 %6815, %v53
  %v6817 = vpop.permute.xlu0 %6816
  %6819 = vset.pattern.permute.xlu0 6
  %6820 = vperm.xlu0 %6819, %v54
  %v6821 = vpop.permute.xlu0 %6820
  %v6823 = vmul.f32 %v6793, %v1654
  %v6824 = vmul.f32 %v6797, %v1658
  %v6825 = vmul.f32 %v6801, %v1664
  %v6826 = vmul.f32 %v6805, %v1668
  %v6827 = vmul.f32 %v6809, %v1674
  %v6828 = vmul.f32 %v6813, %v1678
  %v6829 = vmul.f32 %v6817, %v1684
  %v6830 = vmul.f32 %v6821, %v1688
  %v6831 = vadd.f32 %v6783, %v6823
  %v6832 = vadd.f32 %v6784, %v6824
  %v6833 = vadd.f32 %v6785, %v6825
  %v6834 = vadd.f32 %v6786, %v6826
  %v6835 = vadd.f32 %v6787, %v6827
  %v6836 = vadd.f32 %v6788, %v6828
  %v6837 = vadd.f32 %v6789, %v6829
  %v6838 = vadd.f32 %v6790, %v6830
  %6839 = vset.pattern.permute.xlu0 7
  %6840 = vperm.xlu0 %6839, %v47
  %v6841 = vpop.permute.xlu0 %6840
  %6843 = vset.pattern.permute.xlu0 7
  %6844 = vperm.xlu0 %6843, %v48
  %v6845 = vpop.permute.xlu0 %6844
  %6847 = vset.pattern.permute.xlu0 7
  %6848 = vperm.xlu0 %6847, %v49
  %v6849 = vpop.permute.xlu0 %6848
  %6851 = vset.pattern.permute.xlu0 7
  %6852 = vperm.xlu0 %6851, %v50
  %v6853 = vpop.permute.xlu0 %6852
  %6855 = vset.pattern.permute.xlu0 7
  %6856 = vperm.xlu0 %6855, %v51
  %v6857 = vpop.permute.xlu0 %6856
  %6859 = vset.pattern.permute.xlu0 7
  %6860 = vperm.xlu0 %6859, %v52
  %v6861 = vpop.permute.xlu0 %6860
  %6863 = vset.pattern.permute.xlu0 7
  %6864 = vperm.xlu0 %6863, %v53
  %v6865 = vpop.permute.xlu0 %6864
  %6867 = vset.pattern.permute.xlu0 7
  %6868 = vperm.xlu0 %6867, %v54
  %v6869 = vpop.permute.xlu0 %6868
  %v6871 = vmul.f32 %v6841, %v1656
  %v6872 = vmul.f32 %v6845, %v1660
  %v6873 = vmul.f32 %v6849, %v1666
  %v6874 = vmul.f32 %v6853, %v1670
  %v6875 = vmul.f32 %v6857, %v1676
  %v6876 = vmul.f32 %v6861, %v1680
  %v6877 = vmul.f32 %v6865, %v1686
  %v6878 = vmul.f32 %v6869, %v1690
  %v6879 = vadd.f32 %v6831, %v6871
  %v6880 = vadd.f32 %v6832, %v6872
  %v6881 = vadd.f32 %v6833, %v6873
  %v6882 = vadd.f32 %v6834, %v6874
  %v6883 = vadd.f32 %v6835, %v6875
  %v6884 = vadd.f32 %v6836, %v6876
  %v6885 = vadd.f32 %v6837, %v6877
  %v6886 = vadd.f32 %v6838, %v6878
  %6887 = vset.pattern.permute.xlu0 8
  %6888 = vperm.xlu0 %6887, %v47
  %v6889 = vpop.permute.xlu0 %6888
  %6891 = vset.pattern.permute.xlu0 8
  %6892 = vperm.xlu0 %6891, %v48
  %v6893 = vpop.permute.xlu0 %6892
  %6895 = vset.pattern.permute.xlu0 8
  %6896 = vperm.xlu0 %6895, %v49
  %v6897 = vpop.permute.xlu0 %6896
  %6899 = vset.pattern.permute.xlu0 8
  %6900 = vperm.xlu0 %6899, %v50
  %v6901 = vpop.permute.xlu0 %6900
  %6903 = vset.pattern.permute.xlu0 8
  %6904 = vperm.xlu0 %6903, %v51
  %v6905 = vpop.permute.xlu0 %6904
  %6907 = vset.pattern.permute.xlu0 8
  %6908 = vperm.xlu0 %6907, %v52
  %v6909 = vpop.permute.xlu0 %6908
  %6911 = vset.pattern.permute.xlu0 8
  %6912 = vperm.xlu0 %6911, %v53
  %v6913 = vpop.permute.xlu0 %6912
  %6915 = vset.pattern.permute.xlu0 8
  %6916 = vperm.xlu0 %6915, %v54
  %v6917 = vpop.permute.xlu0 %6916
  %v6919 = vmul.f32 %v6889, %v2007
  %v6920 = vmul.f32 %v6893, %v2011
  %v6921 = vmul.f32 %v6897, %v2017
  %v6922 = vmul.f32 %v6901, %v2021
  %v6923 = vmul.f32 %v6905, %v2027
  %v6924 = vmul.f32 %v6909, %v2031
  %v6925 = vmul.f32 %v6913, %v2037
  %v6926 = vmul.f32 %v6917, %v2041
  %v6927 = vadd.f32 %v6879, %v6919
  %v6928 = vadd.f32 %v6880, %v6920
  %v6929 = vadd.f32 %v6881, %v6921
  %v6930 = vadd.f32 %v6882, %v6922
  %v6931 = vadd.f32 %v6883, %v6923
  %v6932 = vadd.f32 %v6884, %v6924
  %v6933 = vadd.f32 %v6885, %v6925
  %v6934 = vadd.f32 %v6886, %v6926
  %6935 = vset.pattern.permute.xlu0 9
  %6936 = vperm.xlu0 %6935, %v47
  %v6937 = vpop.permute.xlu0 %6936
  %6939 = vset.pattern.permute.xlu0 9
  %6940 = vperm.xlu0 %6939, %v48
  %v6941 = vpop.permute.xlu0 %6940
  %6943 = vset.pattern.permute.xlu0 9
  %6944 = vperm.xlu0 %6943, %v49
  %v6945 = vpop.permute.xlu0 %6944
  %6947 = vset.pattern.permute.xlu0 9
  %6948 = vperm.xlu0 %6947, %v50
  %v6949 = vpop.permute.xlu0 %6948
  %6951 = vset.pattern.permute.xlu0 9
  %6952 = vperm.xlu0 %6951, %v51
  %v6953 = vpop.permute.xlu0 %6952
  %6955 = vset.pattern.permute.xlu0 9
  %6956 = vperm.xlu0 %6955, %v52
  %v6957 = vpop.permute.xlu0 %6956
  %6959 = vset.pattern.permute.xlu0 9
  %6960 = vperm.xlu0 %6959, %v53
  %v6961 = vpop.permute.xlu0 %6960
  %6963 = vset.pattern.permute.xlu0 9
  %6964 = vperm.xlu0 %6963, %v54
  %v6965 = vpop.permute.xlu0 %6964
  %v6967 = vmul.f32 %v6937, %v2009
  %v6968 = vmul.f32 %v6941, %v2013
  %v6969 = vmul.f32 %v6945, %v2019
  %v6970 = vmul.f32 %v6949, %v2023
  %v6971 = vmul.f32 %v6953, %v2029
  %v6972 = vmul.f32 %v6957, %v2033
  %v6973 = vmul.f32 %v6961, %v2039
  %v6974 = vmul.f32 %v6965, %v2043
  %v6975 = vadd.f32 %v6927, %v6967
  %v6976 = vadd.f32 %v6928, %v6968
  %v6977 = vadd.f32 %v6929, %v6969
  %v6978 = vadd.f32 %v6930, %v6970
  %v6979 = vadd.f32 %v6931, %v6971
  %v6980 = vadd.f32 %v6932, %v6972
  %v6981 = vadd.f32 %v6933, %v6973
  %v6982 = vadd.f32 %v6934, %v6974
  %6983 = vset.pattern.permute.xlu0 10
  %6984 = vperm.xlu0 %6983, %v47
  %v6985 = vpop.permute.xlu0 %6984
  %6987 = vset.pattern.permute.xlu0 10
  %6988 = vperm.xlu0 %6987, %v48
  %v6989 = vpop.permute.xlu0 %6988
  %6991 = vset.pattern.permute.xlu0 10
  %6992 = vperm.xlu0 %6991, %v49
  %v6993 = vpop.permute.xlu0 %6992
  %6995 = vset.pattern.permute.xlu0 10
  %6996 = vperm.xlu0 %6995, %v50
  %v6997 = vpop.permute.xlu0 %6996
  %6999 = vset.pattern.permute.xlu0 10
  %7000 = vperm.xlu0 %6999, %v51
  %v7001 = vpop.permute.xlu0 %7000
  %7003 = vset.pattern.permute.xlu0 10
  %7004 = vperm.xlu0 %7003, %v52
  %v7005 = vpop.permute.xlu0 %7004
  %7007 = vset.pattern.permute.xlu0 10
  %7008 = vperm.xlu0 %7007, %v53
  %v7009 = vpop.permute.xlu0 %7008
  %7011 = vset.pattern.permute.xlu0 10
  %7012 = vperm.xlu0 %7011, %v54
  %v7013 = vpop.permute.xlu0 %7012
  %v7015 = vmul.f32 %v6985, %v2360
  %v7016 = vmul.f32 %v6989, %v2364
  %v7017 = vmul.f32 %v6993, %v2370
  %v7018 = vmul.f32 %v6997, %v2374
  %v7019 = vmul.f32 %v7001, %v2380
  %v7020 = vmul.f32 %v7005, %v2384
  %v7021 = vmul.f32 %v7009, %v2390
  %v7022 = vmul.f32 %v7013, %v2394
  %v7023 = vadd.f32 %v6975, %v7015
  %v7024 = vadd.f32 %v6976, %v7016
  %v7025 = vadd.f32 %v6977, %v7017
  %v7026 = vadd.f32 %v6978, %v7018
  %v7027 = vadd.f32 %v6979, %v7019
  %v7028 = vadd.f32 %v6980, %v7020
  %v7029 = vadd.f32 %v6981, %v7021
  %v7030 = vadd.f32 %v6982, %v7022
  %7031 = vset.pattern.permute.xlu0 11
  %7032 = vperm.xlu0 %7031, %v47
  %v7033 = vpop.permute.xlu0 %7032
  %7035 = vset.pattern.permute.xlu0 11
  %7036 = vperm.xlu0 %7035, %v48
  %v7037 = vpop.permute.xlu0 %7036
  %7039 = vset.pattern.permute.xlu0 11
  %7040 = vperm.xlu0 %7039, %v49
  %v7041 = vpop.permute.xlu0 %7040
  %7043 = vset.pattern.permute.xlu0 11
  %7044 = vperm.xlu0 %7043, %v50
  %v7045 = vpop.permute.xlu0 %7044
  %7047 = vset.pattern.permute.xlu0 11
  %7048 = vperm.xlu0 %7047, %v51
  %v7049 = vpop.permute.xlu0 %7048
  %7051 = vset.pattern.permute.xlu0 11
  %7052 = vperm.xlu0 %7051, %v52
  %v7053 = vpop.permute.xlu0 %7052
  %7055 = vset.pattern.permute.xlu0 11
  %7056 = vperm.xlu0 %7055, %v53
  %v7057 = vpop.permute.xlu0 %7056
  %7059 = vset.pattern.permute.xlu0 11
  %7060 = vperm.xlu0 %7059, %v54
  %v7061 = vpop.permute.xlu0 %7060
  %v7063 = vmul.f32 %v7033, %v2362
  %v7064 = vmul.f32 %v7037, %v2366
  %v7065 = vmul.f32 %v7041, %v2372
  %v7066 = vmul.f32 %v7045, %v2376
  %v7067 = vmul.f32 %v7049, %v2382
  %v7068 = vmul.f32 %v7053, %v2386
  %v7069 = vmul.f32 %v7057, %v2392
  %v7070 = vmul.f32 %v7061, %v2396
  %v7071 = vadd.f32 %v7023, %v7063
  %v7072 = vadd.f32 %v7024, %v7064
  %v7073 = vadd.f32 %v7025, %v7065
  %v7074 = vadd.f32 %v7026, %v7066
  %v7075 = vadd.f32 %v7027, %v7067
  %v7076 = vadd.f32 %v7028, %v7068
  %v7077 = vadd.f32 %v7029, %v7069
  %v7078 = vadd.f32 %v7030, %v7070
  %7079 = vset.pattern.permute.xlu0 12
  %7080 = vperm.xlu0 %7079, %v47
  %v7081 = vpop.permute.xlu0 %7080
  %7083 = vset.pattern.permute.xlu0 12
  %7084 = vperm.xlu0 %7083, %v48
  %v7085 = vpop.permute.xlu0 %7084
  %7087 = vset.pattern.permute.xlu0 12
  %7088 = vperm.xlu0 %7087, %v49
  %v7089 = vpop.permute.xlu0 %7088
  %7091 = vset.pattern.permute.xlu0 12
  %7092 = vperm.xlu0 %7091, %v50
  %v7093 = vpop.permute.xlu0 %7092
  %7095 = vset.pattern.permute.xlu0 12
  %7096 = vperm.xlu0 %7095, %v51
  %v7097 = vpop.permute.xlu0 %7096
  %7099 = vset.pattern.permute.xlu0 12
  %7100 = vperm.xlu0 %7099, %v52
  %v7101 = vpop.permute.xlu0 %7100
  %7103 = vset.pattern.permute.xlu0 12
  %7104 = vperm.xlu0 %7103, %v53
  %v7105 = vpop.permute.xlu0 %7104
  %7107 = vset.pattern.permute.xlu0 12
  %7108 = vperm.xlu0 %7107, %v54
  %v7109 = vpop.permute.xlu0 %7108
  %v7111 = vmul.f32 %v7081, %v2713
  %v7112 = vmul.f32 %v7085, %v2717
  %v7113 = vmul.f32 %v7089, %v2723
  %v7114 = vmul.f32 %v7093, %v2727
  %v7115 = vmul.f32 %v7097, %v2733
  %v7116 = vmul.f32 %v7101, %v2737
  %v7117 = vmul.f32 %v7105, %v2743
  %v7118 = vmul.f32 %v7109, %v2747
  %v7119 = vadd.f32 %v7071, %v7111
  %v7120 = vadd.f32 %v7072, %v7112
  %v7121 = vadd.f32 %v7073, %v7113
  %v7122 = vadd.f32 %v7074, %v7114
  %v7123 = vadd.f32 %v7075, %v7115
  %v7124 = vadd.f32 %v7076, %v7116
  %v7125 = vadd.f32 %v7077, %v7117
  %v7126 = vadd.f32 %v7078, %v7118
  %7127 = vset.pattern.permute.xlu0 13
  %7128 = vperm.xlu0 %7127, %v47
  %v7129 = vpop.permute.xlu0 %7128
  %7131 = vset.pattern.permute.xlu0 13
  %7132 = vperm.xlu0 %7131, %v48
  %v7133 = vpop.permute.xlu0 %7132
  %7135 = vset.pattern.permute.xlu0 13
  %7136 = vperm.xlu0 %7135, %v49
  %v7137 = vpop.permute.xlu0 %7136
  %7139 = vset.pattern.permute.xlu0 13
  %7140 = vperm.xlu0 %7139, %v50
  %v7141 = vpop.permute.xlu0 %7140
  %7143 = vset.pattern.permute.xlu0 13
  %7144 = vperm.xlu0 %7143, %v51
  %v7145 = vpop.permute.xlu0 %7144
  %7147 = vset.pattern.permute.xlu0 13
  %7148 = vperm.xlu0 %7147, %v52
  %v7149 = vpop.permute.xlu0 %7148
  %7151 = vset.pattern.permute.xlu0 13
  %7152 = vperm.xlu0 %7151, %v53
  %v7153 = vpop.permute.xlu0 %7152
  %7155 = vset.pattern.permute.xlu0 13
  %7156 = vperm.xlu0 %7155, %v54
  %v7157 = vpop.permute.xlu0 %7156
  %v7159 = vmul.f32 %v7129, %v2715
  %v7160 = vmul.f32 %v7133, %v2719
  %v7161 = vmul.f32 %v7137, %v2725
  %v7162 = vmul.f32 %v7141, %v2729
  %v7163 = vmul.f32 %v7145, %v2735
  %v7164 = vmul.f32 %v7149, %v2739
  %v7165 = vmul.f32 %v7153, %v2745
  %v7166 = vmul.f32 %v7157, %v2749
  %v7167 = vadd.f32 %v7119, %v7159
  %v7168 = vadd.f32 %v7120, %v7160
  %v7169 = vadd.f32 %v7121, %v7161
  %v7170 = vadd.f32 %v7122, %v7162
  %v7171 = vadd.f32 %v7123, %v7163
  %v7172 = vadd.f32 %v7124, %v7164
  %v7173 = vadd.f32 %v7125, %v7165
  %v7174 = vadd.f32 %v7126, %v7166
  %7175 = vset.pattern.permute.xlu0 14
  %7176 = vperm.xlu0 %7175, %v47
  %v7177 = vpop.permute.xlu0 %7176
  %7179 = vset.pattern.permute.xlu0 14
  %7180 = vperm.xlu0 %7179, %v48
  %v7181 = vpop.permute.xlu0 %7180
  %7183 = vset.pattern.permute.xlu0 14
  %7184 = vperm.xlu0 %7183, %v49
  %v7185 = vpop.permute.xlu0 %7184
  %7187 = vset.pattern.permute.xlu0 14
  %7188 = vperm.xlu0 %7187, %v50
  %v7189 = vpop.permute.xlu0 %7188
  %7191 = vset.pattern.permute.xlu0 14
  %7192 = vperm.xlu0 %7191, %v51
  %v7193 = vpop.permute.xlu0 %7192
  %7195 = vset.pattern.permute.xlu0 14
  %7196 = vperm.xlu0 %7195, %v52
  %v7197 = vpop.permute.xlu0 %7196
  %7199 = vset.pattern.permute.xlu0 14
  %7200 = vperm.xlu0 %7199, %v53
  %v7201 = vpop.permute.xlu0 %7200
  %7203 = vset.pattern.permute.xlu0 14
  %7204 = vperm.xlu0 %7203, %v54
  %v7205 = vpop.permute.xlu0 %7204
  %v7207 = vmul.f32 %v7177, %v3066
  %v7208 = vmul.f32 %v7181, %v3070
  %v7209 = vmul.f32 %v7185, %v3076
  %v7210 = vmul.f32 %v7189, %v3080
  %v7211 = vmul.f32 %v7193, %v3086
  %v7212 = vmul.f32 %v7197, %v3090
  %v7213 = vmul.f32 %v7201, %v3096
  %v7214 = vmul.f32 %v7205, %v3100
  %v7215 = vadd.f32 %v7167, %v7207
  %v7216 = vadd.f32 %v7168, %v7208
  %v7217 = vadd.f32 %v7169, %v7209
  %v7218 = vadd.f32 %v7170, %v7210
  %v7219 = vadd.f32 %v7171, %v7211
  %v7220 = vadd.f32 %v7172, %v7212
  %v7221 = vadd.f32 %v7173, %v7213
  %v7222 = vadd.f32 %v7174, %v7214
  %7223 = vset.pattern.permute.xlu0 15
  %7224 = vperm.xlu0 %7223, %v47
  %v7225 = vpop.permute.xlu0 %7224
  %7227 = vset.pattern.permute.xlu0 15
  %7228 = vperm.xlu0 %7227, %v48
  %v7229 = vpop.permute.xlu0 %7228
  %7231 = vset.pattern.permute.xlu0 15
  %7232 = vperm.xlu0 %7231, %v49
  %v7233 = vpop.permute.xlu0 %7232
  %7235 = vset.pattern.permute.xlu0 15
  %7236 = vperm.xlu0 %7235, %v50
  %v7237 = vpop.permute.xlu0 %7236
  %7239 = vset.pattern.permute.xlu0 15
  %7240 = vperm.xlu0 %7239, %v51
  %v7241 = vpop.permute.xlu0 %7240
  %7243 = vset.pattern.permute.xlu0 15
  %7244 = vperm.xlu0 %7243, %v52
  %v7245 = vpop.permute.xlu0 %7244
  %7247 = vset.pattern.permute.xlu0 15
  %7248 = vperm.xlu0 %7247, %v53
  %v7249 = vpop.permute.xlu0 %7248
  %7251 = vset.pattern.permute.xlu0 15
  %7252 = vperm.xlu0 %7251, %v54
  %v7253 = vpop.permute.xlu0 %7252
  %v7255 = vmul.f32 %v7225, %v3068
  %v7256 = vmul.f32 %v7229, %v3072
  %v7257 = vmul.f32 %v7233, %v3078
  %v7258 = vmul.f32 %v7237, %v3082
  %v7259 = vmul.f32 %v7241, %v3088
  %v7260 = vmul.f32 %v7245, %v3092
  %v7261 = vmul.f32 %v7249, %v3098
  %v7262 = vmul.f32 %v7253, %v3102
  %v7263 = vadd.f32 %v7215, %v7255
  %v7264 = vadd.f32 %v7216, %v7256
  %v7265 = vadd.f32 %v7217, %v7257
  %v7266 = vadd.f32 %v7218, %v7258
  %v7267 = vadd.f32 %v7219, %v7259
  %v7268 = vadd.f32 %v7220, %v7260
  %v7269 = vadd.f32 %v7221, %v7261
  %v7270 = vadd.f32 %v7222, %v7262
  %v7271 = vpack.c.bf16 %v7264, %v7263
  %v7272 = vpack.c.bf16 %v7266, %v7265
  %v7273 = vpack.c.bf16 %v7268, %v7267
  %v7274 = vpack.c.bf16 %v7270, %v7269
  %v7279 = vunpack.c.l.b16 %v7271
  %v7280 = vunpack.c.h.b16 %v7271
  %v7281 = vunpack.c.l.b16 %v7272
  %v7282 = vunpack.c.h.b16 %v7272
  %v7283 = vunpack.c.l.b16 %v7273
  %v7284 = vunpack.c.h.b16 %v7273
  %v7285 = vunpack.c.l.b16 %v7274
  %v7286 = vunpack.c.h.b16 %v7274
  %v7287 = vpack.c.b16 %v7279, %v7279
  %v7288 = vpack.c.b16 %v7280, %v7280
  %v7289 = vpack.c.b16 %v7281, %v7281
  %v7290 = vpack.c.b16 %v7282, %v7282
  %v7291 = vpack.c.b16 %v7283, %v7283
  %v7292 = vpack.c.b16 %v7284, %v7284
  %v7293 = vpack.c.b16 %v7285, %v7285
  %v7294 = vpack.c.b16 %v7286, %v7286
  %7303 = vst [vmem:[%s3 + $0x80] sm:$0xf] %v7287
  %7304 = vst [vmem:[%s3 + $0x84] sm:$0xf] %v7288
  %7305 = vst [vmem:[%s3 + $0x88] sm:$0xf] %v7289
  %7306 = vst [vmem:[%s3 + $0x8c] sm:$0xf] %v7290
  %7307 = vst [vmem:[%s3 + $0x90] sm:$0xf] %v7291
  %7308 = vst [vmem:[%s3 + $0x94] sm:$0xf] %v7292
  %7309 = vst [vmem:[%s3 + $0x98] sm:$0xf] %v7293
  %7310 = vst [vmem:[%s3 + $0x9c] sm:$0xf] %v7294
  %7312 = vset.pattern.permute.xlu0 0
  %7313 = vperm.xlu0 %7312, %v55
  %v7314 = vpop.permute.xlu0 %7313
  %7317 = vset.pattern.permute.xlu0 0
  %7318 = vperm.xlu0 %7317, %v56
  %v7319 = vpop.permute.xlu0 %7318
  %7322 = vset.pattern.permute.xlu0 0
  %7323 = vperm.xlu0 %7322, %v57
  %v7324 = vpop.permute.xlu0 %7323
  %7327 = vset.pattern.permute.xlu0 0
  %7328 = vperm.xlu0 %7327, %v58
  %v7329 = vpop.permute.xlu0 %7328
  %7332 = vset.pattern.permute.xlu0 0
  %7333 = vperm.xlu0 %7332, %v59
  %v7334 = vpop.permute.xlu0 %7333
  %7337 = vset.pattern.permute.xlu0 0
  %7338 = vperm.xlu0 %7337, %v60
  %v7339 = vpop.permute.xlu0 %7338
  %7342 = vset.pattern.permute.xlu0 0
  %7343 = vperm.xlu0 %7342, %v61
  %v7344 = vpop.permute.xlu0 %7343
  %7347 = vset.pattern.permute.xlu0 0
  %7348 = vperm.xlu0 %7347, %v62
  %v7349 = vpop.permute.xlu0 %7348
  %v7351 = vmul.f32 %v7314, %v635
  %v7352 = vmul.f32 %v7319, %v639
  %v7353 = vmul.f32 %v7324, %v645
  %v7354 = vmul.f32 %v7329, %v649
  %v7355 = vmul.f32 %v7334, %v655
  %v7356 = vmul.f32 %v7339, %v659
  %v7357 = vmul.f32 %v7344, %v665
  %v7358 = vmul.f32 %v7349, %v669
  %v7359 = vadd.f32 %v3229, %v7351
  %v7360 = vadd.f32 %v3229, %v7352
  %v7361 = vadd.f32 %v3229, %v7353
  %v7362 = vadd.f32 %v3229, %v7354
  %v7363 = vadd.f32 %v3229, %v7355
  %v7364 = vadd.f32 %v3229, %v7356
  %v7365 = vadd.f32 %v3229, %v7357
  %v7366 = vadd.f32 %v3229, %v7358
  %7367 = vset.pattern.permute.xlu0 1
  %7368 = vperm.xlu0 %7367, %v55
  %v7369 = vpop.permute.xlu0 %7368
  %7371 = vset.pattern.permute.xlu0 1
  %7372 = vperm.xlu0 %7371, %v56
  %v7373 = vpop.permute.xlu0 %7372
  %7375 = vset.pattern.permute.xlu0 1
  %7376 = vperm.xlu0 %7375, %v57
  %v7377 = vpop.permute.xlu0 %7376
  %7379 = vset.pattern.permute.xlu0 1
  %7380 = vperm.xlu0 %7379, %v58
  %v7381 = vpop.permute.xlu0 %7380
  %7383 = vset.pattern.permute.xlu0 1
  %7384 = vperm.xlu0 %7383, %v59
  %v7385 = vpop.permute.xlu0 %7384
  %7387 = vset.pattern.permute.xlu0 1
  %7388 = vperm.xlu0 %7387, %v60
  %v7389 = vpop.permute.xlu0 %7388
  %7391 = vset.pattern.permute.xlu0 1
  %7392 = vperm.xlu0 %7391, %v61
  %v7393 = vpop.permute.xlu0 %7392
  %7395 = vset.pattern.permute.xlu0 1
  %7396 = vperm.xlu0 %7395, %v62
  %v7397 = vpop.permute.xlu0 %7396
  %v7399 = vmul.f32 %v7369, %v637
  %v7400 = vmul.f32 %v7373, %v641
  %v7401 = vmul.f32 %v7377, %v647
  %v7402 = vmul.f32 %v7381, %v651
  %v7403 = vmul.f32 %v7385, %v657
  %v7404 = vmul.f32 %v7389, %v661
  %v7405 = vmul.f32 %v7393, %v667
  %v7406 = vmul.f32 %v7397, %v671
  %v7407 = vadd.f32 %v7359, %v7399
  %v7408 = vadd.f32 %v7360, %v7400
  %v7409 = vadd.f32 %v7361, %v7401
  %v7410 = vadd.f32 %v7362, %v7402
  %v7411 = vadd.f32 %v7363, %v7403
  %v7412 = vadd.f32 %v7364, %v7404
  %v7413 = vadd.f32 %v7365, %v7405
  %v7414 = vadd.f32 %v7366, %v7406
  %7415 = vset.pattern.permute.xlu0 2
  %7416 = vperm.xlu0 %7415, %v55
  %v7417 = vpop.permute.xlu0 %7416
  %7419 = vset.pattern.permute.xlu0 2
  %7420 = vperm.xlu0 %7419, %v56
  %v7421 = vpop.permute.xlu0 %7420
  %7423 = vset.pattern.permute.xlu0 2
  %7424 = vperm.xlu0 %7423, %v57
  %v7425 = vpop.permute.xlu0 %7424
  %7427 = vset.pattern.permute.xlu0 2
  %7428 = vperm.xlu0 %7427, %v58
  %v7429 = vpop.permute.xlu0 %7428
  %7431 = vset.pattern.permute.xlu0 2
  %7432 = vperm.xlu0 %7431, %v59
  %v7433 = vpop.permute.xlu0 %7432
  %7435 = vset.pattern.permute.xlu0 2
  %7436 = vperm.xlu0 %7435, %v60
  %v7437 = vpop.permute.xlu0 %7436
  %7439 = vset.pattern.permute.xlu0 2
  %7440 = vperm.xlu0 %7439, %v61
  %v7441 = vpop.permute.xlu0 %7440
  %7443 = vset.pattern.permute.xlu0 2
  %7444 = vperm.xlu0 %7443, %v62
  %v7445 = vpop.permute.xlu0 %7444
  %v7447 = vmul.f32 %v7417, %v988
  %v7448 = vmul.f32 %v7421, %v992
  %v7449 = vmul.f32 %v7425, %v998
  %v7450 = vmul.f32 %v7429, %v1002
  %v7451 = vmul.f32 %v7433, %v1008
  %v7452 = vmul.f32 %v7437, %v1012
  %v7453 = vmul.f32 %v7441, %v1018
  %v7454 = vmul.f32 %v7445, %v1022
  %v7455 = vadd.f32 %v7407, %v7447
  %v7456 = vadd.f32 %v7408, %v7448
  %v7457 = vadd.f32 %v7409, %v7449
  %v7458 = vadd.f32 %v7410, %v7450
  %v7459 = vadd.f32 %v7411, %v7451
  %v7460 = vadd.f32 %v7412, %v7452
  %v7461 = vadd.f32 %v7413, %v7453
  %v7462 = vadd.f32 %v7414, %v7454
  %7463 = vset.pattern.permute.xlu0 3
  %7464 = vperm.xlu0 %7463, %v55
  %v7465 = vpop.permute.xlu0 %7464
  %7467 = vset.pattern.permute.xlu0 3
  %7468 = vperm.xlu0 %7467, %v56
  %v7469 = vpop.permute.xlu0 %7468
  %7471 = vset.pattern.permute.xlu0 3
  %7472 = vperm.xlu0 %7471, %v57
  %v7473 = vpop.permute.xlu0 %7472
  %7475 = vset.pattern.permute.xlu0 3
  %7476 = vperm.xlu0 %7475, %v58
  %v7477 = vpop.permute.xlu0 %7476
  %7479 = vset.pattern.permute.xlu0 3
  %7480 = vperm.xlu0 %7479, %v59
  %v7481 = vpop.permute.xlu0 %7480
  %7483 = vset.pattern.permute.xlu0 3
  %7484 = vperm.xlu0 %7483, %v60
  %v7485 = vpop.permute.xlu0 %7484
  %7487 = vset.pattern.permute.xlu0 3
  %7488 = vperm.xlu0 %7487, %v61
  %v7489 = vpop.permute.xlu0 %7488
  %7491 = vset.pattern.permute.xlu0 3
  %7492 = vperm.xlu0 %7491, %v62
  %v7493 = vpop.permute.xlu0 %7492
  %v7495 = vmul.f32 %v7465, %v990
  %v7496 = vmul.f32 %v7469, %v994
  %v7497 = vmul.f32 %v7473, %v1000
  %v7498 = vmul.f32 %v7477, %v1004
  %v7499 = vmul.f32 %v7481, %v1010
  %v7500 = vmul.f32 %v7485, %v1014
  %v7501 = vmul.f32 %v7489, %v1020
  %v7502 = vmul.f32 %v7493, %v1024
  %v7503 = vadd.f32 %v7455, %v7495
  %v7504 = vadd.f32 %v7456, %v7496
  %v7505 = vadd.f32 %v7457, %v7497
  %v7506 = vadd.f32 %v7458, %v7498
  %v7507 = vadd.f32 %v7459, %v7499
  %v7508 = vadd.f32 %v7460, %v7500
  %v7509 = vadd.f32 %v7461, %v7501
  %v7510 = vadd.f32 %v7462, %v7502
  %7511 = vset.pattern.permute.xlu0 4
  %7512 = vperm.xlu0 %7511, %v55
  %v7513 = vpop.permute.xlu0 %7512
  %7515 = vset.pattern.permute.xlu0 4
  %7516 = vperm.xlu0 %7515, %v56
  %v7517 = vpop.permute.xlu0 %7516
  %7519 = vset.pattern.permute.xlu0 4
  %7520 = vperm.xlu0 %7519, %v57
  %v7521 = vpop.permute.xlu0 %7520
  %7523 = vset.pattern.permute.xlu0 4
  %7524 = vperm.xlu0 %7523, %v58
  %v7525 = vpop.permute.xlu0 %7524
  %7527 = vset.pattern.permute.xlu0 4
  %7528 = vperm.xlu0 %7527, %v59
  %v7529 = vpop.permute.xlu0 %7528
  %7531 = vset.pattern.permute.xlu0 4
  %7532 = vperm.xlu0 %7531, %v60
  %v7533 = vpop.permute.xlu0 %7532
  %7535 = vset.pattern.permute.xlu0 4
  %7536 = vperm.xlu0 %7535, %v61
  %v7537 = vpop.permute.xlu0 %7536
  %7539 = vset.pattern.permute.xlu0 4
  %7540 = vperm.xlu0 %7539, %v62
  %v7541 = vpop.permute.xlu0 %7540
  %v7543 = vmul.f32 %v7513, %v1341
  %v7544 = vmul.f32 %v7517, %v1345
  %v7545 = vmul.f32 %v7521, %v1351
  %v7546 = vmul.f32 %v7525, %v1355
  %v7547 = vmul.f32 %v7529, %v1361
  %v7548 = vmul.f32 %v7533, %v1365
  %v7549 = vmul.f32 %v7537, %v1371
  %v7550 = vmul.f32 %v7541, %v1375
  %v7551 = vadd.f32 %v7503, %v7543
  %v7552 = vadd.f32 %v7504, %v7544
  %v7553 = vadd.f32 %v7505, %v7545
  %v7554 = vadd.f32 %v7506, %v7546
  %v7555 = vadd.f32 %v7507, %v7547
  %v7556 = vadd.f32 %v7508, %v7548
  %v7557 = vadd.f32 %v7509, %v7549
  %v7558 = vadd.f32 %v7510, %v7550
  %7559 = vset.pattern.permute.xlu0 5
  %7560 = vperm.xlu0 %7559, %v55
  %v7561 = vpop.permute.xlu0 %7560
  %7563 = vset.pattern.permute.xlu0 5
  %7564 = vperm.xlu0 %7563, %v56
  %v7565 = vpop.permute.xlu0 %7564
  %7567 = vset.pattern.permute.xlu0 5
  %7568 = vperm.xlu0 %7567, %v57
  %v7569 = vpop.permute.xlu0 %7568
  %7571 = vset.pattern.permute.xlu0 5
  %7572 = vperm.xlu0 %7571, %v58
  %v7573 = vpop.permute.xlu0 %7572
  %7575 = vset.pattern.permute.xlu0 5
  %7576 = vperm.xlu0 %7575, %v59
  %v7577 = vpop.permute.xlu0 %7576
  %7579 = vset.pattern.permute.xlu0 5
  %7580 = vperm.xlu0 %7579, %v60
  %v7581 = vpop.permute.xlu0 %7580
  %7583 = vset.pattern.permute.xlu0 5
  %7584 = vperm.xlu0 %7583, %v61
  %v7585 = vpop.permute.xlu0 %7584
  %7587 = vset.pattern.permute.xlu0 5
  %7588 = vperm.xlu0 %7587, %v62
  %v7589 = vpop.permute.xlu0 %7588
  %v7591 = vmul.f32 %v7561, %v1343
  %v7592 = vmul.f32 %v7565, %v1347
  %v7593 = vmul.f32 %v7569, %v1353
  %v7594 = vmul.f32 %v7573, %v1357
  %v7595 = vmul.f32 %v7577, %v1363
  %v7596 = vmul.f32 %v7581, %v1367
  %v7597 = vmul.f32 %v7585, %v1373
  %v7598 = vmul.f32 %v7589, %v1377
  %v7599 = vadd.f32 %v7551, %v7591
  %v7600 = vadd.f32 %v7552, %v7592
  %v7601 = vadd.f32 %v7553, %v7593
  %v7602 = vadd.f32 %v7554, %v7594
  %v7603 = vadd.f32 %v7555, %v7595
  %v7604 = vadd.f32 %v7556, %v7596
  %v7605 = vadd.f32 %v7557, %v7597
  %v7606 = vadd.f32 %v7558, %v7598
  %7607 = vset.pattern.permute.xlu0 6
  %7608 = vperm.xlu0 %7607, %v55
  %v7609 = vpop.permute.xlu0 %7608
  %7611 = vset.pattern.permute.xlu0 6
  %7612 = vperm.xlu0 %7611, %v56
  %v7613 = vpop.permute.xlu0 %7612
  %7615 = vset.pattern.permute.xlu0 6
  %7616 = vperm.xlu0 %7615, %v57
  %v7617 = vpop.permute.xlu0 %7616
  %7619 = vset.pattern.permute.xlu0 6
  %7620 = vperm.xlu0 %7619, %v58
  %v7621 = vpop.permute.xlu0 %7620
  %7623 = vset.pattern.permute.xlu0 6
  %7624 = vperm.xlu0 %7623, %v59
  %v7625 = vpop.permute.xlu0 %7624
  %7627 = vset.pattern.permute.xlu0 6
  %7628 = vperm.xlu0 %7627, %v60
  %v7629 = vpop.permute.xlu0 %7628
  %7631 = vset.pattern.permute.xlu0 6
  %7632 = vperm.xlu0 %7631, %v61
  %v7633 = vpop.permute.xlu0 %7632
  %7635 = vset.pattern.permute.xlu0 6
  %7636 = vperm.xlu0 %7635, %v62
  %v7637 = vpop.permute.xlu0 %7636
  %v7639 = vmul.f32 %v7609, %v1694
  %v7640 = vmul.f32 %v7613, %v1698
  %v7641 = vmul.f32 %v7617, %v1704
  %v7642 = vmul.f32 %v7621, %v1708
  %v7643 = vmul.f32 %v7625, %v1714
  %v7644 = vmul.f32 %v7629, %v1718
  %v7645 = vmul.f32 %v7633, %v1724
  %v7646 = vmul.f32 %v7637, %v1728
  %v7647 = vadd.f32 %v7599, %v7639
  %v7648 = vadd.f32 %v7600, %v7640
  %v7649 = vadd.f32 %v7601, %v7641
  %v7650 = vadd.f32 %v7602, %v7642
  %v7651 = vadd.f32 %v7603, %v7643
  %v7652 = vadd.f32 %v7604, %v7644
  %v7653 = vadd.f32 %v7605, %v7645
  %v7654 = vadd.f32 %v7606, %v7646
  %7655 = vset.pattern.permute.xlu0 7
  %7656 = vperm.xlu0 %7655, %v55
  %v7657 = vpop.permute.xlu0 %7656
  %7659 = vset.pattern.permute.xlu0 7
  %7660 = vperm.xlu0 %7659, %v56
  %v7661 = vpop.permute.xlu0 %7660
  %7663 = vset.pattern.permute.xlu0 7
  %7664 = vperm.xlu0 %7663, %v57
  %v7665 = vpop.permute.xlu0 %7664
  %7667 = vset.pattern.permute.xlu0 7
  %7668 = vperm.xlu0 %7667, %v58
  %v7669 = vpop.permute.xlu0 %7668
  %7671 = vset.pattern.permute.xlu0 7
  %7672 = vperm.xlu0 %7671, %v59
  %v7673 = vpop.permute.xlu0 %7672
  %7675 = vset.pattern.permute.xlu0 7
  %7676 = vperm.xlu0 %7675, %v60
  %v7677 = vpop.permute.xlu0 %7676
  %7679 = vset.pattern.permute.xlu0 7
  %7680 = vperm.xlu0 %7679, %v61
  %v7681 = vpop.permute.xlu0 %7680
  %7683 = vset.pattern.permute.xlu0 7
  %7684 = vperm.xlu0 %7683, %v62
  %v7685 = vpop.permute.xlu0 %7684
  %v7687 = vmul.f32 %v7657, %v1696
  %v7688 = vmul.f32 %v7661, %v1700
  %v7689 = vmul.f32 %v7665, %v1706
  %v7690 = vmul.f32 %v7669, %v1710
  %v7691 = vmul.f32 %v7673, %v1716
  %v7692 = vmul.f32 %v7677, %v1720
  %v7693 = vmul.f32 %v7681, %v1726
  %v7694 = vmul.f32 %v7685, %v1730
  %v7695 = vadd.f32 %v7647, %v7687
  %v7696 = vadd.f32 %v7648, %v7688
  %v7697 = vadd.f32 %v7649, %v7689
  %v7698 = vadd.f32 %v7650, %v7690
  %v7699 = vadd.f32 %v7651, %v7691
  %v7700 = vadd.f32 %v7652, %v7692
  %v7701 = vadd.f32 %v7653, %v7693
  %v7702 = vadd.f32 %v7654, %v7694
  %7703 = vset.pattern.permute.xlu0 8
  %7704 = vperm.xlu0 %7703, %v55
  %v7705 = vpop.permute.xlu0 %7704
  %7707 = vset.pattern.permute.xlu0 8
  %7708 = vperm.xlu0 %7707, %v56
  %v7709 = vpop.permute.xlu0 %7708
  %7711 = vset.pattern.permute.xlu0 8
  %7712 = vperm.xlu0 %7711, %v57
  %v7713 = vpop.permute.xlu0 %7712
  %7715 = vset.pattern.permute.xlu0 8
  %7716 = vperm.xlu0 %7715, %v58
  %v7717 = vpop.permute.xlu0 %7716
  %7719 = vset.pattern.permute.xlu0 8
  %7720 = vperm.xlu0 %7719, %v59
  %v7721 = vpop.permute.xlu0 %7720
  %7723 = vset.pattern.permute.xlu0 8
  %7724 = vperm.xlu0 %7723, %v60
  %v7725 = vpop.permute.xlu0 %7724
  %7727 = vset.pattern.permute.xlu0 8
  %7728 = vperm.xlu0 %7727, %v61
  %v7729 = vpop.permute.xlu0 %7728
  %7731 = vset.pattern.permute.xlu0 8
  %7732 = vperm.xlu0 %7731, %v62
  %v7733 = vpop.permute.xlu0 %7732
  %v7735 = vmul.f32 %v7705, %v2047
  %v7736 = vmul.f32 %v7709, %v2051
  %v7737 = vmul.f32 %v7713, %v2057
  %v7738 = vmul.f32 %v7717, %v2061
  %v7739 = vmul.f32 %v7721, %v2067
  %v7740 = vmul.f32 %v7725, %v2071
  %v7741 = vmul.f32 %v7729, %v2077
  %v7742 = vmul.f32 %v7733, %v2081
  %v7743 = vadd.f32 %v7695, %v7735
  %v7744 = vadd.f32 %v7696, %v7736
  %v7745 = vadd.f32 %v7697, %v7737
  %v7746 = vadd.f32 %v7698, %v7738
  %v7747 = vadd.f32 %v7699, %v7739
  %v7748 = vadd.f32 %v7700, %v7740
  %v7749 = vadd.f32 %v7701, %v7741
  %v7750 = vadd.f32 %v7702, %v7742
  %7751 = vset.pattern.permute.xlu0 9
  %7752 = vperm.xlu0 %7751, %v55
  %v7753 = vpop.permute.xlu0 %7752
  %7755 = vset.pattern.permute.xlu0 9
  %7756 = vperm.xlu0 %7755, %v56
  %v7757 = vpop.permute.xlu0 %7756
  %7759 = vset.pattern.permute.xlu0 9
  %7760 = vperm.xlu0 %7759, %v57
  %v7761 = vpop.permute.xlu0 %7760
  %7763 = vset.pattern.permute.xlu0 9
  %7764 = vperm.xlu0 %7763, %v58
  %v7765 = vpop.permute.xlu0 %7764
  %7767 = vset.pattern.permute.xlu0 9
  %7768 = vperm.xlu0 %7767, %v59
  %v7769 = vpop.permute.xlu0 %7768
  %7771 = vset.pattern.permute.xlu0 9
  %7772 = vperm.xlu0 %7771, %v60
  %v7773 = vpop.permute.xlu0 %7772
  %7775 = vset.pattern.permute.xlu0 9
  %7776 = vperm.xlu0 %7775, %v61
  %v7777 = vpop.permute.xlu0 %7776
  %7779 = vset.pattern.permute.xlu0 9
  %7780 = vperm.xlu0 %7779, %v62
  %v7781 = vpop.permute.xlu0 %7780
  %v7783 = vmul.f32 %v7753, %v2049
  %v7784 = vmul.f32 %v7757, %v2053
  %v7785 = vmul.f32 %v7761, %v2059
  %v7786 = vmul.f32 %v7765, %v2063
  %v7787 = vmul.f32 %v7769, %v2069
  %v7788 = vmul.f32 %v7773, %v2073
  %v7789 = vmul.f32 %v7777, %v2079
  %v7790 = vmul.f32 %v7781, %v2083
  %v7791 = vadd.f32 %v7743, %v7783
  %v7792 = vadd.f32 %v7744, %v7784
  %v7793 = vadd.f32 %v7745, %v7785
  %v7794 = vadd.f32 %v7746, %v7786
  %v7795 = vadd.f32 %v7747, %v7787
  %v7796 = vadd.f32 %v7748, %v7788
  %v7797 = vadd.f32 %v7749, %v7789
  %v7798 = vadd.f32 %v7750, %v7790
  %7799 = vset.pattern.permute.xlu0 10
  %7800 = vperm.xlu0 %7799, %v55
  %v7801 = vpop.permute.xlu0 %7800
  %7803 = vset.pattern.permute.xlu0 10
  %7804 = vperm.xlu0 %7803, %v56
  %v7805 = vpop.permute.xlu0 %7804
  %7807 = vset.pattern.permute.xlu0 10
  %7808 = vperm.xlu0 %7807, %v57
  %v7809 = vpop.permute.xlu0 %7808
  %7811 = vset.pattern.permute.xlu0 10
  %7812 = vperm.xlu0 %7811, %v58
  %v7813 = vpop.permute.xlu0 %7812
  %7815 = vset.pattern.permute.xlu0 10
  %7816 = vperm.xlu0 %7815, %v59
  %v7817 = vpop.permute.xlu0 %7816
  %7819 = vset.pattern.permute.xlu0 10
  %7820 = vperm.xlu0 %7819, %v60
  %v7821 = vpop.permute.xlu0 %7820
  %7823 = vset.pattern.permute.xlu0 10
  %7824 = vperm.xlu0 %7823, %v61
  %v7825 = vpop.permute.xlu0 %7824
  %7827 = vset.pattern.permute.xlu0 10
  %7828 = vperm.xlu0 %7827, %v62
  %v7829 = vpop.permute.xlu0 %7828
  %v7831 = vmul.f32 %v7801, %v2400
  %v7832 = vmul.f32 %v7805, %v2404
  %v7833 = vmul.f32 %v7809, %v2410
  %v7834 = vmul.f32 %v7813, %v2414
  %v7835 = vmul.f32 %v7817, %v2420
  %v7836 = vmul.f32 %v7821, %v2424
  %v7837 = vmul.f32 %v7825, %v2430
  %v7838 = vmul.f32 %v7829, %v2434
  %v7839 = vadd.f32 %v7791, %v7831
  %v7840 = vadd.f32 %v7792, %v7832
  %v7841 = vadd.f32 %v7793, %v7833
  %v7842 = vadd.f32 %v7794, %v7834
  %v7843 = vadd.f32 %v7795, %v7835
  %v7844 = vadd.f32 %v7796, %v7836
  %v7845 = vadd.f32 %v7797, %v7837
  %v7846 = vadd.f32 %v7798, %v7838
  %7847 = vset.pattern.permute.xlu0 11
  %7848 = vperm.xlu0 %7847, %v55
  %v7849 = vpop.permute.xlu0 %7848
  %7851 = vset.pattern.permute.xlu0 11
  %7852 = vperm.xlu0 %7851, %v56
  %v7853 = vpop.permute.xlu0 %7852
  %7855 = vset.pattern.permute.xlu0 11
  %7856 = vperm.xlu0 %7855, %v57
  %v7857 = vpop.permute.xlu0 %7856
  %7859 = vset.pattern.permute.xlu0 11
  %7860 = vperm.xlu0 %7859, %v58
  %v7861 = vpop.permute.xlu0 %7860
  %7863 = vset.pattern.permute.xlu0 11
  %7864 = vperm.xlu0 %7863, %v59
  %v7865 = vpop.permute.xlu0 %7864
  %7867 = vset.pattern.permute.xlu0 11
  %7868 = vperm.xlu0 %7867, %v60
  %v7869 = vpop.permute.xlu0 %7868
  %7871 = vset.pattern.permute.xlu0 11
  %7872 = vperm.xlu0 %7871, %v61
  %v7873 = vpop.permute.xlu0 %7872
  %7875 = vset.pattern.permute.xlu0 11
  %7876 = vperm.xlu0 %7875, %v62
  %v7877 = vpop.permute.xlu0 %7876
  %v7879 = vmul.f32 %v7849, %v2402
  %v7880 = vmul.f32 %v7853, %v2406
  %v7881 = vmul.f32 %v7857, %v2412
  %v7882 = vmul.f32 %v7861, %v2416
  %v7883 = vmul.f32 %v7865, %v2422
  %v7884 = vmul.f32 %v7869, %v2426
  %v7885 = vmul.f32 %v7873, %v2432
  %v7886 = vmul.f32 %v7877, %v2436
  %v7887 = vadd.f32 %v7839, %v7879
  %v7888 = vadd.f32 %v7840, %v7880
  %v7889 = vadd.f32 %v7841, %v7881
  %v7890 = vadd.f32 %v7842, %v7882
  %v7891 = vadd.f32 %v7843, %v7883
  %v7892 = vadd.f32 %v7844, %v7884
  %v7893 = vadd.f32 %v7845, %v7885
  %v7894 = vadd.f32 %v7846, %v7886
  %7895 = vset.pattern.permute.xlu0 12
  %7896 = vperm.xlu0 %7895, %v55
  %v7897 = vpop.permute.xlu0 %7896
  %7899 = vset.pattern.permute.xlu0 12
  %7900 = vperm.xlu0 %7899, %v56
  %v7901 = vpop.permute.xlu0 %7900
  %7903 = vset.pattern.permute.xlu0 12
  %7904 = vperm.xlu0 %7903, %v57
  %v7905 = vpop.permute.xlu0 %7904
  %7907 = vset.pattern.permute.xlu0 12
  %7908 = vperm.xlu0 %7907, %v58
  %v7909 = vpop.permute.xlu0 %7908
  %7911 = vset.pattern.permute.xlu0 12
  %7912 = vperm.xlu0 %7911, %v59
  %v7913 = vpop.permute.xlu0 %7912
  %7915 = vset.pattern.permute.xlu0 12
  %7916 = vperm.xlu0 %7915, %v60
  %v7917 = vpop.permute.xlu0 %7916
  %7919 = vset.pattern.permute.xlu0 12
  %7920 = vperm.xlu0 %7919, %v61
  %v7921 = vpop.permute.xlu0 %7920
  %7923 = vset.pattern.permute.xlu0 12
  %7924 = vperm.xlu0 %7923, %v62
  %v7925 = vpop.permute.xlu0 %7924
  %v7927 = vmul.f32 %v7897, %v2753
  %v7928 = vmul.f32 %v7901, %v2757
  %v7929 = vmul.f32 %v7905, %v2763
  %v7930 = vmul.f32 %v7909, %v2767
  %v7931 = vmul.f32 %v7913, %v2773
  %v7932 = vmul.f32 %v7917, %v2777
  %v7933 = vmul.f32 %v7921, %v2783
  %v7934 = vmul.f32 %v7925, %v2787
  %v7935 = vadd.f32 %v7887, %v7927
  %v7936 = vadd.f32 %v7888, %v7928
  %v7937 = vadd.f32 %v7889, %v7929
  %v7938 = vadd.f32 %v7890, %v7930
  %v7939 = vadd.f32 %v7891, %v7931
  %v7940 = vadd.f32 %v7892, %v7932
  %v7941 = vadd.f32 %v7893, %v7933
  %v7942 = vadd.f32 %v7894, %v7934
  %7943 = vset.pattern.permute.xlu0 13
  %7944 = vperm.xlu0 %7943, %v55
  %v7945 = vpop.permute.xlu0 %7944
  %7947 = vset.pattern.permute.xlu0 13
  %7948 = vperm.xlu0 %7947, %v56
  %v7949 = vpop.permute.xlu0 %7948
  %7951 = vset.pattern.permute.xlu0 13
  %7952 = vperm.xlu0 %7951, %v57
  %v7953 = vpop.permute.xlu0 %7952
  %7955 = vset.pattern.permute.xlu0 13
  %7956 = vperm.xlu0 %7955, %v58
  %v7957 = vpop.permute.xlu0 %7956
  %7959 = vset.pattern.permute.xlu0 13
  %7960 = vperm.xlu0 %7959, %v59
  %v7961 = vpop.permute.xlu0 %7960
  %7963 = vset.pattern.permute.xlu0 13
  %7964 = vperm.xlu0 %7963, %v60
  %v7965 = vpop.permute.xlu0 %7964
  %7967 = vset.pattern.permute.xlu0 13
  %7968 = vperm.xlu0 %7967, %v61
  %v7969 = vpop.permute.xlu0 %7968
  %7971 = vset.pattern.permute.xlu0 13
  %7972 = vperm.xlu0 %7971, %v62
  %v7973 = vpop.permute.xlu0 %7972
  %v7975 = vmul.f32 %v7945, %v2755
  %v7976 = vmul.f32 %v7949, %v2759
  %v7977 = vmul.f32 %v7953, %v2765
  %v7978 = vmul.f32 %v7957, %v2769
  %v7979 = vmul.f32 %v7961, %v2775
  %v7980 = vmul.f32 %v7965, %v2779
  %v7981 = vmul.f32 %v7969, %v2785
  %v7982 = vmul.f32 %v7973, %v2789
  %v7983 = vadd.f32 %v7935, %v7975
  %v7984 = vadd.f32 %v7936, %v7976
  %v7985 = vadd.f32 %v7937, %v7977
  %v7986 = vadd.f32 %v7938, %v7978
  %v7987 = vadd.f32 %v7939, %v7979
  %v7988 = vadd.f32 %v7940, %v7980
  %v7989 = vadd.f32 %v7941, %v7981
  %v7990 = vadd.f32 %v7942, %v7982
  %7991 = vset.pattern.permute.xlu0 14
  %7992 = vperm.xlu0 %7991, %v55
  %v7993 = vpop.permute.xlu0 %7992
  %7995 = vset.pattern.permute.xlu0 14
  %7996 = vperm.xlu0 %7995, %v56
  %v7997 = vpop.permute.xlu0 %7996
  %7999 = vset.pattern.permute.xlu0 14
  %8000 = vperm.xlu0 %7999, %v57
  %v8001 = vpop.permute.xlu0 %8000
  %8003 = vset.pattern.permute.xlu0 14
  %8004 = vperm.xlu0 %8003, %v58
  %v8005 = vpop.permute.xlu0 %8004
  %8007 = vset.pattern.permute.xlu0 14
  %8008 = vperm.xlu0 %8007, %v59
  %v8009 = vpop.permute.xlu0 %8008
  %8011 = vset.pattern.permute.xlu0 14
  %8012 = vperm.xlu0 %8011, %v60
  %v8013 = vpop.permute.xlu0 %8012
  %8015 = vset.pattern.permute.xlu0 14
  %8016 = vperm.xlu0 %8015, %v61
  %v8017 = vpop.permute.xlu0 %8016
  %8019 = vset.pattern.permute.xlu0 14
  %8020 = vperm.xlu0 %8019, %v62
  %v8021 = vpop.permute.xlu0 %8020
  %v8023 = vmul.f32 %v7993, %v3106
  %v8024 = vmul.f32 %v7997, %v3110
  %v8025 = vmul.f32 %v8001, %v3116
  %v8026 = vmul.f32 %v8005, %v3120
  %v8027 = vmul.f32 %v8009, %v3126
  %v8028 = vmul.f32 %v8013, %v3130
  %v8029 = vmul.f32 %v8017, %v3136
  %v8030 = vmul.f32 %v8021, %v3140
  %v8031 = vadd.f32 %v7983, %v8023
  %v8032 = vadd.f32 %v7984, %v8024
  %v8033 = vadd.f32 %v7985, %v8025
  %v8034 = vadd.f32 %v7986, %v8026
  %v8035 = vadd.f32 %v7987, %v8027
  %v8036 = vadd.f32 %v7988, %v8028
  %v8037 = vadd.f32 %v7989, %v8029
  %v8038 = vadd.f32 %v7990, %v8030
  %8039 = vset.pattern.permute.xlu0 15
  %8040 = vperm.xlu0 %8039, %v55
  %v8041 = vpop.permute.xlu0 %8040
  %8043 = vset.pattern.permute.xlu0 15
  %8044 = vperm.xlu0 %8043, %v56
  %v8045 = vpop.permute.xlu0 %8044
  %8047 = vset.pattern.permute.xlu0 15
  %8048 = vperm.xlu0 %8047, %v57
  %v8049 = vpop.permute.xlu0 %8048
  %8051 = vset.pattern.permute.xlu0 15
  %8052 = vperm.xlu0 %8051, %v58
  %v8053 = vpop.permute.xlu0 %8052
  %8055 = vset.pattern.permute.xlu0 15
  %8056 = vperm.xlu0 %8055, %v59
  %v8057 = vpop.permute.xlu0 %8056
  %8059 = vset.pattern.permute.xlu0 15
  %8060 = vperm.xlu0 %8059, %v60
  %v8061 = vpop.permute.xlu0 %8060
  %8063 = vset.pattern.permute.xlu0 15
  %8064 = vperm.xlu0 %8063, %v61
  %v8065 = vpop.permute.xlu0 %8064
  %8067 = vset.pattern.permute.xlu0 15
  %8068 = vperm.xlu0 %8067, %v62
  %v8069 = vpop.permute.xlu0 %8068
  %v8071 = vmul.f32 %v8041, %v3108
  %v8072 = vmul.f32 %v8045, %v3112
  %v8073 = vmul.f32 %v8049, %v3118
  %v8074 = vmul.f32 %v8053, %v3122
  %v8075 = vmul.f32 %v8057, %v3128
  %v8076 = vmul.f32 %v8061, %v3132
  %v8077 = vmul.f32 %v8065, %v3138
  %v8078 = vmul.f32 %v8069, %v3142
  %v8079 = vadd.f32 %v8031, %v8071
  %v8080 = vadd.f32 %v8032, %v8072
  %v8081 = vadd.f32 %v8033, %v8073
  %v8082 = vadd.f32 %v8034, %v8074
  %v8083 = vadd.f32 %v8035, %v8075
  %v8084 = vadd.f32 %v8036, %v8076
  %v8085 = vadd.f32 %v8037, %v8077
  %v8086 = vadd.f32 %v8038, %v8078
  %v8087 = vpack.c.bf16 %v8080, %v8079
  %v8088 = vpack.c.bf16 %v8082, %v8081
  %v8089 = vpack.c.bf16 %v8084, %v8083
  %v8090 = vpack.c.bf16 %v8086, %v8085
  %v8095 = vunpack.c.l.b16 %v8087
  %v8096 = vunpack.c.h.b16 %v8087
  %v8097 = vunpack.c.l.b16 %v8088
  %v8098 = vunpack.c.h.b16 %v8088
  %v8099 = vunpack.c.l.b16 %v8089
  %v8100 = vunpack.c.h.b16 %v8089
  %v8101 = vunpack.c.l.b16 %v8090
  %v8102 = vunpack.c.h.b16 %v8090
  %v8103 = vpack.c.b16 %v8095, %v8095
  %v8104 = vpack.c.b16 %v8096, %v8096
  %v8105 = vpack.c.b16 %v8097, %v8097
  %v8106 = vpack.c.b16 %v8098, %v8098
  %v8107 = vpack.c.b16 %v8099, %v8099
  %v8108 = vpack.c.b16 %v8100, %v8100
  %v8109 = vpack.c.b16 %v8101, %v8101
  %v8110 = vpack.c.b16 %v8102, %v8102
  %8119 = vst [vmem:[%s3 + $0xa0] sm:$0xf] %v8103
  %8120 = vst [vmem:[%s3 + $0xa4] sm:$0xf] %v8104
  %8121 = vst [vmem:[%s3 + $0xa8] sm:$0xf] %v8105
  %8122 = vst [vmem:[%s3 + $0xac] sm:$0xf] %v8106
  %8123 = vst [vmem:[%s3 + $0xb0] sm:$0xf] %v8107
  %8124 = vst [vmem:[%s3 + $0xb4] sm:$0xf] %v8108
  %8125 = vst [vmem:[%s3 + $0xb8] sm:$0xf] %v8109
  %8126 = vst [vmem:[%s3 + $0xbc] sm:$0xf] %v8110
  %8128 = vset.pattern.permute.xlu0 0
  %8129 = vperm.xlu0 %8128, %v63
  %v8130 = vpop.permute.xlu0 %8129
  %8133 = vset.pattern.permute.xlu0 0
  %8134 = vperm.xlu0 %8133, %v64
  %v8135 = vpop.permute.xlu0 %8134
  %8138 = vset.pattern.permute.xlu0 0
  %8139 = vperm.xlu0 %8138, %v65
  %v8140 = vpop.permute.xlu0 %8139
  %8143 = vset.pattern.permute.xlu0 0
  %8144 = vperm.xlu0 %8143, %v66
  %v8145 = vpop.permute.xlu0 %8144
  %8148 = vset.pattern.permute.xlu0 0
  %8149 = vperm.xlu0 %8148, %v67
  %v8150 = vpop.permute.xlu0 %8149
  %8153 = vset.pattern.permute.xlu0 0
  %8154 = vperm.xlu0 %8153, %v68
  %v8155 = vpop.permute.xlu0 %8154
  %8158 = vset.pattern.permute.xlu0 0
  %8159 = vperm.xlu0 %8158, %v69
  %v8160 = vpop.permute.xlu0 %8159
  %8163 = vset.pattern.permute.xlu0 0
  %8164 = vperm.xlu0 %8163, %v70
  %v8165 = vpop.permute.xlu0 %8164
  %v8167 = vmul.f32 %v8130, %v675
  %v8168 = vmul.f32 %v8135, %v679
  %v8169 = vmul.f32 %v8140, %v685
  %v8170 = vmul.f32 %v8145, %v689
  %v8171 = vmul.f32 %v8150, %v695
  %v8172 = vmul.f32 %v8155, %v699
  %v8173 = vmul.f32 %v8160, %v705
  %v8174 = vmul.f32 %v8165, %v709
  %v8175 = vadd.f32 %v3229, %v8167
  %v8176 = vadd.f32 %v3229, %v8168
  %v8177 = vadd.f32 %v3229, %v8169
  %v8178 = vadd.f32 %v3229, %v8170
  %v8179 = vadd.f32 %v3229, %v8171
  %v8180 = vadd.f32 %v3229, %v8172
  %v8181 = vadd.f32 %v3229, %v8173
  %v8182 = vadd.f32 %v3229, %v8174
  %8183 = vset.pattern.permute.xlu0 1
  %8184 = vperm.xlu0 %8183, %v63
  %v8185 = vpop.permute.xlu0 %8184
  %8187 = vset.pattern.permute.xlu0 1
  %8188 = vperm.xlu0 %8187, %v64
  %v8189 = vpop.permute.xlu0 %8188
  %8191 = vset.pattern.permute.xlu0 1
  %8192 = vperm.xlu0 %8191, %v65
  %v8193 = vpop.permute.xlu0 %8192
  %8195 = vset.pattern.permute.xlu0 1
  %8196 = vperm.xlu0 %8195, %v66
  %v8197 = vpop.permute.xlu0 %8196
  %8199 = vset.pattern.permute.xlu0 1
  %8200 = vperm.xlu0 %8199, %v67
  %v8201 = vpop.permute.xlu0 %8200
  %8203 = vset.pattern.permute.xlu0 1
  %8204 = vperm.xlu0 %8203, %v68
  %v8205 = vpop.permute.xlu0 %8204
  %8207 = vset.pattern.permute.xlu0 1
  %8208 = vperm.xlu0 %8207, %v69
  %v8209 = vpop.permute.xlu0 %8208
  %8211 = vset.pattern.permute.xlu0 1
  %8212 = vperm.xlu0 %8211, %v70
  %v8213 = vpop.permute.xlu0 %8212
  %v8215 = vmul.f32 %v8185, %v677
  %v8216 = vmul.f32 %v8189, %v681
  %v8217 = vmul.f32 %v8193, %v687
  %v8218 = vmul.f32 %v8197, %v691
  %v8219 = vmul.f32 %v8201, %v697
  %v8220 = vmul.f32 %v8205, %v701
  %v8221 = vmul.f32 %v8209, %v707
  %v8222 = vmul.f32 %v8213, %v711
  %v8223 = vadd.f32 %v8175, %v8215
  %v8224 = vadd.f32 %v8176, %v8216
  %v8225 = vadd.f32 %v8177, %v8217
  %v8226 = vadd.f32 %v8178, %v8218
  %v8227 = vadd.f32 %v8179, %v8219
  %v8228 = vadd.f32 %v8180, %v8220
  %v8229 = vadd.f32 %v8181, %v8221
  %v8230 = vadd.f32 %v8182, %v8222
  %8231 = vset.pattern.permute.xlu0 2
  %8232 = vperm.xlu0 %8231, %v63
  %v8233 = vpop.permute.xlu0 %8232
  %8235 = vset.pattern.permute.xlu0 2
  %8236 = vperm.xlu0 %8235, %v64
  %v8237 = vpop.permute.xlu0 %8236
  %8239 = vset.pattern.permute.xlu0 2
  %8240 = vperm.xlu0 %8239, %v65
  %v8241 = vpop.permute.xlu0 %8240
  %8243 = vset.pattern.permute.xlu0 2
  %8244 = vperm.xlu0 %8243, %v66
  %v8245 = vpop.permute.xlu0 %8244
  %8247 = vset.pattern.permute.xlu0 2
  %8248 = vperm.xlu0 %8247, %v67
  %v8249 = vpop.permute.xlu0 %8248
  %8251 = vset.pattern.permute.xlu0 2
  %8252 = vperm.xlu0 %8251, %v68
  %v8253 = vpop.permute.xlu0 %8252
  %8255 = vset.pattern.permute.xlu0 2
  %8256 = vperm.xlu0 %8255, %v69
  %v8257 = vpop.permute.xlu0 %8256
  %8259 = vset.pattern.permute.xlu0 2
  %8260 = vperm.xlu0 %8259, %v70
  %v8261 = vpop.permute.xlu0 %8260
  %v8263 = vmul.f32 %v8233, %v1028
  %v8264 = vmul.f32 %v8237, %v1032
  %v8265 = vmul.f32 %v8241, %v1038
  %v8266 = vmul.f32 %v8245, %v1042
  %v8267 = vmul.f32 %v8249, %v1048
  %v8268 = vmul.f32 %v8253, %v1052
  %v8269 = vmul.f32 %v8257, %v1058
  %v8270 = vmul.f32 %v8261, %v1062
  %v8271 = vadd.f32 %v8223, %v8263
  %v8272 = vadd.f32 %v8224, %v8264
  %v8273 = vadd.f32 %v8225, %v8265
  %v8274 = vadd.f32 %v8226, %v8266
  %v8275 = vadd.f32 %v8227, %v8267
  %v8276 = vadd.f32 %v8228, %v8268
  %v8277 = vadd.f32 %v8229, %v8269
  %v8278 = vadd.f32 %v8230, %v8270
  %8279 = vset.pattern.permute.xlu0 3
  %8280 = vperm.xlu0 %8279, %v63
  %v8281 = vpop.permute.xlu0 %8280
  %8283 = vset.pattern.permute.xlu0 3
  %8284 = vperm.xlu0 %8283, %v64
  %v8285 = vpop.permute.xlu0 %8284
  %8287 = vset.pattern.permute.xlu0 3
  %8288 = vperm.xlu0 %8287, %v65
  %v8289 = vpop.permute.xlu0 %8288
  %8291 = vset.pattern.permute.xlu0 3
  %8292 = vperm.xlu0 %8291, %v66
  %v8293 = vpop.permute.xlu0 %8292
  %8295 = vset.pattern.permute.xlu0 3
  %8296 = vperm.xlu0 %8295, %v67
  %v8297 = vpop.permute.xlu0 %8296
  %8299 = vset.pattern.permute.xlu0 3
  %8300 = vperm.xlu0 %8299, %v68
  %v8301 = vpop.permute.xlu0 %8300
  %8303 = vset.pattern.permute.xlu0 3
  %8304 = vperm.xlu0 %8303, %v69
  %v8305 = vpop.permute.xlu0 %8304
  %8307 = vset.pattern.permute.xlu0 3
  %8308 = vperm.xlu0 %8307, %v70
  %v8309 = vpop.permute.xlu0 %8308
  %v8311 = vmul.f32 %v8281, %v1030
  %v8312 = vmul.f32 %v8285, %v1034
  %v8313 = vmul.f32 %v8289, %v1040
  %v8314 = vmul.f32 %v8293, %v1044
  %v8315 = vmul.f32 %v8297, %v1050
  %v8316 = vmul.f32 %v8301, %v1054
  %v8317 = vmul.f32 %v8305, %v1060
  %v8318 = vmul.f32 %v8309, %v1064
  %v8319 = vadd.f32 %v8271, %v8311
  %v8320 = vadd.f32 %v8272, %v8312
  %v8321 = vadd.f32 %v8273, %v8313
  %v8322 = vadd.f32 %v8274, %v8314
  %v8323 = vadd.f32 %v8275, %v8315
  %v8324 = vadd.f32 %v8276, %v8316
  %v8325 = vadd.f32 %v8277, %v8317
  %v8326 = vadd.f32 %v8278, %v8318
  %8327 = vset.pattern.permute.xlu0 4
  %8328 = vperm.xlu0 %8327, %v63
  %v8329 = vpop.permute.xlu0 %8328
  %8331 = vset.pattern.permute.xlu0 4
  %8332 = vperm.xlu0 %8331, %v64
  %v8333 = vpop.permute.xlu0 %8332
  %8335 = vset.pattern.permute.xlu0 4
  %8336 = vperm.xlu0 %8335, %v65
  %v8337 = vpop.permute.xlu0 %8336
  %8339 = vset.pattern.permute.xlu0 4
  %8340 = vperm.xlu0 %8339, %v66
  %v8341 = vpop.permute.xlu0 %8340
  %8343 = vset.pattern.permute.xlu0 4
  %8344 = vperm.xlu0 %8343, %v67
  %v8345 = vpop.permute.xlu0 %8344
  %8347 = vset.pattern.permute.xlu0 4
  %8348 = vperm.xlu0 %8347, %v68
  %v8349 = vpop.permute.xlu0 %8348
  %8351 = vset.pattern.permute.xlu0 4
  %8352 = vperm.xlu0 %8351, %v69
  %v8353 = vpop.permute.xlu0 %8352
  %8355 = vset.pattern.permute.xlu0 4
  %8356 = vperm.xlu0 %8355, %v70
  %v8357 = vpop.permute.xlu0 %8356
  %v8359 = vmul.f32 %v8329, %v1381
  %v8360 = vmul.f32 %v8333, %v1385
  %v8361 = vmul.f32 %v8337, %v1391
  %v8362 = vmul.f32 %v8341, %v1395
  %v8363 = vmul.f32 %v8345, %v1401
  %v8364 = vmul.f32 %v8349, %v1405
  %v8365 = vmul.f32 %v8353, %v1411
  %v8366 = vmul.f32 %v8357, %v1415
  %v8367 = vadd.f32 %v8319, %v8359
  %v8368 = vadd.f32 %v8320, %v8360
  %v8369 = vadd.f32 %v8321, %v8361
  %v8370 = vadd.f32 %v8322, %v8362
  %v8371 = vadd.f32 %v8323, %v8363
  %v8372 = vadd.f32 %v8324, %v8364
  %v8373 = vadd.f32 %v8325, %v8365
  %v8374 = vadd.f32 %v8326, %v8366
  %8375 = vset.pattern.permute.xlu0 5
  %8376 = vperm.xlu0 %8375, %v63
  %v8377 = vpop.permute.xlu0 %8376
  %8379 = vset.pattern.permute.xlu0 5
  %8380 = vperm.xlu0 %8379, %v64
  %v8381 = vpop.permute.xlu0 %8380
  %8383 = vset.pattern.permute.xlu0 5
  %8384 = vperm.xlu0 %8383, %v65
  %v8385 = vpop.permute.xlu0 %8384
  %8387 = vset.pattern.permute.xlu0 5
  %8388 = vperm.xlu0 %8387, %v66
  %v8389 = vpop.permute.xlu0 %8388
  %8391 = vset.pattern.permute.xlu0 5
  %8392 = vperm.xlu0 %8391, %v67
  %v8393 = vpop.permute.xlu0 %8392
  %8395 = vset.pattern.permute.xlu0 5
  %8396 = vperm.xlu0 %8395, %v68
  %v8397 = vpop.permute.xlu0 %8396
  %8399 = vset.pattern.permute.xlu0 5
  %8400 = vperm.xlu0 %8399, %v69
  %v8401 = vpop.permute.xlu0 %8400
  %8403 = vset.pattern.permute.xlu0 5
  %8404 = vperm.xlu0 %8403, %v70
  %v8405 = vpop.permute.xlu0 %8404
  %v8407 = vmul.f32 %v8377, %v1383
  %v8408 = vmul.f32 %v8381, %v1387
  %v8409 = vmul.f32 %v8385, %v1393
  %v8410 = vmul.f32 %v8389, %v1397
  %v8411 = vmul.f32 %v8393, %v1403
  %v8412 = vmul.f32 %v8397, %v1407
  %v8413 = vmul.f32 %v8401, %v1413
  %v8414 = vmul.f32 %v8405, %v1417
  %v8415 = vadd.f32 %v8367, %v8407
  %v8416 = vadd.f32 %v8368, %v8408
  %v8417 = vadd.f32 %v8369, %v8409
  %v8418 = vadd.f32 %v8370, %v8410
  %v8419 = vadd.f32 %v8371, %v8411
  %v8420 = vadd.f32 %v8372, %v8412
  %v8421 = vadd.f32 %v8373, %v8413
  %v8422 = vadd.f32 %v8374, %v8414
  %8423 = vset.pattern.permute.xlu0 6
  %8424 = vperm.xlu0 %8423, %v63
  %v8425 = vpop.permute.xlu0 %8424
  %8427 = vset.pattern.permute.xlu0 6
  %8428 = vperm.xlu0 %8427, %v64
  %v8429 = vpop.permute.xlu0 %8428
  %8431 = vset.pattern.permute.xlu0 6
  %8432 = vperm.xlu0 %8431, %v65
  %v8433 = vpop.permute.xlu0 %8432
  %8435 = vset.pattern.permute.xlu0 6
  %8436 = vperm.xlu0 %8435, %v66
  %v8437 = vpop.permute.xlu0 %8436
  %8439 = vset.pattern.permute.xlu0 6
  %8440 = vperm.xlu0 %8439, %v67
  %v8441 = vpop.permute.xlu0 %8440
  %8443 = vset.pattern.permute.xlu0 6
  %8444 = vperm.xlu0 %8443, %v68
  %v8445 = vpop.permute.xlu0 %8444
  %8447 = vset.pattern.permute.xlu0 6
  %8448 = vperm.xlu0 %8447, %v69
  %v8449 = vpop.permute.xlu0 %8448
  %8451 = vset.pattern.permute.xlu0 6
  %8452 = vperm.xlu0 %8451, %v70
  %v8453 = vpop.permute.xlu0 %8452
  %v8455 = vmul.f32 %v8425, %v1734
  %v8456 = vmul.f32 %v8429, %v1738
  %v8457 = vmul.f32 %v8433, %v1744
  %v8458 = vmul.f32 %v8437, %v1748
  %v8459 = vmul.f32 %v8441, %v1754
  %v8460 = vmul.f32 %v8445, %v1758
  %v8461 = vmul.f32 %v8449, %v1764
  %v8462 = vmul.f32 %v8453, %v1768
  %v8463 = vadd.f32 %v8415, %v8455
  %v8464 = vadd.f32 %v8416, %v8456
  %v8465 = vadd.f32 %v8417, %v8457
  %v8466 = vadd.f32 %v8418, %v8458
  %v8467 = vadd.f32 %v8419, %v8459
  %v8468 = vadd.f32 %v8420, %v8460
  %v8469 = vadd.f32 %v8421, %v8461
  %v8470 = vadd.f32 %v8422, %v8462
  %8471 = vset.pattern.permute.xlu0 7
  %8472 = vperm.xlu0 %8471, %v63
  %v8473 = vpop.permute.xlu0 %8472
  %8475 = vset.pattern.permute.xlu0 7
  %8476 = vperm.xlu0 %8475, %v64
  %v8477 = vpop.permute.xlu0 %8476
  %8479 = vset.pattern.permute.xlu0 7
  %8480 = vperm.xlu0 %8479, %v65
  %v8481 = vpop.permute.xlu0 %8480
  %8483 = vset.pattern.permute.xlu0 7
  %8484 = vperm.xlu0 %8483, %v66
  %v8485 = vpop.permute.xlu0 %8484
  %8487 = vset.pattern.permute.xlu0 7
  %8488 = vperm.xlu0 %8487, %v67
  %v8489 = vpop.permute.xlu0 %8488
  %8491 = vset.pattern.permute.xlu0 7
  %8492 = vperm.xlu0 %8491, %v68
  %v8493 = vpop.permute.xlu0 %8492
  %8495 = vset.pattern.permute.xlu0 7
  %8496 = vperm.xlu0 %8495, %v69
  %v8497 = vpop.permute.xlu0 %8496
  %8499 = vset.pattern.permute.xlu0 7
  %8500 = vperm.xlu0 %8499, %v70
  %v8501 = vpop.permute.xlu0 %8500
  %v8503 = vmul.f32 %v8473, %v1736
  %v8504 = vmul.f32 %v8477, %v1740
  %v8505 = vmul.f32 %v8481, %v1746
  %v8506 = vmul.f32 %v8485, %v1750
  %v8507 = vmul.f32 %v8489, %v1756
  %v8508 = vmul.f32 %v8493, %v1760
  %v8509 = vmul.f32 %v8497, %v1766
  %v8510 = vmul.f32 %v8501, %v1770
  %v8511 = vadd.f32 %v8463, %v8503
  %v8512 = vadd.f32 %v8464, %v8504
  %v8513 = vadd.f32 %v8465, %v8505
  %v8514 = vadd.f32 %v8466, %v8506
  %v8515 = vadd.f32 %v8467, %v8507
  %v8516 = vadd.f32 %v8468, %v8508
  %v8517 = vadd.f32 %v8469, %v8509
  %v8518 = vadd.f32 %v8470, %v8510
  %8519 = vset.pattern.permute.xlu0 8
  %8520 = vperm.xlu0 %8519, %v63
  %v8521 = vpop.permute.xlu0 %8520
  %8523 = vset.pattern.permute.xlu0 8
  %8524 = vperm.xlu0 %8523, %v64
  %v8525 = vpop.permute.xlu0 %8524
  %8527 = vset.pattern.permute.xlu0 8
  %8528 = vperm.xlu0 %8527, %v65
  %v8529 = vpop.permute.xlu0 %8528
  %8531 = vset.pattern.permute.xlu0 8
  %8532 = vperm.xlu0 %8531, %v66
  %v8533 = vpop.permute.xlu0 %8532
  %8535 = vset.pattern.permute.xlu0 8
  %8536 = vperm.xlu0 %8535, %v67
  %v8537 = vpop.permute.xlu0 %8536
  %8539 = vset.pattern.permute.xlu0 8
  %8540 = vperm.xlu0 %8539, %v68
  %v8541 = vpop.permute.xlu0 %8540
  %8543 = vset.pattern.permute.xlu0 8
  %8544 = vperm.xlu0 %8543, %v69
  %v8545 = vpop.permute.xlu0 %8544
  %8547 = vset.pattern.permute.xlu0 8
  %8548 = vperm.xlu0 %8547, %v70
  %v8549 = vpop.permute.xlu0 %8548
  %v8551 = vmul.f32 %v8521, %v2087
  %v8552 = vmul.f32 %v8525, %v2091
  %v8553 = vmul.f32 %v8529, %v2097
  %v8554 = vmul.f32 %v8533, %v2101
  %v8555 = vmul.f32 %v8537, %v2107
  %v8556 = vmul.f32 %v8541, %v2111
  %v8557 = vmul.f32 %v8545, %v2117
  %v8558 = vmul.f32 %v8549, %v2121
  %v8559 = vadd.f32 %v8511, %v8551
  %v8560 = vadd.f32 %v8512, %v8552
  %v8561 = vadd.f32 %v8513, %v8553
  %v8562 = vadd.f32 %v8514, %v8554
  %v8563 = vadd.f32 %v8515, %v8555
  %v8564 = vadd.f32 %v8516, %v8556
  %v8565 = vadd.f32 %v8517, %v8557
  %v8566 = vadd.f32 %v8518, %v8558
  %8567 = vset.pattern.permute.xlu0 9
  %8568 = vperm.xlu0 %8567, %v63
  %v8569 = vpop.permute.xlu0 %8568
  %8571 = vset.pattern.permute.xlu0 9
  %8572 = vperm.xlu0 %8571, %v64
  %v8573 = vpop.permute.xlu0 %8572
  %8575 = vset.pattern.permute.xlu0 9
  %8576 = vperm.xlu0 %8575, %v65
  %v8577 = vpop.permute.xlu0 %8576
  %8579 = vset.pattern.permute.xlu0 9
  %8580 = vperm.xlu0 %8579, %v66
  %v8581 = vpop.permute.xlu0 %8580
  %8583 = vset.pattern.permute.xlu0 9
  %8584 = vperm.xlu0 %8583, %v67
  %v8585 = vpop.permute.xlu0 %8584
  %8587 = vset.pattern.permute.xlu0 9
  %8588 = vperm.xlu0 %8587, %v68
  %v8589 = vpop.permute.xlu0 %8588
  %8591 = vset.pattern.permute.xlu0 9
  %8592 = vperm.xlu0 %8591, %v69
  %v8593 = vpop.permute.xlu0 %8592
  %8595 = vset.pattern.permute.xlu0 9
  %8596 = vperm.xlu0 %8595, %v70
  %v8597 = vpop.permute.xlu0 %8596
  %v8599 = vmul.f32 %v8569, %v2089
  %v8600 = vmul.f32 %v8573, %v2093
  %v8601 = vmul.f32 %v8577, %v2099
  %v8602 = vmul.f32 %v8581, %v2103
  %v8603 = vmul.f32 %v8585, %v2109
  %v8604 = vmul.f32 %v8589, %v2113
  %v8605 = vmul.f32 %v8593, %v2119
  %v8606 = vmul.f32 %v8597, %v2123
  %v8607 = vadd.f32 %v8559, %v8599
  %v8608 = vadd.f32 %v8560, %v8600
  %v8609 = vadd.f32 %v8561, %v8601
  %v8610 = vadd.f32 %v8562, %v8602
  %v8611 = vadd.f32 %v8563, %v8603
  %v8612 = vadd.f32 %v8564, %v8604
  %v8613 = vadd.f32 %v8565, %v8605
  %v8614 = vadd.f32 %v8566, %v8606
  %8615 = vset.pattern.permute.xlu0 10
  %8616 = vperm.xlu0 %8615, %v63
  %v8617 = vpop.permute.xlu0 %8616
  %8619 = vset.pattern.permute.xlu0 10
  %8620 = vperm.xlu0 %8619, %v64
  %v8621 = vpop.permute.xlu0 %8620
  %8623 = vset.pattern.permute.xlu0 10
  %8624 = vperm.xlu0 %8623, %v65
  %v8625 = vpop.permute.xlu0 %8624
  %8627 = vset.pattern.permute.xlu0 10
  %8628 = vperm.xlu0 %8627, %v66
  %v8629 = vpop.permute.xlu0 %8628
  %8631 = vset.pattern.permute.xlu0 10
  %8632 = vperm.xlu0 %8631, %v67
  %v8633 = vpop.permute.xlu0 %8632
  %8635 = vset.pattern.permute.xlu0 10
  %8636 = vperm.xlu0 %8635, %v68
  %v8637 = vpop.permute.xlu0 %8636
  %8639 = vset.pattern.permute.xlu0 10
  %8640 = vperm.xlu0 %8639, %v69
  %v8641 = vpop.permute.xlu0 %8640
  %8643 = vset.pattern.permute.xlu0 10
  %8644 = vperm.xlu0 %8643, %v70
  %v8645 = vpop.permute.xlu0 %8644
  %v8647 = vmul.f32 %v8617, %v2440
  %v8648 = vmul.f32 %v8621, %v2444
  %v8649 = vmul.f32 %v8625, %v2450
  %v8650 = vmul.f32 %v8629, %v2454
  %v8651 = vmul.f32 %v8633, %v2460
  %v8652 = vmul.f32 %v8637, %v2464
  %v8653 = vmul.f32 %v8641, %v2470
  %v8654 = vmul.f32 %v8645, %v2474
  %v8655 = vadd.f32 %v8607, %v8647
  %v8656 = vadd.f32 %v8608, %v8648
  %v8657 = vadd.f32 %v8609, %v8649
  %v8658 = vadd.f32 %v8610, %v8650
  %v8659 = vadd.f32 %v8611, %v8651
  %v8660 = vadd.f32 %v8612, %v8652
  %v8661 = vadd.f32 %v8613, %v8653
  %v8662 = vadd.f32 %v8614, %v8654
  %8663 = vset.pattern.permute.xlu0 11
  %8664 = vperm.xlu0 %8663, %v63
  %v8665 = vpop.permute.xlu0 %8664
  %8667 = vset.pattern.permute.xlu0 11
  %8668 = vperm.xlu0 %8667, %v64
  %v8669 = vpop.permute.xlu0 %8668
  %8671 = vset.pattern.permute.xlu0 11
  %8672 = vperm.xlu0 %8671, %v65
  %v8673 = vpop.permute.xlu0 %8672
  %8675 = vset.pattern.permute.xlu0 11
  %8676 = vperm.xlu0 %8675, %v66
  %v8677 = vpop.permute.xlu0 %8676
  %8679 = vset.pattern.permute.xlu0 11
  %8680 = vperm.xlu0 %8679, %v67
  %v8681 = vpop.permute.xlu0 %8680
  %8683 = vset.pattern.permute.xlu0 11
  %8684 = vperm.xlu0 %8683, %v68
  %v8685 = vpop.permute.xlu0 %8684
  %8687 = vset.pattern.permute.xlu0 11
  %8688 = vperm.xlu0 %8687, %v69
  %v8689 = vpop.permute.xlu0 %8688
  %8691 = vset.pattern.permute.xlu0 11
  %8692 = vperm.xlu0 %8691, %v70
  %v8693 = vpop.permute.xlu0 %8692
  %v8695 = vmul.f32 %v8665, %v2442
  %v8696 = vmul.f32 %v8669, %v2446
  %v8697 = vmul.f32 %v8673, %v2452
  %v8698 = vmul.f32 %v8677, %v2456
  %v8699 = vmul.f32 %v8681, %v2462
  %v8700 = vmul.f32 %v8685, %v2466
  %v8701 = vmul.f32 %v8689, %v2472
  %v8702 = vmul.f32 %v8693, %v2476
  %v8703 = vadd.f32 %v8655, %v8695
  %v8704 = vadd.f32 %v8656, %v8696
  %v8705 = vadd.f32 %v8657, %v8697
  %v8706 = vadd.f32 %v8658, %v8698
  %v8707 = vadd.f32 %v8659, %v8699
  %v8708 = vadd.f32 %v8660, %v8700
  %v8709 = vadd.f32 %v8661, %v8701
  %v8710 = vadd.f32 %v8662, %v8702
  %8711 = vset.pattern.permute.xlu0 12
  %8712 = vperm.xlu0 %8711, %v63
  %v8713 = vpop.permute.xlu0 %8712
  %8715 = vset.pattern.permute.xlu0 12
  %8716 = vperm.xlu0 %8715, %v64
  %v8717 = vpop.permute.xlu0 %8716
  %8719 = vset.pattern.permute.xlu0 12
  %8720 = vperm.xlu0 %8719, %v65
  %v8721 = vpop.permute.xlu0 %8720
  %8723 = vset.pattern.permute.xlu0 12
  %8724 = vperm.xlu0 %8723, %v66
  %v8725 = vpop.permute.xlu0 %8724
  %8727 = vset.pattern.permute.xlu0 12
  %8728 = vperm.xlu0 %8727, %v67
  %v8729 = vpop.permute.xlu0 %8728
  %8731 = vset.pattern.permute.xlu0 12
  %8732 = vperm.xlu0 %8731, %v68
  %v8733 = vpop.permute.xlu0 %8732
  %8735 = vset.pattern.permute.xlu0 12
  %8736 = vperm.xlu0 %8735, %v69
  %v8737 = vpop.permute.xlu0 %8736
  %8739 = vset.pattern.permute.xlu0 12
  %8740 = vperm.xlu0 %8739, %v70
  %v8741 = vpop.permute.xlu0 %8740
  %v8743 = vmul.f32 %v8713, %v2793
  %v8744 = vmul.f32 %v8717, %v2797
  %v8745 = vmul.f32 %v8721, %v2803
  %v8746 = vmul.f32 %v8725, %v2807
  %v8747 = vmul.f32 %v8729, %v2813
  %v8748 = vmul.f32 %v8733, %v2817
  %v8749 = vmul.f32 %v8737, %v2823
  %v8750 = vmul.f32 %v8741, %v2827
  %v8751 = vadd.f32 %v8703, %v8743
  %v8752 = vadd.f32 %v8704, %v8744
  %v8753 = vadd.f32 %v8705, %v8745
  %v8754 = vadd.f32 %v8706, %v8746
  %v8755 = vadd.f32 %v8707, %v8747
  %v8756 = vadd.f32 %v8708, %v8748
  %v8757 = vadd.f32 %v8709, %v8749
  %v8758 = vadd.f32 %v8710, %v8750
  %8759 = vset.pattern.permute.xlu0 13
  %8760 = vperm.xlu0 %8759, %v63
  %v8761 = vpop.permute.xlu0 %8760
  %8763 = vset.pattern.permute.xlu0 13
  %8764 = vperm.xlu0 %8763, %v64
  %v8765 = vpop.permute.xlu0 %8764
  %8767 = vset.pattern.permute.xlu0 13
  %8768 = vperm.xlu0 %8767, %v65
  %v8769 = vpop.permute.xlu0 %8768
  %8771 = vset.pattern.permute.xlu0 13
  %8772 = vperm.xlu0 %8771, %v66
  %v8773 = vpop.permute.xlu0 %8772
  %8775 = vset.pattern.permute.xlu0 13
  %8776 = vperm.xlu0 %8775, %v67
  %v8777 = vpop.permute.xlu0 %8776
  %8779 = vset.pattern.permute.xlu0 13
  %8780 = vperm.xlu0 %8779, %v68
  %v8781 = vpop.permute.xlu0 %8780
  %8783 = vset.pattern.permute.xlu0 13
  %8784 = vperm.xlu0 %8783, %v69
  %v8785 = vpop.permute.xlu0 %8784
  %8787 = vset.pattern.permute.xlu0 13
  %8788 = vperm.xlu0 %8787, %v70
  %v8789 = vpop.permute.xlu0 %8788
  %v8791 = vmul.f32 %v8761, %v2795
  %v8792 = vmul.f32 %v8765, %v2799
  %v8793 = vmul.f32 %v8769, %v2805
  %v8794 = vmul.f32 %v8773, %v2809
  %v8795 = vmul.f32 %v8777, %v2815
  %v8796 = vmul.f32 %v8781, %v2819
  %v8797 = vmul.f32 %v8785, %v2825
  %v8798 = vmul.f32 %v8789, %v2829
  %v8799 = vadd.f32 %v8751, %v8791
  %v8800 = vadd.f32 %v8752, %v8792
  %v8801 = vadd.f32 %v8753, %v8793
  %v8802 = vadd.f32 %v8754, %v8794
  %v8803 = vadd.f32 %v8755, %v8795
  %v8804 = vadd.f32 %v8756, %v8796
  %v8805 = vadd.f32 %v8757, %v8797
  %v8806 = vadd.f32 %v8758, %v8798
  %8807 = vset.pattern.permute.xlu0 14
  %8808 = vperm.xlu0 %8807, %v63
  %v8809 = vpop.permute.xlu0 %8808
  %8811 = vset.pattern.permute.xlu0 14
  %8812 = vperm.xlu0 %8811, %v64
  %v8813 = vpop.permute.xlu0 %8812
  %8815 = vset.pattern.permute.xlu0 14
  %8816 = vperm.xlu0 %8815, %v65
  %v8817 = vpop.permute.xlu0 %8816
  %8819 = vset.pattern.permute.xlu0 14
  %8820 = vperm.xlu0 %8819, %v66
  %v8821 = vpop.permute.xlu0 %8820
  %8823 = vset.pattern.permute.xlu0 14
  %8824 = vperm.xlu0 %8823, %v67
  %v8825 = vpop.permute.xlu0 %8824
  %8827 = vset.pattern.permute.xlu0 14
  %8828 = vperm.xlu0 %8827, %v68
  %v8829 = vpop.permute.xlu0 %8828
  %8831 = vset.pattern.permute.xlu0 14
  %8832 = vperm.xlu0 %8831, %v69
  %v8833 = vpop.permute.xlu0 %8832
  %8835 = vset.pattern.permute.xlu0 14
  %8836 = vperm.xlu0 %8835, %v70
  %v8837 = vpop.permute.xlu0 %8836
  %v8839 = vmul.f32 %v8809, %v3146
  %v8840 = vmul.f32 %v8813, %v3150
  %v8841 = vmul.f32 %v8817, %v3156
  %v8842 = vmul.f32 %v8821, %v3160
  %v8843 = vmul.f32 %v8825, %v3166
  %v8844 = vmul.f32 %v8829, %v3170
  %v8845 = vmul.f32 %v8833, %v3176
  %v8846 = vmul.f32 %v8837, %v3180
  %v8847 = vadd.f32 %v8799, %v8839
  %v8848 = vadd.f32 %v8800, %v8840
  %v8849 = vadd.f32 %v8801, %v8841
  %v8850 = vadd.f32 %v8802, %v8842
  %v8851 = vadd.f32 %v8803, %v8843
  %v8852 = vadd.f32 %v8804, %v8844
  %v8853 = vadd.f32 %v8805, %v8845
  %v8854 = vadd.f32 %v8806, %v8846
  %8855 = vset.pattern.permute.xlu0 15
  %8856 = vperm.xlu0 %8855, %v63
  %v8857 = vpop.permute.xlu0 %8856
  %8859 = vset.pattern.permute.xlu0 15
  %8860 = vperm.xlu0 %8859, %v64
  %v8861 = vpop.permute.xlu0 %8860
  %8863 = vset.pattern.permute.xlu0 15
  %8864 = vperm.xlu0 %8863, %v65
  %v8865 = vpop.permute.xlu0 %8864
  %8867 = vset.pattern.permute.xlu0 15
  %8868 = vperm.xlu0 %8867, %v66
  %v8869 = vpop.permute.xlu0 %8868
  %8871 = vset.pattern.permute.xlu0 15
  %8872 = vperm.xlu0 %8871, %v67
  %v8873 = vpop.permute.xlu0 %8872
  %8875 = vset.pattern.permute.xlu0 15
  %8876 = vperm.xlu0 %8875, %v68
  %v8877 = vpop.permute.xlu0 %8876
  %8879 = vset.pattern.permute.xlu0 15
  %8880 = vperm.xlu0 %8879, %v69
  %v8881 = vpop.permute.xlu0 %8880
  %8883 = vset.pattern.permute.xlu0 15
  %8884 = vperm.xlu0 %8883, %v70
  %v8885 = vpop.permute.xlu0 %8884
  %v8887 = vmul.f32 %v8857, %v3148
  %v8888 = vmul.f32 %v8861, %v3152
  %v8889 = vmul.f32 %v8865, %v3158
  %v8890 = vmul.f32 %v8869, %v3162
  %v8891 = vmul.f32 %v8873, %v3168
  %v8892 = vmul.f32 %v8877, %v3172
  %v8893 = vmul.f32 %v8881, %v3178
  %v8894 = vmul.f32 %v8885, %v3182
  %v8895 = vadd.f32 %v8847, %v8887
  %v8896 = vadd.f32 %v8848, %v8888
  %v8897 = vadd.f32 %v8849, %v8889
  %v8898 = vadd.f32 %v8850, %v8890
  %v8899 = vadd.f32 %v8851, %v8891
  %v8900 = vadd.f32 %v8852, %v8892
  %v8901 = vadd.f32 %v8853, %v8893
  %v8902 = vadd.f32 %v8854, %v8894
  %v8903 = vpack.c.bf16 %v8896, %v8895
  %v8904 = vpack.c.bf16 %v8898, %v8897
  %v8905 = vpack.c.bf16 %v8900, %v8899
  %v8906 = vpack.c.bf16 %v8902, %v8901
  %v8911 = vunpack.c.l.b16 %v8903
  %v8912 = vunpack.c.h.b16 %v8903
  %v8913 = vunpack.c.l.b16 %v8904
  %v8914 = vunpack.c.h.b16 %v8904
  %v8915 = vunpack.c.l.b16 %v8905
  %v8916 = vunpack.c.h.b16 %v8905
  %v8917 = vunpack.c.l.b16 %v8906
  %v8918 = vunpack.c.h.b16 %v8906
  %v8919 = vpack.c.b16 %v8911, %v8911
  %v8920 = vpack.c.b16 %v8912, %v8912
  %v8921 = vpack.c.b16 %v8913, %v8913
  %v8922 = vpack.c.b16 %v8914, %v8914
  %v8923 = vpack.c.b16 %v8915, %v8915
  %v8924 = vpack.c.b16 %v8916, %v8916
  %v8925 = vpack.c.b16 %v8917, %v8917
  %v8926 = vpack.c.b16 %v8918, %v8918
  %8935 = vst [vmem:[%s3 + $0xc0] sm:$0xf] %v8919
  %8936 = vst [vmem:[%s3 + $0xc4] sm:$0xf] %v8920
  %8937 = vst [vmem:[%s3 + $0xc8] sm:$0xf] %v8921
  %8938 = vst [vmem:[%s3 + $0xcc] sm:$0xf] %v8922
  %8939 = vst [vmem:[%s3 + $0xd0] sm:$0xf] %v8923
  %8940 = vst [vmem:[%s3 + $0xd4] sm:$0xf] %v8924
  %8941 = vst [vmem:[%s3 + $0xd8] sm:$0xf] %v8925
  %8942 = vst [vmem:[%s3 + $0xdc] sm:$0xf] %v8926
  %8944 = vset.pattern.permute.xlu0 0
  %8945 = vperm.xlu0 %8944, %v71
  %v8946 = vpop.permute.xlu0 %8945
  %8949 = vset.pattern.permute.xlu0 0
  %8950 = vperm.xlu0 %8949, %v72
  %v8951 = vpop.permute.xlu0 %8950
  %8954 = vset.pattern.permute.xlu0 0
  %8955 = vperm.xlu0 %8954, %v73
  %v8956 = vpop.permute.xlu0 %8955
  %8959 = vset.pattern.permute.xlu0 0
  %8960 = vperm.xlu0 %8959, %v74
  %v8961 = vpop.permute.xlu0 %8960
  %8964 = vset.pattern.permute.xlu0 0
  %8965 = vperm.xlu0 %8964, %v75
  %v8966 = vpop.permute.xlu0 %8965
  %8969 = vset.pattern.permute.xlu0 0
  %8970 = vperm.xlu0 %8969, %v76
  %v8971 = vpop.permute.xlu0 %8970
  %8974 = vset.pattern.permute.xlu0 0
  %8975 = vperm.xlu0 %8974, %v77
  %v8976 = vpop.permute.xlu0 %8975
  %8979 = vset.pattern.permute.xlu0 0
  %8980 = vperm.xlu0 %8979, %v78
  %v8981 = vpop.permute.xlu0 %8980
  %v8983 = vmul.f32 %v8946, %v715
  %v8984 = vmul.f32 %v8951, %v719
  %v8985 = vmul.f32 %v8956, %v725
  %v8986 = vmul.f32 %v8961, %v729
  %v8987 = vmul.f32 %v8966, %v735
  %v8988 = vmul.f32 %v8971, %v739
  %v8989 = vmul.f32 %v8976, %v745
  %v8990 = vmul.f32 %v8981, %v749
  %v8991 = vadd.f32 %v3229, %v8983
  %v8992 = vadd.f32 %v3229, %v8984
  %v8993 = vadd.f32 %v3229, %v8985
  %v8994 = vadd.f32 %v3229, %v8986
  %v8995 = vadd.f32 %v3229, %v8987
  %v8996 = vadd.f32 %v3229, %v8988
  %v8997 = vadd.f32 %v3229, %v8989
  %v8998 = vadd.f32 %v3229, %v8990
  %8999 = vset.pattern.permute.xlu0 1
  %9000 = vperm.xlu0 %8999, %v71
  %v9001 = vpop.permute.xlu0 %9000
  %9003 = vset.pattern.permute.xlu0 1
  %9004 = vperm.xlu0 %9003, %v72
  %v9005 = vpop.permute.xlu0 %9004
  %9007 = vset.pattern.permute.xlu0 1
  %9008 = vperm.xlu0 %9007, %v73
  %v9009 = vpop.permute.xlu0 %9008
  %9011 = vset.pattern.permute.xlu0 1
  %9012 = vperm.xlu0 %9011, %v74
  %v9013 = vpop.permute.xlu0 %9012
  %9015 = vset.pattern.permute.xlu0 1
  %9016 = vperm.xlu0 %9015, %v75
  %v9017 = vpop.permute.xlu0 %9016
  %9019 = vset.pattern.permute.xlu0 1
  %9020 = vperm.xlu0 %9019, %v76
  %v9021 = vpop.permute.xlu0 %9020
  %9023 = vset.pattern.permute.xlu0 1
  %9024 = vperm.xlu0 %9023, %v77
  %v9025 = vpop.permute.xlu0 %9024
  %9027 = vset.pattern.permute.xlu0 1
  %9028 = vperm.xlu0 %9027, %v78
  %v9029 = vpop.permute.xlu0 %9028
  %v9031 = vmul.f32 %v9001, %v717
  %v9032 = vmul.f32 %v9005, %v721
  %v9033 = vmul.f32 %v9009, %v727
  %v9034 = vmul.f32 %v9013, %v731
  %v9035 = vmul.f32 %v9017, %v737
  %v9036 = vmul.f32 %v9021, %v741
  %v9037 = vmul.f32 %v9025, %v747
  %v9038 = vmul.f32 %v9029, %v751
  %v9039 = vadd.f32 %v8991, %v9031
  %v9040 = vadd.f32 %v8992, %v9032
  %v9041 = vadd.f32 %v8993, %v9033
  %v9042 = vadd.f32 %v8994, %v9034
  %v9043 = vadd.f32 %v8995, %v9035
  %v9044 = vadd.f32 %v8996, %v9036
  %v9045 = vadd.f32 %v8997, %v9037
  %v9046 = vadd.f32 %v8998, %v9038
  %9047 = vset.pattern.permute.xlu0 2
  %9048 = vperm.xlu0 %9047, %v71
  %v9049 = vpop.permute.xlu0 %9048
  %9051 = vset.pattern.permute.xlu0 2
  %9052 = vperm.xlu0 %9051, %v72
  %v9053 = vpop.permute.xlu0 %9052
  %9055 = vset.pattern.permute.xlu0 2
  %9056 = vperm.xlu0 %9055, %v73
  %v9057 = vpop.permute.xlu0 %9056
  %9059 = vset.pattern.permute.xlu0 2
  %9060 = vperm.xlu0 %9059, %v74
  %v9061 = vpop.permute.xlu0 %9060
  %9063 = vset.pattern.permute.xlu0 2
  %9064 = vperm.xlu0 %9063, %v75
  %v9065 = vpop.permute.xlu0 %9064
  %9067 = vset.pattern.permute.xlu0 2
  %9068 = vperm.xlu0 %9067, %v76
  %v9069 = vpop.permute.xlu0 %9068
  %9071 = vset.pattern.permute.xlu0 2
  %9072 = vperm.xlu0 %9071, %v77
  %v9073 = vpop.permute.xlu0 %9072
  %9075 = vset.pattern.permute.xlu0 2
  %9076 = vperm.xlu0 %9075, %v78
  %v9077 = vpop.permute.xlu0 %9076
  %v9079 = vmul.f32 %v9049, %v1068
  %v9080 = vmul.f32 %v9053, %v1072
  %v9081 = vmul.f32 %v9057, %v1078
  %v9082 = vmul.f32 %v9061, %v1082
  %v9083 = vmul.f32 %v9065, %v1088
  %v9084 = vmul.f32 %v9069, %v1092
  %v9085 = vmul.f32 %v9073, %v1098
  %v9086 = vmul.f32 %v9077, %v1102
  %v9087 = vadd.f32 %v9039, %v9079
  %v9088 = vadd.f32 %v9040, %v9080
  %v9089 = vadd.f32 %v9041, %v9081
  %v9090 = vadd.f32 %v9042, %v9082
  %v9091 = vadd.f32 %v9043, %v9083
  %v9092 = vadd.f32 %v9044, %v9084
  %v9093 = vadd.f32 %v9045, %v9085
  %v9094 = vadd.f32 %v9046, %v9086
  %9095 = vset.pattern.permute.xlu0 3
  %9096 = vperm.xlu0 %9095, %v71
  %v9097 = vpop.permute.xlu0 %9096
  %9099 = vset.pattern.permute.xlu0 3
  %9100 = vperm.xlu0 %9099, %v72
  %v9101 = vpop.permute.xlu0 %9100
  %9103 = vset.pattern.permute.xlu0 3
  %9104 = vperm.xlu0 %9103, %v73
  %v9105 = vpop.permute.xlu0 %9104
  %9107 = vset.pattern.permute.xlu0 3
  %9108 = vperm.xlu0 %9107, %v74
  %v9109 = vpop.permute.xlu0 %9108
  %9111 = vset.pattern.permute.xlu0 3
  %9112 = vperm.xlu0 %9111, %v75
  %v9113 = vpop.permute.xlu0 %9112
  %9115 = vset.pattern.permute.xlu0 3
  %9116 = vperm.xlu0 %9115, %v76
  %v9117 = vpop.permute.xlu0 %9116
  %9119 = vset.pattern.permute.xlu0 3
  %9120 = vperm.xlu0 %9119, %v77
  %v9121 = vpop.permute.xlu0 %9120
  %9123 = vset.pattern.permute.xlu0 3
  %9124 = vperm.xlu0 %9123, %v78
  %v9125 = vpop.permute.xlu0 %9124
  %v9127 = vmul.f32 %v9097, %v1070
  %v9128 = vmul.f32 %v9101, %v1074
  %v9129 = vmul.f32 %v9105, %v1080
  %v9130 = vmul.f32 %v9109, %v1084
  %v9131 = vmul.f32 %v9113, %v1090
  %v9132 = vmul.f32 %v9117, %v1094
  %v9133 = vmul.f32 %v9121, %v1100
  %v9134 = vmul.f32 %v9125, %v1104
  %v9135 = vadd.f32 %v9087, %v9127
  %v9136 = vadd.f32 %v9088, %v9128
  %v9137 = vadd.f32 %v9089, %v9129
  %v9138 = vadd.f32 %v9090, %v9130
  %v9139 = vadd.f32 %v9091, %v9131
  %v9140 = vadd.f32 %v9092, %v9132
  %v9141 = vadd.f32 %v9093, %v9133
  %v9142 = vadd.f32 %v9094, %v9134
  %9143 = vset.pattern.permute.xlu0 4
  %9144 = vperm.xlu0 %9143, %v71
  %v9145 = vpop.permute.xlu0 %9144
  %9147 = vset.pattern.permute.xlu0 4
  %9148 = vperm.xlu0 %9147, %v72
  %v9149 = vpop.permute.xlu0 %9148
  %9151 = vset.pattern.permute.xlu0 4
  %9152 = vperm.xlu0 %9151, %v73
  %v9153 = vpop.permute.xlu0 %9152
  %9155 = vset.pattern.permute.xlu0 4
  %9156 = vperm.xlu0 %9155, %v74
  %v9157 = vpop.permute.xlu0 %9156
  %9159 = vset.pattern.permute.xlu0 4
  %9160 = vperm.xlu0 %9159, %v75
  %v9161 = vpop.permute.xlu0 %9160
  %9163 = vset.pattern.permute.xlu0 4
  %9164 = vperm.xlu0 %9163, %v76
  %v9165 = vpop.permute.xlu0 %9164
  %9167 = vset.pattern.permute.xlu0 4
  %9168 = vperm.xlu0 %9167, %v77
  %v9169 = vpop.permute.xlu0 %9168
  %9171 = vset.pattern.permute.xlu0 4
  %9172 = vperm.xlu0 %9171, %v78
  %v9173 = vpop.permute.xlu0 %9172
  %v9175 = vmul.f32 %v9145, %v1421
  %v9176 = vmul.f32 %v9149, %v1425
  %v9177 = vmul.f32 %v9153, %v1431
  %v9178 = vmul.f32 %v9157, %v1435
  %v9179 = vmul.f32 %v9161, %v1441
  %v9180 = vmul.f32 %v9165, %v1445
  %v9181 = vmul.f32 %v9169, %v1451
  %v9182 = vmul.f32 %v9173, %v1455
  %v9183 = vadd.f32 %v9135, %v9175
  %v9184 = vadd.f32 %v9136, %v9176
  %v9185 = vadd.f32 %v9137, %v9177
  %v9186 = vadd.f32 %v9138, %v9178
  %v9187 = vadd.f32 %v9139, %v9179
  %v9188 = vadd.f32 %v9140, %v9180
  %v9189 = vadd.f32 %v9141, %v9181
  %v9190 = vadd.f32 %v9142, %v9182
  %9191 = vset.pattern.permute.xlu0 5
  %9192 = vperm.xlu0 %9191, %v71
  %v9193 = vpop.permute.xlu0 %9192
  %9195 = vset.pattern.permute.xlu0 5
  %9196 = vperm.xlu0 %9195, %v72
  %v9197 = vpop.permute.xlu0 %9196
  %9199 = vset.pattern.permute.xlu0 5
  %9200 = vperm.xlu0 %9199, %v73
  %v9201 = vpop.permute.xlu0 %9200
  %9203 = vset.pattern.permute.xlu0 5
  %9204 = vperm.xlu0 %9203, %v74
  %v9205 = vpop.permute.xlu0 %9204
  %9207 = vset.pattern.permute.xlu0 5
  %9208 = vperm.xlu0 %9207, %v75
  %v9209 = vpop.permute.xlu0 %9208
  %9211 = vset.pattern.permute.xlu0 5
  %9212 = vperm.xlu0 %9211, %v76
  %v9213 = vpop.permute.xlu0 %9212
  %9215 = vset.pattern.permute.xlu0 5
  %9216 = vperm.xlu0 %9215, %v77
  %v9217 = vpop.permute.xlu0 %9216
  %9219 = vset.pattern.permute.xlu0 5
  %9220 = vperm.xlu0 %9219, %v78
  %v9221 = vpop.permute.xlu0 %9220
  %v9223 = vmul.f32 %v9193, %v1423
  %v9224 = vmul.f32 %v9197, %v1427
  %v9225 = vmul.f32 %v9201, %v1433
  %v9226 = vmul.f32 %v9205, %v1437
  %v9227 = vmul.f32 %v9209, %v1443
  %v9228 = vmul.f32 %v9213, %v1447
  %v9229 = vmul.f32 %v9217, %v1453
  %v9230 = vmul.f32 %v9221, %v1457
  %v9231 = vadd.f32 %v9183, %v9223
  %v9232 = vadd.f32 %v9184, %v9224
  %v9233 = vadd.f32 %v9185, %v9225
  %v9234 = vadd.f32 %v9186, %v9226
  %v9235 = vadd.f32 %v9187, %v9227
  %v9236 = vadd.f32 %v9188, %v9228
  %v9237 = vadd.f32 %v9189, %v9229
  %v9238 = vadd.f32 %v9190, %v9230
  %9239 = vset.pattern.permute.xlu0 6
  %9240 = vperm.xlu0 %9239, %v71
  %v9241 = vpop.permute.xlu0 %9240
  %9243 = vset.pattern.permute.xlu0 6
  %9244 = vperm.xlu0 %9243, %v72
  %v9245 = vpop.permute.xlu0 %9244
  %9247 = vset.pattern.permute.xlu0 6
  %9248 = vperm.xlu0 %9247, %v73
  %v9249 = vpop.permute.xlu0 %9248
  %9251 = vset.pattern.permute.xlu0 6
  %9252 = vperm.xlu0 %9251, %v74
  %v9253 = vpop.permute.xlu0 %9252
  %9255 = vset.pattern.permute.xlu0 6
  %9256 = vperm.xlu0 %9255, %v75
  %v9257 = vpop.permute.xlu0 %9256
  %9259 = vset.pattern.permute.xlu0 6
  %9260 = vperm.xlu0 %9259, %v76
  %v9261 = vpop.permute.xlu0 %9260
  %9263 = vset.pattern.permute.xlu0 6
  %9264 = vperm.xlu0 %9263, %v77
  %v9265 = vpop.permute.xlu0 %9264
  %9267 = vset.pattern.permute.xlu0 6
  %9268 = vperm.xlu0 %9267, %v78
  %v9269 = vpop.permute.xlu0 %9268
  %v9271 = vmul.f32 %v9241, %v1774
  %v9272 = vmul.f32 %v9245, %v1778
  %v9273 = vmul.f32 %v9249, %v1784
  %v9274 = vmul.f32 %v9253, %v1788
  %v9275 = vmul.f32 %v9257, %v1794
  %v9276 = vmul.f32 %v9261, %v1798
  %v9277 = vmul.f32 %v9265, %v1804
  %v9278 = vmul.f32 %v9269, %v1808
  %v9279 = vadd.f32 %v9231, %v9271
  %v9280 = vadd.f32 %v9232, %v9272
  %v9281 = vadd.f32 %v9233, %v9273
  %v9282 = vadd.f32 %v9234, %v9274
  %v9283 = vadd.f32 %v9235, %v9275
  %v9284 = vadd.f32 %v9236, %v9276
  %v9285 = vadd.f32 %v9237, %v9277
  %v9286 = vadd.f32 %v9238, %v9278
  %9287 = vset.pattern.permute.xlu0 7
  %9288 = vperm.xlu0 %9287, %v71
  %v9289 = vpop.permute.xlu0 %9288
  %9291 = vset.pattern.permute.xlu0 7
  %9292 = vperm.xlu0 %9291, %v72
  %v9293 = vpop.permute.xlu0 %9292
  %9295 = vset.pattern.permute.xlu0 7
  %9296 = vperm.xlu0 %9295, %v73
  %v9297 = vpop.permute.xlu0 %9296
  %9299 = vset.pattern.permute.xlu0 7
  %9300 = vperm.xlu0 %9299, %v74
  %v9301 = vpop.permute.xlu0 %9300
  %9303 = vset.pattern.permute.xlu0 7
  %9304 = vperm.xlu0 %9303, %v75
  %v9305 = vpop.permute.xlu0 %9304
  %9307 = vset.pattern.permute.xlu0 7
  %9308 = vperm.xlu0 %9307, %v76
  %v9309 = vpop.permute.xlu0 %9308
  %9311 = vset.pattern.permute.xlu0 7
  %9312 = vperm.xlu0 %9311, %v77
  %v9313 = vpop.permute.xlu0 %9312
  %9315 = vset.pattern.permute.xlu0 7
  %9316 = vperm.xlu0 %9315, %v78
  %v9317 = vpop.permute.xlu0 %9316
  %v9319 = vmul.f32 %v9289, %v1776
  %v9320 = vmul.f32 %v9293, %v1780
  %v9321 = vmul.f32 %v9297, %v1786
  %v9322 = vmul.f32 %v9301, %v1790
  %v9323 = vmul.f32 %v9305, %v1796
  %v9324 = vmul.f32 %v9309, %v1800
  %v9325 = vmul.f32 %v9313, %v1806
  %v9326 = vmul.f32 %v9317, %v1810
  %v9327 = vadd.f32 %v9279, %v9319
  %v9328 = vadd.f32 %v9280, %v9320
  %v9329 = vadd.f32 %v9281, %v9321
  %v9330 = vadd.f32 %v9282, %v9322
  %v9331 = vadd.f32 %v9283, %v9323
  %v9332 = vadd.f32 %v9284, %v9324
  %v9333 = vadd.f32 %v9285, %v9325
  %v9334 = vadd.f32 %v9286, %v9326
  %9335 = vset.pattern.permute.xlu0 8
  %9336 = vperm.xlu0 %9335, %v71
  %v9337 = vpop.permute.xlu0 %9336
  %9339 = vset.pattern.permute.xlu0 8
  %9340 = vperm.xlu0 %9339, %v72
  %v9341 = vpop.permute.xlu0 %9340
  %9343 = vset.pattern.permute.xlu0 8
  %9344 = vperm.xlu0 %9343, %v73
  %v9345 = vpop.permute.xlu0 %9344
  %9347 = vset.pattern.permute.xlu0 8
  %9348 = vperm.xlu0 %9347, %v74
  %v9349 = vpop.permute.xlu0 %9348
  %9351 = vset.pattern.permute.xlu0 8
  %9352 = vperm.xlu0 %9351, %v75
  %v9353 = vpop.permute.xlu0 %9352
  %9355 = vset.pattern.permute.xlu0 8
  %9356 = vperm.xlu0 %9355, %v76
  %v9357 = vpop.permute.xlu0 %9356
  %9359 = vset.pattern.permute.xlu0 8
  %9360 = vperm.xlu0 %9359, %v77
  %v9361 = vpop.permute.xlu0 %9360
  %9363 = vset.pattern.permute.xlu0 8
  %9364 = vperm.xlu0 %9363, %v78
  %v9365 = vpop.permute.xlu0 %9364
  %v9367 = vmul.f32 %v9337, %v2127
  %v9368 = vmul.f32 %v9341, %v2131
  %v9369 = vmul.f32 %v9345, %v2137
  %v9370 = vmul.f32 %v9349, %v2141
  %v9371 = vmul.f32 %v9353, %v2147
  %v9372 = vmul.f32 %v9357, %v2151
  %v9373 = vmul.f32 %v9361, %v2157
  %v9374 = vmul.f32 %v9365, %v2161
  %v9375 = vadd.f32 %v9327, %v9367
  %v9376 = vadd.f32 %v9328, %v9368
  %v9377 = vadd.f32 %v9329, %v9369
  %v9378 = vadd.f32 %v9330, %v9370
  %v9379 = vadd.f32 %v9331, %v9371
  %v9380 = vadd.f32 %v9332, %v9372
  %v9381 = vadd.f32 %v9333, %v9373
  %v9382 = vadd.f32 %v9334, %v9374
  %9383 = vset.pattern.permute.xlu0 9
  %9384 = vperm.xlu0 %9383, %v71
  %v9385 = vpop.permute.xlu0 %9384
  %9387 = vset.pattern.permute.xlu0 9
  %9388 = vperm.xlu0 %9387, %v72
  %v9389 = vpop.permute.xlu0 %9388
  %9391 = vset.pattern.permute.xlu0 9
  %9392 = vperm.xlu0 %9391, %v73
  %v9393 = vpop.permute.xlu0 %9392
  %9395 = vset.pattern.permute.xlu0 9
  %9396 = vperm.xlu0 %9395, %v74
  %v9397 = vpop.permute.xlu0 %9396
  %9399 = vset.pattern.permute.xlu0 9
  %9400 = vperm.xlu0 %9399, %v75
  %v9401 = vpop.permute.xlu0 %9400
  %9403 = vset.pattern.permute.xlu0 9
  %9404 = vperm.xlu0 %9403, %v76
  %v9405 = vpop.permute.xlu0 %9404
  %9407 = vset.pattern.permute.xlu0 9
  %9408 = vperm.xlu0 %9407, %v77
  %v9409 = vpop.permute.xlu0 %9408
  %9411 = vset.pattern.permute.xlu0 9
  %9412 = vperm.xlu0 %9411, %v78
  %v9413 = vpop.permute.xlu0 %9412
  %v9415 = vmul.f32 %v9385, %v2129
  %v9416 = vmul.f32 %v9389, %v2133
  %v9417 = vmul.f32 %v9393, %v2139
  %v9418 = vmul.f32 %v9397, %v2143
  %v9419 = vmul.f32 %v9401, %v2149
  %v9420 = vmul.f32 %v9405, %v2153
  %v9421 = vmul.f32 %v9409, %v2159
  %v9422 = vmul.f32 %v9413, %v2163
  %v9423 = vadd.f32 %v9375, %v9415
  %v9424 = vadd.f32 %v9376, %v9416
  %v9425 = vadd.f32 %v9377, %v9417
  %v9426 = vadd.f32 %v9378, %v9418
  %v9427 = vadd.f32 %v9379, %v9419
  %v9428 = vadd.f32 %v9380, %v9420
  %v9429 = vadd.f32 %v9381, %v9421
  %v9430 = vadd.f32 %v9382, %v9422
  %9431 = vset.pattern.permute.xlu0 10
  %9432 = vperm.xlu0 %9431, %v71
  %v9433 = vpop.permute.xlu0 %9432
  %9435 = vset.pattern.permute.xlu0 10
  %9436 = vperm.xlu0 %9435, %v72
  %v9437 = vpop.permute.xlu0 %9436
  %9439 = vset.pattern.permute.xlu0 10
  %9440 = vperm.xlu0 %9439, %v73
  %v9441 = vpop.permute.xlu0 %9440
  %9443 = vset.pattern.permute.xlu0 10
  %9444 = vperm.xlu0 %9443, %v74
  %v9445 = vpop.permute.xlu0 %9444
  %9447 = vset.pattern.permute.xlu0 10
  %9448 = vperm.xlu0 %9447, %v75
  %v9449 = vpop.permute.xlu0 %9448
  %9451 = vset.pattern.permute.xlu0 10
  %9452 = vperm.xlu0 %9451, %v76
  %v9453 = vpop.permute.xlu0 %9452
  %9455 = vset.pattern.permute.xlu0 10
  %9456 = vperm.xlu0 %9455, %v77
  %v9457 = vpop.permute.xlu0 %9456
  %9459 = vset.pattern.permute.xlu0 10
  %9460 = vperm.xlu0 %9459, %v78
  %v9461 = vpop.permute.xlu0 %9460
  %v9463 = vmul.f32 %v9433, %v2480
  %v9464 = vmul.f32 %v9437, %v2484
  %v9465 = vmul.f32 %v9441, %v2490
  %v9466 = vmul.f32 %v9445, %v2494
  %v9467 = vmul.f32 %v9449, %v2500
  %v9468 = vmul.f32 %v9453, %v2504
  %v9469 = vmul.f32 %v9457, %v2510
  %v9470 = vmul.f32 %v9461, %v2514
  %v9471 = vadd.f32 %v9423, %v9463
  %v9472 = vadd.f32 %v9424, %v9464
  %v9473 = vadd.f32 %v9425, %v9465
  %v9474 = vadd.f32 %v9426, %v9466
  %v9475 = vadd.f32 %v9427, %v9467
  %v9476 = vadd.f32 %v9428, %v9468
  %v9477 = vadd.f32 %v9429, %v9469
  %v9478 = vadd.f32 %v9430, %v9470
  %9479 = vset.pattern.permute.xlu0 11
  %9480 = vperm.xlu0 %9479, %v71
  %v9481 = vpop.permute.xlu0 %9480
  %9483 = vset.pattern.permute.xlu0 11
  %9484 = vperm.xlu0 %9483, %v72
  %v9485 = vpop.permute.xlu0 %9484
  %9487 = vset.pattern.permute.xlu0 11
  %9488 = vperm.xlu0 %9487, %v73
  %v9489 = vpop.permute.xlu0 %9488
  %9491 = vset.pattern.permute.xlu0 11
  %9492 = vperm.xlu0 %9491, %v74
  %v9493 = vpop.permute.xlu0 %9492
  %9495 = vset.pattern.permute.xlu0 11
  %9496 = vperm.xlu0 %9495, %v75
  %v9497 = vpop.permute.xlu0 %9496
  %9499 = vset.pattern.permute.xlu0 11
  %9500 = vperm.xlu0 %9499, %v76
  %v9501 = vpop.permute.xlu0 %9500
  %9503 = vset.pattern.permute.xlu0 11
  %9504 = vperm.xlu0 %9503, %v77
  %v9505 = vpop.permute.xlu0 %9504
  %9507 = vset.pattern.permute.xlu0 11
  %9508 = vperm.xlu0 %9507, %v78
  %v9509 = vpop.permute.xlu0 %9508
  %v9511 = vmul.f32 %v9481, %v2482
  %v9512 = vmul.f32 %v9485, %v2486
  %v9513 = vmul.f32 %v9489, %v2492
  %v9514 = vmul.f32 %v9493, %v2496
  %v9515 = vmul.f32 %v9497, %v2502
  %v9516 = vmul.f32 %v9501, %v2506
  %v9517 = vmul.f32 %v9505, %v2512
  %v9518 = vmul.f32 %v9509, %v2516
  %v9519 = vadd.f32 %v9471, %v9511
  %v9520 = vadd.f32 %v9472, %v9512
  %v9521 = vadd.f32 %v9473, %v9513
  %v9522 = vadd.f32 %v9474, %v9514
  %v9523 = vadd.f32 %v9475, %v9515
  %v9524 = vadd.f32 %v9476, %v9516
  %v9525 = vadd.f32 %v9477, %v9517
  %v9526 = vadd.f32 %v9478, %v9518
  %9527 = vset.pattern.permute.xlu0 12
  %9528 = vperm.xlu0 %9527, %v71
  %v9529 = vpop.permute.xlu0 %9528
  %9531 = vset.pattern.permute.xlu0 12
  %9532 = vperm.xlu0 %9531, %v72
  %v9533 = vpop.permute.xlu0 %9532
  %9535 = vset.pattern.permute.xlu0 12
  %9536 = vperm.xlu0 %9535, %v73
  %v9537 = vpop.permute.xlu0 %9536
  %9539 = vset.pattern.permute.xlu0 12
  %9540 = vperm.xlu0 %9539, %v74
  %v9541 = vpop.permute.xlu0 %9540
  %9543 = vset.pattern.permute.xlu0 12
  %9544 = vperm.xlu0 %9543, %v75
  %v9545 = vpop.permute.xlu0 %9544
  %9547 = vset.pattern.permute.xlu0 12
  %9548 = vperm.xlu0 %9547, %v76
  %v9549 = vpop.permute.xlu0 %9548
  %9551 = vset.pattern.permute.xlu0 12
  %9552 = vperm.xlu0 %9551, %v77
  %v9553 = vpop.permute.xlu0 %9552
  %9555 = vset.pattern.permute.xlu0 12
  %9556 = vperm.xlu0 %9555, %v78
  %v9557 = vpop.permute.xlu0 %9556
  %v9559 = vmul.f32 %v9529, %v2833
  %v9560 = vmul.f32 %v9533, %v2837
  %v9561 = vmul.f32 %v9537, %v2843
  %v9562 = vmul.f32 %v9541, %v2847
  %v9563 = vmul.f32 %v9545, %v2853
  %v9564 = vmul.f32 %v9549, %v2857
  %v9565 = vmul.f32 %v9553, %v2863
  %v9566 = vmul.f32 %v9557, %v2867
  %v9567 = vadd.f32 %v9519, %v9559
  %v9568 = vadd.f32 %v9520, %v9560
  %v9569 = vadd.f32 %v9521, %v9561
  %v9570 = vadd.f32 %v9522, %v9562
  %v9571 = vadd.f32 %v9523, %v9563
  %v9572 = vadd.f32 %v9524, %v9564
  %v9573 = vadd.f32 %v9525, %v9565
  %v9574 = vadd.f32 %v9526, %v9566
  %9575 = vset.pattern.permute.xlu0 13
  %9576 = vperm.xlu0 %9575, %v71
  %v9577 = vpop.permute.xlu0 %9576
  %9579 = vset.pattern.permute.xlu0 13
  %9580 = vperm.xlu0 %9579, %v72
  %v9581 = vpop.permute.xlu0 %9580
  %9583 = vset.pattern.permute.xlu0 13
  %9584 = vperm.xlu0 %9583, %v73
  %v9585 = vpop.permute.xlu0 %9584
  %9587 = vset.pattern.permute.xlu0 13
  %9588 = vperm.xlu0 %9587, %v74
  %v9589 = vpop.permute.xlu0 %9588
  %9591 = vset.pattern.permute.xlu0 13
  %9592 = vperm.xlu0 %9591, %v75
  %v9593 = vpop.permute.xlu0 %9592
  %9595 = vset.pattern.permute.xlu0 13
  %9596 = vperm.xlu0 %9595, %v76
  %v9597 = vpop.permute.xlu0 %9596
  %9599 = vset.pattern.permute.xlu0 13
  %9600 = vperm.xlu0 %9599, %v77
  %v9601 = vpop.permute.xlu0 %9600
  %9603 = vset.pattern.permute.xlu0 13
  %9604 = vperm.xlu0 %9603, %v78
  %v9605 = vpop.permute.xlu0 %9604
  %v9607 = vmul.f32 %v9577, %v2835
  %v9608 = vmul.f32 %v9581, %v2839
  %v9609 = vmul.f32 %v9585, %v2845
  %v9610 = vmul.f32 %v9589, %v2849
  %v9611 = vmul.f32 %v9593, %v2855
  %v9612 = vmul.f32 %v9597, %v2859
  %v9613 = vmul.f32 %v9601, %v2865
  %v9614 = vmul.f32 %v9605, %v2869
  %v9615 = vadd.f32 %v9567, %v9607
  %v9616 = vadd.f32 %v9568, %v9608
  %v9617 = vadd.f32 %v9569, %v9609
  %v9618 = vadd.f32 %v9570, %v9610
  %v9619 = vadd.f32 %v9571, %v9611
  %v9620 = vadd.f32 %v9572, %v9612
  %v9621 = vadd.f32 %v9573, %v9613
  %v9622 = vadd.f32 %v9574, %v9614
  %9623 = vset.pattern.permute.xlu0 14
  %9624 = vperm.xlu0 %9623, %v71
  %v9625 = vpop.permute.xlu0 %9624
  %9627 = vset.pattern.permute.xlu0 14
  %9628 = vperm.xlu0 %9627, %v72
  %v9629 = vpop.permute.xlu0 %9628
  %9631 = vset.pattern.permute.xlu0 14
  %9632 = vperm.xlu0 %9631, %v73
  %v9633 = vpop.permute.xlu0 %9632
  %9635 = vset.pattern.permute.xlu0 14
  %9636 = vperm.xlu0 %9635, %v74
  %v9637 = vpop.permute.xlu0 %9636
  %9639 = vset.pattern.permute.xlu0 14
  %9640 = vperm.xlu0 %9639, %v75
  %v9641 = vpop.permute.xlu0 %9640
  %9643 = vset.pattern.permute.xlu0 14
  %9644 = vperm.xlu0 %9643, %v76
  %v9645 = vpop.permute.xlu0 %9644
  %9647 = vset.pattern.permute.xlu0 14
  %9648 = vperm.xlu0 %9647, %v77
  %v9649 = vpop.permute.xlu0 %9648
  %9651 = vset.pattern.permute.xlu0 14
  %9652 = vperm.xlu0 %9651, %v78
  %v9653 = vpop.permute.xlu0 %9652
  %v9655 = vmul.f32 %v9625, %v3186
  %v9656 = vmul.f32 %v9629, %v3190
  %v9657 = vmul.f32 %v9633, %v3196
  %v9658 = vmul.f32 %v9637, %v3200
  %v9659 = vmul.f32 %v9641, %v3206
  %v9660 = vmul.f32 %v9645, %v3210
  %v9661 = vmul.f32 %v9649, %v3216
  %v9662 = vmul.f32 %v9653, %v3220
  %v9663 = vadd.f32 %v9615, %v9655
  %v9664 = vadd.f32 %v9616, %v9656
  %v9665 = vadd.f32 %v9617, %v9657
  %v9666 = vadd.f32 %v9618, %v9658
  %v9667 = vadd.f32 %v9619, %v9659
  %v9668 = vadd.f32 %v9620, %v9660
  %v9669 = vadd.f32 %v9621, %v9661
  %v9670 = vadd.f32 %v9622, %v9662
  %9671 = vset.pattern.permute.xlu0 15
  %9672 = vperm.xlu0 %9671, %v71
  %v9673 = vpop.permute.xlu0 %9672
  %9675 = vset.pattern.permute.xlu0 15
  %9676 = vperm.xlu0 %9675, %v72
  %v9677 = vpop.permute.xlu0 %9676
  %9679 = vset.pattern.permute.xlu0 15
  %9680 = vperm.xlu0 %9679, %v73
  %v9681 = vpop.permute.xlu0 %9680
  %9683 = vset.pattern.permute.xlu0 15
  %9684 = vperm.xlu0 %9683, %v74
  %v9685 = vpop.permute.xlu0 %9684
  %9687 = vset.pattern.permute.xlu0 15
  %9688 = vperm.xlu0 %9687, %v75
  %v9689 = vpop.permute.xlu0 %9688
  %9691 = vset.pattern.permute.xlu0 15
  %9692 = vperm.xlu0 %9691, %v76
  %v9693 = vpop.permute.xlu0 %9692
  %9695 = vset.pattern.permute.xlu0 15
  %9696 = vperm.xlu0 %9695, %v77
  %v9697 = vpop.permute.xlu0 %9696
  %9699 = vset.pattern.permute.xlu0 15
  %9700 = vperm.xlu0 %9699, %v78
  %v9701 = vpop.permute.xlu0 %9700
  %v9703 = vmul.f32 %v9673, %v3188
  %v9704 = vmul.f32 %v9677, %v3192
  %v9705 = vmul.f32 %v9681, %v3198
  %v9706 = vmul.f32 %v9685, %v3202
  %v9707 = vmul.f32 %v9689, %v3208
  %v9708 = vmul.f32 %v9693, %v3212
  %v9709 = vmul.f32 %v9697, %v3218
  %v9710 = vmul.f32 %v9701, %v3222
  %v9711 = vadd.f32 %v9663, %v9703
  %v9712 = vadd.f32 %v9664, %v9704
  %v9713 = vadd.f32 %v9665, %v9705
  %v9714 = vadd.f32 %v9666, %v9706
  %v9715 = vadd.f32 %v9667, %v9707
  %v9716 = vadd.f32 %v9668, %v9708
  %v9717 = vadd.f32 %v9669, %v9709
  %v9718 = vadd.f32 %v9670, %v9710
  %v9719 = vpack.c.bf16 %v9712, %v9711
  %v9720 = vpack.c.bf16 %v9714, %v9713
  %v9721 = vpack.c.bf16 %v9716, %v9715
  %v9722 = vpack.c.bf16 %v9718, %v9717
  %v9727 = vunpack.c.l.b16 %v9719
  %v9728 = vunpack.c.h.b16 %v9719
  %v9729 = vunpack.c.l.b16 %v9720
  %v9730 = vunpack.c.h.b16 %v9720
  %v9731 = vunpack.c.l.b16 %v9721
  %v9732 = vunpack.c.h.b16 %v9721
  %v9733 = vunpack.c.l.b16 %v9722
  %v9734 = vunpack.c.h.b16 %v9722
  %v9735 = vpack.c.b16 %v9727, %v9727
  %v9736 = vpack.c.b16 %v9728, %v9728
  %v9737 = vpack.c.b16 %v9729, %v9729
  %v9738 = vpack.c.b16 %v9730, %v9730
  %v9739 = vpack.c.b16 %v9731, %v9731
  %v9740 = vpack.c.b16 %v9732, %v9732
  %v9741 = vpack.c.b16 %v9733, %v9733
  %v9742 = vpack.c.b16 %v9734, %v9734
  %9751 = vst [vmem:[%s3 + $0xe0] sm:$0xf] %v9735
  %9752 = vst [vmem:[%s3 + $0xe4] sm:$0xf] %v9736
  %9753 = vst [vmem:[%s3 + $0xe8] sm:$0xf] %v9737
  %9754 = vst [vmem:[%s3 + $0xec] sm:$0xf] %v9738
  %9755 = vst [vmem:[%s3 + $0xf0] sm:$0xf] %v9739
  %9756 = vst [vmem:[%s3 + $0xf4] sm:$0xf] %v9740
  %9757 = vst [vmem:[%s3 + $0xf8] sm:$0xf] %v9741
  %9758 = vst [vmem:[%s3 + $0xfc] sm:$0xf] %v9742
  // Predicated region
  $region14: #{qpr_forward.1} parent=0 // pred_check
    _
  $region15: #{qpr_forward.1} parent=0 // pred_check_branch
    %9760 = sbr.rel (0) target = $region17
  $region16: #{qpr_forward.1} parent=0 // pred_region
    _
  $region17: #{qpr_forward.1} parent=0 // pred_fallthru
    _
  // Predicated region
  $region18: #{qpr_forward.1} parent=0 // pred_check
    _
  $region19: #{qpr_forward.1} parent=0 // pred_check_branch
    %9762 = sbr.rel (0) target = $region21
  $region20: #{qpr_forward.1} parent=0 // pred_region
    _
  $region21: #{qpr_forward.1} parent=0 // pred_fallthru
    _

</llo_original>
